<compile_context>
chip_gen: v6e
topology: v6e:2x2x1
jax: 0.10.0
libtpu: 0.0.40
codegen_flags: <defaults>
</compile_context>

<pallas_src>
import functools

import jax
import jax.numpy as jnp
from jax import lax
from jax.experimental import pallas as pl
from jax.experimental.pallas import tpu as pltpu


def _fused_kernel(x_ref, w_ref, b_ref, o_ref, pad_a, pad_b, *, C, H, W):
    """Fused conv_first -> relu(conv1) -> conv2 + skip for one image.

    x_ref:  (1, C, H, W)        VMEM input block
    w_ref:  (3*C*C*9,)          SMEM, flattened OIHW weights for the 3 convs
    b_ref:  (3*C,)              SMEM, flattened biases for the 3 convs
    o_ref:  (1, C, H, W)        VMEM output block
    pad_a:  (C, H+2, W+2) f32   VMEM halo scratch (holds x, then relu(f1))
    pad_b:  (C, H+2, W+2) f32   VMEM halo scratch (holds f0; also read for the skip)
    """
    f32 = jnp.float32

    # ---- zero only the 1-px border ring of both halo buffers -------------------
    # Interiors are fully overwritten every stage, so the ring is all the padding
    # we need.  (Constants hoisted out of the Python loops: one broadcast each.)
    zrow = jnp.zeros((1, W + 2), f32)
    zcol = jnp.zeros((H + 2, 1), f32)
    for buf in (pad_a, pad_b):
        for c in range(C):
            buf[c, pl.ds(0, 1), :] = zrow
            buf[c, pl.ds(H + 1, 1), :] = zrow
            buf[c, :, pl.ds(0, 1)] = zcol
            buf[c, :, pl.ds(W + 1, 1)] = zcol

    def conv_stage(src_pad, stage):
        """3x3 'SAME' conv of all C channels, read from a zero-padded VMEM buffer.

        (ci, dy, dx) are the outer loops so every shifted (H, W) tap slice is loaded
        and shifted once and reused by all C output-channel accumulators.  Weights
        and biases come from SMEM as scalars -> scalar x (H, W)-vreg MACs on the VPU.
        """
        base_s = stage * C * C * 9
        accs = [None] * C
        for ci in range(C):
            for dy in range(3):
                for dx in range(3):
                    tap = src_pad[ci, pl.ds(dy, H), pl.ds(dx, W)]      # load once
                    for co in range(C):                                # reuse 4x
                        wv = w_ref[base_s + co * C * 9 + ci * 9 + dy * 3 + dx]
                        contrib = wv * tap
                        accs[co] = contrib if accs[co] is None else accs[co] + contrib
        return [accs[co] + b_ref[stage * C + co] for co in range(C)]

    # ---- stage 0: f0 = conv_first(x) --------------------------------------------
    for ci in range(C):
        pad_a[ci, pl.ds(1, H), pl.ds(1, W)] = x_ref[0, ci].astype(f32)
    f0 = conv_stage(pad_a, 0)
    for co in range(C):
        pad_b[co, pl.ds(1, H), pl.ds(1, W)] = f0[co]   # f0 stays here for the skip

    # ---- stage 1: f1 = relu(conv1(f0)) -------------------------------------------
    f1 = conv_stage(pad_b, 1)
    for co in range(C):
        pad_a[co, pl.ds(1, H), pl.ds(1, W)] = jnp.maximum(f1[co], 0.0)

    # ---- stage 2: out = conv2(f1) + f0 (skip read from pad_b interior) -----------
    out = conv_stage(pad_a, 2)
    for co in range(C):
        o_ref[0, co] = (out[co] + pad_b[co, pl.ds(1, H), pl.ds(1, W)]).astype(o_ref.dtype)


def _convrep3_params(key, num_feat, rep_scale):
    """rep_scale parallel Conv2d(num_feat, num_feat, 3) branches, collapsed (OIHW)."""
    kw, kb = jax.random.split(key)
    w_branches = 0.05 * jax.random.normal(
        kw, (rep_scale, num_feat, num_feat, 3, 3), jnp.float32)   # per-branch OIHW
    b_branches = 0.05 * jax.random.normal(
        kb, (rep_scale, num_feat), jnp.float32)
    return jnp.sum(w_branches, axis=0), jnp.sum(b_branches, axis=0)


def init_prepyramid_l1_params(key, num_feat, rep_scale=4):
    k0, k1, k2 = jax.random.split(key, 3)
    w0, b0 = _convrep3_params(k0, num_feat, rep_scale)            # conv_first
    w1, b1 = _convrep3_params(k1, num_feat, rep_scale)            # resblock.conv1
    w2, b2 = _convrep3_params(k2, num_feat, rep_scale)            # resblock.conv2
    return dict(w_first=w0, b_first=b0, w_res1=w1, b_res1=b1,
                w_res2=w2, b_res2=b2)


@jax.jit
def prepyramid_l1(x_nchw, params):
    """NCHW in / NCHW out (PyTorch convention). Single fused Pallas call."""
    N, C, H, W = x_nchw.shape
    # Flattened OIHW weights / biases for the 3 convs -> SMEM scalars in-kernel.
    w_flat = jnp.concatenate([params["w_first"].reshape(-1),
                              params["w_res1"].reshape(-1),
                              params["w_res2"].reshape(-1)]).astype(jnp.float32)
    b_flat = jnp.concatenate([params["b_first"], params["b_res1"],
                              params["b_res2"]]).astype(jnp.float32)

    kernel = functools.partial(_fused_kernel, C=C, H=H, W=W)
    return pl.pallas_call(
        kernel,
        out_shape=jax.ShapeDtypeStruct((N, C, H, W), jnp.float32),
        grid=(N,),                                         # one image per step
        in_specs=[
            pl.BlockSpec((1, C, H, W), lambda n: (n, 0, 0, 0)),
            pl.BlockSpec(memory_space=pltpu.MemorySpace.SMEM),   # weights
            pl.BlockSpec(memory_space=pltpu.MemorySpace.SMEM),   # biases
        ],
        out_specs=pl.BlockSpec((1, C, H, W), lambda n: (n, 0, 0, 0)),
        scratch_shapes=[
            pltpu.VMEM((C, H + 2, W + 2), jnp.float32),    # pad_a: x, then relu(f1)
            pltpu.VMEM((C, H + 2, W + 2), jnp.float32),    # pad_b: f0 (also the skip)
        ],
        compiler_params=pltpu.CompilerParams(
            dimension_semantics=("parallel",),             # shards batch on v7x 2-TC
            vmem_limit_bytes=32 * 1024 * 1024,             # explicit, v7x-safe
        ),
    )(x_nchw.astype(jnp.float32), w_flat, b_flat)


def _reference(x_nchw, params):
    """Pure-JAX reference (lax conv) for correctness checking."""
    dn = ("NCHW", "OIHW", "NCHW")

    def conv(z, w, b):
        y = lax.conv_general_dilated(z, w, (1, 1), "SAME", dimension_numbers=dn)
        return y + b.reshape(1, -1, 1, 1)

    x = x_nchw.astype(jnp.float32)
    f0 = conv(x, params["w_first"], params["b_first"])
    f1 = jnp.maximum(conv(f0, params["w_res1"], params["b_res1"]), 0.0)
    return conv(f1, params["w_res2"], params["b_res2"]) + f0


if __name__ == "__main__":
    key = jax.random.PRNGKey(0)
    kx, kp = jax.random.split(key)
    num_feat, rep_scale = 4, 4

    x = jax.random.normal(kx, (2, num_feat, 16, 16), jnp.float32)   # NCHW
    params = init_prepyramid_l1_params(kp, num_feat, rep_scale)

    out = prepyramid_l1(x, params)
    jax.block_until_ready(out)

    ref = _reference(x, params)
    assert out.shape == x.shape, (out.shape, x.shape)
    err = float(jnp.max(jnp.abs(out - ref)))
    assert err < 1e-4, err
    print("KERNEL_OK")
</pallas_src>

<mosaic_0001>
module attributes {stable_mosaic.version = 11 : i64} {
  func.func @_fused_kernel(%arg0: i32, %arg1: memref<1x4x16x16xf32, #tpu.memory_space<vmem>>, %arg2: memref<432xf32, #tpu.memory_space<smem>>, %arg3: memref<12xf32, #tpu.memory_space<smem>>, %arg4: memref<1x4x16x16xf32, #tpu.memory_space<vmem>>, %arg5: memref<4x18x18xf32, #tpu.memory_space<vmem>>, %arg6: memref<4x18x18xf32, #tpu.memory_space<vmem>>) attributes {dimension_semantics = [#tpu.dimension_semantics<parallel>], iteration_bounds = array<i64: 2>, scalar_prefetch = 0 : i64, scratch_operands = 2 : i64, tpu.core_type = #tpu.core_type<tc>, window_params = [{transform_indices = @transform_0, window_bounds = array<i64: 1, 4, 16, 16>}, {transform_indices = @transform_1, window_bounds = array<i64: 432>}, {transform_indices = @transform_2, window_bounds = array<i64: 12>}, {transform_indices = @transform_3, window_bounds = array<i64: 1, 4, 16, 16>}]} {
    %cst = arith.constant 0.000000e+00 : f32
    %0 = vector.broadcast %cst : f32 to vector<1x18xf32>
    %cst_0 = arith.constant 0.000000e+00 : f32
    %1 = vector.broadcast %cst_0 : f32 to vector<18x1xf32>
    %c0 = arith.constant 0 : index
    %c0_1 = arith.constant 0 : index
    %c0_2 = arith.constant 0 : index
    %2 = vector.load %arg5[%c0, %c0_1, %c0_2] : memref<4x18x18xf32, #tpu.memory_space<vmem>>, vector<1x1x18xf32>
    %3 = vector.shape_cast %2 : vector<1x1x18xf32> to vector<1x18xf32>
    %4 = vector.shape_cast %0 : vector<1x18xf32> to vector<1x1x18xf32>
    tpu.vector_store %arg5[%c0, %c0_1, %c0_2], %4 {strides = array<i32>} : memref<4x18x18xf32, #tpu.memory_space<vmem>>, vector<1x1x18xf32>,
    %c0_3 = arith.constant 0 : index
    %c17 = arith.constant 17 : index
    %c0_4 = arith.constant 0 : index
    %5 = vector.load %arg5[%c0_3, %c17, %c0_4] : memref<4x18x18xf32, #tpu.memory_space<vmem>>, vector<1x1x18xf32>
    %6 = vector.shape_cast %5 : vector<1x1x18xf32> to vector<1x18xf32>
    %7 = vector.shape_cast %0 : vector<1x18xf32> to vector<1x1x18xf32>
    tpu.vector_store %arg5[%c0_3, %c17, %c0_4], %7 {strides = array<i32>} : memref<4x18x18xf32, #tpu.memory_space<vmem>>, vector<1x1x18xf32>,
    %c0_5 = arith.constant 0 : index
    %c0_6 = arith.constant 0 : index
    %c0_7 = arith.constant 0 : index
    %8 = vector.load %arg5[%c0_5, %c0_6, %c0_7] : memref<4x18x18xf32, #tpu.memory_space<vmem>>, vector<1x18x1xf32>
    %9 = vector.shape_cast %8 : vector<1x18x1xf32> to vector<18x1xf32>
    %10 = vector.shape_cast %1 : vector<18x1xf32> to vector<1x18x1xf32>
    tpu.vector_store %arg5[%c0_5, %c0_6, %c0_7], %10 {strides = array<i32>} : memref<4x18x18xf32, #tpu.memory_space<vmem>>, vector<1x18x1xf32>,
    %c0_8 = arith.constant 0 : index
    %c0_9 = arith.constant 0 : index
    %c17_10 = arith.constant 17 : index
    %11 = vector.load %arg5[%c0_8, %c0_9, %c17_10] : memref<4x18x18xf32, #tpu.memory_space<vmem>>, vector<1x18x1xf32>
    %12 = vector.shape_cast %11 : vector<1x18x1xf32> to vector<18x1xf32>
    %13 = vector.shape_cast %1 : vector<18x1xf32> to vector<1x18x1xf32>
    tpu.vector_store %arg5[%c0_8, %c0_9, %c17_10], %13 {strides = array<i32>} : memref<4x18x18xf32, #tpu.memory_space<vmem>>, vector<1x18x1xf32>,
    %c1 = arith.constant 1 : index
    %c0_11 = arith.constant 0 : index
    %c0_12 = arith.constant 0 : index
    %14 = vector.load %arg5[%c1, %c0_11, %c0_12] : memref<4x18x18xf32, #tpu.memory_space<vmem>>, vector<1x1x18xf32>
    %15 = vector.shape_cast %14 : vector<1x1x18xf32> to vector<1x18xf32>
    %16 = vector.shape_cast %0 : vector<1x18xf32> to vector<1x1x18xf32>
    tpu.vector_store %arg5[%c1, %c0_11, %c0_12], %16 {strides = array<i32>} : memref<4x18x18xf32, #tpu.memory_space<vmem>>, vector<1x1x18xf32>,
    %c1_13 = arith.constant 1 : index
    %c17_14 = arith.constant 17 : index
    %c0_15 = arith.constant 0 : index
    %17 = vector.load %arg5[%c1_13, %c17_14, %c0_15] : memref<4x18x18xf32, #tpu.memory_space<vmem>>, vector<1x1x18xf32>
    %18 = vector.shape_cast %17 : vector<1x1x18xf32> to vector<1x18xf32>
    %19 = vector.shape_cast %0 : vector<1x18xf32> to vector<1x1x18xf32>
    tpu.vector_store %arg5[%c1_13, %c17_14, %c0_15], %19 {strides = array<i32>} : memref<4x18x18xf32, #tpu.memory_space<vmem>>, vector<1x1x18xf32>,
    %c1_16 = arith.constant 1 : index
    %c0_17 = arith.constant 0 : index
    %c0_18 = arith.constant 0 : index
    %20 = vector.load %arg5[%c1_16, %c0_17, %c0_18] : memref<4x18x18xf32, #tpu.memory_space<vmem>>, vector<1x18x1xf32>
    %21 = vector.shape_cast %20 : vector<1x18x1xf32> to vector<18x1xf32>
    %22 = vector.shape_cast %1 : vector<18x1xf32> to vector<1x18x1xf32>
    tpu.vector_store %arg5[%c1_16, %c0_17, %c0_18], %22 {strides = array<i32>} : memref<4x18x18xf32, #tpu.memory_space<vmem>>, vector<1x18x1xf32>,
    %c1_19 = arith.constant 1 : index
    %c0_20 = arith.constant 0 : index
    %c17_21 = arith.constant 17 : index
    %23 = vector.load %arg5[%c1_19, %c0_20, %c17_21] : memref<4x18x18xf32, #tpu.memory_space<vmem>>, vector<1x18x1xf32>
    %24 = vector.shape_cast %23 : vector<1x18x1xf32> to vector<18x1xf32>
    %25 = vector.shape_cast %1 : vector<18x1xf32> to vector<1x18x1xf32>
    tpu.vector_store %arg5[%c1_19, %c0_20, %c17_21], %25 {strides = array<i32>} : memref<4x18x18xf32, #tpu.memory_space<vmem>>, vector<1x18x1xf32>,
    %c2 = arith.constant 2 : index
    %c0_22 = arith.constant 0 : index
    %c0_23 = arith.constant 0 : index
    %26 = vector.load %arg5[%c2, %c0_22, %c0_23] : memref<4x18x18xf32, #tpu.memory_space<vmem>>, vector<1x1x18xf32>
    %27 = vector.shape_cast %26 : vector<1x1x18xf32> to vector<1x18xf32>
    %28 = vector.shape_cast %0 : vector<1x18xf32> to vector<1x1x18xf32>
    tpu.vector_store %arg5[%c2, %c0_22, %c0_23], %28 {strides = array<i32>} : memref<4x18x18xf32, #tpu.memory_space<vmem>>, vector<1x1x18xf32>,
    %c2_24 = arith.constant 2 : index
    %c17_25 = arith.constant 17 : index
    %c0_26 = arith.constant 0 : index
    %29 = vector.load %arg5[%c2_24, %c17_25, %c0_26] : memref<4x18x18xf32, #tpu.memory_space<vmem>>, vector<1x1x18xf32>
    %30 = vector.shape_cast %29 : vector<1x1x18xf32> to vector<1x18xf32>
    %31 = vector.shape_cast %0 : vector<1x18xf32> to vector<1x1x18xf32>
    tpu.vector_store %arg5[%c2_24, %c17_25, %c0_26], %31 {strides = array<i32>} : memref<4x18x18xf32, #tpu.memory_space<vmem>>, vector<1x1x18xf32>,
    %c2_27 = arith.constant 2 : index
    %c0_28 = arith.constant 0 : index
    %c0_29 = arith.constant 0 : index
    %32 = vector.load %arg5[%c2_27, %c0_28, %c0_29] : memref<4x18x18xf32, #tpu.memory_space<vmem>>, vector<1x18x1xf32>
    %33 = vector.shape_cast %32 : vector<1x18x1xf32> to vector<18x1xf32>
    %34 = vector.shape_cast %1 : vector<18x1xf32> to vector<1x18x1xf32>
    tpu.vector_store %arg5[%c2_27, %c0_28, %c0_29], %34 {strides = array<i32>} : memref<4x18x18xf32, #tpu.memory_space<vmem>>, vector<1x18x1xf32>,
    %c2_30 = arith.constant 2 : index
    %c0_31 = arith.constant 0 : index
    %c17_32 = arith.constant 17 : index
    %35 = vector.load %arg5[%c2_30, %c0_31, %c17_32] : memref<4x18x18xf32, #tpu.memory_space<vmem>>, vector<1x18x1xf32>
    %36 = vector.shape_cast %35 : vector<1x18x1xf32> to vector<18x1xf32>
    %37 = vector.shape_cast %1 : vector<18x1xf32> to vector<1x18x1xf32>
    tpu.vector_store %arg5[%c2_30, %c0_31, %c17_32], %37 {strides = array<i32>} : memref<4x18x18xf32, #tpu.memory_space<vmem>>, vector<1x18x1xf32>,
    %c3 = arith.constant 3 : index
    %c0_33 = arith.constant 0 : index
    %c0_34 = arith.constant 0 : index
    %38 = vector.load %arg5[%c3, %c0_33, %c0_34] : memref<4x18x18xf32, #tpu.memory_space<vmem>>, vector<1x1x18xf32>
    %39 = vector.shape_cast %38 : vector<1x1x18xf32> to vector<1x18xf32>
    %40 = vector.shape_cast %0 : vector<1x18xf32> to vector<1x1x18xf32>
    tpu.vector_store %arg5[%c3, %c0_33, %c0_34], %40 {strides = array<i32>} : memref<4x18x18xf32, #tpu.memory_space<vmem>>, vector<1x1x18xf32>,
    %c3_35 = arith.constant 3 : index
    %c17_36 = arith.constant 17 : index
    %c0_37 = arith.constant 0 : index
    %41 = vector.load %arg5[%c3_35, %c17_36, %c0_37] : memref<4x18x18xf32, #tpu.memory_space<vmem>>, vector<1x1x18xf32>
    %42 = vector.shape_cast %41 : vector<1x1x18xf32> to vector<1x18xf32>
    %43 = vector.shape_cast %0 : vector<1x18xf32> to vector<1x1x18xf32>
    tpu.vector_store %arg5[%c3_35, %c17_36, %c0_37], %43 {strides = array<i32>} : memref<4x18x18xf32, #tpu.memory_space<vmem>>, vector<1x1x18xf32>,
    %c3_38 = arith.constant 3 : index
    %c0_39 = arith.constant 0 : index
    %c0_40 = arith.constant 0 : index
    %44 = vector.load %arg5[%c3_38, %c0_39, %c0_40] : memref<4x18x18xf32, #tpu.memory_space<vmem>>, vector<1x18x1xf32>
    %45 = vector.shape_cast %44 : vector<1x18x1xf32> to vector<18x1xf32>
    %46 = vector.shape_cast %1 : vector<18x1xf32> to vector<1x18x1xf32>
    tpu.vector_store %arg5[%c3_38, %c0_39, %c0_40], %46 {strides = array<i32>} : memref<4x18x18xf32, #tpu.memory_space<vmem>>, vector<1x18x1xf32>,
    %c3_41 = arith.constant 3 : index
    %c0_42 = arith.constant 0 : index
    %c17_43 = arith.constant 17 : index
    %47 = vector.load %arg5[%c3_41, %c0_42, %c17_43] : memref<4x18x18xf32, #tpu.memory_space<vmem>>, vector<1x18x1xf32>
    %48 = vector.shape_cast %47 : vector<1x18x1xf32> to vector<18x1xf32>
    %49 = vector.shape_cast %1 : vector<18x1xf32> to vector<1x18x1xf32>
    tpu.vector_store %arg5[%c3_41, %c0_42, %c17_43], %49 {strides = array<i32>} : memref<4x18x18xf32, #tpu.memory_space<vmem>>, vector<1x18x1xf32>,
    %c0_44 = arith.constant 0 : index
    %c0_45 = arith.constant 0 : index
    %c0_46 = arith.constant 0 : index
    %50 = vector.load %arg6[%c0_44, %c0_45, %c0_46] : memref<4x18x18xf32, #tpu.memory_space<vmem>>, vector<1x1x18xf32>
    %51 = vector.shape_cast %50 : vector<1x1x18xf32> to vector<1x18xf32>
    %52 = vector.shape_cast %0 : vector<1x18xf32> to vector<1x1x18xf32>
    tpu.vector_store %arg6[%c0_44, %c0_45, %c0_46], %52 {strides = array<i32>} : memref<4x18x18xf32, #tpu.memory_space<vmem>>, vector<1x1x18xf32>,
    %c0_47 = arith.constant 0 : index
    %c17_48 = arith.constant 17 : index
    %c0_49 = arith.constant 0 : index
    %53 = vector.load %arg6[%c0_47, %c17_48, %c0_49] : memref<4x18x18xf32, #tpu.memory_space<vmem>>, vector<1x1x18xf32>
    %54 = vector.shape_cast %53 : vector<1x1x18xf32> to vector<1x18xf32>
    %55 = vector.shape_cast %0 : vector<1x18xf32> to vector<1x1x18xf32>
    tpu.vector_store %arg6[%c0_47, %c17_48, %c0_49], %55 {strides = array<i32>} : memref<4x18x18xf32, #tpu.memory_space<vmem>>, vector<1x1x18xf32>,
    %c0_50 = arith.constant 0 : index
    %c0_51 = arith.constant 0 : index
    %c0_52 = arith.constant 0 : index
    %56 = vector.load %arg6[%c0_50, %c0_51, %c0_52] : memref<4x18x18xf32, #tpu.memory_space<vmem>>, vector<1x18x1xf32>
    %57 = vector.shape_cast %56 : vector<1x18x1xf32> to vector<18x1xf32>
    %58 = vector.shape_cast %1 : vector<18x1xf32> to vector<1x18x1xf32>
    tpu.vector_store %arg6[%c0_50, %c0_51, %c0_52], %58 {strides = array<i32>} : memref<4x18x18xf32, #tpu.memory_space<vmem>>, vector<1x18x1xf32>,
    %c0_53 = arith.constant 0 : index
    %c0_54 = arith.constant 0 : index
    %c17_55 = arith.constant 17 : index
    %59 = vector.load %arg6[%c0_53, %c0_54, %c17_55] : memref<4x18x18xf32, #tpu.memory_space<vmem>>, vector<1x18x1xf32>
    %60 = vector.shape_cast %59 : vector<1x18x1xf32> to vector<18x1xf32>
    %61 = vector.shape_cast %1 : vector<18x1xf32> to vector<1x18x1xf32>
    tpu.vector_store %arg6[%c0_53, %c0_54, %c17_55], %61 {strides = array<i32>} : memref<4x18x18xf32, #tpu.memory_space<vmem>>, vector<1x18x1xf32>,
    %c1_56 = arith.constant 1 : index
    %c0_57 = arith.constant 0 : index
    %c0_58 = arith.constant 0 : index
    %62 = vector.load %arg6[%c1_56, %c0_57, %c0_58] : memref<4x18x18xf32, #tpu.memory_space<vmem>>, vector<1x1x18xf32>
    %63 = vector.shape_cast %62 : vector<1x1x18xf32> to vector<1x18xf32>
    %64 = vector.shape_cast %0 : vector<1x18xf32> to vector<1x1x18xf32>
    tpu.vector_store %arg6[%c1_56, %c0_57, %c0_58], %64 {strides = array<i32>} : memref<4x18x18xf32, #tpu.memory_space<vmem>>, vector<1x1x18xf32>,
    %c1_59 = arith.constant 1 : index
    %c17_60 = arith.constant 17 : index
    %c0_61 = arith.constant 0 : index
    %65 = vector.load %arg6[%c1_59, %c17_60, %c0_61] : memref<4x18x18xf32, #tpu.memory_space<vmem>>, vector<1x1x18xf32>
    %66 = vector.shape_cast %65 : vector<1x1x18xf32> to vector<1x18xf32>
    %67 = vector.shape_cast %0 : vector<1x18xf32> to vector<1x1x18xf32>
    tpu.vector_store %arg6[%c1_59, %c17_60, %c0_61], %67 {strides = array<i32>} : memref<4x18x18xf32, #tpu.memory_space<vmem>>, vector<1x1x18xf32>,
    %c1_62 = arith.constant 1 : index
    %c0_63 = arith.constant 0 : index
    %c0_64 = arith.constant 0 : index
    %68 = vector.load %arg6[%c1_62, %c0_63, %c0_64] : memref<4x18x18xf32, #tpu.memory_space<vmem>>, vector<1x18x1xf32>
    %69 = vector.shape_cast %68 : vector<1x18x1xf32> to vector<18x1xf32>
    %70 = vector.shape_cast %1 : vector<18x1xf32> to vector<1x18x1xf32>
    tpu.vector_store %arg6[%c1_62, %c0_63, %c0_64], %70 {strides = array<i32>} : memref<4x18x18xf32, #tpu.memory_space<vmem>>, vector<1x18x1xf32>,
    %c1_65 = arith.constant 1 : index
    %c0_66 = arith.constant 0 : index
    %c17_67 = arith.constant 17 : index
    %71 = vector.load %arg6[%c1_65, %c0_66, %c17_67] : memref<4x18x18xf32, #tpu.memory_space<vmem>>, vector<1x18x1xf32>
    %72 = vector.shape_cast %71 : vector<1x18x1xf32> to vector<18x1xf32>
    %73 = vector.shape_cast %1 : vector<18x1xf32> to vector<1x18x1xf32>
    tpu.vector_store %arg6[%c1_65, %c0_66, %c17_67], %73 {strides = array<i32>} : memref<4x18x18xf32, #tpu.memory_space<vmem>>, vector<1x18x1xf32>,
    %c2_68 = arith.constant 2 : index
    %c0_69 = arith.constant 0 : index
    %c0_70 = arith.constant 0 : index
    %74 = vector.load %arg6[%c2_68, %c0_69, %c0_70] : memref<4x18x18xf32, #tpu.memory_space<vmem>>, vector<1x1x18xf32>
    %75 = vector.shape_cast %74 : vector<1x1x18xf32> to vector<1x18xf32>
    %76 = vector.shape_cast %0 : vector<1x18xf32> to vector<1x1x18xf32>
    tpu.vector_store %arg6[%c2_68, %c0_69, %c0_70], %76 {strides = array<i32>} : memref<4x18x18xf32, #tpu.memory_space<vmem>>, vector<1x1x18xf32>,
    %c2_71 = arith.constant 2 : index
    %c17_72 = arith.constant 17 : index
    %c0_73 = arith.constant 0 : index
    %77 = vector.load %arg6[%c2_71, %c17_72, %c0_73] : memref<4x18x18xf32, #tpu.memory_space<vmem>>, vector<1x1x18xf32>
    %78 = vector.shape_cast %77 : vector<1x1x18xf32> to vector<1x18xf32>
    %79 = vector.shape_cast %0 : vector<1x18xf32> to vector<1x1x18xf32>
    tpu.vector_store %arg6[%c2_71, %c17_72, %c0_73], %79 {strides = array<i32>} : memref<4x18x18xf32, #tpu.memory_space<vmem>>, vector<1x1x18xf32>,
    %c2_74 = arith.constant 2 : index
    %c0_75 = arith.constant 0 : index
    %c0_76 = arith.constant 0 : index
    %80 = vector.load %arg6[%c2_74, %c0_75, %c0_76] : memref<4x18x18xf32, #tpu.memory_space<vmem>>, vector<1x18x1xf32>
    %81 = vector.shape_cast %80 : vector<1x18x1xf32> to vector<18x1xf32>
    %82 = vector.shape_cast %1 : vector<18x1xf32> to vector<1x18x1xf32>
    tpu.vector_store %arg6[%c2_74, %c0_75, %c0_76], %82 {strides = array<i32>} : memref<4x18x18xf32, #tpu.memory_space<vmem>>, vector<1x18x1xf32>,
    %c2_77 = arith.constant 2 : index
    %c0_78 = arith.constant 0 : index
    %c17_79 = arith.constant 17 : index
    %83 = vector.load %arg6[%c2_77, %c0_78, %c17_79] : memref<4x18x18xf32, #tpu.memory_space<vmem>>, vector<1x18x1xf32>
    %84 = vector.shape_cast %83 : vector<1x18x1xf32> to vector<18x1xf32>
    %85 = vector.shape_cast %1 : vector<18x1xf32> to vector<1x18x1xf32>
    tpu.vector_store %arg6[%c2_77, %c0_78, %c17_79], %85 {strides = array<i32>} : memref<4x18x18xf32, #tpu.memory_space<vmem>>, vector<1x18x1xf32>,
    %c3_80 = arith.constant 3 : index
    %c0_81 = arith.constant 0 : index
    %c0_82 = arith.constant 0 : index
    %86 = vector.load %arg6[%c3_80, %c0_81, %c0_82] : memref<4x18x18xf32, #tpu.memory_space<vmem>>, vector<1x1x18xf32>
    %87 = vector.shape_cast %86 : vector<1x1x18xf32> to vector<1x18xf32>
    %88 = vector.shape_cast %0 : vector<1x18xf32> to vector<1x1x18xf32>
    tpu.vector_store %arg6[%c3_80, %c0_81, %c0_82], %88 {strides = array<i32>} : memref<4x18x18xf32, #tpu.memory_space<vmem>>, vector<1x1x18xf32>,
    %c3_83 = arith.constant 3 : index
    %c17_84 = arith.constant 17 : index
    %c0_85 = arith.constant 0 : index
    %89 = vector.load %arg6[%c3_83, %c17_84, %c0_85] : memref<4x18x18xf32, #tpu.memory_space<vmem>>, vector<1x1x18xf32>
    %90 = vector.shape_cast %89 : vector<1x1x18xf32> to vector<1x18xf32>
    %91 = vector.shape_cast %0 : vector<1x18xf32> to vector<1x1x18xf32>
    tpu.vector_store %arg6[%c3_83, %c17_84, %c0_85], %91 {strides = array<i32>} : memref<4x18x18xf32, #tpu.memory_space<vmem>>, vector<1x1x18xf32>,
    %c3_86 = arith.constant 3 : index
    %c0_87 = arith.constant 0 : index
    %c0_88 = arith.constant 0 : index
    %92 = vector.load %arg6[%c3_86, %c0_87, %c0_88] : memref<4x18x18xf32, #tpu.memory_space<vmem>>, vector<1x18x1xf32>
    %93 = vector.shape_cast %92 : vector<1x18x1xf32> to vector<18x1xf32>
    %94 = vector.shape_cast %1 : vector<18x1xf32> to vector<1x18x1xf32>
    tpu.vector_store %arg6[%c3_86, %c0_87, %c0_88], %94 {strides = array<i32>} : memref<4x18x18xf32, #tpu.memory_space<vmem>>, vector<1x18x1xf32>,
    %c3_89 = arith.constant 3 : index
    %c0_90 = arith.constant 0 : index
    %c17_91 = arith.constant 17 : index
    %95 = vector.load %arg6[%c3_89, %c0_90, %c17_91] : memref<4x18x18xf32, #tpu.memory_space<vmem>>, vector<1x18x1xf32>
    %96 = vector.shape_cast %95 : vector<1x18x1xf32> to vector<18x1xf32>
    %97 = vector.shape_cast %1 : vector<18x1xf32> to vector<1x18x1xf32>
    tpu.vector_store %arg6[%c3_89, %c0_90, %c17_91], %97 {strides = array<i32>} : memref<4x18x18xf32, #tpu.memory_space<vmem>>, vector<1x18x1xf32>,
    %c0_92 = arith.constant 0 : index
    %c0_93 = arith.constant 0 : index
    %c0_94 = arith.constant 0 : index
    %c0_95 = arith.constant 0 : index
    %98 = vector.load %arg1[%c0_92, %c0_93, %c0_94, %c0_95] : memref<1x4x16x16xf32, #tpu.memory_space<vmem>>, vector<1x1x16x16xf32>
    %99 = vector.shape_cast %98 : vector<1x1x16x16xf32> to vector<16x16xf32>
    %c0_96 = arith.constant 0 : index
    %c1_97 = arith.constant 1 : index
    %c1_98 = arith.constant 1 : index
    %100 = vector.load %arg5[%c0_96, %c1_97, %c1_98] : memref<4x18x18xf32, #tpu.memory_space<vmem>>, vector<1x16x16xf32>
    %101 = vector.shape_cast %100 : vector<1x16x16xf32> to vector<16x16xf32>
    %102 = vector.shape_cast %99 : vector<16x16xf32> to vector<1x16x16xf32>
    tpu.vector_store %arg5[%c0_96, %c1_97, %c1_98], %102 {strides = array<i32>} : memref<4x18x18xf32, #tpu.memory_space<vmem>>, vector<1x16x16xf32>,
    %c0_99 = arith.constant 0 : index
    %c1_100 = arith.constant 1 : index
    %c0_101 = arith.constant 0 : index
    %c0_102 = arith.constant 0 : index
    %103 = vector.load %arg1[%c0_99, %c1_100, %c0_101, %c0_102] : memref<1x4x16x16xf32, #tpu.memory_space<vmem>>, vector<1x1x16x16xf32>
    %104 = vector.shape_cast %103 : vector<1x1x16x16xf32> to vector<16x16xf32>
    %c1_103 = arith.constant 1 : index
    %c1_104 = arith.constant 1 : index
    %c1_105 = arith.constant 1 : index
    %105 = vector.load %arg5[%c1_103, %c1_104, %c1_105] : memref<4x18x18xf32, #tpu.memory_space<vmem>>, vector<1x16x16xf32>
    %106 = vector.shape_cast %105 : vector<1x16x16xf32> to vector<16x16xf32>
    %107 = vector.shape_cast %104 : vector<16x16xf32> to vector<1x16x16xf32>
    tpu.vector_store %arg5[%c1_103, %c1_104, %c1_105], %107 {strides = array<i32>} : memref<4x18x18xf32, #tpu.memory_space<vmem>>, vector<1x16x16xf32>,
    %c0_106 = arith.constant 0 : index
    %c2_107 = arith.constant 2 : index
    %c0_108 = arith.constant 0 : index
    %c0_109 = arith.constant 0 : index
    %108 = vector.load %arg1[%c0_106, %c2_107, %c0_108, %c0_109] : memref<1x4x16x16xf32, #tpu.memory_space<vmem>>, vector<1x1x16x16xf32>
    %109 = vector.shape_cast %108 : vector<1x1x16x16xf32> to vector<16x16xf32>
    %c2_110 = arith.constant 2 : index
    %c1_111 = arith.constant 1 : index
    %c1_112 = arith.constant 1 : index
    %110 = vector.load %arg5[%c2_110, %c1_111, %c1_112] : memref<4x18x18xf32, #tpu.memory_space<vmem>>, vector<1x16x16xf32>
    %111 = vector.shape_cast %110 : vector<1x16x16xf32> to vector<16x16xf32>
    %112 = vector.shape_cast %109 : vector<16x16xf32> to vector<1x16x16xf32>
    tpu.vector_store %arg5[%c2_110, %c1_111, %c1_112], %112 {strides = array<i32>} : memref<4x18x18xf32, #tpu.memory_space<vmem>>, vector<1x16x16xf32>,
    %c0_113 = arith.constant 0 : index
    %c3_114 = arith.constant 3 : index
    %c0_115 = arith.constant 0 : index
    %c0_116 = arith.constant 0 : index
    %113 = vector.load %arg1[%c0_113, %c3_114, %c0_115, %c0_116] : memref<1x4x16x16xf32, #tpu.memory_space<vmem>>, vector<1x1x16x16xf32>
    %114 = vector.shape_cast %113 : vector<1x1x16x16xf32> to vector<16x16xf32>
    %c3_117 = arith.constant 3 : index
    %c1_118 = arith.constant 1 : index
    %c1_119 = arith.constant 1 : index
    %115 = vector.load %arg5[%c3_117, %c1_118, %c1_119] : memref<4x18x18xf32, #tpu.memory_space<vmem>>, vector<1x16x16xf32>
    %116 = vector.shape_cast %115 : vector<1x16x16xf32> to vector<16x16xf32>
    %117 = vector.shape_cast %114 : vector<16x16xf32> to vector<1x16x16xf32>
    tpu.vector_store %arg5[%c3_117, %c1_118, %c1_119], %117 {strides = array<i32>} : memref<4x18x18xf32, #tpu.memory_space<vmem>>, vector<1x16x16xf32>,
    %c0_120 = arith.constant 0 : index
    %c0_121 = arith.constant 0 : index
    %c0_122 = arith.constant 0 : index
    %118 = vector.load %arg5[%c0_120, %c0_121, %c0_122] : memref<4x18x18xf32, #tpu.memory_space<vmem>>, vector<1x16x16xf32>
    %119 = vector.shape_cast %118 : vector<1x16x16xf32> to vector<16x16xf32>
    %c0_123 = arith.constant 0 : index
    %120 = memref.load %arg2[%c0_123] : memref<432xf32, #tpu.memory_space<smem>>
    %121 = vector.broadcast %120 : f32 to vector<16x16xf32>
    %122 = arith.mulf %121, %119 : vector<16x16xf32>
    %c36 = arith.constant 36 : index
    %123 = memref.load %arg2[%c36] : memref<432xf32, #tpu.memory_space<smem>>
    %124 = vector.broadcast %123 : f32 to vector<16x16xf32>
    %125 = arith.mulf %124, %119 : vector<16x16xf32>
    %c72 = arith.constant 72 : index
    %126 = memref.load %arg2[%c72] : memref<432xf32, #tpu.memory_space<smem>>
    %127 = vector.broadcast %126 : f32 to vector<16x16xf32>
    %128 = arith.mulf %127, %119 : vector<16x16xf32>
    %c108 = arith.constant 108 : index
    %129 = memref.load %arg2[%c108] : memref<432xf32, #tpu.memory_space<smem>>
    %130 = vector.broadcast %129 : f32 to vector<16x16xf32>
    %131 = arith.mulf %130, %119 : vector<16x16xf32>
    %c0_124 = arith.constant 0 : index
    %c0_125 = arith.constant 0 : index
    %c1_126 = arith.constant 1 : index
    %132 = vector.load %arg5[%c0_124, %c0_125, %c1_126] : memref<4x18x18xf32, #tpu.memory_space<vmem>>, vector<1x16x16xf32>
    %133 = vector.shape_cast %132 : vector<1x16x16xf32> to vector<16x16xf32>
    %c1_127 = arith.constant 1 : index
    %134 = memref.load %arg2[%c1_127] : memref<432xf32, #tpu.memory_space<smem>>
    %135 = vector.broadcast %134 : f32 to vector<16x16xf32>
    %136 = arith.mulf %135, %133 : vector<16x16xf32>
    %137 = arith.addf %122, %136 : vector<16x16xf32>
    %c37 = arith.constant 37 : index
    %138 = memref.load %arg2[%c37] : memref<432xf32, #tpu.memory_space<smem>>
    %139 = vector.broadcast %138 : f32 to vector<16x16xf32>
    %140 = arith.mulf %139, %133 : vector<16x16xf32>
    %141 = arith.addf %125, %140 : vector<16x16xf32>
    %c73 = arith.constant 73 : index
    %142 = memref.load %arg2[%c73] : memref<432xf32, #tpu.memory_space<smem>>
    %143 = vector.broadcast %142 : f32 to vector<16x16xf32>
    %144 = arith.mulf %143, %133 : vector<16x16xf32>
    %145 = arith.addf %128, %144 : vector<16x16xf32>
    %c109 = arith.constant 109 : index
    %146 = memref.load %arg2[%c109] : memref<432xf32, #tpu.memory_space<smem>>
    %147 = vector.broadcast %146 : f32 to vector<16x16xf32>
    %148 = arith.mulf %147, %133 : vector<16x16xf32>
    %149 = arith.addf %131, %148 : vector<16x16xf32>
    %c0_128 = arith.constant 0 : index
    %c0_129 = arith.constant 0 : index
    %c2_130 = arith.constant 2 : index
    %150 = vector.load %arg5[%c0_128, %c0_129, %c2_130] : memref<4x18x18xf32, #tpu.memory_space<vmem>>, vector<1x16x16xf32>
    %151 = vector.shape_cast %150 : vector<1x16x16xf32> to vector<16x16xf32>
    %c2_131 = arith.constant 2 : index
    %152 = memref.load %arg2[%c2_131] : memref<432xf32, #tpu.memory_space<smem>>
    %153 = vector.broadcast %152 : f32 to vector<16x16xf32>
    %154 = arith.mulf %153, %151 : vector<16x16xf32>
    %155 = arith.addf %137, %154 : vector<16x16xf32>
    %c38 = arith.constant 38 : index
    %156 = memref.load %arg2[%c38] : memref<432xf32, #tpu.memory_space<smem>>
    %157 = vector.broadcast %156 : f32 to vector<16x16xf32>
    %158 = arith.mulf %157, %151 : vector<16x16xf32>
    %159 = arith.addf %141, %158 : vector<16x16xf32>
    %c74 = arith.constant 74 : index
    %160 = memref.load %arg2[%c74] : memref<432xf32, #tpu.memory_space<smem>>
    %161 = vector.broadcast %160 : f32 to vector<16x16xf32>
    %162 = arith.mulf %161, %151 : vector<16x16xf32>
    %163 = arith.addf %145, %162 : vector<16x16xf32>
    %c110 = arith.constant 110 : index
    %164 = memref.load %arg2[%c110] : memref<432xf32, #tpu.memory_space<smem>>
    %165 = vector.broadcast %164 : f32 to vector<16x16xf32>
    %166 = arith.mulf %165, %151 : vector<16x16xf32>
    %167 = arith.addf %149, %166 : vector<16x16xf32>
    %c0_132 = arith.constant 0 : index
    %c1_133 = arith.constant 1 : index
    %c0_134 = arith.constant 0 : index
    %168 = vector.load %arg5[%c0_132, %c1_133, %c0_134] : memref<4x18x18xf32, #tpu.memory_space<vmem>>, vector<1x16x16xf32>
    %169 = vector.shape_cast %168 : vector<1x16x16xf32> to vector<16x16xf32>
    %c3_135 = arith.constant 3 : index
    %170 = memref.load %arg2[%c3_135] : memref<432xf32, #tpu.memory_space<smem>>
    %171 = vector.broadcast %170 : f32 to vector<16x16xf32>
    %172 = arith.mulf %171, %169 : vector<16x16xf32>
    %173 = arith.addf %155, %172 : vector<16x16xf32>
    %c39 = arith.constant 39 : index
    %174 = memref.load %arg2[%c39] : memref<432xf32, #tpu.memory_space<smem>>
    %175 = vector.broadcast %174 : f32 to vector<16x16xf32>
    %176 = arith.mulf %175, %169 : vector<16x16xf32>
    %177 = arith.addf %159, %176 : vector<16x16xf32>
    %c75 = arith.constant 75 : index
    %178 = memref.load %arg2[%c75] : memref<432xf32, #tpu.memory_space<smem>>
    %179 = vector.broadcast %178 : f32 to vector<16x16xf32>
    %180 = arith.mulf %179, %169 : vector<16x16xf32>
    %181 = arith.addf %163, %180 : vector<16x16xf32>
    %c111 = arith.constant 111 : index
    %182 = memref.load %arg2[%c111] : memref<432xf32, #tpu.memory_space<smem>>
    %183 = vector.broadcast %182 : f32 to vector<16x16xf32>
    %184 = arith.mulf %183, %169 : vector<16x16xf32>
    %185 = arith.addf %167, %184 : vector<16x16xf32>
    %c0_136 = arith.constant 0 : index
    %c1_137 = arith.constant 1 : index
    %c1_138 = arith.constant 1 : index
    %186 = vector.load %arg5[%c0_136, %c1_137, %c1_138] : memref<4x18x18xf32, #tpu.memory_space<vmem>>, vector<1x16x16xf32>
    %187 = vector.shape_cast %186 : vector<1x16x16xf32> to vector<16x16xf32>
    %c4 = arith.constant 4 : index
    %188 = memref.load %arg2[%c4] : memref<432xf32, #tpu.memory_space<smem>>
    %189 = vector.broadcast %188 : f32 to vector<16x16xf32>
    %190 = arith.mulf %189, %187 : vector<16x16xf32>
    %191 = arith.addf %173, %190 : vector<16x16xf32>
    %c40 = arith.constant 40 : index
    %192 = memref.load %arg2[%c40] : memref<432xf32, #tpu.memory_space<smem>>
    %193 = vector.broadcast %192 : f32 to vector<16x16xf32>
    %194 = arith.mulf %193, %187 : vector<16x16xf32>
    %195 = arith.addf %177, %194 : vector<16x16xf32>
    %c76 = arith.constant 76 : index
    %196 = memref.load %arg2[%c76] : memref<432xf32, #tpu.memory_space<smem>>
    %197 = vector.broadcast %196 : f32 to vector<16x16xf32>
    %198 = arith.mulf %197, %187 : vector<16x16xf32>
    %199 = arith.addf %181, %198 : vector<16x16xf32>
    %c112 = arith.constant 112 : index
    %200 = memref.load %arg2[%c112] : memref<432xf32, #tpu.memory_space<smem>>
    %201 = vector.broadcast %200 : f32 to vector<16x16xf32>
    %202 = arith.mulf %201, %187 : vector<16x16xf32>
    %203 = arith.addf %185, %202 : vector<16x16xf32>
    %c0_139 = arith.constant 0 : index
    %c1_140 = arith.constant 1 : index
    %c2_141 = arith.constant 2 : index
    %204 = vector.load %arg5[%c0_139, %c1_140, %c2_141] : memref<4x18x18xf32, #tpu.memory_space<vmem>>, vector<1x16x16xf32>
    %205 = vector.shape_cast %204 : vector<1x16x16xf32> to vector<16x16xf32>
    %c5 = arith.constant 5 : index
    %206 = memref.load %arg2[%c5] : memref<432xf32, #tpu.memory_space<smem>>
    %207 = vector.broadcast %206 : f32 to vector<16x16xf32>
    %208 = arith.mulf %207, %205 : vector<16x16xf32>
    %209 = arith.addf %191, %208 : vector<16x16xf32>
    %c41 = arith.constant 41 : index
    %210 = memref.load %arg2[%c41] : memref<432xf32, #tpu.memory_space<smem>>
    %211 = vector.broadcast %210 : f32 to vector<16x16xf32>
    %212 = arith.mulf %211, %205 : vector<16x16xf32>
    %213 = arith.addf %195, %212 : vector<16x16xf32>
    %c77 = arith.constant 77 : index
    %214 = memref.load %arg2[%c77] : memref<432xf32, #tpu.memory_space<smem>>
    %215 = vector.broadcast %214 : f32 to vector<16x16xf32>
    %216 = arith.mulf %215, %205 : vector<16x16xf32>
    %217 = arith.addf %199, %216 : vector<16x16xf32>
    %c113 = arith.constant 113 : index
    %218 = memref.load %arg2[%c113] : memref<432xf32, #tpu.memory_space<smem>>
    %219 = vector.broadcast %218 : f32 to vector<16x16xf32>
    %220 = arith.mulf %219, %205 : vector<16x16xf32>
    %221 = arith.addf %203, %220 : vector<16x16xf32>
    %c0_142 = arith.constant 0 : index
    %c2_143 = arith.constant 2 : index
    %c0_144 = arith.constant 0 : index
    %222 = vector.load %arg5[%c0_142, %c2_143, %c0_144] : memref<4x18x18xf32, #tpu.memory_space<vmem>>, vector<1x16x16xf32>
    %223 = vector.shape_cast %222 : vector<1x16x16xf32> to vector<16x16xf32>
    %c6 = arith.constant 6 : index
    %224 = memref.load %arg2[%c6] : memref<432xf32, #tpu.memory_space<smem>>
    %225 = vector.broadcast %224 : f32 to vector<16x16xf32>
    %226 = arith.mulf %225, %223 : vector<16x16xf32>
    %227 = arith.addf %209, %226 : vector<16x16xf32>
    %c42 = arith.constant 42 : index
    %228 = memref.load %arg2[%c42] : memref<432xf32, #tpu.memory_space<smem>>
    %229 = vector.broadcast %228 : f32 to vector<16x16xf32>
    %230 = arith.mulf %229, %223 : vector<16x16xf32>
    %231 = arith.addf %213, %230 : vector<16x16xf32>
    %c78 = arith.constant 78 : index
    %232 = memref.load %arg2[%c78] : memref<432xf32, #tpu.memory_space<smem>>
    %233 = vector.broadcast %232 : f32 to vector<16x16xf32>
    %234 = arith.mulf %233, %223 : vector<16x16xf32>
    %235 = arith.addf %217, %234 : vector<16x16xf32>
    %c114 = arith.constant 114 : index
    %236 = memref.load %arg2[%c114] : memref<432xf32, #tpu.memory_space<smem>>
    %237 = vector.broadcast %236 : f32 to vector<16x16xf32>
    %238 = arith.mulf %237, %223 : vector<16x16xf32>
    %239 = arith.addf %221, %238 : vector<16x16xf32>
    %c0_145 = arith.constant 0 : index
    %c2_146 = arith.constant 2 : index
    %c1_147 = arith.constant 1 : index
    %240 = vector.load %arg5[%c0_145, %c2_146, %c1_147] : memref<4x18x18xf32, #tpu.memory_space<vmem>>, vector<1x16x16xf32>
    %241 = vector.shape_cast %240 : vector<1x16x16xf32> to vector<16x16xf32>
    %c7 = arith.constant 7 : index
    %242 = memref.load %arg2[%c7] : memref<432xf32, #tpu.memory_space<smem>>
    %243 = vector.broadcast %242 : f32 to vector<16x16xf32>
    %244 = arith.mulf %243, %241 : vector<16x16xf32>
    %245 = arith.addf %227, %244 : vector<16x16xf32>
    %c43 = arith.constant 43 : index
    %246 = memref.load %arg2[%c43] : memref<432xf32, #tpu.memory_space<smem>>
    %247 = vector.broadcast %246 : f32 to vector<16x16xf32>
    %248 = arith.mulf %247, %241 : vector<16x16xf32>
    %249 = arith.addf %231, %248 : vector<16x16xf32>
    %c79 = arith.constant 79 : index
    %250 = memref.load %arg2[%c79] : memref<432xf32, #tpu.memory_space<smem>>
    %251 = vector.broadcast %250 : f32 to vector<16x16xf32>
    %252 = arith.mulf %251, %241 : vector<16x16xf32>
    %253 = arith.addf %235, %252 : vector<16x16xf32>
    %c115 = arith.constant 115 : index
    %254 = memref.load %arg2[%c115] : memref<432xf32, #tpu.memory_space<smem>>
    %255 = vector.broadcast %254 : f32 to vector<16x16xf32>
    %256 = arith.mulf %255, %241 : vector<16x16xf32>
    %257 = arith.addf %239, %256 : vector<16x16xf32>
    %c0_148 = arith.constant 0 : index
    %c2_149 = arith.constant 2 : index
    %c2_150 = arith.constant 2 : index
    %258 = vector.load %arg5[%c0_148, %c2_149, %c2_150] : memref<4x18x18xf32, #tpu.memory_space<vmem>>, vector<1x16x16xf32>
    %259 = vector.shape_cast %258 : vector<1x16x16xf32> to vector<16x16xf32>
    %c8 = arith.constant 8 : index
    %260 = memref.load %arg2[%c8] : memref<432xf32, #tpu.memory_space<smem>>
    %261 = vector.broadcast %260 : f32 to vector<16x16xf32>
    %262 = arith.mulf %261, %259 : vector<16x16xf32>
    %263 = arith.addf %245, %262 : vector<16x16xf32>
    %c44 = arith.constant 44 : index
    %264 = memref.load %arg2[%c44] : memref<432xf32, #tpu.memory_space<smem>>
    %265 = vector.broadcast %264 : f32 to vector<16x16xf32>
    %266 = arith.mulf %265, %259 : vector<16x16xf32>
    %267 = arith.addf %249, %266 : vector<16x16xf32>
    %c80 = arith.constant 80 : index
    %268 = memref.load %arg2[%c80] : memref<432xf32, #tpu.memory_space<smem>>
    %269 = vector.broadcast %268 : f32 to vector<16x16xf32>
    %270 = arith.mulf %269, %259 : vector<16x16xf32>
    %271 = arith.addf %253, %270 : vector<16x16xf32>
    %c116 = arith.constant 116 : index
    %272 = memref.load %arg2[%c116] : memref<432xf32, #tpu.memory_space<smem>>
    %273 = vector.broadcast %272 : f32 to vector<16x16xf32>
    %274 = arith.mulf %273, %259 : vector<16x16xf32>
    %275 = arith.addf %257, %274 : vector<16x16xf32>
    %c1_151 = arith.constant 1 : index
    %c0_152 = arith.constant 0 : index
    %c0_153 = arith.constant 0 : index
    %276 = vector.load %arg5[%c1_151, %c0_152, %c0_153] : memref<4x18x18xf32, #tpu.memory_space<vmem>>, vector<1x16x16xf32>
    %277 = vector.shape_cast %276 : vector<1x16x16xf32> to vector<16x16xf32>
    %c9 = arith.constant 9 : index
    %278 = memref.load %arg2[%c9] : memref<432xf32, #tpu.memory_space<smem>>
    %279 = vector.broadcast %278 : f32 to vector<16x16xf32>
    %280 = arith.mulf %279, %277 : vector<16x16xf32>
    %281 = arith.addf %263, %280 : vector<16x16xf32>
    %c45 = arith.constant 45 : index
    %282 = memref.load %arg2[%c45] : memref<432xf32, #tpu.memory_space<smem>>
    %283 = vector.broadcast %282 : f32 to vector<16x16xf32>
    %284 = arith.mulf %283, %277 : vector<16x16xf32>
    %285 = arith.addf %267, %284 : vector<16x16xf32>
    %c81 = arith.constant 81 : index
    %286 = memref.load %arg2[%c81] : memref<432xf32, #tpu.memory_space<smem>>
    %287 = vector.broadcast %286 : f32 to vector<16x16xf32>
    %288 = arith.mulf %287, %277 : vector<16x16xf32>
    %289 = arith.addf %271, %288 : vector<16x16xf32>
    %c117 = arith.constant 117 : index
    %290 = memref.load %arg2[%c117] : memref<432xf32, #tpu.memory_space<smem>>
    %291 = vector.broadcast %290 : f32 to vector<16x16xf32>
    %292 = arith.mulf %291, %277 : vector<16x16xf32>
    %293 = arith.addf %275, %292 : vector<16x16xf32>
    %c1_154 = arith.constant 1 : index
    %c0_155 = arith.constant 0 : index
    %c1_156 = arith.constant 1 : index
    %294 = vector.load %arg5[%c1_154, %c0_155, %c1_156] : memref<4x18x18xf32, #tpu.memory_space<vmem>>, vector<1x16x16xf32>
    %295 = vector.shape_cast %294 : vector<1x16x16xf32> to vector<16x16xf32>
    %c10 = arith.constant 10 : index
    %296 = memref.load %arg2[%c10] : memref<432xf32, #tpu.memory_space<smem>>
    %297 = vector.broadcast %296 : f32 to vector<16x16xf32>
    %298 = arith.mulf %297, %295 : vector<16x16xf32>
    %299 = arith.addf %281, %298 : vector<16x16xf32>
    %c46 = arith.constant 46 : index
    %300 = memref.load %arg2[%c46] : memref<432xf32, #tpu.memory_space<smem>>
    %301 = vector.broadcast %300 : f32 to vector<16x16xf32>
    %302 = arith.mulf %301, %295 : vector<16x16xf32>
    %303 = arith.addf %285, %302 : vector<16x16xf32>
    %c82 = arith.constant 82 : index
    %304 = memref.load %arg2[%c82] : memref<432xf32, #tpu.memory_space<smem>>
    %305 = vector.broadcast %304 : f32 to vector<16x16xf32>
    %306 = arith.mulf %305, %295 : vector<16x16xf32>
    %307 = arith.addf %289, %306 : vector<16x16xf32>
    %c118 = arith.constant 118 : index
    %308 = memref.load %arg2[%c118] : memref<432xf32, #tpu.memory_space<smem>>
    %309 = vector.broadcast %308 : f32 to vector<16x16xf32>
    %310 = arith.mulf %309, %295 : vector<16x16xf32>
    %311 = arith.addf %293, %310 : vector<16x16xf32>
    %c1_157 = arith.constant 1 : index
    %c0_158 = arith.constant 0 : index
    %c2_159 = arith.constant 2 : index
    %312 = vector.load %arg5[%c1_157, %c0_158, %c2_159] : memref<4x18x18xf32, #tpu.memory_space<vmem>>, vector<1x16x16xf32>
    %313 = vector.shape_cast %312 : vector<1x16x16xf32> to vector<16x16xf32>
    %c11 = arith.constant 11 : index
    %314 = memref.load %arg2[%c11] : memref<432xf32, #tpu.memory_space<smem>>
    %315 = vector.broadcast %314 : f32 to vector<16x16xf32>
    %316 = arith.mulf %315, %313 : vector<16x16xf32>
    %317 = arith.addf %299, %316 : vector<16x16xf32>
    %c47 = arith.constant 47 : index
    %318 = memref.load %arg2[%c47] : memref<432xf32, #tpu.memory_space<smem>>
    %319 = vector.broadcast %318 : f32 to vector<16x16xf32>
    %320 = arith.mulf %319, %313 : vector<16x16xf32>
    %321 = arith.addf %303, %320 : vector<16x16xf32>
    %c83 = arith.constant 83 : index
    %322 = memref.load %arg2[%c83] : memref<432xf32, #tpu.memory_space<smem>>
    %323 = vector.broadcast %322 : f32 to vector<16x16xf32>
    %324 = arith.mulf %323, %313 : vector<16x16xf32>
    %325 = arith.addf %307, %324 : vector<16x16xf32>
    %c119 = arith.constant 119 : index
    %326 = memref.load %arg2[%c119] : memref<432xf32, #tpu.memory_space<smem>>
    %327 = vector.broadcast %326 : f32 to vector<16x16xf32>
    %328 = arith.mulf %327, %313 : vector<16x16xf32>
    %329 = arith.addf %311, %328 : vector<16x16xf32>
    %c1_160 = arith.constant 1 : index
    %c1_161 = arith.constant 1 : index
    %c0_162 = arith.constant 0 : index
    %330 = vector.load %arg5[%c1_160, %c1_161, %c0_162] : memref<4x18x18xf32, #tpu.memory_space<vmem>>, vector<1x16x16xf32>
    %331 = vector.shape_cast %330 : vector<1x16x16xf32> to vector<16x16xf32>
    %c12 = arith.constant 12 : index
    %332 = memref.load %arg2[%c12] : memref<432xf32, #tpu.memory_space<smem>>
    %333 = vector.broadcast %332 : f32 to vector<16x16xf32>
    %334 = arith.mulf %333, %331 : vector<16x16xf32>
    %335 = arith.addf %317, %334 : vector<16x16xf32>
    %c48 = arith.constant 48 : index
    %336 = memref.load %arg2[%c48] : memref<432xf32, #tpu.memory_space<smem>>
    %337 = vector.broadcast %336 : f32 to vector<16x16xf32>
    %338 = arith.mulf %337, %331 : vector<16x16xf32>
    %339 = arith.addf %321, %338 : vector<16x16xf32>
    %c84 = arith.constant 84 : index
    %340 = memref.load %arg2[%c84] : memref<432xf32, #tpu.memory_space<smem>>
    %341 = vector.broadcast %340 : f32 to vector<16x16xf32>
    %342 = arith.mulf %341, %331 : vector<16x16xf32>
    %343 = arith.addf %325, %342 : vector<16x16xf32>
    %c120 = arith.constant 120 : index
    %344 = memref.load %arg2[%c120] : memref<432xf32, #tpu.memory_space<smem>>
    %345 = vector.broadcast %344 : f32 to vector<16x16xf32>
    %346 = arith.mulf %345, %331 : vector<16x16xf32>
    %347 = arith.addf %329, %346 : vector<16x16xf32>
    %c1_163 = arith.constant 1 : index
    %c1_164 = arith.constant 1 : index
    %c1_165 = arith.constant 1 : index
    %348 = vector.load %arg5[%c1_163, %c1_164, %c1_165] : memref<4x18x18xf32, #tpu.memory_space<vmem>>, vector<1x16x16xf32>
    %349 = vector.shape_cast %348 : vector<1x16x16xf32> to vector<16x16xf32>
    %c13 = arith.constant 13 : index
    %350 = memref.load %arg2[%c13] : memref<432xf32, #tpu.memory_space<smem>>
    %351 = vector.broadcast %350 : f32 to vector<16x16xf32>
    %352 = arith.mulf %351, %349 : vector<16x16xf32>
    %353 = arith.addf %335, %352 : vector<16x16xf32>
    %c49 = arith.constant 49 : index
    %354 = memref.load %arg2[%c49] : memref<432xf32, #tpu.memory_space<smem>>
    %355 = vector.broadcast %354 : f32 to vector<16x16xf32>
    %356 = arith.mulf %355, %349 : vector<16x16xf32>
    %357 = arith.addf %339, %356 : vector<16x16xf32>
    %c85 = arith.constant 85 : index
    %358 = memref.load %arg2[%c85] : memref<432xf32, #tpu.memory_space<smem>>
    %359 = vector.broadcast %358 : f32 to vector<16x16xf32>
    %360 = arith.mulf %359, %349 : vector<16x16xf32>
    %361 = arith.addf %343, %360 : vector<16x16xf32>
    %c121 = arith.constant 121 : index
    %362 = memref.load %arg2[%c121] : memref<432xf32, #tpu.memory_space<smem>>
    %363 = vector.broadcast %362 : f32 to vector<16x16xf32>
    %364 = arith.mulf %363, %349 : vector<16x16xf32>
    %365 = arith.addf %347, %364 : vector<16x16xf32>
    %c1_166 = arith.constant 1 : index
    %c1_167 = arith.constant 1 : index
    %c2_168 = arith.constant 2 : index
    %366 = vector.load %arg5[%c1_166, %c1_167, %c2_168] : memref<4x18x18xf32, #tpu.memory_space<vmem>>, vector<1x16x16xf32>
    %367 = vector.shape_cast %366 : vector<1x16x16xf32> to vector<16x16xf32>
    %c14 = arith.constant 14 : index
    %368 = memref.load %arg2[%c14] : memref<432xf32, #tpu.memory_space<smem>>
    %369 = vector.broadcast %368 : f32 to vector<16x16xf32>
    %370 = arith.mulf %369, %367 : vector<16x16xf32>
    %371 = arith.addf %353, %370 : vector<16x16xf32>
    %c50 = arith.constant 50 : index
    %372 = memref.load %arg2[%c50] : memref<432xf32, #tpu.memory_space<smem>>
    %373 = vector.broadcast %372 : f32 to vector<16x16xf32>
    %374 = arith.mulf %373, %367 : vector<16x16xf32>
    %375 = arith.addf %357, %374 : vector<16x16xf32>
    %c86 = arith.constant 86 : index
    %376 = memref.load %arg2[%c86] : memref<432xf32, #tpu.memory_space<smem>>
    %377 = vector.broadcast %376 : f32 to vector<16x16xf32>
    %378 = arith.mulf %377, %367 : vector<16x16xf32>
    %379 = arith.addf %361, %378 : vector<16x16xf32>
    %c122 = arith.constant 122 : index
    %380 = memref.load %arg2[%c122] : memref<432xf32, #tpu.memory_space<smem>>
    %381 = vector.broadcast %380 : f32 to vector<16x16xf32>
    %382 = arith.mulf %381, %367 : vector<16x16xf32>
    %383 = arith.addf %365, %382 : vector<16x16xf32>
    %c1_169 = arith.constant 1 : index
    %c2_170 = arith.constant 2 : index
    %c0_171 = arith.constant 0 : index
    %384 = vector.load %arg5[%c1_169, %c2_170, %c0_171] : memref<4x18x18xf32, #tpu.memory_space<vmem>>, vector<1x16x16xf32>
    %385 = vector.shape_cast %384 : vector<1x16x16xf32> to vector<16x16xf32>
    %c15 = arith.constant 15 : index
    %386 = memref.load %arg2[%c15] : memref<432xf32, #tpu.memory_space<smem>>
    %387 = vector.broadcast %386 : f32 to vector<16x16xf32>
    %388 = arith.mulf %387, %385 : vector<16x16xf32>
    %389 = arith.addf %371, %388 : vector<16x16xf32>
    %c51 = arith.constant 51 : index
    %390 = memref.load %arg2[%c51] : memref<432xf32, #tpu.memory_space<smem>>
    %391 = vector.broadcast %390 : f32 to vector<16x16xf32>
    %392 = arith.mulf %391, %385 : vector<16x16xf32>
    %393 = arith.addf %375, %392 : vector<16x16xf32>
    %c87 = arith.constant 87 : index
    %394 = memref.load %arg2[%c87] : memref<432xf32, #tpu.memory_space<smem>>
    %395 = vector.broadcast %394 : f32 to vector<16x16xf32>
    %396 = arith.mulf %395, %385 : vector<16x16xf32>
    %397 = arith.addf %379, %396 : vector<16x16xf32>
    %c123 = arith.constant 123 : index
    %398 = memref.load %arg2[%c123] : memref<432xf32, #tpu.memory_space<smem>>
    %399 = vector.broadcast %398 : f32 to vector<16x16xf32>
    %400 = arith.mulf %399, %385 : vector<16x16xf32>
    %401 = arith.addf %383, %400 : vector<16x16xf32>
    %c1_172 = arith.constant 1 : index
    %c2_173 = arith.constant 2 : index
    %c1_174 = arith.constant 1 : index
    %402 = vector.load %arg5[%c1_172, %c2_173, %c1_174] : memref<4x18x18xf32, #tpu.memory_space<vmem>>, vector<1x16x16xf32>
    %403 = vector.shape_cast %402 : vector<1x16x16xf32> to vector<16x16xf32>
    %c16 = arith.constant 16 : index
    %404 = memref.load %arg2[%c16] : memref<432xf32, #tpu.memory_space<smem>>
    %405 = vector.broadcast %404 : f32 to vector<16x16xf32>
    %406 = arith.mulf %405, %403 : vector<16x16xf32>
    %407 = arith.addf %389, %406 : vector<16x16xf32>
    %c52 = arith.constant 52 : index
    %408 = memref.load %arg2[%c52] : memref<432xf32, #tpu.memory_space<smem>>
    %409 = vector.broadcast %408 : f32 to vector<16x16xf32>
    %410 = arith.mulf %409, %403 : vector<16x16xf32>
    %411 = arith.addf %393, %410 : vector<16x16xf32>
    %c88 = arith.constant 88 : index
    %412 = memref.load %arg2[%c88] : memref<432xf32, #tpu.memory_space<smem>>
    %413 = vector.broadcast %412 : f32 to vector<16x16xf32>
    %414 = arith.mulf %413, %403 : vector<16x16xf32>
    %415 = arith.addf %397, %414 : vector<16x16xf32>
    %c124 = arith.constant 124 : index
    %416 = memref.load %arg2[%c124] : memref<432xf32, #tpu.memory_space<smem>>
    %417 = vector.broadcast %416 : f32 to vector<16x16xf32>
    %418 = arith.mulf %417, %403 : vector<16x16xf32>
    %419 = arith.addf %401, %418 : vector<16x16xf32>
    %c1_175 = arith.constant 1 : index
    %c2_176 = arith.constant 2 : index
    %c2_177 = arith.constant 2 : index
    %420 = vector.load %arg5[%c1_175, %c2_176, %c2_177] : memref<4x18x18xf32, #tpu.memory_space<vmem>>, vector<1x16x16xf32>
    %421 = vector.shape_cast %420 : vector<1x16x16xf32> to vector<16x16xf32>
    %c17_178 = arith.constant 17 : index
    %422 = memref.load %arg2[%c17_178] : memref<432xf32, #tpu.memory_space<smem>>
    %423 = vector.broadcast %422 : f32 to vector<16x16xf32>
    %424 = arith.mulf %423, %421 : vector<16x16xf32>
    %425 = arith.addf %407, %424 : vector<16x16xf32>
    %c53 = arith.constant 53 : index
    %426 = memref.load %arg2[%c53] : memref<432xf32, #tpu.memory_space<smem>>
    %427 = vector.broadcast %426 : f32 to vector<16x16xf32>
    %428 = arith.mulf %427, %421 : vector<16x16xf32>
    %429 = arith.addf %411, %428 : vector<16x16xf32>
    %c89 = arith.constant 89 : index
    %430 = memref.load %arg2[%c89] : memref<432xf32, #tpu.memory_space<smem>>
    %431 = vector.broadcast %430 : f32 to vector<16x16xf32>
    %432 = arith.mulf %431, %421 : vector<16x16xf32>
    %433 = arith.addf %415, %432 : vector<16x16xf32>
    %c125 = arith.constant 125 : index
    %434 = memref.load %arg2[%c125] : memref<432xf32, #tpu.memory_space<smem>>
    %435 = vector.broadcast %434 : f32 to vector<16x16xf32>
    %436 = arith.mulf %435, %421 : vector<16x16xf32>
    %437 = arith.addf %419, %436 : vector<16x16xf32>
    %c2_179 = arith.constant 2 : index
    %c0_180 = arith.constant 0 : index
    %c0_181 = arith.constant 0 : index
    %438 = vector.load %arg5[%c2_179, %c0_180, %c0_181] : memref<4x18x18xf32, #tpu.memory_space<vmem>>, vector<1x16x16xf32>
    %439 = vector.shape_cast %438 : vector<1x16x16xf32> to vector<16x16xf32>
    %c18 = arith.constant 18 : index
    %440 = memref.load %arg2[%c18] : memref<432xf32, #tpu.memory_space<smem>>
    %441 = vector.broadcast %440 : f32 to vector<16x16xf32>
    %442 = arith.mulf %441, %439 : vector<16x16xf32>
    %443 = arith.addf %425, %442 : vector<16x16xf32>
    %c54 = arith.constant 54 : index
    %444 = memref.load %arg2[%c54] : memref<432xf32, #tpu.memory_space<smem>>
    %445 = vector.broadcast %444 : f32 to vector<16x16xf32>
    %446 = arith.mulf %445, %439 : vector<16x16xf32>
    %447 = arith.addf %429, %446 : vector<16x16xf32>
    %c90 = arith.constant 90 : index
    %448 = memref.load %arg2[%c90] : memref<432xf32, #tpu.memory_space<smem>>
    %449 = vector.broadcast %448 : f32 to vector<16x16xf32>
    %450 = arith.mulf %449, %439 : vector<16x16xf32>
    %451 = arith.addf %433, %450 : vector<16x16xf32>
    %c126 = arith.constant 126 : index
    %452 = memref.load %arg2[%c126] : memref<432xf32, #tpu.memory_space<smem>>
    %453 = vector.broadcast %452 : f32 to vector<16x16xf32>
    %454 = arith.mulf %453, %439 : vector<16x16xf32>
    %455 = arith.addf %437, %454 : vector<16x16xf32>
    %c2_182 = arith.constant 2 : index
    %c0_183 = arith.constant 0 : index
    %c1_184 = arith.constant 1 : index
    %456 = vector.load %arg5[%c2_182, %c0_183, %c1_184] : memref<4x18x18xf32, #tpu.memory_space<vmem>>, vector<1x16x16xf32>
    %457 = vector.shape_cast %456 : vector<1x16x16xf32> to vector<16x16xf32>
    %c19 = arith.constant 19 : index
    %458 = memref.load %arg2[%c19] : memref<432xf32, #tpu.memory_space<smem>>
    %459 = vector.broadcast %458 : f32 to vector<16x16xf32>
    %460 = arith.mulf %459, %457 : vector<16x16xf32>
    %461 = arith.addf %443, %460 : vector<16x16xf32>
    %c55 = arith.constant 55 : index
    %462 = memref.load %arg2[%c55] : memref<432xf32, #tpu.memory_space<smem>>
    %463 = vector.broadcast %462 : f32 to vector<16x16xf32>
    %464 = arith.mulf %463, %457 : vector<16x16xf32>
    %465 = arith.addf %447, %464 : vector<16x16xf32>
    %c91 = arith.constant 91 : index
    %466 = memref.load %arg2[%c91] : memref<432xf32, #tpu.memory_space<smem>>
    %467 = vector.broadcast %466 : f32 to vector<16x16xf32>
    %468 = arith.mulf %467, %457 : vector<16x16xf32>
    %469 = arith.addf %451, %468 : vector<16x16xf32>
    %c127 = arith.constant 127 : index
    %470 = memref.load %arg2[%c127] : memref<432xf32, #tpu.memory_space<smem>>
    %471 = vector.broadcast %470 : f32 to vector<16x16xf32>
    %472 = arith.mulf %471, %457 : vector<16x16xf32>
    %473 = arith.addf %455, %472 : vector<16x16xf32>
    %c2_185 = arith.constant 2 : index
    %c0_186 = arith.constant 0 : index
    %c2_187 = arith.constant 2 : index
    %474 = vector.load %arg5[%c2_185, %c0_186, %c2_187] : memref<4x18x18xf32, #tpu.memory_space<vmem>>, vector<1x16x16xf32>
    %475 = vector.shape_cast %474 : vector<1x16x16xf32> to vector<16x16xf32>
    %c20 = arith.constant 20 : index
    %476 = memref.load %arg2[%c20] : memref<432xf32, #tpu.memory_space<smem>>
    %477 = vector.broadcast %476 : f32 to vector<16x16xf32>
    %478 = arith.mulf %477, %475 : vector<16x16xf32>
    %479 = arith.addf %461, %478 : vector<16x16xf32>
    %c56 = arith.constant 56 : index
    %480 = memref.load %arg2[%c56] : memref<432xf32, #tpu.memory_space<smem>>
    %481 = vector.broadcast %480 : f32 to vector<16x16xf32>
    %482 = arith.mulf %481, %475 : vector<16x16xf32>
    %483 = arith.addf %465, %482 : vector<16x16xf32>
    %c92 = arith.constant 92 : index
    %484 = memref.load %arg2[%c92] : memref<432xf32, #tpu.memory_space<smem>>
    %485 = vector.broadcast %484 : f32 to vector<16x16xf32>
    %486 = arith.mulf %485, %475 : vector<16x16xf32>
    %487 = arith.addf %469, %486 : vector<16x16xf32>
    %c128 = arith.constant 128 : index
    %488 = memref.load %arg2[%c128] : memref<432xf32, #tpu.memory_space<smem>>
    %489 = vector.broadcast %488 : f32 to vector<16x16xf32>
    %490 = arith.mulf %489, %475 : vector<16x16xf32>
    %491 = arith.addf %473, %490 : vector<16x16xf32>
    %c2_188 = arith.constant 2 : index
    %c1_189 = arith.constant 1 : index
    %c0_190 = arith.constant 0 : index
    %492 = vector.load %arg5[%c2_188, %c1_189, %c0_190] : memref<4x18x18xf32, #tpu.memory_space<vmem>>, vector<1x16x16xf32>
    %493 = vector.shape_cast %492 : vector<1x16x16xf32> to vector<16x16xf32>
    %c21 = arith.constant 21 : index
    %494 = memref.load %arg2[%c21] : memref<432xf32, #tpu.memory_space<smem>>
    %495 = vector.broadcast %494 : f32 to vector<16x16xf32>
    %496 = arith.mulf %495, %493 : vector<16x16xf32>
    %497 = arith.addf %479, %496 : vector<16x16xf32>
    %c57 = arith.constant 57 : index
    %498 = memref.load %arg2[%c57] : memref<432xf32, #tpu.memory_space<smem>>
    %499 = vector.broadcast %498 : f32 to vector<16x16xf32>
    %500 = arith.mulf %499, %493 : vector<16x16xf32>
    %501 = arith.addf %483, %500 : vector<16x16xf32>
    %c93 = arith.constant 93 : index
    %502 = memref.load %arg2[%c93] : memref<432xf32, #tpu.memory_space<smem>>
    %503 = vector.broadcast %502 : f32 to vector<16x16xf32>
    %504 = arith.mulf %503, %493 : vector<16x16xf32>
    %505 = arith.addf %487, %504 : vector<16x16xf32>
    %c129 = arith.constant 129 : index
    %506 = memref.load %arg2[%c129] : memref<432xf32, #tpu.memory_space<smem>>
    %507 = vector.broadcast %506 : f32 to vector<16x16xf32>
    %508 = arith.mulf %507, %493 : vector<16x16xf32>
    %509 = arith.addf %491, %508 : vector<16x16xf32>
    %c2_191 = arith.constant 2 : index
    %c1_192 = arith.constant 1 : index
    %c1_193 = arith.constant 1 : index
    %510 = vector.load %arg5[%c2_191, %c1_192, %c1_193] : memref<4x18x18xf32, #tpu.memory_space<vmem>>, vector<1x16x16xf32>
    %511 = vector.shape_cast %510 : vector<1x16x16xf32> to vector<16x16xf32>
    %c22 = arith.constant 22 : index
    %512 = memref.load %arg2[%c22] : memref<432xf32, #tpu.memory_space<smem>>
    %513 = vector.broadcast %512 : f32 to vector<16x16xf32>
    %514 = arith.mulf %513, %511 : vector<16x16xf32>
    %515 = arith.addf %497, %514 : vector<16x16xf32>
    %c58 = arith.constant 58 : index
    %516 = memref.load %arg2[%c58] : memref<432xf32, #tpu.memory_space<smem>>
    %517 = vector.broadcast %516 : f32 to vector<16x16xf32>
    %518 = arith.mulf %517, %511 : vector<16x16xf32>
    %519 = arith.addf %501, %518 : vector<16x16xf32>
    %c94 = arith.constant 94 : index
    %520 = memref.load %arg2[%c94] : memref<432xf32, #tpu.memory_space<smem>>
    %521 = vector.broadcast %520 : f32 to vector<16x16xf32>
    %522 = arith.mulf %521, %511 : vector<16x16xf32>
    %523 = arith.addf %505, %522 : vector<16x16xf32>
    %c130 = arith.constant 130 : index
    %524 = memref.load %arg2[%c130] : memref<432xf32, #tpu.memory_space<smem>>
    %525 = vector.broadcast %524 : f32 to vector<16x16xf32>
    %526 = arith.mulf %525, %511 : vector<16x16xf32>
    %527 = arith.addf %509, %526 : vector<16x16xf32>
    %c2_194 = arith.constant 2 : index
    %c1_195 = arith.constant 1 : index
    %c2_196 = arith.constant 2 : index
    %528 = vector.load %arg5[%c2_194, %c1_195, %c2_196] : memref<4x18x18xf32, #tpu.memory_space<vmem>>, vector<1x16x16xf32>
    %529 = vector.shape_cast %528 : vector<1x16x16xf32> to vector<16x16xf32>
    %c23 = arith.constant 23 : index
    %530 = memref.load %arg2[%c23] : memref<432xf32, #tpu.memory_space<smem>>
    %531 = vector.broadcast %530 : f32 to vector<16x16xf32>
    %532 = arith.mulf %531, %529 : vector<16x16xf32>
    %533 = arith.addf %515, %532 : vector<16x16xf32>
    %c59 = arith.constant 59 : index
    %534 = memref.load %arg2[%c59] : memref<432xf32, #tpu.memory_space<smem>>
    %535 = vector.broadcast %534 : f32 to vector<16x16xf32>
    %536 = arith.mulf %535, %529 : vector<16x16xf32>
    %537 = arith.addf %519, %536 : vector<16x16xf32>
    %c95 = arith.constant 95 : index
    %538 = memref.load %arg2[%c95] : memref<432xf32, #tpu.memory_space<smem>>
    %539 = vector.broadcast %538 : f32 to vector<16x16xf32>
    %540 = arith.mulf %539, %529 : vector<16x16xf32>
    %541 = arith.addf %523, %540 : vector<16x16xf32>
    %c131 = arith.constant 131 : index
    %542 = memref.load %arg2[%c131] : memref<432xf32, #tpu.memory_space<smem>>
    %543 = vector.broadcast %542 : f32 to vector<16x16xf32>
    %544 = arith.mulf %543, %529 : vector<16x16xf32>
    %545 = arith.addf %527, %544 : vector<16x16xf32>
    %c2_197 = arith.constant 2 : index
    %c2_198 = arith.constant 2 : index
    %c0_199 = arith.constant 0 : index
    %546 = vector.load %arg5[%c2_197, %c2_198, %c0_199] : memref<4x18x18xf32, #tpu.memory_space<vmem>>, vector<1x16x16xf32>
    %547 = vector.shape_cast %546 : vector<1x16x16xf32> to vector<16x16xf32>
    %c24 = arith.constant 24 : index
    %548 = memref.load %arg2[%c24] : memref<432xf32, #tpu.memory_space<smem>>
    %549 = vector.broadcast %548 : f32 to vector<16x16xf32>
    %550 = arith.mulf %549, %547 : vector<16x16xf32>
    %551 = arith.addf %533, %550 : vector<16x16xf32>
    %c60 = arith.constant 60 : index
    %552 = memref.load %arg2[%c60] : memref<432xf32, #tpu.memory_space<smem>>
    %553 = vector.broadcast %552 : f32 to vector<16x16xf32>
    %554 = arith.mulf %553, %547 : vector<16x16xf32>
    %555 = arith.addf %537, %554 : vector<16x16xf32>
    %c96 = arith.constant 96 : index
    %556 = memref.load %arg2[%c96] : memref<432xf32, #tpu.memory_space<smem>>
    %557 = vector.broadcast %556 : f32 to vector<16x16xf32>
    %558 = arith.mulf %557, %547 : vector<16x16xf32>
    %559 = arith.addf %541, %558 : vector<16x16xf32>
    %c132 = arith.constant 132 : index
    %560 = memref.load %arg2[%c132] : memref<432xf32, #tpu.memory_space<smem>>
    %561 = vector.broadcast %560 : f32 to vector<16x16xf32>
    %562 = arith.mulf %561, %547 : vector<16x16xf32>
    %563 = arith.addf %545, %562 : vector<16x16xf32>
    %c2_200 = arith.constant 2 : index
    %c2_201 = arith.constant 2 : index
    %c1_202 = arith.constant 1 : index
    %564 = vector.load %arg5[%c2_200, %c2_201, %c1_202] : memref<4x18x18xf32, #tpu.memory_space<vmem>>, vector<1x16x16xf32>
    %565 = vector.shape_cast %564 : vector<1x16x16xf32> to vector<16x16xf32>
    %c25 = arith.constant 25 : index
    %566 = memref.load %arg2[%c25] : memref<432xf32, #tpu.memory_space<smem>>
    %567 = vector.broadcast %566 : f32 to vector<16x16xf32>
    %568 = arith.mulf %567, %565 : vector<16x16xf32>
    %569 = arith.addf %551, %568 : vector<16x16xf32>
    %c61 = arith.constant 61 : index
    %570 = memref.load %arg2[%c61] : memref<432xf32, #tpu.memory_space<smem>>
    %571 = vector.broadcast %570 : f32 to vector<16x16xf32>
    %572 = arith.mulf %571, %565 : vector<16x16xf32>
    %573 = arith.addf %555, %572 : vector<16x16xf32>
    %c97 = arith.constant 97 : index
    %574 = memref.load %arg2[%c97] : memref<432xf32, #tpu.memory_space<smem>>
    %575 = vector.broadcast %574 : f32 to vector<16x16xf32>
    %576 = arith.mulf %575, %565 : vector<16x16xf32>
    %577 = arith.addf %559, %576 : vector<16x16xf32>
    %c133 = arith.constant 133 : index
    %578 = memref.load %arg2[%c133] : memref<432xf32, #tpu.memory_space<smem>>
    %579 = vector.broadcast %578 : f32 to vector<16x16xf32>
    %580 = arith.mulf %579, %565 : vector<16x16xf32>
    %581 = arith.addf %563, %580 : vector<16x16xf32>
    %c2_203 = arith.constant 2 : index
    %c2_204 = arith.constant 2 : index
    %c2_205 = arith.constant 2 : index
    %582 = vector.load %arg5[%c2_203, %c2_204, %c2_205] : memref<4x18x18xf32, #tpu.memory_space<vmem>>, vector<1x16x16xf32>
    %583 = vector.shape_cast %582 : vector<1x16x16xf32> to vector<16x16xf32>
    %c26 = arith.constant 26 : index
    %584 = memref.load %arg2[%c26] : memref<432xf32, #tpu.memory_space<smem>>
    %585 = vector.broadcast %584 : f32 to vector<16x16xf32>
    %586 = arith.mulf %585, %583 : vector<16x16xf32>
    %587 = arith.addf %569, %586 : vector<16x16xf32>
    %c62 = arith.constant 62 : index
    %588 = memref.load %arg2[%c62] : memref<432xf32, #tpu.memory_space<smem>>
    %589 = vector.broadcast %588 : f32 to vector<16x16xf32>
    %590 = arith.mulf %589, %583 : vector<16x16xf32>
    %591 = arith.addf %573, %590 : vector<16x16xf32>
    %c98 = arith.constant 98 : index
    %592 = memref.load %arg2[%c98] : memref<432xf32, #tpu.memory_space<smem>>
    %593 = vector.broadcast %592 : f32 to vector<16x16xf32>
    %594 = arith.mulf %593, %583 : vector<16x16xf32>
    %595 = arith.addf %577, %594 : vector<16x16xf32>
    %c134 = arith.constant 134 : index
    %596 = memref.load %arg2[%c134] : memref<432xf32, #tpu.memory_space<smem>>
    %597 = vector.broadcast %596 : f32 to vector<16x16xf32>
    %598 = arith.mulf %597, %583 : vector<16x16xf32>
    %599 = arith.addf %581, %598 : vector<16x16xf32>
    %c3_206 = arith.constant 3 : index
    %c0_207 = arith.constant 0 : index
    %c0_208 = arith.constant 0 : index
    %600 = vector.load %arg5[%c3_206, %c0_207, %c0_208] : memref<4x18x18xf32, #tpu.memory_space<vmem>>, vector<1x16x16xf32>
    %601 = vector.shape_cast %600 : vector<1x16x16xf32> to vector<16x16xf32>
    %c27 = arith.constant 27 : index
    %602 = memref.load %arg2[%c27] : memref<432xf32, #tpu.memory_space<smem>>
    %603 = vector.broadcast %602 : f32 to vector<16x16xf32>
    %604 = arith.mulf %603, %601 : vector<16x16xf32>
    %605 = arith.addf %587, %604 : vector<16x16xf32>
    %c63 = arith.constant 63 : index
    %606 = memref.load %arg2[%c63] : memref<432xf32, #tpu.memory_space<smem>>
    %607 = vector.broadcast %606 : f32 to vector<16x16xf32>
    %608 = arith.mulf %607, %601 : vector<16x16xf32>
    %609 = arith.addf %591, %608 : vector<16x16xf32>
    %c99 = arith.constant 99 : index
    %610 = memref.load %arg2[%c99] : memref<432xf32, #tpu.memory_space<smem>>
    %611 = vector.broadcast %610 : f32 to vector<16x16xf32>
    %612 = arith.mulf %611, %601 : vector<16x16xf32>
    %613 = arith.addf %595, %612 : vector<16x16xf32>
    %c135 = arith.constant 135 : index
    %614 = memref.load %arg2[%c135] : memref<432xf32, #tpu.memory_space<smem>>
    %615 = vector.broadcast %614 : f32 to vector<16x16xf32>
    %616 = arith.mulf %615, %601 : vector<16x16xf32>
    %617 = arith.addf %599, %616 : vector<16x16xf32>
    %c3_209 = arith.constant 3 : index
    %c0_210 = arith.constant 0 : index
    %c1_211 = arith.constant 1 : index
    %618 = vector.load %arg5[%c3_209, %c0_210, %c1_211] : memref<4x18x18xf32, #tpu.memory_space<vmem>>, vector<1x16x16xf32>
    %619 = vector.shape_cast %618 : vector<1x16x16xf32> to vector<16x16xf32>
    %c28 = arith.constant 28 : index
    %620 = memref.load %arg2[%c28] : memref<432xf32, #tpu.memory_space<smem>>
    %621 = vector.broadcast %620 : f32 to vector<16x16xf32>
    %622 = arith.mulf %621, %619 : vector<16x16xf32>
    %623 = arith.addf %605, %622 : vector<16x16xf32>
    %c64 = arith.constant 64 : index
    %624 = memref.load %arg2[%c64] : memref<432xf32, #tpu.memory_space<smem>>
    %625 = vector.broadcast %624 : f32 to vector<16x16xf32>
    %626 = arith.mulf %625, %619 : vector<16x16xf32>
    %627 = arith.addf %609, %626 : vector<16x16xf32>
    %c100 = arith.constant 100 : index
    %628 = memref.load %arg2[%c100] : memref<432xf32, #tpu.memory_space<smem>>
    %629 = vector.broadcast %628 : f32 to vector<16x16xf32>
    %630 = arith.mulf %629, %619 : vector<16x16xf32>
    %631 = arith.addf %613, %630 : vector<16x16xf32>
    %c136 = arith.constant 136 : index
    %632 = memref.load %arg2[%c136] : memref<432xf32, #tpu.memory_space<smem>>
    %633 = vector.broadcast %632 : f32 to vector<16x16xf32>
    %634 = arith.mulf %633, %619 : vector<16x16xf32>
    %635 = arith.addf %617, %634 : vector<16x16xf32>
    %c3_212 = arith.constant 3 : index
    %c0_213 = arith.constant 0 : index
    %c2_214 = arith.constant 2 : index
    %636 = vector.load %arg5[%c3_212, %c0_213, %c2_214] : memref<4x18x18xf32, #tpu.memory_space<vmem>>, vector<1x16x16xf32>
    %637 = vector.shape_cast %636 : vector<1x16x16xf32> to vector<16x16xf32>
    %c29 = arith.constant 29 : index
    %638 = memref.load %arg2[%c29] : memref<432xf32, #tpu.memory_space<smem>>
    %639 = vector.broadcast %638 : f32 to vector<16x16xf32>
    %640 = arith.mulf %639, %637 : vector<16x16xf32>
    %641 = arith.addf %623, %640 : vector<16x16xf32>
    %c65 = arith.constant 65 : index
    %642 = memref.load %arg2[%c65] : memref<432xf32, #tpu.memory_space<smem>>
    %643 = vector.broadcast %642 : f32 to vector<16x16xf32>
    %644 = arith.mulf %643, %637 : vector<16x16xf32>
    %645 = arith.addf %627, %644 : vector<16x16xf32>
    %c101 = arith.constant 101 : index
    %646 = memref.load %arg2[%c101] : memref<432xf32, #tpu.memory_space<smem>>
    %647 = vector.broadcast %646 : f32 to vector<16x16xf32>
    %648 = arith.mulf %647, %637 : vector<16x16xf32>
    %649 = arith.addf %631, %648 : vector<16x16xf32>
    %c137 = arith.constant 137 : index
    %650 = memref.load %arg2[%c137] : memref<432xf32, #tpu.memory_space<smem>>
    %651 = vector.broadcast %650 : f32 to vector<16x16xf32>
    %652 = arith.mulf %651, %637 : vector<16x16xf32>
    %653 = arith.addf %635, %652 : vector<16x16xf32>
    %c3_215 = arith.constant 3 : index
    %c1_216 = arith.constant 1 : index
    %c0_217 = arith.constant 0 : index
    %654 = vector.load %arg5[%c3_215, %c1_216, %c0_217] : memref<4x18x18xf32, #tpu.memory_space<vmem>>, vector<1x16x16xf32>
    %655 = vector.shape_cast %654 : vector<1x16x16xf32> to vector<16x16xf32>
    %c30 = arith.constant 30 : index
    %656 = memref.load %arg2[%c30] : memref<432xf32, #tpu.memory_space<smem>>
    %657 = vector.broadcast %656 : f32 to vector<16x16xf32>
    %658 = arith.mulf %657, %655 : vector<16x16xf32>
    %659 = arith.addf %641, %658 : vector<16x16xf32>
    %c66 = arith.constant 66 : index
    %660 = memref.load %arg2[%c66] : memref<432xf32, #tpu.memory_space<smem>>
    %661 = vector.broadcast %660 : f32 to vector<16x16xf32>
    %662 = arith.mulf %661, %655 : vector<16x16xf32>
    %663 = arith.addf %645, %662 : vector<16x16xf32>
    %c102 = arith.constant 102 : index
    %664 = memref.load %arg2[%c102] : memref<432xf32, #tpu.memory_space<smem>>
    %665 = vector.broadcast %664 : f32 to vector<16x16xf32>
    %666 = arith.mulf %665, %655 : vector<16x16xf32>
    %667 = arith.addf %649, %666 : vector<16x16xf32>
    %c138 = arith.constant 138 : index
    %668 = memref.load %arg2[%c138] : memref<432xf32, #tpu.memory_space<smem>>
    %669 = vector.broadcast %668 : f32 to vector<16x16xf32>
    %670 = arith.mulf %669, %655 : vector<16x16xf32>
    %671 = arith.addf %653, %670 : vector<16x16xf32>
    %c3_218 = arith.constant 3 : index
    %c1_219 = arith.constant 1 : index
    %c1_220 = arith.constant 1 : index
    %672 = vector.load %arg5[%c3_218, %c1_219, %c1_220] : memref<4x18x18xf32, #tpu.memory_space<vmem>>, vector<1x16x16xf32>
    %673 = vector.shape_cast %672 : vector<1x16x16xf32> to vector<16x16xf32>
    %c31 = arith.constant 31 : index
    %674 = memref.load %arg2[%c31] : memref<432xf32, #tpu.memory_space<smem>>
    %675 = vector.broadcast %674 : f32 to vector<16x16xf32>
    %676 = arith.mulf %675, %673 : vector<16x16xf32>
    %677 = arith.addf %659, %676 : vector<16x16xf32>
    %c67 = arith.constant 67 : index
    %678 = memref.load %arg2[%c67] : memref<432xf32, #tpu.memory_space<smem>>
    %679 = vector.broadcast %678 : f32 to vector<16x16xf32>
    %680 = arith.mulf %679, %673 : vector<16x16xf32>
    %681 = arith.addf %663, %680 : vector<16x16xf32>
    %c103 = arith.constant 103 : index
    %682 = memref.load %arg2[%c103] : memref<432xf32, #tpu.memory_space<smem>>
    %683 = vector.broadcast %682 : f32 to vector<16x16xf32>
    %684 = arith.mulf %683, %673 : vector<16x16xf32>
    %685 = arith.addf %667, %684 : vector<16x16xf32>
    %c139 = arith.constant 139 : index
    %686 = memref.load %arg2[%c139] : memref<432xf32, #tpu.memory_space<smem>>
    %687 = vector.broadcast %686 : f32 to vector<16x16xf32>
    %688 = arith.mulf %687, %673 : vector<16x16xf32>
    %689 = arith.addf %671, %688 : vector<16x16xf32>
    %c3_221 = arith.constant 3 : index
    %c1_222 = arith.constant 1 : index
    %c2_223 = arith.constant 2 : index
    %690 = vector.load %arg5[%c3_221, %c1_222, %c2_223] : memref<4x18x18xf32, #tpu.memory_space<vmem>>, vector<1x16x16xf32>
    %691 = vector.shape_cast %690 : vector<1x16x16xf32> to vector<16x16xf32>
    %c32 = arith.constant 32 : index
    %692 = memref.load %arg2[%c32] : memref<432xf32, #tpu.memory_space<smem>>
    %693 = vector.broadcast %692 : f32 to vector<16x16xf32>
    %694 = arith.mulf %693, %691 : vector<16x16xf32>
    %695 = arith.addf %677, %694 : vector<16x16xf32>
    %c68 = arith.constant 68 : index
    %696 = memref.load %arg2[%c68] : memref<432xf32, #tpu.memory_space<smem>>
    %697 = vector.broadcast %696 : f32 to vector<16x16xf32>
    %698 = arith.mulf %697, %691 : vector<16x16xf32>
    %699 = arith.addf %681, %698 : vector<16x16xf32>
    %c104 = arith.constant 104 : index
    %700 = memref.load %arg2[%c104] : memref<432xf32, #tpu.memory_space<smem>>
    %701 = vector.broadcast %700 : f32 to vector<16x16xf32>
    %702 = arith.mulf %701, %691 : vector<16x16xf32>
    %703 = arith.addf %685, %702 : vector<16x16xf32>
    %c140 = arith.constant 140 : index
    %704 = memref.load %arg2[%c140] : memref<432xf32, #tpu.memory_space<smem>>
    %705 = vector.broadcast %704 : f32 to vector<16x16xf32>
    %706 = arith.mulf %705, %691 : vector<16x16xf32>
    %707 = arith.addf %689, %706 : vector<16x16xf32>
    %c3_224 = arith.constant 3 : index
    %c2_225 = arith.constant 2 : index
    %c0_226 = arith.constant 0 : index
    %708 = vector.load %arg5[%c3_224, %c2_225, %c0_226] : memref<4x18x18xf32, #tpu.memory_space<vmem>>, vector<1x16x16xf32>
    %709 = vector.shape_cast %708 : vector<1x16x16xf32> to vector<16x16xf32>
    %c33 = arith.constant 33 : index
    %710 = memref.load %arg2[%c33] : memref<432xf32, #tpu.memory_space<smem>>
    %711 = vector.broadcast %710 : f32 to vector<16x16xf32>
    %712 = arith.mulf %711, %709 : vector<16x16xf32>
    %713 = arith.addf %695, %712 : vector<16x16xf32>
    %c69 = arith.constant 69 : index
    %714 = memref.load %arg2[%c69] : memref<432xf32, #tpu.memory_space<smem>>
    %715 = vector.broadcast %714 : f32 to vector<16x16xf32>
    %716 = arith.mulf %715, %709 : vector<16x16xf32>
    %717 = arith.addf %699, %716 : vector<16x16xf32>
    %c105 = arith.constant 105 : index
    %718 = memref.load %arg2[%c105] : memref<432xf32, #tpu.memory_space<smem>>
    %719 = vector.broadcast %718 : f32 to vector<16x16xf32>
    %720 = arith.mulf %719, %709 : vector<16x16xf32>
    %721 = arith.addf %703, %720 : vector<16x16xf32>
    %c141 = arith.constant 141 : index
    %722 = memref.load %arg2[%c141] : memref<432xf32, #tpu.memory_space<smem>>
    %723 = vector.broadcast %722 : f32 to vector<16x16xf32>
    %724 = arith.mulf %723, %709 : vector<16x16xf32>
    %725 = arith.addf %707, %724 : vector<16x16xf32>
    %c3_227 = arith.constant 3 : index
    %c2_228 = arith.constant 2 : index
    %c1_229 = arith.constant 1 : index
    %726 = vector.load %arg5[%c3_227, %c2_228, %c1_229] : memref<4x18x18xf32, #tpu.memory_space<vmem>>, vector<1x16x16xf32>
    %727 = vector.shape_cast %726 : vector<1x16x16xf32> to vector<16x16xf32>
    %c34 = arith.constant 34 : index
    %728 = memref.load %arg2[%c34] : memref<432xf32, #tpu.memory_space<smem>>
    %729 = vector.broadcast %728 : f32 to vector<16x16xf32>
    %730 = arith.mulf %729, %727 : vector<16x16xf32>
    %731 = arith.addf %713, %730 : vector<16x16xf32>
    %c70 = arith.constant 70 : index
    %732 = memref.load %arg2[%c70] : memref<432xf32, #tpu.memory_space<smem>>
    %733 = vector.broadcast %732 : f32 to vector<16x16xf32>
    %734 = arith.mulf %733, %727 : vector<16x16xf32>
    %735 = arith.addf %717, %734 : vector<16x16xf32>
    %c106 = arith.constant 106 : index
    %736 = memref.load %arg2[%c106] : memref<432xf32, #tpu.memory_space<smem>>
    %737 = vector.broadcast %736 : f32 to vector<16x16xf32>
    %738 = arith.mulf %737, %727 : vector<16x16xf32>
    %739 = arith.addf %721, %738 : vector<16x16xf32>
    %c142 = arith.constant 142 : index
    %740 = memref.load %arg2[%c142] : memref<432xf32, #tpu.memory_space<smem>>
    %741 = vector.broadcast %740 : f32 to vector<16x16xf32>
    %742 = arith.mulf %741, %727 : vector<16x16xf32>
    %743 = arith.addf %725, %742 : vector<16x16xf32>
    %c3_230 = arith.constant 3 : index
    %c2_231 = arith.constant 2 : index
    %c2_232 = arith.constant 2 : index
    %744 = vector.load %arg5[%c3_230, %c2_231, %c2_232] : memref<4x18x18xf32, #tpu.memory_space<vmem>>, vector<1x16x16xf32>
    %745 = vector.shape_cast %744 : vector<1x16x16xf32> to vector<16x16xf32>
    %c35 = arith.constant 35 : index
    %746 = memref.load %arg2[%c35] : memref<432xf32, #tpu.memory_space<smem>>
    %747 = vector.broadcast %746 : f32 to vector<16x16xf32>
    %748 = arith.mulf %747, %745 : vector<16x16xf32>
    %749 = arith.addf %731, %748 : vector<16x16xf32>
    %c71 = arith.constant 71 : index
    %750 = memref.load %arg2[%c71] : memref<432xf32, #tpu.memory_space<smem>>
    %751 = vector.broadcast %750 : f32 to vector<16x16xf32>
    %752 = arith.mulf %751, %745 : vector<16x16xf32>
    %753 = arith.addf %735, %752 : vector<16x16xf32>
    %c107 = arith.constant 107 : index
    %754 = memref.load %arg2[%c107] : memref<432xf32, #tpu.memory_space<smem>>
    %755 = vector.broadcast %754 : f32 to vector<16x16xf32>
    %756 = arith.mulf %755, %745 : vector<16x16xf32>
    %757 = arith.addf %739, %756 : vector<16x16xf32>
    %c143 = arith.constant 143 : index
    %758 = memref.load %arg2[%c143] : memref<432xf32, #tpu.memory_space<smem>>
    %759 = vector.broadcast %758 : f32 to vector<16x16xf32>
    %760 = arith.mulf %759, %745 : vector<16x16xf32>
    %761 = arith.addf %743, %760 : vector<16x16xf32>
    %c0_233 = arith.constant 0 : index
    %762 = memref.load %arg3[%c0_233] : memref<12xf32, #tpu.memory_space<smem>>
    %763 = vector.broadcast %762 : f32 to vector<16x16xf32>
    %764 = arith.addf %749, %763 : vector<16x16xf32>
    %c1_234 = arith.constant 1 : index
    %765 = memref.load %arg3[%c1_234] : memref<12xf32, #tpu.memory_space<smem>>
    %766 = vector.broadcast %765 : f32 to vector<16x16xf32>
    %767 = arith.addf %753, %766 : vector<16x16xf32>
    %c2_235 = arith.constant 2 : index
    %768 = memref.load %arg3[%c2_235] : memref<12xf32, #tpu.memory_space<smem>>
    %769 = vector.broadcast %768 : f32 to vector<16x16xf32>
    %770 = arith.addf %757, %769 : vector<16x16xf32>
    %c3_236 = arith.constant 3 : index
    %771 = memref.load %arg3[%c3_236] : memref<12xf32, #tpu.memory_space<smem>>
    %772 = vector.broadcast %771 : f32 to vector<16x16xf32>
    %773 = arith.addf %761, %772 : vector<16x16xf32>
    %c0_237 = arith.constant 0 : index
    %c1_238 = arith.constant 1 : index
    %c1_239 = arith.constant 1 : index
    %774 = vector.load %arg6[%c0_237, %c1_238, %c1_239] : memref<4x18x18xf32, #tpu.memory_space<vmem>>, vector<1x16x16xf32>
    %775 = vector.shape_cast %774 : vector<1x16x16xf32> to vector<16x16xf32>
    %776 = vector.shape_cast %764 : vector<16x16xf32> to vector<1x16x16xf32>
    tpu.vector_store %arg6[%c0_237, %c1_238, %c1_239], %776 {strides = array<i32>} : memref<4x18x18xf32, #tpu.memory_space<vmem>>, vector<1x16x16xf32>,
    %c1_240 = arith.constant 1 : index
    %c1_241 = arith.constant 1 : index
    %c1_242 = arith.constant 1 : index
    %777 = vector.load %arg6[%c1_240, %c1_241, %c1_242] : memref<4x18x18xf32, #tpu.memory_space<vmem>>, vector<1x16x16xf32>
    %778 = vector.shape_cast %777 : vector<1x16x16xf32> to vector<16x16xf32>
    %779 = vector.shape_cast %767 : vector<16x16xf32> to vector<1x16x16xf32>
    tpu.vector_store %arg6[%c1_240, %c1_241, %c1_242], %779 {strides = array<i32>} : memref<4x18x18xf32, #tpu.memory_space<vmem>>, vector<1x16x16xf32>,
    %c2_243 = arith.constant 2 : index
    %c1_244 = arith.constant 1 : index
    %c1_245 = arith.constant 1 : index
    %780 = vector.load %arg6[%c2_243, %c1_244, %c1_245] : memref<4x18x18xf32, #tpu.memory_space<vmem>>, vector<1x16x16xf32>
    %781 = vector.shape_cast %780 : vector<1x16x16xf32> to vector<16x16xf32>
    %782 = vector.shape_cast %770 : vector<16x16xf32> to vector<1x16x16xf32>
    tpu.vector_store %arg6[%c2_243, %c1_244, %c1_245], %782 {strides = array<i32>} : memref<4x18x18xf32, #tpu.memory_space<vmem>>, vector<1x16x16xf32>,
    %c3_246 = arith.constant 3 : index
    %c1_247 = arith.constant 1 : index
    %c1_248 = arith.constant 1 : index
    %783 = vector.load %arg6[%c3_246, %c1_247, %c1_248] : memref<4x18x18xf32, #tpu.memory_space<vmem>>, vector<1x16x16xf32>
    %784 = vector.shape_cast %783 : vector<1x16x16xf32> to vector<16x16xf32>
    %785 = vector.shape_cast %773 : vector<16x16xf32> to vector<1x16x16xf32>
    tpu.vector_store %arg6[%c3_246, %c1_247, %c1_248], %785 {strides = array<i32>} : memref<4x18x18xf32, #tpu.memory_space<vmem>>, vector<1x16x16xf32>,
    %c0_249 = arith.constant 0 : index
    %c0_250 = arith.constant 0 : index
    %c0_251 = arith.constant 0 : index
    %786 = vector.load %arg6[%c0_249, %c0_250, %c0_251] : memref<4x18x18xf32, #tpu.memory_space<vmem>>, vector<1x16x16xf32>
    %787 = vector.shape_cast %786 : vector<1x16x16xf32> to vector<16x16xf32>
    %c144 = arith.constant 144 : index
    %788 = memref.load %arg2[%c144] : memref<432xf32, #tpu.memory_space<smem>>
    %789 = vector.broadcast %788 : f32 to vector<16x16xf32>
    %790 = arith.mulf %789, %787 : vector<16x16xf32>
    %c180 = arith.constant 180 : index
    %791 = memref.load %arg2[%c180] : memref<432xf32, #tpu.memory_space<smem>>
    %792 = vector.broadcast %791 : f32 to vector<16x16xf32>
    %793 = arith.mulf %792, %787 : vector<16x16xf32>
    %c216 = arith.constant 216 : index
    %794 = memref.load %arg2[%c216] : memref<432xf32, #tpu.memory_space<smem>>
    %795 = vector.broadcast %794 : f32 to vector<16x16xf32>
    %796 = arith.mulf %795, %787 : vector<16x16xf32>
    %c252 = arith.constant 252 : index
    %797 = memref.load %arg2[%c252] : memref<432xf32, #tpu.memory_space<smem>>
    %798 = vector.broadcast %797 : f32 to vector<16x16xf32>
    %799 = arith.mulf %798, %787 : vector<16x16xf32>
    %c0_252 = arith.constant 0 : index
    %c0_253 = arith.constant 0 : index
    %c1_254 = arith.constant 1 : index
    %800 = vector.load %arg6[%c0_252, %c0_253, %c1_254] : memref<4x18x18xf32, #tpu.memory_space<vmem>>, vector<1x16x16xf32>
    %801 = vector.shape_cast %800 : vector<1x16x16xf32> to vector<16x16xf32>
    %c145 = arith.constant 145 : index
    %802 = memref.load %arg2[%c145] : memref<432xf32, #tpu.memory_space<smem>>
    %803 = vector.broadcast %802 : f32 to vector<16x16xf32>
    %804 = arith.mulf %803, %801 : vector<16x16xf32>
    %805 = arith.addf %790, %804 : vector<16x16xf32>
    %c181 = arith.constant 181 : index
    %806 = memref.load %arg2[%c181] : memref<432xf32, #tpu.memory_space<smem>>
    %807 = vector.broadcast %806 : f32 to vector<16x16xf32>
    %808 = arith.mulf %807, %801 : vector<16x16xf32>
    %809 = arith.addf %793, %808 : vector<16x16xf32>
    %c217 = arith.constant 217 : index
    %810 = memref.load %arg2[%c217] : memref<432xf32, #tpu.memory_space<smem>>
    %811 = vector.broadcast %810 : f32 to vector<16x16xf32>
    %812 = arith.mulf %811, %801 : vector<16x16xf32>
    %813 = arith.addf %796, %812 : vector<16x16xf32>
    %c253 = arith.constant 253 : index
    %814 = memref.load %arg2[%c253] : memref<432xf32, #tpu.memory_space<smem>>
    %815 = vector.broadcast %814 : f32 to vector<16x16xf32>
    %816 = arith.mulf %815, %801 : vector<16x16xf32>
    %817 = arith.addf %799, %816 : vector<16x16xf32>
    %c0_255 = arith.constant 0 : index
    %c0_256 = arith.constant 0 : index
    %c2_257 = arith.constant 2 : index
    %818 = vector.load %arg6[%c0_255, %c0_256, %c2_257] : memref<4x18x18xf32, #tpu.memory_space<vmem>>, vector<1x16x16xf32>
    %819 = vector.shape_cast %818 : vector<1x16x16xf32> to vector<16x16xf32>
    %c146 = arith.constant 146 : index
    %820 = memref.load %arg2[%c146] : memref<432xf32, #tpu.memory_space<smem>>
    %821 = vector.broadcast %820 : f32 to vector<16x16xf32>
    %822 = arith.mulf %821, %819 : vector<16x16xf32>
    %823 = arith.addf %805, %822 : vector<16x16xf32>
    %c182 = arith.constant 182 : index
    %824 = memref.load %arg2[%c182] : memref<432xf32, #tpu.memory_space<smem>>
    %825 = vector.broadcast %824 : f32 to vector<16x16xf32>
    %826 = arith.mulf %825, %819 : vector<16x16xf32>
    %827 = arith.addf %809, %826 : vector<16x16xf32>
    %c218 = arith.constant 218 : index
    %828 = memref.load %arg2[%c218] : memref<432xf32, #tpu.memory_space<smem>>
    %829 = vector.broadcast %828 : f32 to vector<16x16xf32>
    %830 = arith.mulf %829, %819 : vector<16x16xf32>
    %831 = arith.addf %813, %830 : vector<16x16xf32>
    %c254 = arith.constant 254 : index
    %832 = memref.load %arg2[%c254] : memref<432xf32, #tpu.memory_space<smem>>
    %833 = vector.broadcast %832 : f32 to vector<16x16xf32>
    %834 = arith.mulf %833, %819 : vector<16x16xf32>
    %835 = arith.addf %817, %834 : vector<16x16xf32>
    %c0_258 = arith.constant 0 : index
    %c1_259 = arith.constant 1 : index
    %c0_260 = arith.constant 0 : index
    %836 = vector.load %arg6[%c0_258, %c1_259, %c0_260] : memref<4x18x18xf32, #tpu.memory_space<vmem>>, vector<1x16x16xf32>
    %837 = vector.shape_cast %836 : vector<1x16x16xf32> to vector<16x16xf32>
    %c147 = arith.constant 147 : index
    %838 = memref.load %arg2[%c147] : memref<432xf32, #tpu.memory_space<smem>>
    %839 = vector.broadcast %838 : f32 to vector<16x16xf32>
    %840 = arith.mulf %839, %837 : vector<16x16xf32>
    %841 = arith.addf %823, %840 : vector<16x16xf32>
    %c183 = arith.constant 183 : index
    %842 = memref.load %arg2[%c183] : memref<432xf32, #tpu.memory_space<smem>>
    %843 = vector.broadcast %842 : f32 to vector<16x16xf32>
    %844 = arith.mulf %843, %837 : vector<16x16xf32>
    %845 = arith.addf %827, %844 : vector<16x16xf32>
    %c219 = arith.constant 219 : index
    %846 = memref.load %arg2[%c219] : memref<432xf32, #tpu.memory_space<smem>>
    %847 = vector.broadcast %846 : f32 to vector<16x16xf32>
    %848 = arith.mulf %847, %837 : vector<16x16xf32>
    %849 = arith.addf %831, %848 : vector<16x16xf32>
    %c255 = arith.constant 255 : index
    %850 = memref.load %arg2[%c255] : memref<432xf32, #tpu.memory_space<smem>>
    %851 = vector.broadcast %850 : f32 to vector<16x16xf32>
    %852 = arith.mulf %851, %837 : vector<16x16xf32>
    %853 = arith.addf %835, %852 : vector<16x16xf32>
    %c0_261 = arith.constant 0 : index
    %c1_262 = arith.constant 1 : index
    %c1_263 = arith.constant 1 : index
    %854 = vector.load %arg6[%c0_261, %c1_262, %c1_263] : memref<4x18x18xf32, #tpu.memory_space<vmem>>, vector<1x16x16xf32>
    %855 = vector.shape_cast %854 : vector<1x16x16xf32> to vector<16x16xf32>
    %c148 = arith.constant 148 : index
    %856 = memref.load %arg2[%c148] : memref<432xf32, #tpu.memory_space<smem>>
    %857 = vector.broadcast %856 : f32 to vector<16x16xf32>
    %858 = arith.mulf %857, %855 : vector<16x16xf32>
    %859 = arith.addf %841, %858 : vector<16x16xf32>
    %c184 = arith.constant 184 : index
    %860 = memref.load %arg2[%c184] : memref<432xf32, #tpu.memory_space<smem>>
    %861 = vector.broadcast %860 : f32 to vector<16x16xf32>
    %862 = arith.mulf %861, %855 : vector<16x16xf32>
    %863 = arith.addf %845, %862 : vector<16x16xf32>
    %c220 = arith.constant 220 : index
    %864 = memref.load %arg2[%c220] : memref<432xf32, #tpu.memory_space<smem>>
    %865 = vector.broadcast %864 : f32 to vector<16x16xf32>
    %866 = arith.mulf %865, %855 : vector<16x16xf32>
    %867 = arith.addf %849, %866 : vector<16x16xf32>
    %c256 = arith.constant 256 : index
    %868 = memref.load %arg2[%c256] : memref<432xf32, #tpu.memory_space<smem>>
    %869 = vector.broadcast %868 : f32 to vector<16x16xf32>
    %870 = arith.mulf %869, %855 : vector<16x16xf32>
    %871 = arith.addf %853, %870 : vector<16x16xf32>
    %c0_264 = arith.constant 0 : index
    %c1_265 = arith.constant 1 : index
    %c2_266 = arith.constant 2 : index
    %872 = vector.load %arg6[%c0_264, %c1_265, %c2_266] : memref<4x18x18xf32, #tpu.memory_space<vmem>>, vector<1x16x16xf32>
    %873 = vector.shape_cast %872 : vector<1x16x16xf32> to vector<16x16xf32>
    %c149 = arith.constant 149 : index
    %874 = memref.load %arg2[%c149] : memref<432xf32, #tpu.memory_space<smem>>
    %875 = vector.broadcast %874 : f32 to vector<16x16xf32>
    %876 = arith.mulf %875, %873 : vector<16x16xf32>
    %877 = arith.addf %859, %876 : vector<16x16xf32>
    %c185 = arith.constant 185 : index
    %878 = memref.load %arg2[%c185] : memref<432xf32, #tpu.memory_space<smem>>
    %879 = vector.broadcast %878 : f32 to vector<16x16xf32>
    %880 = arith.mulf %879, %873 : vector<16x16xf32>
    %881 = arith.addf %863, %880 : vector<16x16xf32>
    %c221 = arith.constant 221 : index
    %882 = memref.load %arg2[%c221] : memref<432xf32, #tpu.memory_space<smem>>
    %883 = vector.broadcast %882 : f32 to vector<16x16xf32>
    %884 = arith.mulf %883, %873 : vector<16x16xf32>
    %885 = arith.addf %867, %884 : vector<16x16xf32>
    %c257 = arith.constant 257 : index
    %886 = memref.load %arg2[%c257] : memref<432xf32, #tpu.memory_space<smem>>
    %887 = vector.broadcast %886 : f32 to vector<16x16xf32>
    %888 = arith.mulf %887, %873 : vector<16x16xf32>
    %889 = arith.addf %871, %888 : vector<16x16xf32>
    %c0_267 = arith.constant 0 : index
    %c2_268 = arith.constant 2 : index
    %c0_269 = arith.constant 0 : index
    %890 = vector.load %arg6[%c0_267, %c2_268, %c0_269] : memref<4x18x18xf32, #tpu.memory_space<vmem>>, vector<1x16x16xf32>
    %891 = vector.shape_cast %890 : vector<1x16x16xf32> to vector<16x16xf32>
    %c150 = arith.constant 150 : index
    %892 = memref.load %arg2[%c150] : memref<432xf32, #tpu.memory_space<smem>>
    %893 = vector.broadcast %892 : f32 to vector<16x16xf32>
    %894 = arith.mulf %893, %891 : vector<16x16xf32>
    %895 = arith.addf %877, %894 : vector<16x16xf32>
    %c186 = arith.constant 186 : index
    %896 = memref.load %arg2[%c186] : memref<432xf32, #tpu.memory_space<smem>>
    %897 = vector.broadcast %896 : f32 to vector<16x16xf32>
    %898 = arith.mulf %897, %891 : vector<16x16xf32>
    %899 = arith.addf %881, %898 : vector<16x16xf32>
    %c222 = arith.constant 222 : index
    %900 = memref.load %arg2[%c222] : memref<432xf32, #tpu.memory_space<smem>>
    %901 = vector.broadcast %900 : f32 to vector<16x16xf32>
    %902 = arith.mulf %901, %891 : vector<16x16xf32>
    %903 = arith.addf %885, %902 : vector<16x16xf32>
    %c258 = arith.constant 258 : index
    %904 = memref.load %arg2[%c258] : memref<432xf32, #tpu.memory_space<smem>>
    %905 = vector.broadcast %904 : f32 to vector<16x16xf32>
    %906 = arith.mulf %905, %891 : vector<16x16xf32>
    %907 = arith.addf %889, %906 : vector<16x16xf32>
    %c0_270 = arith.constant 0 : index
    %c2_271 = arith.constant 2 : index
    %c1_272 = arith.constant 1 : index
    %908 = vector.load %arg6[%c0_270, %c2_271, %c1_272] : memref<4x18x18xf32, #tpu.memory_space<vmem>>, vector<1x16x16xf32>
    %909 = vector.shape_cast %908 : vector<1x16x16xf32> to vector<16x16xf32>
    %c151 = arith.constant 151 : index
    %910 = memref.load %arg2[%c151] : memref<432xf32, #tpu.memory_space<smem>>
    %911 = vector.broadcast %910 : f32 to vector<16x16xf32>
    %912 = arith.mulf %911, %909 : vector<16x16xf32>
    %913 = arith.addf %895, %912 : vector<16x16xf32>
    %c187 = arith.constant 187 : index
    %914 = memref.load %arg2[%c187] : memref<432xf32, #tpu.memory_space<smem>>
    %915 = vector.broadcast %914 : f32 to vector<16x16xf32>
    %916 = arith.mulf %915, %909 : vector<16x16xf32>
    %917 = arith.addf %899, %916 : vector<16x16xf32>
    %c223 = arith.constant 223 : index
    %918 = memref.load %arg2[%c223] : memref<432xf32, #tpu.memory_space<smem>>
    %919 = vector.broadcast %918 : f32 to vector<16x16xf32>
    %920 = arith.mulf %919, %909 : vector<16x16xf32>
    %921 = arith.addf %903, %920 : vector<16x16xf32>
    %c259 = arith.constant 259 : index
    %922 = memref.load %arg2[%c259] : memref<432xf32, #tpu.memory_space<smem>>
    %923 = vector.broadcast %922 : f32 to vector<16x16xf32>
    %924 = arith.mulf %923, %909 : vector<16x16xf32>
    %925 = arith.addf %907, %924 : vector<16x16xf32>
    %c0_273 = arith.constant 0 : index
    %c2_274 = arith.constant 2 : index
    %c2_275 = arith.constant 2 : index
    %926 = vector.load %arg6[%c0_273, %c2_274, %c2_275] : memref<4x18x18xf32, #tpu.memory_space<vmem>>, vector<1x16x16xf32>
    %927 = vector.shape_cast %926 : vector<1x16x16xf32> to vector<16x16xf32>
    %c152 = arith.constant 152 : index
    %928 = memref.load %arg2[%c152] : memref<432xf32, #tpu.memory_space<smem>>
    %929 = vector.broadcast %928 : f32 to vector<16x16xf32>
    %930 = arith.mulf %929, %927 : vector<16x16xf32>
    %931 = arith.addf %913, %930 : vector<16x16xf32>
    %c188 = arith.constant 188 : index
    %932 = memref.load %arg2[%c188] : memref<432xf32, #tpu.memory_space<smem>>
    %933 = vector.broadcast %932 : f32 to vector<16x16xf32>
    %934 = arith.mulf %933, %927 : vector<16x16xf32>
    %935 = arith.addf %917, %934 : vector<16x16xf32>
    %c224 = arith.constant 224 : index
    %936 = memref.load %arg2[%c224] : memref<432xf32, #tpu.memory_space<smem>>
    %937 = vector.broadcast %936 : f32 to vector<16x16xf32>
    %938 = arith.mulf %937, %927 : vector<16x16xf32>
    %939 = arith.addf %921, %938 : vector<16x16xf32>
    %c260 = arith.constant 260 : index
    %940 = memref.load %arg2[%c260] : memref<432xf32, #tpu.memory_space<smem>>
    %941 = vector.broadcast %940 : f32 to vector<16x16xf32>
    %942 = arith.mulf %941, %927 : vector<16x16xf32>
    %943 = arith.addf %925, %942 : vector<16x16xf32>
    %c1_276 = arith.constant 1 : index
    %c0_277 = arith.constant 0 : index
    %c0_278 = arith.constant 0 : index
    %944 = vector.load %arg6[%c1_276, %c0_277, %c0_278] : memref<4x18x18xf32, #tpu.memory_space<vmem>>, vector<1x16x16xf32>
    %945 = vector.shape_cast %944 : vector<1x16x16xf32> to vector<16x16xf32>
    %c153 = arith.constant 153 : index
    %946 = memref.load %arg2[%c153] : memref<432xf32, #tpu.memory_space<smem>>
    %947 = vector.broadcast %946 : f32 to vector<16x16xf32>
    %948 = arith.mulf %947, %945 : vector<16x16xf32>
    %949 = arith.addf %931, %948 : vector<16x16xf32>
    %c189 = arith.constant 189 : index
    %950 = memref.load %arg2[%c189] : memref<432xf32, #tpu.memory_space<smem>>
    %951 = vector.broadcast %950 : f32 to vector<16x16xf32>
    %952 = arith.mulf %951, %945 : vector<16x16xf32>
    %953 = arith.addf %935, %952 : vector<16x16xf32>
    %c225 = arith.constant 225 : index
    %954 = memref.load %arg2[%c225] : memref<432xf32, #tpu.memory_space<smem>>
    %955 = vector.broadcast %954 : f32 to vector<16x16xf32>
    %956 = arith.mulf %955, %945 : vector<16x16xf32>
    %957 = arith.addf %939, %956 : vector<16x16xf32>
    %c261 = arith.constant 261 : index
    %958 = memref.load %arg2[%c261] : memref<432xf32, #tpu.memory_space<smem>>
    %959 = vector.broadcast %958 : f32 to vector<16x16xf32>
    %960 = arith.mulf %959, %945 : vector<16x16xf32>
    %961 = arith.addf %943, %960 : vector<16x16xf32>
    %c1_279 = arith.constant 1 : index
    %c0_280 = arith.constant 0 : index
    %c1_281 = arith.constant 1 : index
    %962 = vector.load %arg6[%c1_279, %c0_280, %c1_281] : memref<4x18x18xf32, #tpu.memory_space<vmem>>, vector<1x16x16xf32>
    %963 = vector.shape_cast %962 : vector<1x16x16xf32> to vector<16x16xf32>
    %c154 = arith.constant 154 : index
    %964 = memref.load %arg2[%c154] : memref<432xf32, #tpu.memory_space<smem>>
    %965 = vector.broadcast %964 : f32 to vector<16x16xf32>
    %966 = arith.mulf %965, %963 : vector<16x16xf32>
    %967 = arith.addf %949, %966 : vector<16x16xf32>
    %c190 = arith.constant 190 : index
    %968 = memref.load %arg2[%c190] : memref<432xf32, #tpu.memory_space<smem>>
    %969 = vector.broadcast %968 : f32 to vector<16x16xf32>
    %970 = arith.mulf %969, %963 : vector<16x16xf32>
    %971 = arith.addf %953, %970 : vector<16x16xf32>
    %c226 = arith.constant 226 : index
    %972 = memref.load %arg2[%c226] : memref<432xf32, #tpu.memory_space<smem>>
    %973 = vector.broadcast %972 : f32 to vector<16x16xf32>
    %974 = arith.mulf %973, %963 : vector<16x16xf32>
    %975 = arith.addf %957, %974 : vector<16x16xf32>
    %c262 = arith.constant 262 : index
    %976 = memref.load %arg2[%c262] : memref<432xf32, #tpu.memory_space<smem>>
    %977 = vector.broadcast %976 : f32 to vector<16x16xf32>
    %978 = arith.mulf %977, %963 : vector<16x16xf32>
    %979 = arith.addf %961, %978 : vector<16x16xf32>
    %c1_282 = arith.constant 1 : index
    %c0_283 = arith.constant 0 : index
    %c2_284 = arith.constant 2 : index
    %980 = vector.load %arg6[%c1_282, %c0_283, %c2_284] : memref<4x18x18xf32, #tpu.memory_space<vmem>>, vector<1x16x16xf32>
    %981 = vector.shape_cast %980 : vector<1x16x16xf32> to vector<16x16xf32>
    %c155 = arith.constant 155 : index
    %982 = memref.load %arg2[%c155] : memref<432xf32, #tpu.memory_space<smem>>
    %983 = vector.broadcast %982 : f32 to vector<16x16xf32>
    %984 = arith.mulf %983, %981 : vector<16x16xf32>
    %985 = arith.addf %967, %984 : vector<16x16xf32>
    %c191 = arith.constant 191 : index
    %986 = memref.load %arg2[%c191] : memref<432xf32, #tpu.memory_space<smem>>
    %987 = vector.broadcast %986 : f32 to vector<16x16xf32>
    %988 = arith.mulf %987, %981 : vector<16x16xf32>
    %989 = arith.addf %971, %988 : vector<16x16xf32>
    %c227 = arith.constant 227 : index
    %990 = memref.load %arg2[%c227] : memref<432xf32, #tpu.memory_space<smem>>
    %991 = vector.broadcast %990 : f32 to vector<16x16xf32>
    %992 = arith.mulf %991, %981 : vector<16x16xf32>
    %993 = arith.addf %975, %992 : vector<16x16xf32>
    %c263 = arith.constant 263 : index
    %994 = memref.load %arg2[%c263] : memref<432xf32, #tpu.memory_space<smem>>
    %995 = vector.broadcast %994 : f32 to vector<16x16xf32>
    %996 = arith.mulf %995, %981 : vector<16x16xf32>
    %997 = arith.addf %979, %996 : vector<16x16xf32>
    %c1_285 = arith.constant 1 : index
    %c1_286 = arith.constant 1 : index
    %c0_287 = arith.constant 0 : index
    %998 = vector.load %arg6[%c1_285, %c1_286, %c0_287] : memref<4x18x18xf32, #tpu.memory_space<vmem>>, vector<1x16x16xf32>
    %999 = vector.shape_cast %998 : vector<1x16x16xf32> to vector<16x16xf32>
    %c156 = arith.constant 156 : index
    %1000 = memref.load %arg2[%c156] : memref<432xf32, #tpu.memory_space<smem>>
    %1001 = vector.broadcast %1000 : f32 to vector<16x16xf32>
    %1002 = arith.mulf %1001, %999 : vector<16x16xf32>
    %1003 = arith.addf %985, %1002 : vector<16x16xf32>
    %c192 = arith.constant 192 : index
    %1004 = memref.load %arg2[%c192] : memref<432xf32, #tpu.memory_space<smem>>
    %1005 = vector.broadcast %1004 : f32 to vector<16x16xf32>
    %1006 = arith.mulf %1005, %999 : vector<16x16xf32>
    %1007 = arith.addf %989, %1006 : vector<16x16xf32>
    %c228 = arith.constant 228 : index
    %1008 = memref.load %arg2[%c228] : memref<432xf32, #tpu.memory_space<smem>>
    %1009 = vector.broadcast %1008 : f32 to vector<16x16xf32>
    %1010 = arith.mulf %1009, %999 : vector<16x16xf32>
    %1011 = arith.addf %993, %1010 : vector<16x16xf32>
    %c264 = arith.constant 264 : index
    %1012 = memref.load %arg2[%c264] : memref<432xf32, #tpu.memory_space<smem>>
    %1013 = vector.broadcast %1012 : f32 to vector<16x16xf32>
    %1014 = arith.mulf %1013, %999 : vector<16x16xf32>
    %1015 = arith.addf %997, %1014 : vector<16x16xf32>
    %c1_288 = arith.constant 1 : index
    %c1_289 = arith.constant 1 : index
    %c1_290 = arith.constant 1 : index
    %1016 = vector.load %arg6[%c1_288, %c1_289, %c1_290] : memref<4x18x18xf32, #tpu.memory_space<vmem>>, vector<1x16x16xf32>
    %1017 = vector.shape_cast %1016 : vector<1x16x16xf32> to vector<16x16xf32>
    %c157 = arith.constant 157 : index
    %1018 = memref.load %arg2[%c157] : memref<432xf32, #tpu.memory_space<smem>>
    %1019 = vector.broadcast %1018 : f32 to vector<16x16xf32>
    %1020 = arith.mulf %1019, %1017 : vector<16x16xf32>
    %1021 = arith.addf %1003, %1020 : vector<16x16xf32>
    %c193 = arith.constant 193 : index
    %1022 = memref.load %arg2[%c193] : memref<432xf32, #tpu.memory_space<smem>>
    %1023 = vector.broadcast %1022 : f32 to vector<16x16xf32>
    %1024 = arith.mulf %1023, %1017 : vector<16x16xf32>
    %1025 = arith.addf %1007, %1024 : vector<16x16xf32>
    %c229 = arith.constant 229 : index
    %1026 = memref.load %arg2[%c229] : memref<432xf32, #tpu.memory_space<smem>>
    %1027 = vector.broadcast %1026 : f32 to vector<16x16xf32>
    %1028 = arith.mulf %1027, %1017 : vector<16x16xf32>
    %1029 = arith.addf %1011, %1028 : vector<16x16xf32>
    %c265 = arith.constant 265 : index
    %1030 = memref.load %arg2[%c265] : memref<432xf32, #tpu.memory_space<smem>>
    %1031 = vector.broadcast %1030 : f32 to vector<16x16xf32>
    %1032 = arith.mulf %1031, %1017 : vector<16x16xf32>
    %1033 = arith.addf %1015, %1032 : vector<16x16xf32>
    %c1_291 = arith.constant 1 : index
    %c1_292 = arith.constant 1 : index
    %c2_293 = arith.constant 2 : index
    %1034 = vector.load %arg6[%c1_291, %c1_292, %c2_293] : memref<4x18x18xf32, #tpu.memory_space<vmem>>, vector<1x16x16xf32>
    %1035 = vector.shape_cast %1034 : vector<1x16x16xf32> to vector<16x16xf32>
    %c158 = arith.constant 158 : index
    %1036 = memref.load %arg2[%c158] : memref<432xf32, #tpu.memory_space<smem>>
    %1037 = vector.broadcast %1036 : f32 to vector<16x16xf32>
    %1038 = arith.mulf %1037, %1035 : vector<16x16xf32>
    %1039 = arith.addf %1021, %1038 : vector<16x16xf32>
    %c194 = arith.constant 194 : index
    %1040 = memref.load %arg2[%c194] : memref<432xf32, #tpu.memory_space<smem>>
    %1041 = vector.broadcast %1040 : f32 to vector<16x16xf32>
    %1042 = arith.mulf %1041, %1035 : vector<16x16xf32>
    %1043 = arith.addf %1025, %1042 : vector<16x16xf32>
    %c230 = arith.constant 230 : index
    %1044 = memref.load %arg2[%c230] : memref<432xf32, #tpu.memory_space<smem>>
    %1045 = vector.broadcast %1044 : f32 to vector<16x16xf32>
    %1046 = arith.mulf %1045, %1035 : vector<16x16xf32>
    %1047 = arith.addf %1029, %1046 : vector<16x16xf32>
    %c266 = arith.constant 266 : index
    %1048 = memref.load %arg2[%c266] : memref<432xf32, #tpu.memory_space<smem>>
    %1049 = vector.broadcast %1048 : f32 to vector<16x16xf32>
    %1050 = arith.mulf %1049, %1035 : vector<16x16xf32>
    %1051 = arith.addf %1033, %1050 : vector<16x16xf32>
    %c1_294 = arith.constant 1 : index
    %c2_295 = arith.constant 2 : index
    %c0_296 = arith.constant 0 : index
    %1052 = vector.load %arg6[%c1_294, %c2_295, %c0_296] : memref<4x18x18xf32, #tpu.memory_space<vmem>>, vector<1x16x16xf32>
    %1053 = vector.shape_cast %1052 : vector<1x16x16xf32> to vector<16x16xf32>
    %c159 = arith.constant 159 : index
    %1054 = memref.load %arg2[%c159] : memref<432xf32, #tpu.memory_space<smem>>
    %1055 = vector.broadcast %1054 : f32 to vector<16x16xf32>
    %1056 = arith.mulf %1055, %1053 : vector<16x16xf32>
    %1057 = arith.addf %1039, %1056 : vector<16x16xf32>
    %c195 = arith.constant 195 : index
    %1058 = memref.load %arg2[%c195] : memref<432xf32, #tpu.memory_space<smem>>
    %1059 = vector.broadcast %1058 : f32 to vector<16x16xf32>
    %1060 = arith.mulf %1059, %1053 : vector<16x16xf32>
    %1061 = arith.addf %1043, %1060 : vector<16x16xf32>
    %c231 = arith.constant 231 : index
    %1062 = memref.load %arg2[%c231] : memref<432xf32, #tpu.memory_space<smem>>
    %1063 = vector.broadcast %1062 : f32 to vector<16x16xf32>
    %1064 = arith.mulf %1063, %1053 : vector<16x16xf32>
    %1065 = arith.addf %1047, %1064 : vector<16x16xf32>
    %c267 = arith.constant 267 : index
    %1066 = memref.load %arg2[%c267] : memref<432xf32, #tpu.memory_space<smem>>
    %1067 = vector.broadcast %1066 : f32 to vector<16x16xf32>
    %1068 = arith.mulf %1067, %1053 : vector<16x16xf32>
    %1069 = arith.addf %1051, %1068 : vector<16x16xf32>
    %c1_297 = arith.constant 1 : index
    %c2_298 = arith.constant 2 : index
    %c1_299 = arith.constant 1 : index
    %1070 = vector.load %arg6[%c1_297, %c2_298, %c1_299] : memref<4x18x18xf32, #tpu.memory_space<vmem>>, vector<1x16x16xf32>
    %1071 = vector.shape_cast %1070 : vector<1x16x16xf32> to vector<16x16xf32>
    %c160 = arith.constant 160 : index
    %1072 = memref.load %arg2[%c160] : memref<432xf32, #tpu.memory_space<smem>>
    %1073 = vector.broadcast %1072 : f32 to vector<16x16xf32>
    %1074 = arith.mulf %1073, %1071 : vector<16x16xf32>
    %1075 = arith.addf %1057, %1074 : vector<16x16xf32>
    %c196 = arith.constant 196 : index
    %1076 = memref.load %arg2[%c196] : memref<432xf32, #tpu.memory_space<smem>>
    %1077 = vector.broadcast %1076 : f32 to vector<16x16xf32>
    %1078 = arith.mulf %1077, %1071 : vector<16x16xf32>
    %1079 = arith.addf %1061, %1078 : vector<16x16xf32>
    %c232 = arith.constant 232 : index
    %1080 = memref.load %arg2[%c232] : memref<432xf32, #tpu.memory_space<smem>>
    %1081 = vector.broadcast %1080 : f32 to vector<16x16xf32>
    %1082 = arith.mulf %1081, %1071 : vector<16x16xf32>
    %1083 = arith.addf %1065, %1082 : vector<16x16xf32>
    %c268 = arith.constant 268 : index
    %1084 = memref.load %arg2[%c268] : memref<432xf32, #tpu.memory_space<smem>>
    %1085 = vector.broadcast %1084 : f32 to vector<16x16xf32>
    %1086 = arith.mulf %1085, %1071 : vector<16x16xf32>
    %1087 = arith.addf %1069, %1086 : vector<16x16xf32>
    %c1_300 = arith.constant 1 : index
    %c2_301 = arith.constant 2 : index
    %c2_302 = arith.constant 2 : index
    %1088 = vector.load %arg6[%c1_300, %c2_301, %c2_302] : memref<4x18x18xf32, #tpu.memory_space<vmem>>, vector<1x16x16xf32>
    %1089 = vector.shape_cast %1088 : vector<1x16x16xf32> to vector<16x16xf32>
    %c161 = arith.constant 161 : index
    %1090 = memref.load %arg2[%c161] : memref<432xf32, #tpu.memory_space<smem>>
    %1091 = vector.broadcast %1090 : f32 to vector<16x16xf32>
    %1092 = arith.mulf %1091, %1089 : vector<16x16xf32>
    %1093 = arith.addf %1075, %1092 : vector<16x16xf32>
    %c197 = arith.constant 197 : index
    %1094 = memref.load %arg2[%c197] : memref<432xf32, #tpu.memory_space<smem>>
    %1095 = vector.broadcast %1094 : f32 to vector<16x16xf32>
    %1096 = arith.mulf %1095, %1089 : vector<16x16xf32>
    %1097 = arith.addf %1079, %1096 : vector<16x16xf32>
    %c233 = arith.constant 233 : index
    %1098 = memref.load %arg2[%c233] : memref<432xf32, #tpu.memory_space<smem>>
    %1099 = vector.broadcast %1098 : f32 to vector<16x16xf32>
    %1100 = arith.mulf %1099, %1089 : vector<16x16xf32>
    %1101 = arith.addf %1083, %1100 : vector<16x16xf32>
    %c269 = arith.constant 269 : index
    %1102 = memref.load %arg2[%c269] : memref<432xf32, #tpu.memory_space<smem>>
    %1103 = vector.broadcast %1102 : f32 to vector<16x16xf32>
    %1104 = arith.mulf %1103, %1089 : vector<16x16xf32>
    %1105 = arith.addf %1087, %1104 : vector<16x16xf32>
    %c2_303 = arith.constant 2 : index
    %c0_304 = arith.constant 0 : index
    %c0_305 = arith.constant 0 : index
    %1106 = vector.load %arg6[%c2_303, %c0_304, %c0_305] : memref<4x18x18xf32, #tpu.memory_space<vmem>>, vector<1x16x16xf32>
    %1107 = vector.shape_cast %1106 : vector<1x16x16xf32> to vector<16x16xf32>
    %c162 = arith.constant 162 : index
    %1108 = memref.load %arg2[%c162] : memref<432xf32, #tpu.memory_space<smem>>
    %1109 = vector.broadcast %1108 : f32 to vector<16x16xf32>
    %1110 = arith.mulf %1109, %1107 : vector<16x16xf32>
    %1111 = arith.addf %1093, %1110 : vector<16x16xf32>
    %c198 = arith.constant 198 : index
    %1112 = memref.load %arg2[%c198] : memref<432xf32, #tpu.memory_space<smem>>
    %1113 = vector.broadcast %1112 : f32 to vector<16x16xf32>
    %1114 = arith.mulf %1113, %1107 : vector<16x16xf32>
    %1115 = arith.addf %1097, %1114 : vector<16x16xf32>
    %c234 = arith.constant 234 : index
    %1116 = memref.load %arg2[%c234] : memref<432xf32, #tpu.memory_space<smem>>
    %1117 = vector.broadcast %1116 : f32 to vector<16x16xf32>
    %1118 = arith.mulf %1117, %1107 : vector<16x16xf32>
    %1119 = arith.addf %1101, %1118 : vector<16x16xf32>
    %c270 = arith.constant 270 : index
    %1120 = memref.load %arg2[%c270] : memref<432xf32, #tpu.memory_space<smem>>
    %1121 = vector.broadcast %1120 : f32 to vector<16x16xf32>
    %1122 = arith.mulf %1121, %1107 : vector<16x16xf32>
    %1123 = arith.addf %1105, %1122 : vector<16x16xf32>
    %c2_306 = arith.constant 2 : index
    %c0_307 = arith.constant 0 : index
    %c1_308 = arith.constant 1 : index
    %1124 = vector.load %arg6[%c2_306, %c0_307, %c1_308] : memref<4x18x18xf32, #tpu.memory_space<vmem>>, vector<1x16x16xf32>
    %1125 = vector.shape_cast %1124 : vector<1x16x16xf32> to vector<16x16xf32>
    %c163 = arith.constant 163 : index
    %1126 = memref.load %arg2[%c163] : memref<432xf32, #tpu.memory_space<smem>>
    %1127 = vector.broadcast %1126 : f32 to vector<16x16xf32>
    %1128 = arith.mulf %1127, %1125 : vector<16x16xf32>
    %1129 = arith.addf %1111, %1128 : vector<16x16xf32>
    %c199 = arith.constant 199 : index
    %1130 = memref.load %arg2[%c199] : memref<432xf32, #tpu.memory_space<smem>>
    %1131 = vector.broadcast %1130 : f32 to vector<16x16xf32>
    %1132 = arith.mulf %1131, %1125 : vector<16x16xf32>
    %1133 = arith.addf %1115, %1132 : vector<16x16xf32>
    %c235 = arith.constant 235 : index
    %1134 = memref.load %arg2[%c235] : memref<432xf32, #tpu.memory_space<smem>>
    %1135 = vector.broadcast %1134 : f32 to vector<16x16xf32>
    %1136 = arith.mulf %1135, %1125 : vector<16x16xf32>
    %1137 = arith.addf %1119, %1136 : vector<16x16xf32>
    %c271 = arith.constant 271 : index
    %1138 = memref.load %arg2[%c271] : memref<432xf32, #tpu.memory_space<smem>>
    %1139 = vector.broadcast %1138 : f32 to vector<16x16xf32>
    %1140 = arith.mulf %1139, %1125 : vector<16x16xf32>
    %1141 = arith.addf %1123, %1140 : vector<16x16xf32>
    %c2_309 = arith.constant 2 : index
    %c0_310 = arith.constant 0 : index
    %c2_311 = arith.constant 2 : index
    %1142 = vector.load %arg6[%c2_309, %c0_310, %c2_311] : memref<4x18x18xf32, #tpu.memory_space<vmem>>, vector<1x16x16xf32>
    %1143 = vector.shape_cast %1142 : vector<1x16x16xf32> to vector<16x16xf32>
    %c164 = arith.constant 164 : index
    %1144 = memref.load %arg2[%c164] : memref<432xf32, #tpu.memory_space<smem>>
    %1145 = vector.broadcast %1144 : f32 to vector<16x16xf32>
    %1146 = arith.mulf %1145, %1143 : vector<16x16xf32>
    %1147 = arith.addf %1129, %1146 : vector<16x16xf32>
    %c200 = arith.constant 200 : index
    %1148 = memref.load %arg2[%c200] : memref<432xf32, #tpu.memory_space<smem>>
    %1149 = vector.broadcast %1148 : f32 to vector<16x16xf32>
    %1150 = arith.mulf %1149, %1143 : vector<16x16xf32>
    %1151 = arith.addf %1133, %1150 : vector<16x16xf32>
    %c236 = arith.constant 236 : index
    %1152 = memref.load %arg2[%c236] : memref<432xf32, #tpu.memory_space<smem>>
    %1153 = vector.broadcast %1152 : f32 to vector<16x16xf32>
    %1154 = arith.mulf %1153, %1143 : vector<16x16xf32>
    %1155 = arith.addf %1137, %1154 : vector<16x16xf32>
    %c272 = arith.constant 272 : index
    %1156 = memref.load %arg2[%c272] : memref<432xf32, #tpu.memory_space<smem>>
    %1157 = vector.broadcast %1156 : f32 to vector<16x16xf32>
    %1158 = arith.mulf %1157, %1143 : vector<16x16xf32>
    %1159 = arith.addf %1141, %1158 : vector<16x16xf32>
    %c2_312 = arith.constant 2 : index
    %c1_313 = arith.constant 1 : index
    %c0_314 = arith.constant 0 : index
    %1160 = vector.load %arg6[%c2_312, %c1_313, %c0_314] : memref<4x18x18xf32, #tpu.memory_space<vmem>>, vector<1x16x16xf32>
    %1161 = vector.shape_cast %1160 : vector<1x16x16xf32> to vector<16x16xf32>
    %c165 = arith.constant 165 : index
    %1162 = memref.load %arg2[%c165] : memref<432xf32, #tpu.memory_space<smem>>
    %1163 = vector.broadcast %1162 : f32 to vector<16x16xf32>
    %1164 = arith.mulf %1163, %1161 : vector<16x16xf32>
    %1165 = arith.addf %1147, %1164 : vector<16x16xf32>
    %c201 = arith.constant 201 : index
    %1166 = memref.load %arg2[%c201] : memref<432xf32, #tpu.memory_space<smem>>
    %1167 = vector.broadcast %1166 : f32 to vector<16x16xf32>
    %1168 = arith.mulf %1167, %1161 : vector<16x16xf32>
    %1169 = arith.addf %1151, %1168 : vector<16x16xf32>
    %c237 = arith.constant 237 : index
    %1170 = memref.load %arg2[%c237] : memref<432xf32, #tpu.memory_space<smem>>
    %1171 = vector.broadcast %1170 : f32 to vector<16x16xf32>
    %1172 = arith.mulf %1171, %1161 : vector<16x16xf32>
    %1173 = arith.addf %1155, %1172 : vector<16x16xf32>
    %c273 = arith.constant 273 : index
    %1174 = memref.load %arg2[%c273] : memref<432xf32, #tpu.memory_space<smem>>
    %1175 = vector.broadcast %1174 : f32 to vector<16x16xf32>
    %1176 = arith.mulf %1175, %1161 : vector<16x16xf32>
    %1177 = arith.addf %1159, %1176 : vector<16x16xf32>
    %c2_315 = arith.constant 2 : index
    %c1_316 = arith.constant 1 : index
    %c1_317 = arith.constant 1 : index
    %1178 = vector.load %arg6[%c2_315, %c1_316, %c1_317] : memref<4x18x18xf32, #tpu.memory_space<vmem>>, vector<1x16x16xf32>
    %1179 = vector.shape_cast %1178 : vector<1x16x16xf32> to vector<16x16xf32>
    %c166 = arith.constant 166 : index
    %1180 = memref.load %arg2[%c166] : memref<432xf32, #tpu.memory_space<smem>>
    %1181 = vector.broadcast %1180 : f32 to vector<16x16xf32>
    %1182 = arith.mulf %1181, %1179 : vector<16x16xf32>
    %1183 = arith.addf %1165, %1182 : vector<16x16xf32>
    %c202 = arith.constant 202 : index
    %1184 = memref.load %arg2[%c202] : memref<432xf32, #tpu.memory_space<smem>>
    %1185 = vector.broadcast %1184 : f32 to vector<16x16xf32>
    %1186 = arith.mulf %1185, %1179 : vector<16x16xf32>
    %1187 = arith.addf %1169, %1186 : vector<16x16xf32>
    %c238 = arith.constant 238 : index
    %1188 = memref.load %arg2[%c238] : memref<432xf32, #tpu.memory_space<smem>>
    %1189 = vector.broadcast %1188 : f32 to vector<16x16xf32>
    %1190 = arith.mulf %1189, %1179 : vector<16x16xf32>
    %1191 = arith.addf %1173, %1190 : vector<16x16xf32>
    %c274 = arith.constant 274 : index
    %1192 = memref.load %arg2[%c274] : memref<432xf32, #tpu.memory_space<smem>>
    %1193 = vector.broadcast %1192 : f32 to vector<16x16xf32>
    %1194 = arith.mulf %1193, %1179 : vector<16x16xf32>
    %1195 = arith.addf %1177, %1194 : vector<16x16xf32>
    %c2_318 = arith.constant 2 : index
    %c1_319 = arith.constant 1 : index
    %c2_320 = arith.constant 2 : index
    %1196 = vector.load %arg6[%c2_318, %c1_319, %c2_320] : memref<4x18x18xf32, #tpu.memory_space<vmem>>, vector<1x16x16xf32>
    %1197 = vector.shape_cast %1196 : vector<1x16x16xf32> to vector<16x16xf32>
    %c167 = arith.constant 167 : index
    %1198 = memref.load %arg2[%c167] : memref<432xf32, #tpu.memory_space<smem>>
    %1199 = vector.broadcast %1198 : f32 to vector<16x16xf32>
    %1200 = arith.mulf %1199, %1197 : vector<16x16xf32>
    %1201 = arith.addf %1183, %1200 : vector<16x16xf32>
    %c203 = arith.constant 203 : index
    %1202 = memref.load %arg2[%c203] : memref<432xf32, #tpu.memory_space<smem>>
    %1203 = vector.broadcast %1202 : f32 to vector<16x16xf32>
    %1204 = arith.mulf %1203, %1197 : vector<16x16xf32>
    %1205 = arith.addf %1187, %1204 : vector<16x16xf32>
    %c239 = arith.constant 239 : index
    %1206 = memref.load %arg2[%c239] : memref<432xf32, #tpu.memory_space<smem>>
    %1207 = vector.broadcast %1206 : f32 to vector<16x16xf32>
    %1208 = arith.mulf %1207, %1197 : vector<16x16xf32>
    %1209 = arith.addf %1191, %1208 : vector<16x16xf32>
    %c275 = arith.constant 275 : index
    %1210 = memref.load %arg2[%c275] : memref<432xf32, #tpu.memory_space<smem>>
    %1211 = vector.broadcast %1210 : f32 to vector<16x16xf32>
    %1212 = arith.mulf %1211, %1197 : vector<16x16xf32>
    %1213 = arith.addf %1195, %1212 : vector<16x16xf32>
    %c2_321 = arith.constant 2 : index
    %c2_322 = arith.constant 2 : index
    %c0_323 = arith.constant 0 : index
    %1214 = vector.load %arg6[%c2_321, %c2_322, %c0_323] : memref<4x18x18xf32, #tpu.memory_space<vmem>>, vector<1x16x16xf32>
    %1215 = vector.shape_cast %1214 : vector<1x16x16xf32> to vector<16x16xf32>
    %c168 = arith.constant 168 : index
    %1216 = memref.load %arg2[%c168] : memref<432xf32, #tpu.memory_space<smem>>
    %1217 = vector.broadcast %1216 : f32 to vector<16x16xf32>
    %1218 = arith.mulf %1217, %1215 : vector<16x16xf32>
    %1219 = arith.addf %1201, %1218 : vector<16x16xf32>
    %c204 = arith.constant 204 : index
    %1220 = memref.load %arg2[%c204] : memref<432xf32, #tpu.memory_space<smem>>
    %1221 = vector.broadcast %1220 : f32 to vector<16x16xf32>
    %1222 = arith.mulf %1221, %1215 : vector<16x16xf32>
    %1223 = arith.addf %1205, %1222 : vector<16x16xf32>
    %c240 = arith.constant 240 : index
    %1224 = memref.load %arg2[%c240] : memref<432xf32, #tpu.memory_space<smem>>
    %1225 = vector.broadcast %1224 : f32 to vector<16x16xf32>
    %1226 = arith.mulf %1225, %1215 : vector<16x16xf32>
    %1227 = arith.addf %1209, %1226 : vector<16x16xf32>
    %c276 = arith.constant 276 : index
    %1228 = memref.load %arg2[%c276] : memref<432xf32, #tpu.memory_space<smem>>
    %1229 = vector.broadcast %1228 : f32 to vector<16x16xf32>
    %1230 = arith.mulf %1229, %1215 : vector<16x16xf32>
    %1231 = arith.addf %1213, %1230 : vector<16x16xf32>
    %c2_324 = arith.constant 2 : index
    %c2_325 = arith.constant 2 : index
    %c1_326 = arith.constant 1 : index
    %1232 = vector.load %arg6[%c2_324, %c2_325, %c1_326] : memref<4x18x18xf32, #tpu.memory_space<vmem>>, vector<1x16x16xf32>
    %1233 = vector.shape_cast %1232 : vector<1x16x16xf32> to vector<16x16xf32>
    %c169 = arith.constant 169 : index
    %1234 = memref.load %arg2[%c169] : memref<432xf32, #tpu.memory_space<smem>>
    %1235 = vector.broadcast %1234 : f32 to vector<16x16xf32>
    %1236 = arith.mulf %1235, %1233 : vector<16x16xf32>
    %1237 = arith.addf %1219, %1236 : vector<16x16xf32>
    %c205 = arith.constant 205 : index
    %1238 = memref.load %arg2[%c205] : memref<432xf32, #tpu.memory_space<smem>>
    %1239 = vector.broadcast %1238 : f32 to vector<16x16xf32>
    %1240 = arith.mulf %1239, %1233 : vector<16x16xf32>
    %1241 = arith.addf %1223, %1240 : vector<16x16xf32>
    %c241 = arith.constant 241 : index
    %1242 = memref.load %arg2[%c241] : memref<432xf32, #tpu.memory_space<smem>>
    %1243 = vector.broadcast %1242 : f32 to vector<16x16xf32>
    %1244 = arith.mulf %1243, %1233 : vector<16x16xf32>
    %1245 = arith.addf %1227, %1244 : vector<16x16xf32>
    %c277 = arith.constant 277 : index
    %1246 = memref.load %arg2[%c277] : memref<432xf32, #tpu.memory_space<smem>>
    %1247 = vector.broadcast %1246 : f32 to vector<16x16xf32>
    %1248 = arith.mulf %1247, %1233 : vector<16x16xf32>
    %1249 = arith.addf %1231, %1248 : vector<16x16xf32>
    %c2_327 = arith.constant 2 : index
    %c2_328 = arith.constant 2 : index
    %c2_329 = arith.constant 2 : index
    %1250 = vector.load %arg6[%c2_327, %c2_328, %c2_329] : memref<4x18x18xf32, #tpu.memory_space<vmem>>, vector<1x16x16xf32>
    %1251 = vector.shape_cast %1250 : vector<1x16x16xf32> to vector<16x16xf32>
    %c170 = arith.constant 170 : index
    %1252 = memref.load %arg2[%c170] : memref<432xf32, #tpu.memory_space<smem>>
    %1253 = vector.broadcast %1252 : f32 to vector<16x16xf32>
    %1254 = arith.mulf %1253, %1251 : vector<16x16xf32>
    %1255 = arith.addf %1237, %1254 : vector<16x16xf32>
    %c206 = arith.constant 206 : index
    %1256 = memref.load %arg2[%c206] : memref<432xf32, #tpu.memory_space<smem>>
    %1257 = vector.broadcast %1256 : f32 to vector<16x16xf32>
    %1258 = arith.mulf %1257, %1251 : vector<16x16xf32>
    %1259 = arith.addf %1241, %1258 : vector<16x16xf32>
    %c242 = arith.constant 242 : index
    %1260 = memref.load %arg2[%c242] : memref<432xf32, #tpu.memory_space<smem>>
    %1261 = vector.broadcast %1260 : f32 to vector<16x16xf32>
    %1262 = arith.mulf %1261, %1251 : vector<16x16xf32>
    %1263 = arith.addf %1245, %1262 : vector<16x16xf32>
    %c278 = arith.constant 278 : index
    %1264 = memref.load %arg2[%c278] : memref<432xf32, #tpu.memory_space<smem>>
    %1265 = vector.broadcast %1264 : f32 to vector<16x16xf32>
    %1266 = arith.mulf %1265, %1251 : vector<16x16xf32>
    %1267 = arith.addf %1249, %1266 : vector<16x16xf32>
    %c3_330 = arith.constant 3 : index
    %c0_331 = arith.constant 0 : index
    %c0_332 = arith.constant 0 : index
    %1268 = vector.load %arg6[%c3_330, %c0_331, %c0_332] : memref<4x18x18xf32, #tpu.memory_space<vmem>>, vector<1x16x16xf32>
    %1269 = vector.shape_cast %1268 : vector<1x16x16xf32> to vector<16x16xf32>
    %c171 = arith.constant 171 : index
    %1270 = memref.load %arg2[%c171] : memref<432xf32, #tpu.memory_space<smem>>
    %1271 = vector.broadcast %1270 : f32 to vector<16x16xf32>
    %1272 = arith.mulf %1271, %1269 : vector<16x16xf32>
    %1273 = arith.addf %1255, %1272 : vector<16x16xf32>
    %c207 = arith.constant 207 : index
    %1274 = memref.load %arg2[%c207] : memref<432xf32, #tpu.memory_space<smem>>
    %1275 = vector.broadcast %1274 : f32 to vector<16x16xf32>
    %1276 = arith.mulf %1275, %1269 : vector<16x16xf32>
    %1277 = arith.addf %1259, %1276 : vector<16x16xf32>
    %c243 = arith.constant 243 : index
    %1278 = memref.load %arg2[%c243] : memref<432xf32, #tpu.memory_space<smem>>
    %1279 = vector.broadcast %1278 : f32 to vector<16x16xf32>
    %1280 = arith.mulf %1279, %1269 : vector<16x16xf32>
    %1281 = arith.addf %1263, %1280 : vector<16x16xf32>
    %c279 = arith.constant 279 : index
    %1282 = memref.load %arg2[%c279] : memref<432xf32, #tpu.memory_space<smem>>
    %1283 = vector.broadcast %1282 : f32 to vector<16x16xf32>
    %1284 = arith.mulf %1283, %1269 : vector<16x16xf32>
    %1285 = arith.addf %1267, %1284 : vector<16x16xf32>
    %c3_333 = arith.constant 3 : index
    %c0_334 = arith.constant 0 : index
    %c1_335 = arith.constant 1 : index
    %1286 = vector.load %arg6[%c3_333, %c0_334, %c1_335] : memref<4x18x18xf32, #tpu.memory_space<vmem>>, vector<1x16x16xf32>
    %1287 = vector.shape_cast %1286 : vector<1x16x16xf32> to vector<16x16xf32>
    %c172 = arith.constant 172 : index
    %1288 = memref.load %arg2[%c172] : memref<432xf32, #tpu.memory_space<smem>>
    %1289 = vector.broadcast %1288 : f32 to vector<16x16xf32>
    %1290 = arith.mulf %1289, %1287 : vector<16x16xf32>
    %1291 = arith.addf %1273, %1290 : vector<16x16xf32>
    %c208 = arith.constant 208 : index
    %1292 = memref.load %arg2[%c208] : memref<432xf32, #tpu.memory_space<smem>>
    %1293 = vector.broadcast %1292 : f32 to vector<16x16xf32>
    %1294 = arith.mulf %1293, %1287 : vector<16x16xf32>
    %1295 = arith.addf %1277, %1294 : vector<16x16xf32>
    %c244 = arith.constant 244 : index
    %1296 = memref.load %arg2[%c244] : memref<432xf32, #tpu.memory_space<smem>>
    %1297 = vector.broadcast %1296 : f32 to vector<16x16xf32>
    %1298 = arith.mulf %1297, %1287 : vector<16x16xf32>
    %1299 = arith.addf %1281, %1298 : vector<16x16xf32>
    %c280 = arith.constant 280 : index
    %1300 = memref.load %arg2[%c280] : memref<432xf32, #tpu.memory_space<smem>>
    %1301 = vector.broadcast %1300 : f32 to vector<16x16xf32>
    %1302 = arith.mulf %1301, %1287 : vector<16x16xf32>
    %1303 = arith.addf %1285, %1302 : vector<16x16xf32>
    %c3_336 = arith.constant 3 : index
    %c0_337 = arith.constant 0 : index
    %c2_338 = arith.constant 2 : index
    %1304 = vector.load %arg6[%c3_336, %c0_337, %c2_338] : memref<4x18x18xf32, #tpu.memory_space<vmem>>, vector<1x16x16xf32>
    %1305 = vector.shape_cast %1304 : vector<1x16x16xf32> to vector<16x16xf32>
    %c173 = arith.constant 173 : index
    %1306 = memref.load %arg2[%c173] : memref<432xf32, #tpu.memory_space<smem>>
    %1307 = vector.broadcast %1306 : f32 to vector<16x16xf32>
    %1308 = arith.mulf %1307, %1305 : vector<16x16xf32>
    %1309 = arith.addf %1291, %1308 : vector<16x16xf32>
    %c209 = arith.constant 209 : index
    %1310 = memref.load %arg2[%c209] : memref<432xf32, #tpu.memory_space<smem>>
    %1311 = vector.broadcast %1310 : f32 to vector<16x16xf32>
    %1312 = arith.mulf %1311, %1305 : vector<16x16xf32>
    %1313 = arith.addf %1295, %1312 : vector<16x16xf32>
    %c245 = arith.constant 245 : index
    %1314 = memref.load %arg2[%c245] : memref<432xf32, #tpu.memory_space<smem>>
    %1315 = vector.broadcast %1314 : f32 to vector<16x16xf32>
    %1316 = arith.mulf %1315, %1305 : vector<16x16xf32>
    %1317 = arith.addf %1299, %1316 : vector<16x16xf32>
    %c281 = arith.constant 281 : index
    %1318 = memref.load %arg2[%c281] : memref<432xf32, #tpu.memory_space<smem>>
    %1319 = vector.broadcast %1318 : f32 to vector<16x16xf32>
    %1320 = arith.mulf %1319, %1305 : vector<16x16xf32>
    %1321 = arith.addf %1303, %1320 : vector<16x16xf32>
    %c3_339 = arith.constant 3 : index
    %c1_340 = arith.constant 1 : index
    %c0_341 = arith.constant 0 : index
    %1322 = vector.load %arg6[%c3_339, %c1_340, %c0_341] : memref<4x18x18xf32, #tpu.memory_space<vmem>>, vector<1x16x16xf32>
    %1323 = vector.shape_cast %1322 : vector<1x16x16xf32> to vector<16x16xf32>
    %c174 = arith.constant 174 : index
    %1324 = memref.load %arg2[%c174] : memref<432xf32, #tpu.memory_space<smem>>
    %1325 = vector.broadcast %1324 : f32 to vector<16x16xf32>
    %1326 = arith.mulf %1325, %1323 : vector<16x16xf32>
    %1327 = arith.addf %1309, %1326 : vector<16x16xf32>
    %c210 = arith.constant 210 : index
    %1328 = memref.load %arg2[%c210] : memref<432xf32, #tpu.memory_space<smem>>
    %1329 = vector.broadcast %1328 : f32 to vector<16x16xf32>
    %1330 = arith.mulf %1329, %1323 : vector<16x16xf32>
    %1331 = arith.addf %1313, %1330 : vector<16x16xf32>
    %c246 = arith.constant 246 : index
    %1332 = memref.load %arg2[%c246] : memref<432xf32, #tpu.memory_space<smem>>
    %1333 = vector.broadcast %1332 : f32 to vector<16x16xf32>
    %1334 = arith.mulf %1333, %1323 : vector<16x16xf32>
    %1335 = arith.addf %1317, %1334 : vector<16x16xf32>
    %c282 = arith.constant 282 : index
    %1336 = memref.load %arg2[%c282] : memref<432xf32, #tpu.memory_space<smem>>
    %1337 = vector.broadcast %1336 : f32 to vector<16x16xf32>
    %1338 = arith.mulf %1337, %1323 : vector<16x16xf32>
    %1339 = arith.addf %1321, %1338 : vector<16x16xf32>
    %c3_342 = arith.constant 3 : index
    %c1_343 = arith.constant 1 : index
    %c1_344 = arith.constant 1 : index
    %1340 = vector.load %arg6[%c3_342, %c1_343, %c1_344] : memref<4x18x18xf32, #tpu.memory_space<vmem>>, vector<1x16x16xf32>
    %1341 = vector.shape_cast %1340 : vector<1x16x16xf32> to vector<16x16xf32>
    %c175 = arith.constant 175 : index
    %1342 = memref.load %arg2[%c175] : memref<432xf32, #tpu.memory_space<smem>>
    %1343 = vector.broadcast %1342 : f32 to vector<16x16xf32>
    %1344 = arith.mulf %1343, %1341 : vector<16x16xf32>
    %1345 = arith.addf %1327, %1344 : vector<16x16xf32>
    %c211 = arith.constant 211 : index
    %1346 = memref.load %arg2[%c211] : memref<432xf32, #tpu.memory_space<smem>>
    %1347 = vector.broadcast %1346 : f32 to vector<16x16xf32>
    %1348 = arith.mulf %1347, %1341 : vector<16x16xf32>
    %1349 = arith.addf %1331, %1348 : vector<16x16xf32>
    %c247 = arith.constant 247 : index
    %1350 = memref.load %arg2[%c247] : memref<432xf32, #tpu.memory_space<smem>>
    %1351 = vector.broadcast %1350 : f32 to vector<16x16xf32>
    %1352 = arith.mulf %1351, %1341 : vector<16x16xf32>
    %1353 = arith.addf %1335, %1352 : vector<16x16xf32>
    %c283 = arith.constant 283 : index
    %1354 = memref.load %arg2[%c283] : memref<432xf32, #tpu.memory_space<smem>>
    %1355 = vector.broadcast %1354 : f32 to vector<16x16xf32>
    %1356 = arith.mulf %1355, %1341 : vector<16x16xf32>
    %1357 = arith.addf %1339, %1356 : vector<16x16xf32>
    %c3_345 = arith.constant 3 : index
    %c1_346 = arith.constant 1 : index
    %c2_347 = arith.constant 2 : index
    %1358 = vector.load %arg6[%c3_345, %c1_346, %c2_347] : memref<4x18x18xf32, #tpu.memory_space<vmem>>, vector<1x16x16xf32>
    %1359 = vector.shape_cast %1358 : vector<1x16x16xf32> to vector<16x16xf32>
    %c176 = arith.constant 176 : index
    %1360 = memref.load %arg2[%c176] : memref<432xf32, #tpu.memory_space<smem>>
    %1361 = vector.broadcast %1360 : f32 to vector<16x16xf32>
    %1362 = arith.mulf %1361, %1359 : vector<16x16xf32>
    %1363 = arith.addf %1345, %1362 : vector<16x16xf32>
    %c212 = arith.constant 212 : index
    %1364 = memref.load %arg2[%c212] : memref<432xf32, #tpu.memory_space<smem>>
    %1365 = vector.broadcast %1364 : f32 to vector<16x16xf32>
    %1366 = arith.mulf %1365, %1359 : vector<16x16xf32>
    %1367 = arith.addf %1349, %1366 : vector<16x16xf32>
    %c248 = arith.constant 248 : index
    %1368 = memref.load %arg2[%c248] : memref<432xf32, #tpu.memory_space<smem>>
    %1369 = vector.broadcast %1368 : f32 to vector<16x16xf32>
    %1370 = arith.mulf %1369, %1359 : vector<16x16xf32>
    %1371 = arith.addf %1353, %1370 : vector<16x16xf32>
    %c284 = arith.constant 284 : index
    %1372 = memref.load %arg2[%c284] : memref<432xf32, #tpu.memory_space<smem>>
    %1373 = vector.broadcast %1372 : f32 to vector<16x16xf32>
    %1374 = arith.mulf %1373, %1359 : vector<16x16xf32>
    %1375 = arith.addf %1357, %1374 : vector<16x16xf32>
    %c3_348 = arith.constant 3 : index
    %c2_349 = arith.constant 2 : index
    %c0_350 = arith.constant 0 : index
    %1376 = vector.load %arg6[%c3_348, %c2_349, %c0_350] : memref<4x18x18xf32, #tpu.memory_space<vmem>>, vector<1x16x16xf32>
    %1377 = vector.shape_cast %1376 : vector<1x16x16xf32> to vector<16x16xf32>
    %c177 = arith.constant 177 : index
    %1378 = memref.load %arg2[%c177] : memref<432xf32, #tpu.memory_space<smem>>
    %1379 = vector.broadcast %1378 : f32 to vector<16x16xf32>
    %1380 = arith.mulf %1379, %1377 : vector<16x16xf32>
    %1381 = arith.addf %1363, %1380 : vector<16x16xf32>
    %c213 = arith.constant 213 : index
    %1382 = memref.load %arg2[%c213] : memref<432xf32, #tpu.memory_space<smem>>
    %1383 = vector.broadcast %1382 : f32 to vector<16x16xf32>
    %1384 = arith.mulf %1383, %1377 : vector<16x16xf32>
    %1385 = arith.addf %1367, %1384 : vector<16x16xf32>
    %c249 = arith.constant 249 : index
    %1386 = memref.load %arg2[%c249] : memref<432xf32, #tpu.memory_space<smem>>
    %1387 = vector.broadcast %1386 : f32 to vector<16x16xf32>
    %1388 = arith.mulf %1387, %1377 : vector<16x16xf32>
    %1389 = arith.addf %1371, %1388 : vector<16x16xf32>
    %c285 = arith.constant 285 : index
    %1390 = memref.load %arg2[%c285] : memref<432xf32, #tpu.memory_space<smem>>
    %1391 = vector.broadcast %1390 : f32 to vector<16x16xf32>
    %1392 = arith.mulf %1391, %1377 : vector<16x16xf32>
    %1393 = arith.addf %1375, %1392 : vector<16x16xf32>
    %c3_351 = arith.constant 3 : index
    %c2_352 = arith.constant 2 : index
    %c1_353 = arith.constant 1 : index
    %1394 = vector.load %arg6[%c3_351, %c2_352, %c1_353] : memref<4x18x18xf32, #tpu.memory_space<vmem>>, vector<1x16x16xf32>
    %1395 = vector.shape_cast %1394 : vector<1x16x16xf32> to vector<16x16xf32>
    %c178 = arith.constant 178 : index
    %1396 = memref.load %arg2[%c178] : memref<432xf32, #tpu.memory_space<smem>>
    %1397 = vector.broadcast %1396 : f32 to vector<16x16xf32>
    %1398 = arith.mulf %1397, %1395 : vector<16x16xf32>
    %1399 = arith.addf %1381, %1398 : vector<16x16xf32>
    %c214 = arith.constant 214 : index
    %1400 = memref.load %arg2[%c214] : memref<432xf32, #tpu.memory_space<smem>>
    %1401 = vector.broadcast %1400 : f32 to vector<16x16xf32>
    %1402 = arith.mulf %1401, %1395 : vector<16x16xf32>
    %1403 = arith.addf %1385, %1402 : vector<16x16xf32>
    %c250 = arith.constant 250 : index
    %1404 = memref.load %arg2[%c250] : memref<432xf32, #tpu.memory_space<smem>>
    %1405 = vector.broadcast %1404 : f32 to vector<16x16xf32>
    %1406 = arith.mulf %1405, %1395 : vector<16x16xf32>
    %1407 = arith.addf %1389, %1406 : vector<16x16xf32>
    %c286 = arith.constant 286 : index
    %1408 = memref.load %arg2[%c286] : memref<432xf32, #tpu.memory_space<smem>>
    %1409 = vector.broadcast %1408 : f32 to vector<16x16xf32>
    %1410 = arith.mulf %1409, %1395 : vector<16x16xf32>
    %1411 = arith.addf %1393, %1410 : vector<16x16xf32>
    %c3_354 = arith.constant 3 : index
    %c2_355 = arith.constant 2 : index
    %c2_356 = arith.constant 2 : index
    %1412 = vector.load %arg6[%c3_354, %c2_355, %c2_356] : memref<4x18x18xf32, #tpu.memory_space<vmem>>, vector<1x16x16xf32>
    %1413 = vector.shape_cast %1412 : vector<1x16x16xf32> to vector<16x16xf32>
    %c179 = arith.constant 179 : index
    %1414 = memref.load %arg2[%c179] : memref<432xf32, #tpu.memory_space<smem>>
    %1415 = vector.broadcast %1414 : f32 to vector<16x16xf32>
    %1416 = arith.mulf %1415, %1413 : vector<16x16xf32>
    %1417 = arith.addf %1399, %1416 : vector<16x16xf32>
    %c215 = arith.constant 215 : index
    %1418 = memref.load %arg2[%c215] : memref<432xf32, #tpu.memory_space<smem>>
    %1419 = vector.broadcast %1418 : f32 to vector<16x16xf32>
    %1420 = arith.mulf %1419, %1413 : vector<16x16xf32>
    %1421 = arith.addf %1403, %1420 : vector<16x16xf32>
    %c251 = arith.constant 251 : index
    %1422 = memref.load %arg2[%c251] : memref<432xf32, #tpu.memory_space<smem>>
    %1423 = vector.broadcast %1422 : f32 to vector<16x16xf32>
    %1424 = arith.mulf %1423, %1413 : vector<16x16xf32>
    %1425 = arith.addf %1407, %1424 : vector<16x16xf32>
    %c287 = arith.constant 287 : index
    %1426 = memref.load %arg2[%c287] : memref<432xf32, #tpu.memory_space<smem>>
    %1427 = vector.broadcast %1426 : f32 to vector<16x16xf32>
    %1428 = arith.mulf %1427, %1413 : vector<16x16xf32>
    %1429 = arith.addf %1411, %1428 : vector<16x16xf32>
    %c4_357 = arith.constant 4 : index
    %1430 = memref.load %arg3[%c4_357] : memref<12xf32, #tpu.memory_space<smem>>
    %1431 = vector.broadcast %1430 : f32 to vector<16x16xf32>
    %1432 = arith.addf %1417, %1431 : vector<16x16xf32>
    %c5_358 = arith.constant 5 : index
    %1433 = memref.load %arg3[%c5_358] : memref<12xf32, #tpu.memory_space<smem>>
    %1434 = vector.broadcast %1433 : f32 to vector<16x16xf32>
    %1435 = arith.addf %1421, %1434 : vector<16x16xf32>
    %c6_359 = arith.constant 6 : index
    %1436 = memref.load %arg3[%c6_359] : memref<12xf32, #tpu.memory_space<smem>>
    %1437 = vector.broadcast %1436 : f32 to vector<16x16xf32>
    %1438 = arith.addf %1425, %1437 : vector<16x16xf32>
    %c7_360 = arith.constant 7 : index
    %1439 = memref.load %arg3[%c7_360] : memref<12xf32, #tpu.memory_space<smem>>
    %1440 = vector.broadcast %1439 : f32 to vector<16x16xf32>
    %1441 = arith.addf %1429, %1440 : vector<16x16xf32>
    %cst_361 = arith.constant 0.000000e+00 : f32
    %1442 = vector.broadcast %cst_361 : f32 to vector<16x16xf32>
    %1443 = arith.maximumf %1432, %1442 : vector<16x16xf32>
    %c0_362 = arith.constant 0 : index
    %c1_363 = arith.constant 1 : index
    %c1_364 = arith.constant 1 : index
    %1444 = vector.load %arg5[%c0_362, %c1_363, %c1_364] : memref<4x18x18xf32, #tpu.memory_space<vmem>>, vector<1x16x16xf32>
    %1445 = vector.shape_cast %1444 : vector<1x16x16xf32> to vector<16x16xf32>
    %1446 = vector.shape_cast %1443 : vector<16x16xf32> to vector<1x16x16xf32>
    tpu.vector_store %arg5[%c0_362, %c1_363, %c1_364], %1446 {strides = array<i32>} : memref<4x18x18xf32, #tpu.memory_space<vmem>>, vector<1x16x16xf32>,
    %cst_365 = arith.constant 0.000000e+00 : f32
    %1447 = vector.broadcast %cst_365 : f32 to vector<16x16xf32>
    %1448 = arith.maximumf %1435, %1447 : vector<16x16xf32>
    %c1_366 = arith.constant 1 : index
    %c1_367 = arith.constant 1 : index
    %c1_368 = arith.constant 1 : index
    %1449 = vector.load %arg5[%c1_366, %c1_367, %c1_368] : memref<4x18x18xf32, #tpu.memory_space<vmem>>, vector<1x16x16xf32>
    %1450 = vector.shape_cast %1449 : vector<1x16x16xf32> to vector<16x16xf32>
    %1451 = vector.shape_cast %1448 : vector<16x16xf32> to vector<1x16x16xf32>
    tpu.vector_store %arg5[%c1_366, %c1_367, %c1_368], %1451 {strides = array<i32>} : memref<4x18x18xf32, #tpu.memory_space<vmem>>, vector<1x16x16xf32>,
    %cst_369 = arith.constant 0.000000e+00 : f32
    %1452 = vector.broadcast %cst_369 : f32 to vector<16x16xf32>
    %1453 = arith.maximumf %1438, %1452 : vector<16x16xf32>
    %c2_370 = arith.constant 2 : index
    %c1_371 = arith.constant 1 : index
    %c1_372 = arith.constant 1 : index
    %1454 = vector.load %arg5[%c2_370, %c1_371, %c1_372] : memref<4x18x18xf32, #tpu.memory_space<vmem>>, vector<1x16x16xf32>
    %1455 = vector.shape_cast %1454 : vector<1x16x16xf32> to vector<16x16xf32>
    %1456 = vector.shape_cast %1453 : vector<16x16xf32> to vector<1x16x16xf32>
    tpu.vector_store %arg5[%c2_370, %c1_371, %c1_372], %1456 {strides = array<i32>} : memref<4x18x18xf32, #tpu.memory_space<vmem>>, vector<1x16x16xf32>,
    %cst_373 = arith.constant 0.000000e+00 : f32
    %1457 = vector.broadcast %cst_373 : f32 to vector<16x16xf32>
    %1458 = arith.maximumf %1441, %1457 : vector<16x16xf32>
    %c3_374 = arith.constant 3 : index
    %c1_375 = arith.constant 1 : index
    %c1_376 = arith.constant 1 : index
    %1459 = vector.load %arg5[%c3_374, %c1_375, %c1_376] : memref<4x18x18xf32, #tpu.memory_space<vmem>>, vector<1x16x16xf32>
    %1460 = vector.shape_cast %1459 : vector<1x16x16xf32> to vector<16x16xf32>
    %1461 = vector.shape_cast %1458 : vector<16x16xf32> to vector<1x16x16xf32>
    tpu.vector_store %arg5[%c3_374, %c1_375, %c1_376], %1461 {strides = array<i32>} : memref<4x18x18xf32, #tpu.memory_space<vmem>>, vector<1x16x16xf32>,
    %c0_377 = arith.constant 0 : index
    %c0_378 = arith.constant 0 : index
    %c0_379 = arith.constant 0 : index
    %1462 = vector.load %arg5[%c0_377, %c0_378, %c0_379] : memref<4x18x18xf32, #tpu.memory_space<vmem>>, vector<1x16x16xf32>
    %1463 = vector.shape_cast %1462 : vector<1x16x16xf32> to vector<16x16xf32>
    %c288 = arith.constant 288 : index
    %1464 = memref.load %arg2[%c288] : memref<432xf32, #tpu.memory_space<smem>>
    %1465 = vector.broadcast %1464 : f32 to vector<16x16xf32>
    %1466 = arith.mulf %1465, %1463 : vector<16x16xf32>
    %c324 = arith.constant 324 : index
    %1467 = memref.load %arg2[%c324] : memref<432xf32, #tpu.memory_space<smem>>
    %1468 = vector.broadcast %1467 : f32 to vector<16x16xf32>
    %1469 = arith.mulf %1468, %1463 : vector<16x16xf32>
    %c360 = arith.constant 360 : index
    %1470 = memref.load %arg2[%c360] : memref<432xf32, #tpu.memory_space<smem>>
    %1471 = vector.broadcast %1470 : f32 to vector<16x16xf32>
    %1472 = arith.mulf %1471, %1463 : vector<16x16xf32>
    %c396 = arith.constant 396 : index
    %1473 = memref.load %arg2[%c396] : memref<432xf32, #tpu.memory_space<smem>>
    %1474 = vector.broadcast %1473 : f32 to vector<16x16xf32>
    %1475 = arith.mulf %1474, %1463 : vector<16x16xf32>
    %c0_380 = arith.constant 0 : index
    %c0_381 = arith.constant 0 : index
    %c1_382 = arith.constant 1 : index
    %1476 = vector.load %arg5[%c0_380, %c0_381, %c1_382] : memref<4x18x18xf32, #tpu.memory_space<vmem>>, vector<1x16x16xf32>
    %1477 = vector.shape_cast %1476 : vector<1x16x16xf32> to vector<16x16xf32>
    %c289 = arith.constant 289 : index
    %1478 = memref.load %arg2[%c289] : memref<432xf32, #tpu.memory_space<smem>>
    %1479 = vector.broadcast %1478 : f32 to vector<16x16xf32>
    %1480 = arith.mulf %1479, %1477 : vector<16x16xf32>
    %1481 = arith.addf %1466, %1480 : vector<16x16xf32>
    %c325 = arith.constant 325 : index
    %1482 = memref.load %arg2[%c325] : memref<432xf32, #tpu.memory_space<smem>>
    %1483 = vector.broadcast %1482 : f32 to vector<16x16xf32>
    %1484 = arith.mulf %1483, %1477 : vector<16x16xf32>
    %1485 = arith.addf %1469, %1484 : vector<16x16xf32>
    %c361 = arith.constant 361 : index
    %1486 = memref.load %arg2[%c361] : memref<432xf32, #tpu.memory_space<smem>>
    %1487 = vector.broadcast %1486 : f32 to vector<16x16xf32>
    %1488 = arith.mulf %1487, %1477 : vector<16x16xf32>
    %1489 = arith.addf %1472, %1488 : vector<16x16xf32>
    %c397 = arith.constant 397 : index
    %1490 = memref.load %arg2[%c397] : memref<432xf32, #tpu.memory_space<smem>>
    %1491 = vector.broadcast %1490 : f32 to vector<16x16xf32>
    %1492 = arith.mulf %1491, %1477 : vector<16x16xf32>
    %1493 = arith.addf %1475, %1492 : vector<16x16xf32>
    %c0_383 = arith.constant 0 : index
    %c0_384 = arith.constant 0 : index
    %c2_385 = arith.constant 2 : index
    %1494 = vector.load %arg5[%c0_383, %c0_384, %c2_385] : memref<4x18x18xf32, #tpu.memory_space<vmem>>, vector<1x16x16xf32>
    %1495 = vector.shape_cast %1494 : vector<1x16x16xf32> to vector<16x16xf32>
    %c290 = arith.constant 290 : index
    %1496 = memref.load %arg2[%c290] : memref<432xf32, #tpu.memory_space<smem>>
    %1497 = vector.broadcast %1496 : f32 to vector<16x16xf32>
    %1498 = arith.mulf %1497, %1495 : vector<16x16xf32>
    %1499 = arith.addf %1481, %1498 : vector<16x16xf32>
    %c326 = arith.constant 326 : index
    %1500 = memref.load %arg2[%c326] : memref<432xf32, #tpu.memory_space<smem>>
    %1501 = vector.broadcast %1500 : f32 to vector<16x16xf32>
    %1502 = arith.mulf %1501, %1495 : vector<16x16xf32>
    %1503 = arith.addf %1485, %1502 : vector<16x16xf32>
    %c362 = arith.constant 362 : index
    %1504 = memref.load %arg2[%c362] : memref<432xf32, #tpu.memory_space<smem>>
    %1505 = vector.broadcast %1504 : f32 to vector<16x16xf32>
    %1506 = arith.mulf %1505, %1495 : vector<16x16xf32>
    %1507 = arith.addf %1489, %1506 : vector<16x16xf32>
    %c398 = arith.constant 398 : index
    %1508 = memref.load %arg2[%c398] : memref<432xf32, #tpu.memory_space<smem>>
    %1509 = vector.broadcast %1508 : f32 to vector<16x16xf32>
    %1510 = arith.mulf %1509, %1495 : vector<16x16xf32>
    %1511 = arith.addf %1493, %1510 : vector<16x16xf32>
    %c0_386 = arith.constant 0 : index
    %c1_387 = arith.constant 1 : index
    %c0_388 = arith.constant 0 : index
    %1512 = vector.load %arg5[%c0_386, %c1_387, %c0_388] : memref<4x18x18xf32, #tpu.memory_space<vmem>>, vector<1x16x16xf32>
    %1513 = vector.shape_cast %1512 : vector<1x16x16xf32> to vector<16x16xf32>
    %c291 = arith.constant 291 : index
    %1514 = memref.load %arg2[%c291] : memref<432xf32, #tpu.memory_space<smem>>
    %1515 = vector.broadcast %1514 : f32 to vector<16x16xf32>
    %1516 = arith.mulf %1515, %1513 : vector<16x16xf32>
    %1517 = arith.addf %1499, %1516 : vector<16x16xf32>
    %c327 = arith.constant 327 : index
    %1518 = memref.load %arg2[%c327] : memref<432xf32, #tpu.memory_space<smem>>
    %1519 = vector.broadcast %1518 : f32 to vector<16x16xf32>
    %1520 = arith.mulf %1519, %1513 : vector<16x16xf32>
    %1521 = arith.addf %1503, %1520 : vector<16x16xf32>
    %c363 = arith.constant 363 : index
    %1522 = memref.load %arg2[%c363] : memref<432xf32, #tpu.memory_space<smem>>
    %1523 = vector.broadcast %1522 : f32 to vector<16x16xf32>
    %1524 = arith.mulf %1523, %1513 : vector<16x16xf32>
    %1525 = arith.addf %1507, %1524 : vector<16x16xf32>
    %c399 = arith.constant 399 : index
    %1526 = memref.load %arg2[%c399] : memref<432xf32, #tpu.memory_space<smem>>
    %1527 = vector.broadcast %1526 : f32 to vector<16x16xf32>
    %1528 = arith.mulf %1527, %1513 : vector<16x16xf32>
    %1529 = arith.addf %1511, %1528 : vector<16x16xf32>
    %c0_389 = arith.constant 0 : index
    %c1_390 = arith.constant 1 : index
    %c1_391 = arith.constant 1 : index
    %1530 = vector.load %arg5[%c0_389, %c1_390, %c1_391] : memref<4x18x18xf32, #tpu.memory_space<vmem>>, vector<1x16x16xf32>
    %1531 = vector.shape_cast %1530 : vector<1x16x16xf32> to vector<16x16xf32>
    %c292 = arith.constant 292 : index
    %1532 = memref.load %arg2[%c292] : memref<432xf32, #tpu.memory_space<smem>>
    %1533 = vector.broadcast %1532 : f32 to vector<16x16xf32>
    %1534 = arith.mulf %1533, %1531 : vector<16x16xf32>
    %1535 = arith.addf %1517, %1534 : vector<16x16xf32>
    %c328 = arith.constant 328 : index
    %1536 = memref.load %arg2[%c328] : memref<432xf32, #tpu.memory_space<smem>>
    %1537 = vector.broadcast %1536 : f32 to vector<16x16xf32>
    %1538 = arith.mulf %1537, %1531 : vector<16x16xf32>
    %1539 = arith.addf %1521, %1538 : vector<16x16xf32>
    %c364 = arith.constant 364 : index
    %1540 = memref.load %arg2[%c364] : memref<432xf32, #tpu.memory_space<smem>>
    %1541 = vector.broadcast %1540 : f32 to vector<16x16xf32>
    %1542 = arith.mulf %1541, %1531 : vector<16x16xf32>
    %1543 = arith.addf %1525, %1542 : vector<16x16xf32>
    %c400 = arith.constant 400 : index
    %1544 = memref.load %arg2[%c400] : memref<432xf32, #tpu.memory_space<smem>>
    %1545 = vector.broadcast %1544 : f32 to vector<16x16xf32>
    %1546 = arith.mulf %1545, %1531 : vector<16x16xf32>
    %1547 = arith.addf %1529, %1546 : vector<16x16xf32>
    %c0_392 = arith.constant 0 : index
    %c1_393 = arith.constant 1 : index
    %c2_394 = arith.constant 2 : index
    %1548 = vector.load %arg5[%c0_392, %c1_393, %c2_394] : memref<4x18x18xf32, #tpu.memory_space<vmem>>, vector<1x16x16xf32>
    %1549 = vector.shape_cast %1548 : vector<1x16x16xf32> to vector<16x16xf32>
    %c293 = arith.constant 293 : index
    %1550 = memref.load %arg2[%c293] : memref<432xf32, #tpu.memory_space<smem>>
    %1551 = vector.broadcast %1550 : f32 to vector<16x16xf32>
    %1552 = arith.mulf %1551, %1549 : vector<16x16xf32>
    %1553 = arith.addf %1535, %1552 : vector<16x16xf32>
    %c329 = arith.constant 329 : index
    %1554 = memref.load %arg2[%c329] : memref<432xf32, #tpu.memory_space<smem>>
    %1555 = vector.broadcast %1554 : f32 to vector<16x16xf32>
    %1556 = arith.mulf %1555, %1549 : vector<16x16xf32>
    %1557 = arith.addf %1539, %1556 : vector<16x16xf32>
    %c365 = arith.constant 365 : index
    %1558 = memref.load %arg2[%c365] : memref<432xf32, #tpu.memory_space<smem>>
    %1559 = vector.broadcast %1558 : f32 to vector<16x16xf32>
    %1560 = arith.mulf %1559, %1549 : vector<16x16xf32>
    %1561 = arith.addf %1543, %1560 : vector<16x16xf32>
    %c401 = arith.constant 401 : index
    %1562 = memref.load %arg2[%c401] : memref<432xf32, #tpu.memory_space<smem>>
    %1563 = vector.broadcast %1562 : f32 to vector<16x16xf32>
    %1564 = arith.mulf %1563, %1549 : vector<16x16xf32>
    %1565 = arith.addf %1547, %1564 : vector<16x16xf32>
    %c0_395 = arith.constant 0 : index
    %c2_396 = arith.constant 2 : index
    %c0_397 = arith.constant 0 : index
    %1566 = vector.load %arg5[%c0_395, %c2_396, %c0_397] : memref<4x18x18xf32, #tpu.memory_space<vmem>>, vector<1x16x16xf32>
    %1567 = vector.shape_cast %1566 : vector<1x16x16xf32> to vector<16x16xf32>
    %c294 = arith.constant 294 : index
    %1568 = memref.load %arg2[%c294] : memref<432xf32, #tpu.memory_space<smem>>
    %1569 = vector.broadcast %1568 : f32 to vector<16x16xf32>
    %1570 = arith.mulf %1569, %1567 : vector<16x16xf32>
    %1571 = arith.addf %1553, %1570 : vector<16x16xf32>
    %c330 = arith.constant 330 : index
    %1572 = memref.load %arg2[%c330] : memref<432xf32, #tpu.memory_space<smem>>
    %1573 = vector.broadcast %1572 : f32 to vector<16x16xf32>
    %1574 = arith.mulf %1573, %1567 : vector<16x16xf32>
    %1575 = arith.addf %1557, %1574 : vector<16x16xf32>
    %c366 = arith.constant 366 : index
    %1576 = memref.load %arg2[%c366] : memref<432xf32, #tpu.memory_space<smem>>
    %1577 = vector.broadcast %1576 : f32 to vector<16x16xf32>
    %1578 = arith.mulf %1577, %1567 : vector<16x16xf32>
    %1579 = arith.addf %1561, %1578 : vector<16x16xf32>
    %c402 = arith.constant 402 : index
    %1580 = memref.load %arg2[%c402] : memref<432xf32, #tpu.memory_space<smem>>
    %1581 = vector.broadcast %1580 : f32 to vector<16x16xf32>
    %1582 = arith.mulf %1581, %1567 : vector<16x16xf32>
    %1583 = arith.addf %1565, %1582 : vector<16x16xf32>
    %c0_398 = arith.constant 0 : index
    %c2_399 = arith.constant 2 : index
    %c1_400 = arith.constant 1 : index
    %1584 = vector.load %arg5[%c0_398, %c2_399, %c1_400] : memref<4x18x18xf32, #tpu.memory_space<vmem>>, vector<1x16x16xf32>
    %1585 = vector.shape_cast %1584 : vector<1x16x16xf32> to vector<16x16xf32>
    %c295 = arith.constant 295 : index
    %1586 = memref.load %arg2[%c295] : memref<432xf32, #tpu.memory_space<smem>>
    %1587 = vector.broadcast %1586 : f32 to vector<16x16xf32>
    %1588 = arith.mulf %1587, %1585 : vector<16x16xf32>
    %1589 = arith.addf %1571, %1588 : vector<16x16xf32>
    %c331 = arith.constant 331 : index
    %1590 = memref.load %arg2[%c331] : memref<432xf32, #tpu.memory_space<smem>>
    %1591 = vector.broadcast %1590 : f32 to vector<16x16xf32>
    %1592 = arith.mulf %1591, %1585 : vector<16x16xf32>
    %1593 = arith.addf %1575, %1592 : vector<16x16xf32>
    %c367 = arith.constant 367 : index
    %1594 = memref.load %arg2[%c367] : memref<432xf32, #tpu.memory_space<smem>>
    %1595 = vector.broadcast %1594 : f32 to vector<16x16xf32>
    %1596 = arith.mulf %1595, %1585 : vector<16x16xf32>
    %1597 = arith.addf %1579, %1596 : vector<16x16xf32>
    %c403 = arith.constant 403 : index
    %1598 = memref.load %arg2[%c403] : memref<432xf32, #tpu.memory_space<smem>>
    %1599 = vector.broadcast %1598 : f32 to vector<16x16xf32>
    %1600 = arith.mulf %1599, %1585 : vector<16x16xf32>
    %1601 = arith.addf %1583, %1600 : vector<16x16xf32>
    %c0_401 = arith.constant 0 : index
    %c2_402 = arith.constant 2 : index
    %c2_403 = arith.constant 2 : index
    %1602 = vector.load %arg5[%c0_401, %c2_402, %c2_403] : memref<4x18x18xf32, #tpu.memory_space<vmem>>, vector<1x16x16xf32>
    %1603 = vector.shape_cast %1602 : vector<1x16x16xf32> to vector<16x16xf32>
    %c296 = arith.constant 296 : index
    %1604 = memref.load %arg2[%c296] : memref<432xf32, #tpu.memory_space<smem>>
    %1605 = vector.broadcast %1604 : f32 to vector<16x16xf32>
    %1606 = arith.mulf %1605, %1603 : vector<16x16xf32>
    %1607 = arith.addf %1589, %1606 : vector<16x16xf32>
    %c332 = arith.constant 332 : index
    %1608 = memref.load %arg2[%c332] : memref<432xf32, #tpu.memory_space<smem>>
    %1609 = vector.broadcast %1608 : f32 to vector<16x16xf32>
    %1610 = arith.mulf %1609, %1603 : vector<16x16xf32>
    %1611 = arith.addf %1593, %1610 : vector<16x16xf32>
    %c368 = arith.constant 368 : index
    %1612 = memref.load %arg2[%c368] : memref<432xf32, #tpu.memory_space<smem>>
    %1613 = vector.broadcast %1612 : f32 to vector<16x16xf32>
    %1614 = arith.mulf %1613, %1603 : vector<16x16xf32>
    %1615 = arith.addf %1597, %1614 : vector<16x16xf32>
    %c404 = arith.constant 404 : index
    %1616 = memref.load %arg2[%c404] : memref<432xf32, #tpu.memory_space<smem>>
    %1617 = vector.broadcast %1616 : f32 to vector<16x16xf32>
    %1618 = arith.mulf %1617, %1603 : vector<16x16xf32>
    %1619 = arith.addf %1601, %1618 : vector<16x16xf32>
    %c1_404 = arith.constant 1 : index
    %c0_405 = arith.constant 0 : index
    %c0_406 = arith.constant 0 : index
    %1620 = vector.load %arg5[%c1_404, %c0_405, %c0_406] : memref<4x18x18xf32, #tpu.memory_space<vmem>>, vector<1x16x16xf32>
    %1621 = vector.shape_cast %1620 : vector<1x16x16xf32> to vector<16x16xf32>
    %c297 = arith.constant 297 : index
    %1622 = memref.load %arg2[%c297] : memref<432xf32, #tpu.memory_space<smem>>
    %1623 = vector.broadcast %1622 : f32 to vector<16x16xf32>
    %1624 = arith.mulf %1623, %1621 : vector<16x16xf32>
    %1625 = arith.addf %1607, %1624 : vector<16x16xf32>
    %c333 = arith.constant 333 : index
    %1626 = memref.load %arg2[%c333] : memref<432xf32, #tpu.memory_space<smem>>
    %1627 = vector.broadcast %1626 : f32 to vector<16x16xf32>
    %1628 = arith.mulf %1627, %1621 : vector<16x16xf32>
    %1629 = arith.addf %1611, %1628 : vector<16x16xf32>
    %c369 = arith.constant 369 : index
    %1630 = memref.load %arg2[%c369] : memref<432xf32, #tpu.memory_space<smem>>
    %1631 = vector.broadcast %1630 : f32 to vector<16x16xf32>
    %1632 = arith.mulf %1631, %1621 : vector<16x16xf32>
    %1633 = arith.addf %1615, %1632 : vector<16x16xf32>
    %c405 = arith.constant 405 : index
    %1634 = memref.load %arg2[%c405] : memref<432xf32, #tpu.memory_space<smem>>
    %1635 = vector.broadcast %1634 : f32 to vector<16x16xf32>
    %1636 = arith.mulf %1635, %1621 : vector<16x16xf32>
    %1637 = arith.addf %1619, %1636 : vector<16x16xf32>
    %c1_407 = arith.constant 1 : index
    %c0_408 = arith.constant 0 : index
    %c1_409 = arith.constant 1 : index
    %1638 = vector.load %arg5[%c1_407, %c0_408, %c1_409] : memref<4x18x18xf32, #tpu.memory_space<vmem>>, vector<1x16x16xf32>
    %1639 = vector.shape_cast %1638 : vector<1x16x16xf32> to vector<16x16xf32>
    %c298 = arith.constant 298 : index
    %1640 = memref.load %arg2[%c298] : memref<432xf32, #tpu.memory_space<smem>>
    %1641 = vector.broadcast %1640 : f32 to vector<16x16xf32>
    %1642 = arith.mulf %1641, %1639 : vector<16x16xf32>
    %1643 = arith.addf %1625, %1642 : vector<16x16xf32>
    %c334 = arith.constant 334 : index
    %1644 = memref.load %arg2[%c334] : memref<432xf32, #tpu.memory_space<smem>>
    %1645 = vector.broadcast %1644 : f32 to vector<16x16xf32>
    %1646 = arith.mulf %1645, %1639 : vector<16x16xf32>
    %1647 = arith.addf %1629, %1646 : vector<16x16xf32>
    %c370 = arith.constant 370 : index
    %1648 = memref.load %arg2[%c370] : memref<432xf32, #tpu.memory_space<smem>>
    %1649 = vector.broadcast %1648 : f32 to vector<16x16xf32>
    %1650 = arith.mulf %1649, %1639 : vector<16x16xf32>
    %1651 = arith.addf %1633, %1650 : vector<16x16xf32>
    %c406 = arith.constant 406 : index
    %1652 = memref.load %arg2[%c406] : memref<432xf32, #tpu.memory_space<smem>>
    %1653 = vector.broadcast %1652 : f32 to vector<16x16xf32>
    %1654 = arith.mulf %1653, %1639 : vector<16x16xf32>
    %1655 = arith.addf %1637, %1654 : vector<16x16xf32>
    %c1_410 = arith.constant 1 : index
    %c0_411 = arith.constant 0 : index
    %c2_412 = arith.constant 2 : index
    %1656 = vector.load %arg5[%c1_410, %c0_411, %c2_412] : memref<4x18x18xf32, #tpu.memory_space<vmem>>, vector<1x16x16xf32>
    %1657 = vector.shape_cast %1656 : vector<1x16x16xf32> to vector<16x16xf32>
    %c299 = arith.constant 299 : index
    %1658 = memref.load %arg2[%c299] : memref<432xf32, #tpu.memory_space<smem>>
    %1659 = vector.broadcast %1658 : f32 to vector<16x16xf32>
    %1660 = arith.mulf %1659, %1657 : vector<16x16xf32>
    %1661 = arith.addf %1643, %1660 : vector<16x16xf32>
    %c335 = arith.constant 335 : index
    %1662 = memref.load %arg2[%c335] : memref<432xf32, #tpu.memory_space<smem>>
    %1663 = vector.broadcast %1662 : f32 to vector<16x16xf32>
    %1664 = arith.mulf %1663, %1657 : vector<16x16xf32>
    %1665 = arith.addf %1647, %1664 : vector<16x16xf32>
    %c371 = arith.constant 371 : index
    %1666 = memref.load %arg2[%c371] : memref<432xf32, #tpu.memory_space<smem>>
    %1667 = vector.broadcast %1666 : f32 to vector<16x16xf32>
    %1668 = arith.mulf %1667, %1657 : vector<16x16xf32>
    %1669 = arith.addf %1651, %1668 : vector<16x16xf32>
    %c407 = arith.constant 407 : index
    %1670 = memref.load %arg2[%c407] : memref<432xf32, #tpu.memory_space<smem>>
    %1671 = vector.broadcast %1670 : f32 to vector<16x16xf32>
    %1672 = arith.mulf %1671, %1657 : vector<16x16xf32>
    %1673 = arith.addf %1655, %1672 : vector<16x16xf32>
    %c1_413 = arith.constant 1 : index
    %c1_414 = arith.constant 1 : index
    %c0_415 = arith.constant 0 : index
    %1674 = vector.load %arg5[%c1_413, %c1_414, %c0_415] : memref<4x18x18xf32, #tpu.memory_space<vmem>>, vector<1x16x16xf32>
    %1675 = vector.shape_cast %1674 : vector<1x16x16xf32> to vector<16x16xf32>
    %c300 = arith.constant 300 : index
    %1676 = memref.load %arg2[%c300] : memref<432xf32, #tpu.memory_space<smem>>
    %1677 = vector.broadcast %1676 : f32 to vector<16x16xf32>
    %1678 = arith.mulf %1677, %1675 : vector<16x16xf32>
    %1679 = arith.addf %1661, %1678 : vector<16x16xf32>
    %c336 = arith.constant 336 : index
    %1680 = memref.load %arg2[%c336] : memref<432xf32, #tpu.memory_space<smem>>
    %1681 = vector.broadcast %1680 : f32 to vector<16x16xf32>
    %1682 = arith.mulf %1681, %1675 : vector<16x16xf32>
    %1683 = arith.addf %1665, %1682 : vector<16x16xf32>
    %c372 = arith.constant 372 : index
    %1684 = memref.load %arg2[%c372] : memref<432xf32, #tpu.memory_space<smem>>
    %1685 = vector.broadcast %1684 : f32 to vector<16x16xf32>
    %1686 = arith.mulf %1685, %1675 : vector<16x16xf32>
    %1687 = arith.addf %1669, %1686 : vector<16x16xf32>
    %c408 = arith.constant 408 : index
    %1688 = memref.load %arg2[%c408] : memref<432xf32, #tpu.memory_space<smem>>
    %1689 = vector.broadcast %1688 : f32 to vector<16x16xf32>
    %1690 = arith.mulf %1689, %1675 : vector<16x16xf32>
    %1691 = arith.addf %1673, %1690 : vector<16x16xf32>
    %c1_416 = arith.constant 1 : index
    %c1_417 = arith.constant 1 : index
    %c1_418 = arith.constant 1 : index
    %1692 = vector.load %arg5[%c1_416, %c1_417, %c1_418] : memref<4x18x18xf32, #tpu.memory_space<vmem>>, vector<1x16x16xf32>
    %1693 = vector.shape_cast %1692 : vector<1x16x16xf32> to vector<16x16xf32>
    %c301 = arith.constant 301 : index
    %1694 = memref.load %arg2[%c301] : memref<432xf32, #tpu.memory_space<smem>>
    %1695 = vector.broadcast %1694 : f32 to vector<16x16xf32>
    %1696 = arith.mulf %1695, %1693 : vector<16x16xf32>
    %1697 = arith.addf %1679, %1696 : vector<16x16xf32>
    %c337 = arith.constant 337 : index
    %1698 = memref.load %arg2[%c337] : memref<432xf32, #tpu.memory_space<smem>>
    %1699 = vector.broadcast %1698 : f32 to vector<16x16xf32>
    %1700 = arith.mulf %1699, %1693 : vector<16x16xf32>
    %1701 = arith.addf %1683, %1700 : vector<16x16xf32>
    %c373 = arith.constant 373 : index
    %1702 = memref.load %arg2[%c373] : memref<432xf32, #tpu.memory_space<smem>>
    %1703 = vector.broadcast %1702 : f32 to vector<16x16xf32>
    %1704 = arith.mulf %1703, %1693 : vector<16x16xf32>
    %1705 = arith.addf %1687, %1704 : vector<16x16xf32>
    %c409 = arith.constant 409 : index
    %1706 = memref.load %arg2[%c409] : memref<432xf32, #tpu.memory_space<smem>>
    %1707 = vector.broadcast %1706 : f32 to vector<16x16xf32>
    %1708 = arith.mulf %1707, %1693 : vector<16x16xf32>
    %1709 = arith.addf %1691, %1708 : vector<16x16xf32>
    %c1_419 = arith.constant 1 : index
    %c1_420 = arith.constant 1 : index
    %c2_421 = arith.constant 2 : index
    %1710 = vector.load %arg5[%c1_419, %c1_420, %c2_421] : memref<4x18x18xf32, #tpu.memory_space<vmem>>, vector<1x16x16xf32>
    %1711 = vector.shape_cast %1710 : vector<1x16x16xf32> to vector<16x16xf32>
    %c302 = arith.constant 302 : index
    %1712 = memref.load %arg2[%c302] : memref<432xf32, #tpu.memory_space<smem>>
    %1713 = vector.broadcast %1712 : f32 to vector<16x16xf32>
    %1714 = arith.mulf %1713, %1711 : vector<16x16xf32>
    %1715 = arith.addf %1697, %1714 : vector<16x16xf32>
    %c338 = arith.constant 338 : index
    %1716 = memref.load %arg2[%c338] : memref<432xf32, #tpu.memory_space<smem>>
    %1717 = vector.broadcast %1716 : f32 to vector<16x16xf32>
    %1718 = arith.mulf %1717, %1711 : vector<16x16xf32>
    %1719 = arith.addf %1701, %1718 : vector<16x16xf32>
    %c374 = arith.constant 374 : index
    %1720 = memref.load %arg2[%c374] : memref<432xf32, #tpu.memory_space<smem>>
    %1721 = vector.broadcast %1720 : f32 to vector<16x16xf32>
    %1722 = arith.mulf %1721, %1711 : vector<16x16xf32>
    %1723 = arith.addf %1705, %1722 : vector<16x16xf32>
    %c410 = arith.constant 410 : index
    %1724 = memref.load %arg2[%c410] : memref<432xf32, #tpu.memory_space<smem>>
    %1725 = vector.broadcast %1724 : f32 to vector<16x16xf32>
    %1726 = arith.mulf %1725, %1711 : vector<16x16xf32>
    %1727 = arith.addf %1709, %1726 : vector<16x16xf32>
    %c1_422 = arith.constant 1 : index
    %c2_423 = arith.constant 2 : index
    %c0_424 = arith.constant 0 : index
    %1728 = vector.load %arg5[%c1_422, %c2_423, %c0_424] : memref<4x18x18xf32, #tpu.memory_space<vmem>>, vector<1x16x16xf32>
    %1729 = vector.shape_cast %1728 : vector<1x16x16xf32> to vector<16x16xf32>
    %c303 = arith.constant 303 : index
    %1730 = memref.load %arg2[%c303] : memref<432xf32, #tpu.memory_space<smem>>
    %1731 = vector.broadcast %1730 : f32 to vector<16x16xf32>
    %1732 = arith.mulf %1731, %1729 : vector<16x16xf32>
    %1733 = arith.addf %1715, %1732 : vector<16x16xf32>
    %c339 = arith.constant 339 : index
    %1734 = memref.load %arg2[%c339] : memref<432xf32, #tpu.memory_space<smem>>
    %1735 = vector.broadcast %1734 : f32 to vector<16x16xf32>
    %1736 = arith.mulf %1735, %1729 : vector<16x16xf32>
    %1737 = arith.addf %1719, %1736 : vector<16x16xf32>
    %c375 = arith.constant 375 : index
    %1738 = memref.load %arg2[%c375] : memref<432xf32, #tpu.memory_space<smem>>
    %1739 = vector.broadcast %1738 : f32 to vector<16x16xf32>
    %1740 = arith.mulf %1739, %1729 : vector<16x16xf32>
    %1741 = arith.addf %1723, %1740 : vector<16x16xf32>
    %c411 = arith.constant 411 : index
    %1742 = memref.load %arg2[%c411] : memref<432xf32, #tpu.memory_space<smem>>
    %1743 = vector.broadcast %1742 : f32 to vector<16x16xf32>
    %1744 = arith.mulf %1743, %1729 : vector<16x16xf32>
    %1745 = arith.addf %1727, %1744 : vector<16x16xf32>
    %c1_425 = arith.constant 1 : index
    %c2_426 = arith.constant 2 : index
    %c1_427 = arith.constant 1 : index
    %1746 = vector.load %arg5[%c1_425, %c2_426, %c1_427] : memref<4x18x18xf32, #tpu.memory_space<vmem>>, vector<1x16x16xf32>
    %1747 = vector.shape_cast %1746 : vector<1x16x16xf32> to vector<16x16xf32>
    %c304 = arith.constant 304 : index
    %1748 = memref.load %arg2[%c304] : memref<432xf32, #tpu.memory_space<smem>>
    %1749 = vector.broadcast %1748 : f32 to vector<16x16xf32>
    %1750 = arith.mulf %1749, %1747 : vector<16x16xf32>
    %1751 = arith.addf %1733, %1750 : vector<16x16xf32>
    %c340 = arith.constant 340 : index
    %1752 = memref.load %arg2[%c340] : memref<432xf32, #tpu.memory_space<smem>>
    %1753 = vector.broadcast %1752 : f32 to vector<16x16xf32>
    %1754 = arith.mulf %1753, %1747 : vector<16x16xf32>
    %1755 = arith.addf %1737, %1754 : vector<16x16xf32>
    %c376 = arith.constant 376 : index
    %1756 = memref.load %arg2[%c376] : memref<432xf32, #tpu.memory_space<smem>>
    %1757 = vector.broadcast %1756 : f32 to vector<16x16xf32>
    %1758 = arith.mulf %1757, %1747 : vector<16x16xf32>
    %1759 = arith.addf %1741, %1758 : vector<16x16xf32>
    %c412 = arith.constant 412 : index
    %1760 = memref.load %arg2[%c412] : memref<432xf32, #tpu.memory_space<smem>>
    %1761 = vector.broadcast %1760 : f32 to vector<16x16xf32>
    %1762 = arith.mulf %1761, %1747 : vector<16x16xf32>
    %1763 = arith.addf %1745, %1762 : vector<16x16xf32>
    %c1_428 = arith.constant 1 : index
    %c2_429 = arith.constant 2 : index
    %c2_430 = arith.constant 2 : index
    %1764 = vector.load %arg5[%c1_428, %c2_429, %c2_430] : memref<4x18x18xf32, #tpu.memory_space<vmem>>, vector<1x16x16xf32>
    %1765 = vector.shape_cast %1764 : vector<1x16x16xf32> to vector<16x16xf32>
    %c305 = arith.constant 305 : index
    %1766 = memref.load %arg2[%c305] : memref<432xf32, #tpu.memory_space<smem>>
    %1767 = vector.broadcast %1766 : f32 to vector<16x16xf32>
    %1768 = arith.mulf %1767, %1765 : vector<16x16xf32>
    %1769 = arith.addf %1751, %1768 : vector<16x16xf32>
    %c341 = arith.constant 341 : index
    %1770 = memref.load %arg2[%c341] : memref<432xf32, #tpu.memory_space<smem>>
    %1771 = vector.broadcast %1770 : f32 to vector<16x16xf32>
    %1772 = arith.mulf %1771, %1765 : vector<16x16xf32>
    %1773 = arith.addf %1755, %1772 : vector<16x16xf32>
    %c377 = arith.constant 377 : index
    %1774 = memref.load %arg2[%c377] : memref<432xf32, #tpu.memory_space<smem>>
    %1775 = vector.broadcast %1774 : f32 to vector<16x16xf32>
    %1776 = arith.mulf %1775, %1765 : vector<16x16xf32>
    %1777 = arith.addf %1759, %1776 : vector<16x16xf32>
    %c413 = arith.constant 413 : index
    %1778 = memref.load %arg2[%c413] : memref<432xf32, #tpu.memory_space<smem>>
    %1779 = vector.broadcast %1778 : f32 to vector<16x16xf32>
    %1780 = arith.mulf %1779, %1765 : vector<16x16xf32>
    %1781 = arith.addf %1763, %1780 : vector<16x16xf32>
    %c2_431 = arith.constant 2 : index
    %c0_432 = arith.constant 0 : index
    %c0_433 = arith.constant 0 : index
    %1782 = vector.load %arg5[%c2_431, %c0_432, %c0_433] : memref<4x18x18xf32, #tpu.memory_space<vmem>>, vector<1x16x16xf32>
    %1783 = vector.shape_cast %1782 : vector<1x16x16xf32> to vector<16x16xf32>
    %c306 = arith.constant 306 : index
    %1784 = memref.load %arg2[%c306] : memref<432xf32, #tpu.memory_space<smem>>
    %1785 = vector.broadcast %1784 : f32 to vector<16x16xf32>
    %1786 = arith.mulf %1785, %1783 : vector<16x16xf32>
    %1787 = arith.addf %1769, %1786 : vector<16x16xf32>
    %c342 = arith.constant 342 : index
    %1788 = memref.load %arg2[%c342] : memref<432xf32, #tpu.memory_space<smem>>
    %1789 = vector.broadcast %1788 : f32 to vector<16x16xf32>
    %1790 = arith.mulf %1789, %1783 : vector<16x16xf32>
    %1791 = arith.addf %1773, %1790 : vector<16x16xf32>
    %c378 = arith.constant 378 : index
    %1792 = memref.load %arg2[%c378] : memref<432xf32, #tpu.memory_space<smem>>
    %1793 = vector.broadcast %1792 : f32 to vector<16x16xf32>
    %1794 = arith.mulf %1793, %1783 : vector<16x16xf32>
    %1795 = arith.addf %1777, %1794 : vector<16x16xf32>
    %c414 = arith.constant 414 : index
    %1796 = memref.load %arg2[%c414] : memref<432xf32, #tpu.memory_space<smem>>
    %1797 = vector.broadcast %1796 : f32 to vector<16x16xf32>
    %1798 = arith.mulf %1797, %1783 : vector<16x16xf32>
    %1799 = arith.addf %1781, %1798 : vector<16x16xf32>
    %c2_434 = arith.constant 2 : index
    %c0_435 = arith.constant 0 : index
    %c1_436 = arith.constant 1 : index
    %1800 = vector.load %arg5[%c2_434, %c0_435, %c1_436] : memref<4x18x18xf32, #tpu.memory_space<vmem>>, vector<1x16x16xf32>
    %1801 = vector.shape_cast %1800 : vector<1x16x16xf32> to vector<16x16xf32>
    %c307 = arith.constant 307 : index
    %1802 = memref.load %arg2[%c307] : memref<432xf32, #tpu.memory_space<smem>>
    %1803 = vector.broadcast %1802 : f32 to vector<16x16xf32>
    %1804 = arith.mulf %1803, %1801 : vector<16x16xf32>
    %1805 = arith.addf %1787, %1804 : vector<16x16xf32>
    %c343 = arith.constant 343 : index
    %1806 = memref.load %arg2[%c343] : memref<432xf32, #tpu.memory_space<smem>>
    %1807 = vector.broadcast %1806 : f32 to vector<16x16xf32>
    %1808 = arith.mulf %1807, %1801 : vector<16x16xf32>
    %1809 = arith.addf %1791, %1808 : vector<16x16xf32>
    %c379 = arith.constant 379 : index
    %1810 = memref.load %arg2[%c379] : memref<432xf32, #tpu.memory_space<smem>>
    %1811 = vector.broadcast %1810 : f32 to vector<16x16xf32>
    %1812 = arith.mulf %1811, %1801 : vector<16x16xf32>
    %1813 = arith.addf %1795, %1812 : vector<16x16xf32>
    %c415 = arith.constant 415 : index
    %1814 = memref.load %arg2[%c415] : memref<432xf32, #tpu.memory_space<smem>>
    %1815 = vector.broadcast %1814 : f32 to vector<16x16xf32>
    %1816 = arith.mulf %1815, %1801 : vector<16x16xf32>
    %1817 = arith.addf %1799, %1816 : vector<16x16xf32>
    %c2_437 = arith.constant 2 : index
    %c0_438 = arith.constant 0 : index
    %c2_439 = arith.constant 2 : index
    %1818 = vector.load %arg5[%c2_437, %c0_438, %c2_439] : memref<4x18x18xf32, #tpu.memory_space<vmem>>, vector<1x16x16xf32>
    %1819 = vector.shape_cast %1818 : vector<1x16x16xf32> to vector<16x16xf32>
    %c308 = arith.constant 308 : index
    %1820 = memref.load %arg2[%c308] : memref<432xf32, #tpu.memory_space<smem>>
    %1821 = vector.broadcast %1820 : f32 to vector<16x16xf32>
    %1822 = arith.mulf %1821, %1819 : vector<16x16xf32>
    %1823 = arith.addf %1805, %1822 : vector<16x16xf32>
    %c344 = arith.constant 344 : index
    %1824 = memref.load %arg2[%c344] : memref<432xf32, #tpu.memory_space<smem>>
    %1825 = vector.broadcast %1824 : f32 to vector<16x16xf32>
    %1826 = arith.mulf %1825, %1819 : vector<16x16xf32>
    %1827 = arith.addf %1809, %1826 : vector<16x16xf32>
    %c380 = arith.constant 380 : index
    %1828 = memref.load %arg2[%c380] : memref<432xf32, #tpu.memory_space<smem>>
    %1829 = vector.broadcast %1828 : f32 to vector<16x16xf32>
    %1830 = arith.mulf %1829, %1819 : vector<16x16xf32>
    %1831 = arith.addf %1813, %1830 : vector<16x16xf32>
    %c416 = arith.constant 416 : index
    %1832 = memref.load %arg2[%c416] : memref<432xf32, #tpu.memory_space<smem>>
    %1833 = vector.broadcast %1832 : f32 to vector<16x16xf32>
    %1834 = arith.mulf %1833, %1819 : vector<16x16xf32>
    %1835 = arith.addf %1817, %1834 : vector<16x16xf32>
    %c2_440 = arith.constant 2 : index
    %c1_441 = arith.constant 1 : index
    %c0_442 = arith.constant 0 : index
    %1836 = vector.load %arg5[%c2_440, %c1_441, %c0_442] : memref<4x18x18xf32, #tpu.memory_space<vmem>>, vector<1x16x16xf32>
    %1837 = vector.shape_cast %1836 : vector<1x16x16xf32> to vector<16x16xf32>
    %c309 = arith.constant 309 : index
    %1838 = memref.load %arg2[%c309] : memref<432xf32, #tpu.memory_space<smem>>
    %1839 = vector.broadcast %1838 : f32 to vector<16x16xf32>
    %1840 = arith.mulf %1839, %1837 : vector<16x16xf32>
    %1841 = arith.addf %1823, %1840 : vector<16x16xf32>
    %c345 = arith.constant 345 : index
    %1842 = memref.load %arg2[%c345] : memref<432xf32, #tpu.memory_space<smem>>
    %1843 = vector.broadcast %1842 : f32 to vector<16x16xf32>
    %1844 = arith.mulf %1843, %1837 : vector<16x16xf32>
    %1845 = arith.addf %1827, %1844 : vector<16x16xf32>
    %c381 = arith.constant 381 : index
    %1846 = memref.load %arg2[%c381] : memref<432xf32, #tpu.memory_space<smem>>
    %1847 = vector.broadcast %1846 : f32 to vector<16x16xf32>
    %1848 = arith.mulf %1847, %1837 : vector<16x16xf32>
    %1849 = arith.addf %1831, %1848 : vector<16x16xf32>
    %c417 = arith.constant 417 : index
    %1850 = memref.load %arg2[%c417] : memref<432xf32, #tpu.memory_space<smem>>
    %1851 = vector.broadcast %1850 : f32 to vector<16x16xf32>
    %1852 = arith.mulf %1851, %1837 : vector<16x16xf32>
    %1853 = arith.addf %1835, %1852 : vector<16x16xf32>
    %c2_443 = arith.constant 2 : index
    %c1_444 = arith.constant 1 : index
    %c1_445 = arith.constant 1 : index
    %1854 = vector.load %arg5[%c2_443, %c1_444, %c1_445] : memref<4x18x18xf32, #tpu.memory_space<vmem>>, vector<1x16x16xf32>
    %1855 = vector.shape_cast %1854 : vector<1x16x16xf32> to vector<16x16xf32>
    %c310 = arith.constant 310 : index
    %1856 = memref.load %arg2[%c310] : memref<432xf32, #tpu.memory_space<smem>>
    %1857 = vector.broadcast %1856 : f32 to vector<16x16xf32>
    %1858 = arith.mulf %1857, %1855 : vector<16x16xf32>
    %1859 = arith.addf %1841, %1858 : vector<16x16xf32>
    %c346 = arith.constant 346 : index
    %1860 = memref.load %arg2[%c346] : memref<432xf32, #tpu.memory_space<smem>>
    %1861 = vector.broadcast %1860 : f32 to vector<16x16xf32>
    %1862 = arith.mulf %1861, %1855 : vector<16x16xf32>
    %1863 = arith.addf %1845, %1862 : vector<16x16xf32>
    %c382 = arith.constant 382 : index
    %1864 = memref.load %arg2[%c382] : memref<432xf32, #tpu.memory_space<smem>>
    %1865 = vector.broadcast %1864 : f32 to vector<16x16xf32>
    %1866 = arith.mulf %1865, %1855 : vector<16x16xf32>
    %1867 = arith.addf %1849, %1866 : vector<16x16xf32>
    %c418 = arith.constant 418 : index
    %1868 = memref.load %arg2[%c418] : memref<432xf32, #tpu.memory_space<smem>>
    %1869 = vector.broadcast %1868 : f32 to vector<16x16xf32>
    %1870 = arith.mulf %1869, %1855 : vector<16x16xf32>
    %1871 = arith.addf %1853, %1870 : vector<16x16xf32>
    %c2_446 = arith.constant 2 : index
    %c1_447 = arith.constant 1 : index
    %c2_448 = arith.constant 2 : index
    %1872 = vector.load %arg5[%c2_446, %c1_447, %c2_448] : memref<4x18x18xf32, #tpu.memory_space<vmem>>, vector<1x16x16xf32>
    %1873 = vector.shape_cast %1872 : vector<1x16x16xf32> to vector<16x16xf32>
    %c311 = arith.constant 311 : index
    %1874 = memref.load %arg2[%c311] : memref<432xf32, #tpu.memory_space<smem>>
    %1875 = vector.broadcast %1874 : f32 to vector<16x16xf32>
    %1876 = arith.mulf %1875, %1873 : vector<16x16xf32>
    %1877 = arith.addf %1859, %1876 : vector<16x16xf32>
    %c347 = arith.constant 347 : index
    %1878 = memref.load %arg2[%c347] : memref<432xf32, #tpu.memory_space<smem>>
    %1879 = vector.broadcast %1878 : f32 to vector<16x16xf32>
    %1880 = arith.mulf %1879, %1873 : vector<16x16xf32>
    %1881 = arith.addf %1863, %1880 : vector<16x16xf32>
    %c383 = arith.constant 383 : index
    %1882 = memref.load %arg2[%c383] : memref<432xf32, #tpu.memory_space<smem>>
    %1883 = vector.broadcast %1882 : f32 to vector<16x16xf32>
    %1884 = arith.mulf %1883, %1873 : vector<16x16xf32>
    %1885 = arith.addf %1867, %1884 : vector<16x16xf32>
    %c419 = arith.constant 419 : index
    %1886 = memref.load %arg2[%c419] : memref<432xf32, #tpu.memory_space<smem>>
    %1887 = vector.broadcast %1886 : f32 to vector<16x16xf32>
    %1888 = arith.mulf %1887, %1873 : vector<16x16xf32>
    %1889 = arith.addf %1871, %1888 : vector<16x16xf32>
    %c2_449 = arith.constant 2 : index
    %c2_450 = arith.constant 2 : index
    %c0_451 = arith.constant 0 : index
    %1890 = vector.load %arg5[%c2_449, %c2_450, %c0_451] : memref<4x18x18xf32, #tpu.memory_space<vmem>>, vector<1x16x16xf32>
    %1891 = vector.shape_cast %1890 : vector<1x16x16xf32> to vector<16x16xf32>
    %c312 = arith.constant 312 : index
    %1892 = memref.load %arg2[%c312] : memref<432xf32, #tpu.memory_space<smem>>
    %1893 = vector.broadcast %1892 : f32 to vector<16x16xf32>
    %1894 = arith.mulf %1893, %1891 : vector<16x16xf32>
    %1895 = arith.addf %1877, %1894 : vector<16x16xf32>
    %c348 = arith.constant 348 : index
    %1896 = memref.load %arg2[%c348] : memref<432xf32, #tpu.memory_space<smem>>
    %1897 = vector.broadcast %1896 : f32 to vector<16x16xf32>
    %1898 = arith.mulf %1897, %1891 : vector<16x16xf32>
    %1899 = arith.addf %1881, %1898 : vector<16x16xf32>
    %c384 = arith.constant 384 : index
    %1900 = memref.load %arg2[%c384] : memref<432xf32, #tpu.memory_space<smem>>
    %1901 = vector.broadcast %1900 : f32 to vector<16x16xf32>
    %1902 = arith.mulf %1901, %1891 : vector<16x16xf32>
    %1903 = arith.addf %1885, %1902 : vector<16x16xf32>
    %c420 = arith.constant 420 : index
    %1904 = memref.load %arg2[%c420] : memref<432xf32, #tpu.memory_space<smem>>
    %1905 = vector.broadcast %1904 : f32 to vector<16x16xf32>
    %1906 = arith.mulf %1905, %1891 : vector<16x16xf32>
    %1907 = arith.addf %1889, %1906 : vector<16x16xf32>
    %c2_452 = arith.constant 2 : index
    %c2_453 = arith.constant 2 : index
    %c1_454 = arith.constant 1 : index
    %1908 = vector.load %arg5[%c2_452, %c2_453, %c1_454] : memref<4x18x18xf32, #tpu.memory_space<vmem>>, vector<1x16x16xf32>
    %1909 = vector.shape_cast %1908 : vector<1x16x16xf32> to vector<16x16xf32>
    %c313 = arith.constant 313 : index
    %1910 = memref.load %arg2[%c313] : memref<432xf32, #tpu.memory_space<smem>>
    %1911 = vector.broadcast %1910 : f32 to vector<16x16xf32>
    %1912 = arith.mulf %1911, %1909 : vector<16x16xf32>
    %1913 = arith.addf %1895, %1912 : vector<16x16xf32>
    %c349 = arith.constant 349 : index
    %1914 = memref.load %arg2[%c349] : memref<432xf32, #tpu.memory_space<smem>>
    %1915 = vector.broadcast %1914 : f32 to vector<16x16xf32>
    %1916 = arith.mulf %1915, %1909 : vector<16x16xf32>
    %1917 = arith.addf %1899, %1916 : vector<16x16xf32>
    %c385 = arith.constant 385 : index
    %1918 = memref.load %arg2[%c385] : memref<432xf32, #tpu.memory_space<smem>>
    %1919 = vector.broadcast %1918 : f32 to vector<16x16xf32>
    %1920 = arith.mulf %1919, %1909 : vector<16x16xf32>
    %1921 = arith.addf %1903, %1920 : vector<16x16xf32>
    %c421 = arith.constant 421 : index
    %1922 = memref.load %arg2[%c421] : memref<432xf32, #tpu.memory_space<smem>>
    %1923 = vector.broadcast %1922 : f32 to vector<16x16xf32>
    %1924 = arith.mulf %1923, %1909 : vector<16x16xf32>
    %1925 = arith.addf %1907, %1924 : vector<16x16xf32>
    %c2_455 = arith.constant 2 : index
    %c2_456 = arith.constant 2 : index
    %c2_457 = arith.constant 2 : index
    %1926 = vector.load %arg5[%c2_455, %c2_456, %c2_457] : memref<4x18x18xf32, #tpu.memory_space<vmem>>, vector<1x16x16xf32>
    %1927 = vector.shape_cast %1926 : vector<1x16x16xf32> to vector<16x16xf32>
    %c314 = arith.constant 314 : index
    %1928 = memref.load %arg2[%c314] : memref<432xf32, #tpu.memory_space<smem>>
    %1929 = vector.broadcast %1928 : f32 to vector<16x16xf32>
    %1930 = arith.mulf %1929, %1927 : vector<16x16xf32>
    %1931 = arith.addf %1913, %1930 : vector<16x16xf32>
    %c350 = arith.constant 350 : index
    %1932 = memref.load %arg2[%c350] : memref<432xf32, #tpu.memory_space<smem>>
    %1933 = vector.broadcast %1932 : f32 to vector<16x16xf32>
    %1934 = arith.mulf %1933, %1927 : vector<16x16xf32>
    %1935 = arith.addf %1917, %1934 : vector<16x16xf32>
    %c386 = arith.constant 386 : index
    %1936 = memref.load %arg2[%c386] : memref<432xf32, #tpu.memory_space<smem>>
    %1937 = vector.broadcast %1936 : f32 to vector<16x16xf32>
    %1938 = arith.mulf %1937, %1927 : vector<16x16xf32>
    %1939 = arith.addf %1921, %1938 : vector<16x16xf32>
    %c422 = arith.constant 422 : index
    %1940 = memref.load %arg2[%c422] : memref<432xf32, #tpu.memory_space<smem>>
    %1941 = vector.broadcast %1940 : f32 to vector<16x16xf32>
    %1942 = arith.mulf %1941, %1927 : vector<16x16xf32>
    %1943 = arith.addf %1925, %1942 : vector<16x16xf32>
    %c3_458 = arith.constant 3 : index
    %c0_459 = arith.constant 0 : index
    %c0_460 = arith.constant 0 : index
    %1944 = vector.load %arg5[%c3_458, %c0_459, %c0_460] : memref<4x18x18xf32, #tpu.memory_space<vmem>>, vector<1x16x16xf32>
    %1945 = vector.shape_cast %1944 : vector<1x16x16xf32> to vector<16x16xf32>
    %c315 = arith.constant 315 : index
    %1946 = memref.load %arg2[%c315] : memref<432xf32, #tpu.memory_space<smem>>
    %1947 = vector.broadcast %1946 : f32 to vector<16x16xf32>
    %1948 = arith.mulf %1947, %1945 : vector<16x16xf32>
    %1949 = arith.addf %1931, %1948 : vector<16x16xf32>
    %c351 = arith.constant 351 : index
    %1950 = memref.load %arg2[%c351] : memref<432xf32, #tpu.memory_space<smem>>
    %1951 = vector.broadcast %1950 : f32 to vector<16x16xf32>
    %1952 = arith.mulf %1951, %1945 : vector<16x16xf32>
    %1953 = arith.addf %1935, %1952 : vector<16x16xf32>
    %c387 = arith.constant 387 : index
    %1954 = memref.load %arg2[%c387] : memref<432xf32, #tpu.memory_space<smem>>
    %1955 = vector.broadcast %1954 : f32 to vector<16x16xf32>
    %1956 = arith.mulf %1955, %1945 : vector<16x16xf32>
    %1957 = arith.addf %1939, %1956 : vector<16x16xf32>
    %c423 = arith.constant 423 : index
    %1958 = memref.load %arg2[%c423] : memref<432xf32, #tpu.memory_space<smem>>
    %1959 = vector.broadcast %1958 : f32 to vector<16x16xf32>
    %1960 = arith.mulf %1959, %1945 : vector<16x16xf32>
    %1961 = arith.addf %1943, %1960 : vector<16x16xf32>
    %c3_461 = arith.constant 3 : index
    %c0_462 = arith.constant 0 : index
    %c1_463 = arith.constant 1 : index
    %1962 = vector.load %arg5[%c3_461, %c0_462, %c1_463] : memref<4x18x18xf32, #tpu.memory_space<vmem>>, vector<1x16x16xf32>
    %1963 = vector.shape_cast %1962 : vector<1x16x16xf32> to vector<16x16xf32>
    %c316 = arith.constant 316 : index
    %1964 = memref.load %arg2[%c316] : memref<432xf32, #tpu.memory_space<smem>>
    %1965 = vector.broadcast %1964 : f32 to vector<16x16xf32>
    %1966 = arith.mulf %1965, %1963 : vector<16x16xf32>
    %1967 = arith.addf %1949, %1966 : vector<16x16xf32>
    %c352 = arith.constant 352 : index
    %1968 = memref.load %arg2[%c352] : memref<432xf32, #tpu.memory_space<smem>>
    %1969 = vector.broadcast %1968 : f32 to vector<16x16xf32>
    %1970 = arith.mulf %1969, %1963 : vector<16x16xf32>
    %1971 = arith.addf %1953, %1970 : vector<16x16xf32>
    %c388 = arith.constant 388 : index
    %1972 = memref.load %arg2[%c388] : memref<432xf32, #tpu.memory_space<smem>>
    %1973 = vector.broadcast %1972 : f32 to vector<16x16xf32>
    %1974 = arith.mulf %1973, %1963 : vector<16x16xf32>
    %1975 = arith.addf %1957, %1974 : vector<16x16xf32>
    %c424 = arith.constant 424 : index
    %1976 = memref.load %arg2[%c424] : memref<432xf32, #tpu.memory_space<smem>>
    %1977 = vector.broadcast %1976 : f32 to vector<16x16xf32>
    %1978 = arith.mulf %1977, %1963 : vector<16x16xf32>
    %1979 = arith.addf %1961, %1978 : vector<16x16xf32>
    %c3_464 = arith.constant 3 : index
    %c0_465 = arith.constant 0 : index
    %c2_466 = arith.constant 2 : index
    %1980 = vector.load %arg5[%c3_464, %c0_465, %c2_466] : memref<4x18x18xf32, #tpu.memory_space<vmem>>, vector<1x16x16xf32>
    %1981 = vector.shape_cast %1980 : vector<1x16x16xf32> to vector<16x16xf32>
    %c317 = arith.constant 317 : index
    %1982 = memref.load %arg2[%c317] : memref<432xf32, #tpu.memory_space<smem>>
    %1983 = vector.broadcast %1982 : f32 to vector<16x16xf32>
    %1984 = arith.mulf %1983, %1981 : vector<16x16xf32>
    %1985 = arith.addf %1967, %1984 : vector<16x16xf32>
    %c353 = arith.constant 353 : index
    %1986 = memref.load %arg2[%c353] : memref<432xf32, #tpu.memory_space<smem>>
    %1987 = vector.broadcast %1986 : f32 to vector<16x16xf32>
    %1988 = arith.mulf %1987, %1981 : vector<16x16xf32>
    %1989 = arith.addf %1971, %1988 : vector<16x16xf32>
    %c389 = arith.constant 389 : index
    %1990 = memref.load %arg2[%c389] : memref<432xf32, #tpu.memory_space<smem>>
    %1991 = vector.broadcast %1990 : f32 to vector<16x16xf32>
    %1992 = arith.mulf %1991, %1981 : vector<16x16xf32>
    %1993 = arith.addf %1975, %1992 : vector<16x16xf32>
    %c425 = arith.constant 425 : index
    %1994 = memref.load %arg2[%c425] : memref<432xf32, #tpu.memory_space<smem>>
    %1995 = vector.broadcast %1994 : f32 to vector<16x16xf32>
    %1996 = arith.mulf %1995, %1981 : vector<16x16xf32>
    %1997 = arith.addf %1979, %1996 : vector<16x16xf32>
    %c3_467 = arith.constant 3 : index
    %c1_468 = arith.constant 1 : index
    %c0_469 = arith.constant 0 : index
    %1998 = vector.load %arg5[%c3_467, %c1_468, %c0_469] : memref<4x18x18xf32, #tpu.memory_space<vmem>>, vector<1x16x16xf32>
    %1999 = vector.shape_cast %1998 : vector<1x16x16xf32> to vector<16x16xf32>
    %c318 = arith.constant 318 : index
    %2000 = memref.load %arg2[%c318] : memref<432xf32, #tpu.memory_space<smem>>
    %2001 = vector.broadcast %2000 : f32 to vector<16x16xf32>
    %2002 = arith.mulf %2001, %1999 : vector<16x16xf32>
    %2003 = arith.addf %1985, %2002 : vector<16x16xf32>
    %c354 = arith.constant 354 : index
    %2004 = memref.load %arg2[%c354] : memref<432xf32, #tpu.memory_space<smem>>
    %2005 = vector.broadcast %2004 : f32 to vector<16x16xf32>
    %2006 = arith.mulf %2005, %1999 : vector<16x16xf32>
    %2007 = arith.addf %1989, %2006 : vector<16x16xf32>
    %c390 = arith.constant 390 : index
    %2008 = memref.load %arg2[%c390] : memref<432xf32, #tpu.memory_space<smem>>
    %2009 = vector.broadcast %2008 : f32 to vector<16x16xf32>
    %2010 = arith.mulf %2009, %1999 : vector<16x16xf32>
    %2011 = arith.addf %1993, %2010 : vector<16x16xf32>
    %c426 = arith.constant 426 : index
    %2012 = memref.load %arg2[%c426] : memref<432xf32, #tpu.memory_space<smem>>
    %2013 = vector.broadcast %2012 : f32 to vector<16x16xf32>
    %2014 = arith.mulf %2013, %1999 : vector<16x16xf32>
    %2015 = arith.addf %1997, %2014 : vector<16x16xf32>
    %c3_470 = arith.constant 3 : index
    %c1_471 = arith.constant 1 : index
    %c1_472 = arith.constant 1 : index
    %2016 = vector.load %arg5[%c3_470, %c1_471, %c1_472] : memref<4x18x18xf32, #tpu.memory_space<vmem>>, vector<1x16x16xf32>
    %2017 = vector.shape_cast %2016 : vector<1x16x16xf32> to vector<16x16xf32>
    %c319 = arith.constant 319 : index
    %2018 = memref.load %arg2[%c319] : memref<432xf32, #tpu.memory_space<smem>>
    %2019 = vector.broadcast %2018 : f32 to vector<16x16xf32>
    %2020 = arith.mulf %2019, %2017 : vector<16x16xf32>
    %2021 = arith.addf %2003, %2020 : vector<16x16xf32>
    %c355 = arith.constant 355 : index
    %2022 = memref.load %arg2[%c355] : memref<432xf32, #tpu.memory_space<smem>>
    %2023 = vector.broadcast %2022 : f32 to vector<16x16xf32>
    %2024 = arith.mulf %2023, %2017 : vector<16x16xf32>
    %2025 = arith.addf %2007, %2024 : vector<16x16xf32>
    %c391 = arith.constant 391 : index
    %2026 = memref.load %arg2[%c391] : memref<432xf32, #tpu.memory_space<smem>>
    %2027 = vector.broadcast %2026 : f32 to vector<16x16xf32>
    %2028 = arith.mulf %2027, %2017 : vector<16x16xf32>
    %2029 = arith.addf %2011, %2028 : vector<16x16xf32>
    %c427 = arith.constant 427 : index
    %2030 = memref.load %arg2[%c427] : memref<432xf32, #tpu.memory_space<smem>>
    %2031 = vector.broadcast %2030 : f32 to vector<16x16xf32>
    %2032 = arith.mulf %2031, %2017 : vector<16x16xf32>
    %2033 = arith.addf %2015, %2032 : vector<16x16xf32>
    %c3_473 = arith.constant 3 : index
    %c1_474 = arith.constant 1 : index
    %c2_475 = arith.constant 2 : index
    %2034 = vector.load %arg5[%c3_473, %c1_474, %c2_475] : memref<4x18x18xf32, #tpu.memory_space<vmem>>, vector<1x16x16xf32>
    %2035 = vector.shape_cast %2034 : vector<1x16x16xf32> to vector<16x16xf32>
    %c320 = arith.constant 320 : index
    %2036 = memref.load %arg2[%c320] : memref<432xf32, #tpu.memory_space<smem>>
    %2037 = vector.broadcast %2036 : f32 to vector<16x16xf32>
    %2038 = arith.mulf %2037, %2035 : vector<16x16xf32>
    %2039 = arith.addf %2021, %2038 : vector<16x16xf32>
    %c356 = arith.constant 356 : index
    %2040 = memref.load %arg2[%c356] : memref<432xf32, #tpu.memory_space<smem>>
    %2041 = vector.broadcast %2040 : f32 to vector<16x16xf32>
    %2042 = arith.mulf %2041, %2035 : vector<16x16xf32>
    %2043 = arith.addf %2025, %2042 : vector<16x16xf32>
    %c392 = arith.constant 392 : index
    %2044 = memref.load %arg2[%c392] : memref<432xf32, #tpu.memory_space<smem>>
    %2045 = vector.broadcast %2044 : f32 to vector<16x16xf32>
    %2046 = arith.mulf %2045, %2035 : vector<16x16xf32>
    %2047 = arith.addf %2029, %2046 : vector<16x16xf32>
    %c428 = arith.constant 428 : index
    %2048 = memref.load %arg2[%c428] : memref<432xf32, #tpu.memory_space<smem>>
    %2049 = vector.broadcast %2048 : f32 to vector<16x16xf32>
    %2050 = arith.mulf %2049, %2035 : vector<16x16xf32>
    %2051 = arith.addf %2033, %2050 : vector<16x16xf32>
    %c3_476 = arith.constant 3 : index
    %c2_477 = arith.constant 2 : index
    %c0_478 = arith.constant 0 : index
    %2052 = vector.load %arg5[%c3_476, %c2_477, %c0_478] : memref<4x18x18xf32, #tpu.memory_space<vmem>>, vector<1x16x16xf32>
    %2053 = vector.shape_cast %2052 : vector<1x16x16xf32> to vector<16x16xf32>
    %c321 = arith.constant 321 : index
    %2054 = memref.load %arg2[%c321] : memref<432xf32, #tpu.memory_space<smem>>
    %2055 = vector.broadcast %2054 : f32 to vector<16x16xf32>
    %2056 = arith.mulf %2055, %2053 : vector<16x16xf32>
    %2057 = arith.addf %2039, %2056 : vector<16x16xf32>
    %c357 = arith.constant 357 : index
    %2058 = memref.load %arg2[%c357] : memref<432xf32, #tpu.memory_space<smem>>
    %2059 = vector.broadcast %2058 : f32 to vector<16x16xf32>
    %2060 = arith.mulf %2059, %2053 : vector<16x16xf32>
    %2061 = arith.addf %2043, %2060 : vector<16x16xf32>
    %c393 = arith.constant 393 : index
    %2062 = memref.load %arg2[%c393] : memref<432xf32, #tpu.memory_space<smem>>
    %2063 = vector.broadcast %2062 : f32 to vector<16x16xf32>
    %2064 = arith.mulf %2063, %2053 : vector<16x16xf32>
    %2065 = arith.addf %2047, %2064 : vector<16x16xf32>
    %c429 = arith.constant 429 : index
    %2066 = memref.load %arg2[%c429] : memref<432xf32, #tpu.memory_space<smem>>
    %2067 = vector.broadcast %2066 : f32 to vector<16x16xf32>
    %2068 = arith.mulf %2067, %2053 : vector<16x16xf32>
    %2069 = arith.addf %2051, %2068 : vector<16x16xf32>
    %c3_479 = arith.constant 3 : index
    %c2_480 = arith.constant 2 : index
    %c1_481 = arith.constant 1 : index
    %2070 = vector.load %arg5[%c3_479, %c2_480, %c1_481] : memref<4x18x18xf32, #tpu.memory_space<vmem>>, vector<1x16x16xf32>
    %2071 = vector.shape_cast %2070 : vector<1x16x16xf32> to vector<16x16xf32>
    %c322 = arith.constant 322 : index
    %2072 = memref.load %arg2[%c322] : memref<432xf32, #tpu.memory_space<smem>>
    %2073 = vector.broadcast %2072 : f32 to vector<16x16xf32>
    %2074 = arith.mulf %2073, %2071 : vector<16x16xf32>
    %2075 = arith.addf %2057, %2074 : vector<16x16xf32>
    %c358 = arith.constant 358 : index
    %2076 = memref.load %arg2[%c358] : memref<432xf32, #tpu.memory_space<smem>>
    %2077 = vector.broadcast %2076 : f32 to vector<16x16xf32>
    %2078 = arith.mulf %2077, %2071 : vector<16x16xf32>
    %2079 = arith.addf %2061, %2078 : vector<16x16xf32>
    %c394 = arith.constant 394 : index
    %2080 = memref.load %arg2[%c394] : memref<432xf32, #tpu.memory_space<smem>>
    %2081 = vector.broadcast %2080 : f32 to vector<16x16xf32>
    %2082 = arith.mulf %2081, %2071 : vector<16x16xf32>
    %2083 = arith.addf %2065, %2082 : vector<16x16xf32>
    %c430 = arith.constant 430 : index
    %2084 = memref.load %arg2[%c430] : memref<432xf32, #tpu.memory_space<smem>>
    %2085 = vector.broadcast %2084 : f32 to vector<16x16xf32>
    %2086 = arith.mulf %2085, %2071 : vector<16x16xf32>
    %2087 = arith.addf %2069, %2086 : vector<16x16xf32>
    %c3_482 = arith.constant 3 : index
    %c2_483 = arith.constant 2 : index
    %c2_484 = arith.constant 2 : index
    %2088 = vector.load %arg5[%c3_482, %c2_483, %c2_484] : memref<4x18x18xf32, #tpu.memory_space<vmem>>, vector<1x16x16xf32>
    %2089 = vector.shape_cast %2088 : vector<1x16x16xf32> to vector<16x16xf32>
    %c323 = arith.constant 323 : index
    %2090 = memref.load %arg2[%c323] : memref<432xf32, #tpu.memory_space<smem>>
    %2091 = vector.broadcast %2090 : f32 to vector<16x16xf32>
    %2092 = arith.mulf %2091, %2089 : vector<16x16xf32>
    %2093 = arith.addf %2075, %2092 : vector<16x16xf32>
    %c359 = arith.constant 359 : index
    %2094 = memref.load %arg2[%c359] : memref<432xf32, #tpu.memory_space<smem>>
    %2095 = vector.broadcast %2094 : f32 to vector<16x16xf32>
    %2096 = arith.mulf %2095, %2089 : vector<16x16xf32>
    %2097 = arith.addf %2079, %2096 : vector<16x16xf32>
    %c395 = arith.constant 395 : index
    %2098 = memref.load %arg2[%c395] : memref<432xf32, #tpu.memory_space<smem>>
    %2099 = vector.broadcast %2098 : f32 to vector<16x16xf32>
    %2100 = arith.mulf %2099, %2089 : vector<16x16xf32>
    %2101 = arith.addf %2083, %2100 : vector<16x16xf32>
    %c431 = arith.constant 431 : index
    %2102 = memref.load %arg2[%c431] : memref<432xf32, #tpu.memory_space<smem>>
    %2103 = vector.broadcast %2102 : f32 to vector<16x16xf32>
    %2104 = arith.mulf %2103, %2089 : vector<16x16xf32>
    %2105 = arith.addf %2087, %2104 : vector<16x16xf32>
    %c8_485 = arith.constant 8 : index
    %2106 = memref.load %arg3[%c8_485] : memref<12xf32, #tpu.memory_space<smem>>
    %2107 = vector.broadcast %2106 : f32 to vector<16x16xf32>
    %2108 = arith.addf %2093, %2107 : vector<16x16xf32>
    %c9_486 = arith.constant 9 : index
    %2109 = memref.load %arg3[%c9_486] : memref<12xf32, #tpu.memory_space<smem>>
    %2110 = vector.broadcast %2109 : f32 to vector<16x16xf32>
    %2111 = arith.addf %2097, %2110 : vector<16x16xf32>
    %c10_487 = arith.constant 10 : index
    %2112 = memref.load %arg3[%c10_487] : memref<12xf32, #tpu.memory_space<smem>>
    %2113 = vector.broadcast %2112 : f32 to vector<16x16xf32>
    %2114 = arith.addf %2101, %2113 : vector<16x16xf32>
    %c11_488 = arith.constant 11 : index
    %2115 = memref.load %arg3[%c11_488] : memref<12xf32, #tpu.memory_space<smem>>
    %2116 = vector.broadcast %2115 : f32 to vector<16x16xf32>
    %2117 = arith.addf %2105, %2116 : vector<16x16xf32>
    %c0_489 = arith.constant 0 : index
    %c1_490 = arith.constant 1 : index
    %c1_491 = arith.constant 1 : index
    %2118 = vector.load %arg6[%c0_489, %c1_490, %c1_491] : memref<4x18x18xf32, #tpu.memory_space<vmem>>, vector<1x16x16xf32>
    %2119 = vector.shape_cast %2118 : vector<1x16x16xf32> to vector<16x16xf32>
    %2120 = arith.addf %2108, %2119 : vector<16x16xf32>
    %c0_492 = arith.constant 0 : index
    %c0_493 = arith.constant 0 : index
    %c0_494 = arith.constant 0 : index
    %c0_495 = arith.constant 0 : index
    %2121 = vector.load %arg4[%c0_492, %c0_493, %c0_494, %c0_495] : memref<1x4x16x16xf32, #tpu.memory_space<vmem>>, vector<1x1x16x16xf32>
    %2122 = vector.shape_cast %2121 : vector<1x1x16x16xf32> to vector<16x16xf32>
    %2123 = vector.shape_cast %2120 : vector<16x16xf32> to vector<1x1x16x16xf32>
    tpu.vector_store %arg4[%c0_492, %c0_493, %c0_494, %c0_495], %2123 {strides = array<i32>} : memref<1x4x16x16xf32, #tpu.memory_space<vmem>>, vector<1x1x16x16xf32>,
    %c1_496 = arith.constant 1 : index
    %c1_497 = arith.constant 1 : index
    %c1_498 = arith.constant 1 : index
    %2124 = vector.load %arg6[%c1_496, %c1_497, %c1_498] : memref<4x18x18xf32, #tpu.memory_space<vmem>>, vector<1x16x16xf32>
    %2125 = vector.shape_cast %2124 : vector<1x16x16xf32> to vector<16x16xf32>
    %2126 = arith.addf %2111, %2125 : vector<16x16xf32>
    %c0_499 = arith.constant 0 : index
    %c1_500 = arith.constant 1 : index
    %c0_501 = arith.constant 0 : index
    %c0_502 = arith.constant 0 : index
    %2127 = vector.load %arg4[%c0_499, %c1_500, %c0_501, %c0_502] : memref<1x4x16x16xf32, #tpu.memory_space<vmem>>, vector<1x1x16x16xf32>
    %2128 = vector.shape_cast %2127 : vector<1x1x16x16xf32> to vector<16x16xf32>
    %2129 = vector.shape_cast %2126 : vector<16x16xf32> to vector<1x1x16x16xf32>
    tpu.vector_store %arg4[%c0_499, %c1_500, %c0_501, %c0_502], %2129 {strides = array<i32>} : memref<1x4x16x16xf32, #tpu.memory_space<vmem>>, vector<1x1x16x16xf32>,
    %c2_503 = arith.constant 2 : index
    %c1_504 = arith.constant 1 : index
    %c1_505 = arith.constant 1 : index
    %2130 = vector.load %arg6[%c2_503, %c1_504, %c1_505] : memref<4x18x18xf32, #tpu.memory_space<vmem>>, vector<1x16x16xf32>
    %2131 = vector.shape_cast %2130 : vector<1x16x16xf32> to vector<16x16xf32>
    %2132 = arith.addf %2114, %2131 : vector<16x16xf32>
    %c0_506 = arith.constant 0 : index
    %c2_507 = arith.constant 2 : index
    %c0_508 = arith.constant 0 : index
    %c0_509 = arith.constant 0 : index
    %2133 = vector.load %arg4[%c0_506, %c2_507, %c0_508, %c0_509] : memref<1x4x16x16xf32, #tpu.memory_space<vmem>>, vector<1x1x16x16xf32>
    %2134 = vector.shape_cast %2133 : vector<1x1x16x16xf32> to vector<16x16xf32>
    %2135 = vector.shape_cast %2132 : vector<16x16xf32> to vector<1x1x16x16xf32>
    tpu.vector_store %arg4[%c0_506, %c2_507, %c0_508, %c0_509], %2135 {strides = array<i32>} : memref<1x4x16x16xf32, #tpu.memory_space<vmem>>, vector<1x1x16x16xf32>,
    %c3_510 = arith.constant 3 : index
    %c1_511 = arith.constant 1 : index
    %c1_512 = arith.constant 1 : index
    %2136 = vector.load %arg6[%c3_510, %c1_511, %c1_512] : memref<4x18x18xf32, #tpu.memory_space<vmem>>, vector<1x16x16xf32>
    %2137 = vector.shape_cast %2136 : vector<1x16x16xf32> to vector<16x16xf32>
    %2138 = arith.addf %2117, %2137 : vector<16x16xf32>
    %c0_513 = arith.constant 0 : index
    %c3_514 = arith.constant 3 : index
    %c0_515 = arith.constant 0 : index
    %c0_516 = arith.constant 0 : index
    %2139 = vector.load %arg4[%c0_513, %c3_514, %c0_515, %c0_516] : memref<1x4x16x16xf32, #tpu.memory_space<vmem>>, vector<1x1x16x16xf32>
    %2140 = vector.shape_cast %2139 : vector<1x1x16x16xf32> to vector<16x16xf32>
    %2141 = vector.shape_cast %2138 : vector<16x16xf32> to vector<1x1x16x16xf32>
    tpu.vector_store %arg4[%c0_513, %c3_514, %c0_515, %c0_516], %2141 {strides = array<i32>} : memref<1x4x16x16xf32, #tpu.memory_space<vmem>>, vector<1x1x16x16xf32>,
    return
  }
  func.func @transform_0(%arg0: i32) -> (i32, i32, i32, i32) {
    %c0_i32 = arith.constant 0 : i32
    %c0_i32_0 = arith.constant 0 : i32
    %c0_i32_1 = arith.constant 0 : i32
    %c0_i32_2 = arith.constant 0 : i32
    return %arg0, %c0_i32, %c0_i32_0, %c0_i32_1 : i32, i32, i32, i32
  }
  func.func @transform_1(%arg0: i32) -> i32 {
    %c0_i32 = arith.constant 0 : i32
    %c0_i32_0 = arith.constant 0 : i32
    return %c0_i32 : i32
  }
  func.func @transform_2(%arg0: i32) -> i32 {
    %c0_i32 = arith.constant 0 : i32
    %c0_i32_0 = arith.constant 0 : i32
    return %c0_i32 : i32
  }
  func.func @transform_3(%arg0: i32) -> (i32, i32, i32, i32) {
    %c0_i32 = arith.constant 0 : i32
    %c0_i32_0 = arith.constant 0 : i32
    %c0_i32_1 = arith.constant 0 : i32
    %c0_i32_2 = arith.constant 0 : i32
    return %arg0, %c0_i32, %c0_i32_0, %c0_i32_1 : i32, i32, i32, i32
  }
}

</mosaic_0001>

<llo_original>
// kernel: prepyramid_l1.1
$region0: #{prepyramid_l1.1}
  #allocation0 [shape = 'u32[]', space=smem, size = 0x4, offset = 0x4, fixed_abs, tag = 'smem constant byte address 0x4 - core index']
  #allocation1 [shape = 'u32[144,128]{1,0:T(1,128)}', space=vmem, size = 0x12000, scoped, tag = 'internal scratch']
  #allocation2 [shape = 'f32[4,18,18]{2,1,0:T(8,128)}', space=vmem, size = 0xc000, scoped, tag = 'scratch operand']
  #allocation3 [shape = 'f32[4,18,18]{2,1,0:T(8,128)}', space=vmem, size = 0xc000, scoped, tag = 'scratch operand']
  %s0 = inlined_call_operand.vmem [shape: f32[2,4,16,16], index: 0, kind: input, shape index: {}]
  %s1 = inlined_call_operand.vmem [shape: f32[432], index: 1, kind: input, shape index: {}]
  %s2 = inlined_call_operand.vmem [shape: f32[12], index: 2, kind: input, shape index: {}]
  %s3 = inlined_call_operand.hbm [shape: f32[2,4,16,16], index: 3, kind: output, shape index: {}]
  %s4 = sld [smem:[#allocation0]]
  $region53: #{prepyramid_l1.1} parent=0
    _
  %s6 = ssub.s32 1, %s4
  %s7 = scalar_select 0, %s6, %s4
  $region1: #{prepyramid_l1.1} parent=0
    #allocation4 [shape = 'u8[2048]{0}', space=smem, size = 0x800, scoped, tag = 'input window, operand 1, single buffered']
    #allocation5 [shape = 's32[2]{0}', space=sflag, size = 0x8, scoped, tag = 'scoped memory for prepyramid_l1.1']
    #allocation6 [shape = 's32[2]{0}', space=sflag, size = 0x8, scoped, tag = 'scoped memory for prepyramid_l1.1']
    #allocation7 [shape = 'u8[512]{0}', space=smem, size = 0x200, scoped, tag = 'input window, operand 2, single buffered']
    #allocation8 [shape = 's32[1]{0}', space=sflag, size = 0x4, scoped, tag = 'scoped memory for prepyramid_l1.1']
    #allocation9 [shape = 'u8[65536]{0}', space=vmem, size = 0x10000, scoped, tag = 'output window, operand 0']
    %8 = vsyncpa [#allocation6], 0
    %9 = vsyncpa [#allocation8], 0
    %10 = vsyncpa [#allocation5], 0
    %s11 = scalar_lea.sflag [#allocation5], 1
    %12 = vsyncpa %s11, 0
    loop: start=0, step=1, limit=4
    $region2: #{prepyramid_l1.1} parent=1 // loop_pre_header
      _
    $region3: #{prepyramid_l1.1} parent=1 // loop_header
      %s14 = sphi 0, %s18
      %p15 = scmp.ge.s32.totalorder %s14, 4
      %s24 = sphi 0, %s26
      %s27 = sphi 0, %s24
      %s28 = sphi 0, %s27
      %s44 = sphi 0, %s28
      %s48 = sphi 0, %s48
      %s50 = sphi 0, %s48
      %s51 = sphi 0, %s50
      %s65 = sphi 0, %s51
      %s69 = sphi 0, %s69
      %s71 = sphi 0, %s69
      %s72 = sphi 0, %s71
      %s86 = sphi 0, %s72
      %s92 = sphi 0, %s94
      %s95 = sphi 0, %s92
      %s96 = sphi 0, %s95
      %s112 = sphi 0, %s96
    $region4: #{prepyramid_l1.1} parent=1 // loop_header_branch
      %17 = sbr.rel (%p15) target = $region8
    $region5: #{prepyramid_l1.1} parent=1 // loop_body
      %s19 = ssub.s32 %s14, 1
      %s20 = ssub.s32 %s14, 2
      %s21 = sadd.s32 %s14, 1
      %s22 = ssub.s32 %s14, %s21
      %p23 = scmp.eq.s32.totalorder %s22, 0
      %s25 = sadd.s32 %s24, 1
      %s26 = scalar_select %p23, %s24, %s25
      %p29 = pneg %p23
      %p30 = scmp.eq.s32.totalorder %s14, 1
      %p31 = por %p29, %p30
      %p32 = scmp.ne.s32.totalorder %s24, %s27
      %p33 = scmp.eq.s32.totalorder %s14, 0
      %p34 = por %p32, %p33
      %p35 = scmp.ne.s32.totalorder %s24, %s27
      %p36 = scmp.eq.s32.totalorder %s19, 1
      %p37 = por %p35, %p36
      %p38 = scmp.ne.s32.totalorder %s27, %s28
      %p39 = scmp.eq.s32.totalorder %s19, 0
      %p40 = por %p38, %p39
      %p41 = scmp.ne.s32.totalorder %s27, %s28
      %p42 = scmp.eq.s32.totalorder %s20, 1
      %p43 = por %p41, %p42
      %p45 = scmp.ne.s32.totalorder %s28, %s44
      %p46 = scmp.eq.s32.totalorder %s20, 0
      %p47 = por %p45, %p46
      %s49 = sadd.s32 %s48, 1
      %p52 = scmp.eq.s32.totalorder %s14, 1
      %p53 = scmp.ne.s32.totalorder %s48, %s50
      %p54 = scmp.eq.s32.totalorder %s14, 0
      %p55 = por %p53, %p54
      %p56 = scmp.ne.s32.totalorder %s48, %s50
      %p57 = scmp.eq.s32.totalorder %s19, 1
      %p58 = por %p56, %p57
      %p59 = scmp.ne.s32.totalorder %s50, %s51
      %p60 = scmp.eq.s32.totalorder %s19, 0
      %p61 = por %p59, %p60
      %p62 = scmp.ne.s32.totalorder %s50, %s51
      %p63 = scmp.eq.s32.totalorder %s20, 1
      %p64 = por %p62, %p63
      %p66 = scmp.ne.s32.totalorder %s51, %s65
      %p67 = scmp.eq.s32.totalorder %s20, 0
      %p68 = por %p66, %p67
      %s70 = sadd.s32 %s69, 1
      %p73 = scmp.eq.s32.totalorder %s14, 1
      %p74 = scmp.ne.s32.totalorder %s69, %s71
      %p75 = scmp.eq.s32.totalorder %s14, 0
      %p76 = por %p74, %p75
      %p77 = scmp.ne.s32.totalorder %s69, %s71
      %p78 = scmp.eq.s32.totalorder %s19, 1
      %p79 = por %p77, %p78
      %p80 = scmp.ne.s32.totalorder %s71, %s72
      %p81 = scmp.eq.s32.totalorder %s19, 0
      %p82 = por %p80, %p81
      %p83 = scmp.ne.s32.totalorder %s71, %s72
      %p84 = scmp.eq.s32.totalorder %s20, 1
      %p85 = por %p83, %p84
      %p87 = scmp.ne.s32.totalorder %s72, %s86
      %p88 = scmp.eq.s32.totalorder %s20, 0
      %p89 = por %p87, %p88
      %s90 = ssub.s32 %s14, %s21
      %p91 = scmp.eq.s32.totalorder %s90, 0
      %s93 = sadd.s32 %s92, 1
      %s94 = scalar_select %p91, %s92, %s93
      %p97 = pneg %p91
      %p98 = scmp.eq.s32.totalorder %s14, 1
      %p99 = por %p97, %p98
      %p100 = scmp.ne.s32.totalorder %s92, %s95
      %p101 = scmp.eq.s32.totalorder %s14, 0
      %p102 = por %p100, %p101
      %p103 = scmp.ne.s32.totalorder %s92, %s95
      %p104 = scmp.eq.s32.totalorder %s19, 1
      %p105 = por %p103, %p104
      %p106 = scmp.ne.s32.totalorder %s95, %s96
      %p107 = scmp.eq.s32.totalorder %s19, 0
      %p108 = por %p106, %p107
      %p109 = scmp.ne.s32.totalorder %s95, %s96
      %p110 = scmp.eq.s32.totalorder %s20, 1
      %p111 = por %p109, %p110
      %p113 = scmp.ne.s32.totalorder %s96, %s112
      %p114 = scmp.eq.s32.totalorder %s20, 0
      %p115 = por %p113, %p114
      %p116 = scmp.le.s32.totalorder 1, %s14
      %p117 = scmp.lt.s32.totalorder %s14, 3
      %p118 = pnand %p116, %p117
      %p119 = pneg %p118
      // Predicated region
      $region9: #{prepyramid_l1.1} parent=5 // pred_check
        _
      $region10: #{prepyramid_l1.1} parent=5 // pred_check_branch
        %121 = sbr.rel (%p118) target = $region12
      $region11: #{prepyramid_l1.1} parent=5 // pred_region
        %s122 = ssub.s32 %s14, 1
        // Predicated region
        $region13: #{prepyramid_l1.1} parent=11 // pred_check
          %p123 = pneg %p61
        $region14: #{prepyramid_l1.1} parent=11 // pred_check_branch
          %125 = sbr.rel (%p123) target = $region16
        $region15: #{prepyramid_l1.1} parent=11 // pred_region
          %s127 = ssub.s32 64, 64
          %128 = vsyncadd [#allocation6], %s127
          %s130 = sshll.u32 %s1, 4
          %s131 = int_to_ptr.vmem [resolvable:$true] %s130
          %133 = dma.vmem_to_smem %s131, 64, [#allocation4], [#allocation6]
        $region16: #{prepyramid_l1.1} parent=11 // pred_fallthru
          _
        // Predicated region
        $region17: #{prepyramid_l1.1} parent=11 // pred_check
          %p134 = pneg %p82
        $region18: #{prepyramid_l1.1} parent=11 // pred_check_branch
          %136 = sbr.rel (%p134) target = $region20
        $region19: #{prepyramid_l1.1} parent=11 // pred_region
          %s138 = ssub.s32 16, 16
          %139 = vsyncadd [#allocation8], %s138
          %s141 = sshll.u32 %s2, 4
          %s142 = int_to_ptr.vmem [resolvable:$true] %s141
          %144 = dma.vmem_to_smem %s142, 16, [#allocation7], [#allocation8]
        $region20: #{prepyramid_l1.1} parent=11 // pred_fallthru
          _
      $region12: #{prepyramid_l1.1} parent=5 // pred_fallthru
        _
      %p145 = scmp.lt.s32.totalorder %s14, 2
      // Predicated region
      $region21: #{prepyramid_l1.1} parent=5 // pred_check
        %p146 = pneg %p145
      $region22: #{prepyramid_l1.1} parent=5 // pred_check_branch
        %148 = sbr.rel (%p146) target = $region24
      $region23: #{prepyramid_l1.1} parent=5 // pred_region
        // Predicated region
        $region25: #{prepyramid_l1.1} parent=23 // pred_check
          %p149 = pneg %p34
        $region26: #{prepyramid_l1.1} parent=23 // pred_check_branch
          %151 = sbr.rel (%p149) target = $region28
        $region27: #{prepyramid_l1.1} parent=23 // pred_region
          %p152 = scmp.lt.s32.totalorder %s14, 1
          %s153 = scalar_select %p152, %s14, 1
          %s154 = smul.addr %s153, 8
          %s155 = smul.addr %s154, 8
          %s156 = scalar_lea.vmem %s0, %s155
        $region28: #{prepyramid_l1.1} parent=23 // pred_fallthru
          _
      $region24: #{prepyramid_l1.1} parent=5 // pred_fallthru
        _
      %p157 = scmp.le.s32.totalorder 1, %s14
      %p158 = scmp.lt.s32.totalorder %s14, 3
      %p159 = pnand %p157, %p158
      %p160 = pneg %p159
      // Predicated region
      $region29: #{prepyramid_l1.1} parent=5 // pred_check
        _
      $region30: #{prepyramid_l1.1} parent=5 // pred_check_branch
        %162 = sbr.rel (%p159) target = $region32
      $region31: #{prepyramid_l1.1} parent=5 // pred_region
        %s163 = ssub.s32 %s14, 1
        // Predicated region
        $region33: #{prepyramid_l1.1} parent=31 // pred_check
          %p164 = pneg %p61
        $region34: #{prepyramid_l1.1} parent=31 // pred_check_branch
          %166 = sbr.rel (%p164) target = $region36
        $region35: #{prepyramid_l1.1} parent=31 // pred_region
          %167 = dma.done [#allocation6], 64
        $region36: #{prepyramid_l1.1} parent=31 // pred_fallthru
          _
        // Predicated region
        $region37: #{prepyramid_l1.1} parent=31 // pred_check
          %p168 = pneg %p82
        $region38: #{prepyramid_l1.1} parent=31 // pred_check_branch
          %170 = sbr.rel (%p168) target = $region40
        $region39: #{prepyramid_l1.1} parent=31 // pred_region
          %171 = dma.done [#allocation8], 16
        $region40: #{prepyramid_l1.1} parent=31 // pred_fallthru
          _
        %172 = sfence
        %p173 = scmp.lt.s32.totalorder %s19, 1
        %s174 = scalar_select %p173, %s19, 1
        %s175 = smul.addr %s174, 8
        %s176 = smul.addr %s175, 8
        %s177 = scalar_lea.vmem %s0, %s176
        %p178 = pneg %p40
        %p179 = pneg %p37
        %p180 = pneg %p61
        %p181 = pneg %p58
        %p182 = pneg %p82
        %p183 = pneg %p79
        %p184 = pneg %p108
        %p185 = pneg %p105
        %s186 = sand.u32 %s95, 1
        %s187 = scalar_lea.sflag [#allocation5], %s186
        %s188 = sand.u32 %s95, 1
        %s189 = smul.addr %s188, 64
        %s190 = scalar_lea.vmem [#allocation9], %s189
        %p191 = scmp.lt.s32.totalorder %s19, 1
        %s192 = scalar_select %p191, %s19, 1
        %s193 = smul.addr %s192, 8
        %s194 = smul.addr %s193, 8
        %s195 = scalar_lea.vmem %s0, %s194
        %vm196 = vcmask 139264
        %197 = vst.msk [vmem:[#allocation2] sm:$0x1] %vm196, 0.0
        %198 = vst.msk [vmem:[#allocation2 + $0x11] sm:$0x1] %vm196, 0.0
        %vm199 = vcmask 7168
        %200 = vst.msk [vmem:[#allocation2] sm:$0xff] %vm199, 0.0
        %201 = vst.msk [vmem:[#allocation2 + $0x8] sm:$0xff] %vm199, 0.0
        %vm202 = vcmask 1024
        %203 = vst.msk [vmem:[#allocation2 + $0x10] sm:$0x3] %vm202, 0.0
        %vm204 = vcmask 146568
        %205 = vst.msk [vmem:[#allocation2] sm:$0xff] %vm204, 0.0
        %206 = vst.msk [vmem:[#allocation2 + $0x8] sm:$0xff] %vm204, 0.0
        %vm207 = vcmask 140424
        %208 = vst.msk [vmem:[#allocation2 + $0x10] sm:$0x3] %vm207, 0.0
        %s209 = scalar_lea.vmem [#allocation2], 24
        %210 = vst.msk [vmem:[%s209] sm:$0x1] %vm196, 0.0
        %211 = vst.msk [vmem:[%s209 + $0x11] sm:$0x1] %vm196, 0.0
        %212 = vst.msk [vmem:[%s209] sm:$0xff] %vm199, 0.0
        %213 = vst.msk [vmem:[%s209 + $0x8] sm:$0xff] %vm199, 0.0
        %214 = vst.msk [vmem:[%s209 + $0x10] sm:$0x3] %vm202, 0.0
        %215 = vst.msk [vmem:[%s209] sm:$0xff] %vm204, 0.0
        %216 = vst.msk [vmem:[%s209 + $0x8] sm:$0xff] %vm204, 0.0
        %217 = vst.msk [vmem:[%s209 + $0x10] sm:$0x3] %vm207, 0.0
        %s218 = scalar_lea.vmem [#allocation2], 48
        %219 = vst.msk [vmem:[%s218] sm:$0x1] %vm196, 0.0
        %220 = vst.msk [vmem:[%s218 + $0x11] sm:$0x1] %vm196, 0.0
        %221 = vst.msk [vmem:[%s218] sm:$0xff] %vm199, 0.0
        %222 = vst.msk [vmem:[%s218 + $0x8] sm:$0xff] %vm199, 0.0
        %223 = vst.msk [vmem:[%s218 + $0x10] sm:$0x3] %vm202, 0.0
        %224 = vst.msk [vmem:[%s218] sm:$0xff] %vm204, 0.0
        %225 = vst.msk [vmem:[%s218 + $0x8] sm:$0xff] %vm204, 0.0
        %226 = vst.msk [vmem:[%s218 + $0x10] sm:$0x3] %vm207, 0.0
        %s227 = scalar_lea.vmem [#allocation2], 72
        %228 = vst.msk [vmem:[%s227] sm:$0x1] %vm196, 0.0
        %229 = vst.msk [vmem:[%s227 + $0x11] sm:$0x1] %vm196, 0.0
        %230 = vst.msk [vmem:[%s227] sm:$0xff] %vm199, 0.0
        %231 = vst.msk [vmem:[%s227 + $0x8] sm:$0xff] %vm199, 0.0
        %232 = vst.msk [vmem:[%s227 + $0x10] sm:$0x3] %vm202, 0.0
        %233 = vst.msk [vmem:[%s227] sm:$0xff] %vm204, 0.0
        %234 = vst.msk [vmem:[%s227 + $0x8] sm:$0xff] %vm204, 0.0
        %235 = vst.msk [vmem:[%s227 + $0x10] sm:$0x3] %vm207, 0.0
        %236 = vst.msk [vmem:[#allocation3] sm:$0x1] %vm196, 0.0
        %237 = vst.msk [vmem:[#allocation3 + $0x11] sm:$0x1] %vm196, 0.0
        %238 = vst.msk [vmem:[#allocation3] sm:$0xff] %vm199, 0.0
        %239 = vst.msk [vmem:[#allocation3 + $0x8] sm:$0xff] %vm199, 0.0
        %240 = vst.msk [vmem:[#allocation3 + $0x10] sm:$0x3] %vm202, 0.0
        %241 = vst.msk [vmem:[#allocation3] sm:$0xff] %vm204, 0.0
        %242 = vst.msk [vmem:[#allocation3 + $0x8] sm:$0xff] %vm204, 0.0
        %243 = vst.msk [vmem:[#allocation3 + $0x10] sm:$0x3] %vm207, 0.0
        %s244 = scalar_lea.vmem [#allocation3], 24
        %245 = vst.msk [vmem:[%s244] sm:$0x1] %vm196, 0.0
        %246 = vst.msk [vmem:[%s244 + $0x11] sm:$0x1] %vm196, 0.0
        %247 = vst.msk [vmem:[%s244] sm:$0xff] %vm199, 0.0
        %248 = vst.msk [vmem:[%s244 + $0x8] sm:$0xff] %vm199, 0.0
        %249 = vst.msk [vmem:[%s244 + $0x10] sm:$0x3] %vm202, 0.0
        %250 = vst.msk [vmem:[%s244] sm:$0xff] %vm204, 0.0
        %251 = vst.msk [vmem:[%s244 + $0x8] sm:$0xff] %vm204, 0.0
        %252 = vst.msk [vmem:[%s244 + $0x10] sm:$0x3] %vm207, 0.0
        %s253 = scalar_lea.vmem [#allocation3], 48
        %254 = vst.msk [vmem:[%s253] sm:$0x1] %vm196, 0.0
        %255 = vst.msk [vmem:[%s253 + $0x11] sm:$0x1] %vm196, 0.0
        %256 = vst.msk [vmem:[%s253] sm:$0xff] %vm199, 0.0
        %257 = vst.msk [vmem:[%s253 + $0x8] sm:$0xff] %vm199, 0.0
        %258 = vst.msk [vmem:[%s253 + $0x10] sm:$0x3] %vm202, 0.0
        %259 = vst.msk [vmem:[%s253] sm:$0xff] %vm204, 0.0
        %260 = vst.msk [vmem:[%s253 + $0x8] sm:$0xff] %vm204, 0.0
        %261 = vst.msk [vmem:[%s253 + $0x10] sm:$0x3] %vm207, 0.0
        %s262 = scalar_lea.vmem [#allocation3], 72
        %263 = vst.msk [vmem:[%s262] sm:$0x1] %vm196, 0.0
        %264 = vst.msk [vmem:[%s262 + $0x11] sm:$0x1] %vm196, 0.0
        %265 = vst.msk [vmem:[%s262] sm:$0xff] %vm199, 0.0
        %266 = vst.msk [vmem:[%s262 + $0x8] sm:$0xff] %vm199, 0.0
        %267 = vst.msk [vmem:[%s262 + $0x10] sm:$0x3] %vm202, 0.0
        %268 = vst.msk [vmem:[%s262] sm:$0xff] %vm204, 0.0
        %269 = vst.msk [vmem:[%s262 + $0x8] sm:$0xff] %vm204, 0.0
        %270 = vst.msk [vmem:[%s262 + $0x10] sm:$0x3] %vm207, 0.0
        %v271 = vld [vmem:[%s195] sm:$0xff]
        %v272 = vld [vmem:[%s195 + $0x8] sm:$0xff]
        %275 = vrot.lane.b32.xlu0 %v271, 1
        %v276 = vpop.permute.xlu0 %275
        %277 = vrot.lane.b32.xlu0 %v272, 1
        %v278 = vpop.permute.xlu0 %277
        %vm281 = vcmask 138248
        %282 = vst.msk [vmem:[#allocation2 + $0x1] sm:$0xff] %vm281, %v276
        %283 = vst.msk [vmem:[#allocation2 + $0x9] sm:$0xff] %vm281, %v278
        %s284 = scalar_lea.vmem %s195, 16
        %v285 = vld [vmem:[%s284] sm:$0xff]
        %v286 = vld [vmem:[%s284 + $0x8] sm:$0xff]
        %289 = vrot.lane.b32.xlu0 %v285, 1
        %v290 = vpop.permute.xlu0 %289
        %291 = vrot.lane.b32.xlu0 %v286, 1
        %v292 = vpop.permute.xlu0 %291
        %295 = vst.msk [vmem:[%s209 + $0x1] sm:$0xff] %vm281, %v290
        %296 = vst.msk [vmem:[%s209 + $0x9] sm:$0xff] %vm281, %v292
        %s297 = scalar_lea.vmem %s195, 32
        %v298 = vld [vmem:[%s297] sm:$0xff]
        %v299 = vld [vmem:[%s297 + $0x8] sm:$0xff]
        %302 = vrot.lane.b32.xlu0 %v298, 1
        %v303 = vpop.permute.xlu0 %302
        %304 = vrot.lane.b32.xlu0 %v299, 1
        %v305 = vpop.permute.xlu0 %304
        %308 = vst.msk [vmem:[%s218 + $0x1] sm:$0xff] %vm281, %v303
        %309 = vst.msk [vmem:[%s218 + $0x9] sm:$0xff] %vm281, %v305
        %s310 = scalar_lea.vmem %s195, 48
        %v311 = vld [vmem:[%s310] sm:$0xff]
        %v312 = vld [vmem:[%s310 + $0x8] sm:$0xff]
        %315 = vrot.lane.b32.xlu0 %v311, 1
        %v316 = vpop.permute.xlu0 %315
        %317 = vrot.lane.b32.xlu0 %v312, 1
        %v318 = vpop.permute.xlu0 %317
        %321 = vst.msk [vmem:[%s227 + $0x1] sm:$0xff] %vm281, %v316
        %322 = vst.msk [vmem:[%s227 + $0x9] sm:$0xff] %vm281, %v318
        %v323 = vld [vmem:[#allocation2] sm:$0xff]
        %v324 = vld [vmem:[#allocation2 + $0x8] sm:$0xff]
        %s325 = sld [smem:[#allocation4]]
        %v326 = vstv %s325
        %v327 = vmul.f32 %v326, %v323
        %v328 = vmul.f32 %v326, %v324
        %s329 = sld [smem:[#allocation4 + $0x24]]
        %v330 = vstv %s329
        %v331 = vmul.f32 %v330, %v323
        %v332 = vmul.f32 %v330, %v324
        %s333 = sld [smem:[#allocation4 + $0x48]]
        %v334 = vstv %s333
        %v335 = vmul.f32 %v334, %v323
        %v336 = vmul.f32 %v334, %v324
        %s337 = sld [smem:[#allocation4 + $0x6c]]
        %v338 = vstv %s337
        %v339 = vmul.f32 %v338, %v323
        %v340 = vmul.f32 %v338, %v324
        %s341 = sld [smem:[#allocation4 + $0x1]]
        %v342 = vstv %s341
        %v343 = vmul.f32 %v342, %v323
        %v344 = vmul.f32 %v342, %v324
        %347 = vrot.lane.b32.xlu0 %v343, 127
        %v348 = vpop.permute.xlu0 %347
        %349 = vrot.lane.b32.xlu0 %v344, 127
        %v350 = vpop.permute.xlu0 %349
        %v353 = vadd.f32 %v327, %v348
        %v354 = vadd.f32 %v328, %v350
        %s355 = sld [smem:[#allocation4 + $0x25]]
        %v356 = vstv %s355
        %v357 = vmul.f32 %v356, %v323
        %v358 = vmul.f32 %v356, %v324
        %361 = vrot.lane.b32.xlu0 %v357, 127
        %v362 = vpop.permute.xlu0 %361
        %363 = vrot.lane.b32.xlu0 %v358, 127
        %v364 = vpop.permute.xlu0 %363
        %v367 = vadd.f32 %v331, %v362
        %v368 = vadd.f32 %v332, %v364
        %s369 = sld [smem:[#allocation4 + $0x49]]
        %v370 = vstv %s369
        %v371 = vmul.f32 %v370, %v323
        %v372 = vmul.f32 %v370, %v324
        %375 = vrot.lane.b32.xlu0 %v371, 127
        %v376 = vpop.permute.xlu0 %375
        %377 = vrot.lane.b32.xlu0 %v372, 127
        %v378 = vpop.permute.xlu0 %377
        %v381 = vadd.f32 %v335, %v376
        %v382 = vadd.f32 %v336, %v378
        %s383 = sld [smem:[#allocation4 + $0x6d]]
        %v384 = vstv %s383
        %v385 = vmul.f32 %v384, %v323
        %v386 = vmul.f32 %v384, %v324
        %389 = vrot.lane.b32.xlu0 %v385, 127
        %v390 = vpop.permute.xlu0 %389
        %391 = vrot.lane.b32.xlu0 %v386, 127
        %v392 = vpop.permute.xlu0 %391
        %v395 = vadd.f32 %v339, %v390
        %v396 = vadd.f32 %v340, %v392
        %s397 = sld [smem:[#allocation4 + $0x2]]
        %v398 = vstv %s397
        %v399 = vmul.f32 %v398, %v323
        %v400 = vmul.f32 %v398, %v324
        %403 = vrot.lane.b32.xlu0 %v399, 126
        %v404 = vpop.permute.xlu0 %403
        %405 = vrot.lane.b32.xlu0 %v400, 126
        %v406 = vpop.permute.xlu0 %405
        %v409 = vadd.f32 %v353, %v404
        %v410 = vadd.f32 %v354, %v406
        %s411 = sld [smem:[#allocation4 + $0x26]]
        %v412 = vstv %s411
        %v413 = vmul.f32 %v412, %v323
        %v414 = vmul.f32 %v412, %v324
        %417 = vrot.lane.b32.xlu0 %v413, 126
        %v418 = vpop.permute.xlu0 %417
        %419 = vrot.lane.b32.xlu0 %v414, 126
        %v420 = vpop.permute.xlu0 %419
        %v423 = vadd.f32 %v367, %v418
        %v424 = vadd.f32 %v368, %v420
        %s425 = sld [smem:[#allocation4 + $0x4a]]
        %v426 = vstv %s425
        %v427 = vmul.f32 %v426, %v323
        %v428 = vmul.f32 %v426, %v324
        %431 = vrot.lane.b32.xlu0 %v427, 126
        %v432 = vpop.permute.xlu0 %431
        %433 = vrot.lane.b32.xlu0 %v428, 126
        %v434 = vpop.permute.xlu0 %433
        %v437 = vadd.f32 %v381, %v432
        %v438 = vadd.f32 %v382, %v434
        %s439 = sld [smem:[#allocation4 + $0x6e]]
        %v440 = vstv %s439
        %v441 = vmul.f32 %v440, %v323
        %v442 = vmul.f32 %v440, %v324
        %445 = vrot.lane.b32.xlu0 %v441, 126
        %v446 = vpop.permute.xlu0 %445
        %447 = vrot.lane.b32.xlu0 %v442, 126
        %v448 = vpop.permute.xlu0 %447
        %v451 = vadd.f32 %v395, %v446
        %v452 = vadd.f32 %v396, %v448
        %v453 = vld [vmem:[#allocation2 + $0x1] sm:$0xff]
        %v454 = vld [vmem:[#allocation2 + $0x9] sm:$0xff]
        %s455 = sld [smem:[#allocation4 + $0x3]]
        %v456 = vstv %s455
        %v457 = vmul.f32 %v456, %v453
        %v458 = vmul.f32 %v456, %v454
        %v459 = vadd.f32 %v409, %v457
        %v460 = vadd.f32 %v410, %v458
        %s461 = sld [smem:[#allocation4 + $0x27]]
        %v462 = vstv %s461
        %v463 = vmul.f32 %v462, %v453
        %v464 = vmul.f32 %v462, %v454
        %v465 = vadd.f32 %v423, %v463
        %v466 = vadd.f32 %v424, %v464
        %s467 = sld [smem:[#allocation4 + $0x4b]]
        %v468 = vstv %s467
        %v469 = vmul.f32 %v468, %v453
        %v470 = vmul.f32 %v468, %v454
        %v471 = vadd.f32 %v437, %v469
        %v472 = vadd.f32 %v438, %v470
        %s473 = sld [smem:[#allocation4 + $0x6f]]
        %v474 = vstv %s473
        %v475 = vmul.f32 %v474, %v453
        %v476 = vmul.f32 %v474, %v454
        %v477 = vadd.f32 %v451, %v475
        %v478 = vadd.f32 %v452, %v476
        %s479 = sld [smem:[#allocation4 + $0x4]]
        %v480 = vstv %s479
        %v481 = vmul.f32 %v480, %v453
        %v482 = vmul.f32 %v480, %v454
        %485 = vrot.lane.b32.xlu0 %v481, 127
        %v486 = vpop.permute.xlu0 %485
        %487 = vrot.lane.b32.xlu0 %v482, 127
        %v488 = vpop.permute.xlu0 %487
        %v491 = vadd.f32 %v459, %v486
        %v492 = vadd.f32 %v460, %v488
        %s493 = sld [smem:[#allocation4 + $0x28]]
        %v494 = vstv %s493
        %v495 = vmul.f32 %v494, %v453
        %v496 = vmul.f32 %v494, %v454
        %499 = vrot.lane.b32.xlu0 %v495, 127
        %v500 = vpop.permute.xlu0 %499
        %501 = vrot.lane.b32.xlu0 %v496, 127
        %v502 = vpop.permute.xlu0 %501
        %v505 = vadd.f32 %v465, %v500
        %v506 = vadd.f32 %v466, %v502
        %s507 = sld [smem:[#allocation4 + $0x4c]]
        %v508 = vstv %s507
        %v509 = vmul.f32 %v508, %v453
        %v510 = vmul.f32 %v508, %v454
        %513 = vrot.lane.b32.xlu0 %v509, 127
        %v514 = vpop.permute.xlu0 %513
        %515 = vrot.lane.b32.xlu0 %v510, 127
        %v516 = vpop.permute.xlu0 %515
        %v519 = vadd.f32 %v471, %v514
        %v520 = vadd.f32 %v472, %v516
        %s521 = sld [smem:[#allocation4 + $0x70]]
        %v522 = vstv %s521
        %v523 = vmul.f32 %v522, %v453
        %v524 = vmul.f32 %v522, %v454
        %527 = vrot.lane.b32.xlu0 %v523, 127
        %v528 = vpop.permute.xlu0 %527
        %529 = vrot.lane.b32.xlu0 %v524, 127
        %v530 = vpop.permute.xlu0 %529
        %v533 = vadd.f32 %v477, %v528
        %v534 = vadd.f32 %v478, %v530
        %s535 = sld [smem:[#allocation4 + $0x5]]
        %v536 = vstv %s535
        %v537 = vmul.f32 %v536, %v453
        %v538 = vmul.f32 %v536, %v454
        %541 = vrot.lane.b32.xlu0 %v537, 126
        %v542 = vpop.permute.xlu0 %541
        %543 = vrot.lane.b32.xlu0 %v538, 126
        %v544 = vpop.permute.xlu0 %543
        %v547 = vadd.f32 %v491, %v542
        %v548 = vadd.f32 %v492, %v544
        %s549 = sld [smem:[#allocation4 + $0x29]]
        %v550 = vstv %s549
        %v551 = vmul.f32 %v550, %v453
        %v552 = vmul.f32 %v550, %v454
        %555 = vrot.lane.b32.xlu0 %v551, 126
        %v556 = vpop.permute.xlu0 %555
        %557 = vrot.lane.b32.xlu0 %v552, 126
        %v558 = vpop.permute.xlu0 %557
        %v561 = vadd.f32 %v505, %v556
        %v562 = vadd.f32 %v506, %v558
        %s563 = sld [smem:[#allocation4 + $0x4d]]
        %v564 = vstv %s563
        %v565 = vmul.f32 %v564, %v453
        %v566 = vmul.f32 %v564, %v454
        %569 = vrot.lane.b32.xlu0 %v565, 126
        %v570 = vpop.permute.xlu0 %569
        %571 = vrot.lane.b32.xlu0 %v566, 126
        %v572 = vpop.permute.xlu0 %571
        %v575 = vadd.f32 %v519, %v570
        %v576 = vadd.f32 %v520, %v572
        %s577 = sld [smem:[#allocation4 + $0x71]]
        %v578 = vstv %s577
        %v579 = vmul.f32 %v578, %v453
        %v580 = vmul.f32 %v578, %v454
        %583 = vrot.lane.b32.xlu0 %v579, 126
        %v584 = vpop.permute.xlu0 %583
        %585 = vrot.lane.b32.xlu0 %v580, 126
        %v586 = vpop.permute.xlu0 %585
        %v589 = vadd.f32 %v533, %v584
        %v590 = vadd.f32 %v534, %v586
        %v591 = vld [vmem:[#allocation2 + $0x2] sm:$0xff]
        %v592 = vld [vmem:[#allocation2 + $0xa] sm:$0xff]
        %s593 = sld [smem:[#allocation4 + $0x6]]
        %v594 = vstv %s593
        %v595 = vmul.f32 %v594, %v591
        %v596 = vmul.f32 %v594, %v592
        %v597 = vadd.f32 %v547, %v595
        %v598 = vadd.f32 %v548, %v596
        %s599 = sld [smem:[#allocation4 + $0x2a]]
        %v600 = vstv %s599
        %v601 = vmul.f32 %v600, %v591
        %v602 = vmul.f32 %v600, %v592
        %v603 = vadd.f32 %v561, %v601
        %v604 = vadd.f32 %v562, %v602
        %s605 = sld [smem:[#allocation4 + $0x4e]]
        %v606 = vstv %s605
        %v607 = vmul.f32 %v606, %v591
        %v608 = vmul.f32 %v606, %v592
        %v609 = vadd.f32 %v575, %v607
        %v610 = vadd.f32 %v576, %v608
        %s611 = sld [smem:[#allocation4 + $0x72]]
        %v612 = vstv %s611
        %v613 = vmul.f32 %v612, %v591
        %v614 = vmul.f32 %v612, %v592
        %v615 = vadd.f32 %v589, %v613
        %v616 = vadd.f32 %v590, %v614
        %s617 = sld [smem:[#allocation4 + $0x7]]
        %v618 = vstv %s617
        %v619 = vmul.f32 %v618, %v591
        %v620 = vmul.f32 %v618, %v592
        %623 = vrot.lane.b32.xlu0 %v619, 127
        %v624 = vpop.permute.xlu0 %623
        %625 = vrot.lane.b32.xlu0 %v620, 127
        %v626 = vpop.permute.xlu0 %625
        %v629 = vadd.f32 %v597, %v624
        %v630 = vadd.f32 %v598, %v626
        %s631 = sld [smem:[#allocation4 + $0x2b]]
        %v632 = vstv %s631
        %v633 = vmul.f32 %v632, %v591
        %v634 = vmul.f32 %v632, %v592
        %637 = vrot.lane.b32.xlu0 %v633, 127
        %v638 = vpop.permute.xlu0 %637
        %639 = vrot.lane.b32.xlu0 %v634, 127
        %v640 = vpop.permute.xlu0 %639
        %v643 = vadd.f32 %v603, %v638
        %v644 = vadd.f32 %v604, %v640
        %s645 = sld [smem:[#allocation4 + $0x4f]]
        %v646 = vstv %s645
        %v647 = vmul.f32 %v646, %v591
        %v648 = vmul.f32 %v646, %v592
        %651 = vrot.lane.b32.xlu0 %v647, 127
        %v652 = vpop.permute.xlu0 %651
        %653 = vrot.lane.b32.xlu0 %v648, 127
        %v654 = vpop.permute.xlu0 %653
        %v657 = vadd.f32 %v609, %v652
        %v658 = vadd.f32 %v610, %v654
        %s659 = sld [smem:[#allocation4 + $0x73]]
        %v660 = vstv %s659
        %v661 = vmul.f32 %v660, %v591
        %v662 = vmul.f32 %v660, %v592
        %665 = vrot.lane.b32.xlu0 %v661, 127
        %v666 = vpop.permute.xlu0 %665
        %667 = vrot.lane.b32.xlu0 %v662, 127
        %v668 = vpop.permute.xlu0 %667
        %v671 = vadd.f32 %v615, %v666
        %v672 = vadd.f32 %v616, %v668
        %s673 = sld [smem:[#allocation4 + $0x8]]
        %v674 = vstv %s673
        %v675 = vmul.f32 %v674, %v591
        %v676 = vmul.f32 %v674, %v592
        %679 = vrot.lane.b32.xlu0 %v675, 126
        %v680 = vpop.permute.xlu0 %679
        %681 = vrot.lane.b32.xlu0 %v676, 126
        %v682 = vpop.permute.xlu0 %681
        %v685 = vadd.f32 %v629, %v680
        %v686 = vadd.f32 %v630, %v682
        %s687 = sld [smem:[#allocation4 + $0x2c]]
        %v688 = vstv %s687
        %v689 = vmul.f32 %v688, %v591
        %v690 = vmul.f32 %v688, %v592
        %693 = vrot.lane.b32.xlu0 %v689, 126
        %v694 = vpop.permute.xlu0 %693
        %695 = vrot.lane.b32.xlu0 %v690, 126
        %v696 = vpop.permute.xlu0 %695
        %v699 = vadd.f32 %v643, %v694
        %v700 = vadd.f32 %v644, %v696
        %s701 = sld [smem:[#allocation4 + $0x50]]
        %v702 = vstv %s701
        %v703 = vmul.f32 %v702, %v591
        %v704 = vmul.f32 %v702, %v592
        %707 = vrot.lane.b32.xlu0 %v703, 126
        %v708 = vpop.permute.xlu0 %707
        %709 = vrot.lane.b32.xlu0 %v704, 126
        %v710 = vpop.permute.xlu0 %709
        %v713 = vadd.f32 %v657, %v708
        %v714 = vadd.f32 %v658, %v710
        %s715 = sld [smem:[#allocation4 + $0x74]]
        %v716 = vstv %s715
        %v717 = vmul.f32 %v716, %v591
        %v718 = vmul.f32 %v716, %v592
        %721 = vrot.lane.b32.xlu0 %v717, 126
        %v722 = vpop.permute.xlu0 %721
        %723 = vrot.lane.b32.xlu0 %v718, 126
        %v724 = vpop.permute.xlu0 %723
        %v727 = vadd.f32 %v671, %v722
        %v728 = vadd.f32 %v672, %v724
        %v729 = vld [vmem:[%s209] sm:$0xff]
        %v730 = vld [vmem:[%s209 + $0x8] sm:$0xff]
        %s731 = sld [smem:[#allocation4 + $0x9]]
        %v732 = vstv %s731
        %v733 = vmul.f32 %v732, %v729
        %v734 = vmul.f32 %v732, %v730
        %v735 = vadd.f32 %v685, %v733
        %v736 = vadd.f32 %v686, %v734
        %s737 = sld [smem:[#allocation4 + $0x2d]]
        %v738 = vstv %s737
        %v739 = vmul.f32 %v738, %v729
        %v740 = vmul.f32 %v738, %v730
        %v741 = vadd.f32 %v699, %v739
        %v742 = vadd.f32 %v700, %v740
        %s743 = sld [smem:[#allocation4 + $0x51]]
        %v744 = vstv %s743
        %v745 = vmul.f32 %v744, %v729
        %v746 = vmul.f32 %v744, %v730
        %v747 = vadd.f32 %v713, %v745
        %v748 = vadd.f32 %v714, %v746
        %s749 = sld [smem:[#allocation4 + $0x75]]
        %v750 = vstv %s749
        %v751 = vmul.f32 %v750, %v729
        %v752 = vmul.f32 %v750, %v730
        %v753 = vadd.f32 %v727, %v751
        %v754 = vadd.f32 %v728, %v752
        %s755 = sld [smem:[#allocation4 + $0xa]]
        %v756 = vstv %s755
        %v757 = vmul.f32 %v756, %v729
        %v758 = vmul.f32 %v756, %v730
        %761 = vrot.lane.b32.xlu0 %v757, 127
        %v762 = vpop.permute.xlu0 %761
        %763 = vrot.lane.b32.xlu0 %v758, 127
        %v764 = vpop.permute.xlu0 %763
        %v767 = vadd.f32 %v735, %v762
        %v768 = vadd.f32 %v736, %v764
        %s769 = sld [smem:[#allocation4 + $0x2e]]
        %v770 = vstv %s769
        %v771 = vmul.f32 %v770, %v729
        %v772 = vmul.f32 %v770, %v730
        %775 = vrot.lane.b32.xlu0 %v771, 127
        %v776 = vpop.permute.xlu0 %775
        %777 = vrot.lane.b32.xlu0 %v772, 127
        %v778 = vpop.permute.xlu0 %777
        %v781 = vadd.f32 %v741, %v776
        %v782 = vadd.f32 %v742, %v778
        %s783 = sld [smem:[#allocation4 + $0x52]]
        %v784 = vstv %s783
        %v785 = vmul.f32 %v784, %v729
        %v786 = vmul.f32 %v784, %v730
        %789 = vrot.lane.b32.xlu0 %v785, 127
        %v790 = vpop.permute.xlu0 %789
        %791 = vrot.lane.b32.xlu0 %v786, 127
        %v792 = vpop.permute.xlu0 %791
        %v795 = vadd.f32 %v747, %v790
        %v796 = vadd.f32 %v748, %v792
        %s797 = sld [smem:[#allocation4 + $0x76]]
        %v798 = vstv %s797
        %v799 = vmul.f32 %v798, %v729
        %v800 = vmul.f32 %v798, %v730
        %803 = vrot.lane.b32.xlu0 %v799, 127
        %v804 = vpop.permute.xlu0 %803
        %805 = vrot.lane.b32.xlu0 %v800, 127
        %v806 = vpop.permute.xlu0 %805
        %v809 = vadd.f32 %v753, %v804
        %v810 = vadd.f32 %v754, %v806
        %s811 = sld [smem:[#allocation4 + $0xb]]
        %v812 = vstv %s811
        %v813 = vmul.f32 %v812, %v729
        %v814 = vmul.f32 %v812, %v730
        %817 = vrot.lane.b32.xlu0 %v813, 126
        %v818 = vpop.permute.xlu0 %817
        %819 = vrot.lane.b32.xlu0 %v814, 126
        %v820 = vpop.permute.xlu0 %819
        %v823 = vadd.f32 %v767, %v818
        %v824 = vadd.f32 %v768, %v820
        %s825 = sld [smem:[#allocation4 + $0x2f]]
        %v826 = vstv %s825
        %v827 = vmul.f32 %v826, %v729
        %v828 = vmul.f32 %v826, %v730
        %831 = vrot.lane.b32.xlu0 %v827, 126
        %v832 = vpop.permute.xlu0 %831
        %833 = vrot.lane.b32.xlu0 %v828, 126
        %v834 = vpop.permute.xlu0 %833
        %v837 = vadd.f32 %v781, %v832
        %v838 = vadd.f32 %v782, %v834
        %s839 = sld [smem:[#allocation4 + $0x53]]
        %v840 = vstv %s839
        %v841 = vmul.f32 %v840, %v729
        %v842 = vmul.f32 %v840, %v730
        %845 = vrot.lane.b32.xlu0 %v841, 126
        %v846 = vpop.permute.xlu0 %845
        %847 = vrot.lane.b32.xlu0 %v842, 126
        %v848 = vpop.permute.xlu0 %847
        %v851 = vadd.f32 %v795, %v846
        %v852 = vadd.f32 %v796, %v848
        %s853 = sld [smem:[#allocation4 + $0x77]]
        %v854 = vstv %s853
        %v855 = vmul.f32 %v854, %v729
        %v856 = vmul.f32 %v854, %v730
        %859 = vrot.lane.b32.xlu0 %v855, 126
        %v860 = vpop.permute.xlu0 %859
        %861 = vrot.lane.b32.xlu0 %v856, 126
        %v862 = vpop.permute.xlu0 %861
        %v865 = vadd.f32 %v809, %v860
        %v866 = vadd.f32 %v810, %v862
        %v867 = vld [vmem:[%s209 + $0x1] sm:$0xff]
        %v868 = vld [vmem:[%s209 + $0x9] sm:$0xff]
        %s869 = sld [smem:[#allocation4 + $0xc]]
        %v870 = vstv %s869
        %v871 = vmul.f32 %v870, %v867
        %v872 = vmul.f32 %v870, %v868
        %v873 = vadd.f32 %v823, %v871
        %v874 = vadd.f32 %v824, %v872
        %s875 = sld [smem:[#allocation4 + $0x30]]
        %v876 = vstv %s875
        %v877 = vmul.f32 %v876, %v867
        %v878 = vmul.f32 %v876, %v868
        %v879 = vadd.f32 %v837, %v877
        %v880 = vadd.f32 %v838, %v878
        %s881 = sld [smem:[#allocation4 + $0x54]]
        %v882 = vstv %s881
        %v883 = vmul.f32 %v882, %v867
        %v884 = vmul.f32 %v882, %v868
        %v885 = vadd.f32 %v851, %v883
        %v886 = vadd.f32 %v852, %v884
        %s887 = sld [smem:[#allocation4 + $0x78]]
        %v888 = vstv %s887
        %v889 = vmul.f32 %v888, %v867
        %v890 = vmul.f32 %v888, %v868
        %v891 = vadd.f32 %v865, %v889
        %v892 = vadd.f32 %v866, %v890
        %s893 = sld [smem:[#allocation4 + $0xd]]
        %v894 = vstv %s893
        %v895 = vmul.f32 %v894, %v867
        %v896 = vmul.f32 %v894, %v868
        %899 = vrot.lane.b32.xlu0 %v895, 127
        %v900 = vpop.permute.xlu0 %899
        %901 = vrot.lane.b32.xlu0 %v896, 127
        %v902 = vpop.permute.xlu0 %901
        %v905 = vadd.f32 %v873, %v900
        %v906 = vadd.f32 %v874, %v902
        %s907 = sld [smem:[#allocation4 + $0x31]]
        %v908 = vstv %s907
        %v909 = vmul.f32 %v908, %v867
        %v910 = vmul.f32 %v908, %v868
        %913 = vrot.lane.b32.xlu0 %v909, 127
        %v914 = vpop.permute.xlu0 %913
        %915 = vrot.lane.b32.xlu0 %v910, 127
        %v916 = vpop.permute.xlu0 %915
        %v919 = vadd.f32 %v879, %v914
        %v920 = vadd.f32 %v880, %v916
        %s921 = sld [smem:[#allocation4 + $0x55]]
        %v922 = vstv %s921
        %v923 = vmul.f32 %v922, %v867
        %v924 = vmul.f32 %v922, %v868
        %927 = vrot.lane.b32.xlu0 %v923, 127
        %v928 = vpop.permute.xlu0 %927
        %929 = vrot.lane.b32.xlu0 %v924, 127
        %v930 = vpop.permute.xlu0 %929
        %v933 = vadd.f32 %v885, %v928
        %v934 = vadd.f32 %v886, %v930
        %s935 = sld [smem:[#allocation4 + $0x79]]
        %v936 = vstv %s935
        %v937 = vmul.f32 %v936, %v867
        %v938 = vmul.f32 %v936, %v868
        %941 = vrot.lane.b32.xlu0 %v937, 127
        %v942 = vpop.permute.xlu0 %941
        %943 = vrot.lane.b32.xlu0 %v938, 127
        %v944 = vpop.permute.xlu0 %943
        %v947 = vadd.f32 %v891, %v942
        %v948 = vadd.f32 %v892, %v944
        %s949 = sld [smem:[#allocation4 + $0xe]]
        %v950 = vstv %s949
        %v951 = vmul.f32 %v950, %v867
        %v952 = vmul.f32 %v950, %v868
        %955 = vrot.lane.b32.xlu0 %v951, 126
        %v956 = vpop.permute.xlu0 %955
        %957 = vrot.lane.b32.xlu0 %v952, 126
        %v958 = vpop.permute.xlu0 %957
        %v961 = vadd.f32 %v905, %v956
        %v962 = vadd.f32 %v906, %v958
        %s963 = sld [smem:[#allocation4 + $0x32]]
        %v964 = vstv %s963
        %v965 = vmul.f32 %v964, %v867
        %v966 = vmul.f32 %v964, %v868
        %969 = vrot.lane.b32.xlu0 %v965, 126
        %v970 = vpop.permute.xlu0 %969
        %971 = vrot.lane.b32.xlu0 %v966, 126
        %v972 = vpop.permute.xlu0 %971
        %v975 = vadd.f32 %v919, %v970
        %v976 = vadd.f32 %v920, %v972
        %s977 = sld [smem:[#allocation4 + $0x56]]
        %v978 = vstv %s977
        %v979 = vmul.f32 %v978, %v867
        %v980 = vmul.f32 %v978, %v868
        %983 = vrot.lane.b32.xlu0 %v979, 126
        %v984 = vpop.permute.xlu0 %983
        %985 = vrot.lane.b32.xlu0 %v980, 126
        %v986 = vpop.permute.xlu0 %985
        %v989 = vadd.f32 %v933, %v984
        %v990 = vadd.f32 %v934, %v986
        %s991 = sld [smem:[#allocation4 + $0x7a]]
        %v992 = vstv %s991
        %v993 = vmul.f32 %v992, %v867
        %v994 = vmul.f32 %v992, %v868
        %997 = vrot.lane.b32.xlu0 %v993, 126
        %v998 = vpop.permute.xlu0 %997
        %999 = vrot.lane.b32.xlu0 %v994, 126
        %v1000 = vpop.permute.xlu0 %999
        %v1003 = vadd.f32 %v947, %v998
        %v1004 = vadd.f32 %v948, %v1000
        %v1005 = vld [vmem:[%s209 + $0x2] sm:$0xff]
        %v1006 = vld [vmem:[%s209 + $0xa] sm:$0xff]
        %s1007 = sld [smem:[#allocation4 + $0xf]]
        %v1008 = vstv %s1007
        %v1009 = vmul.f32 %v1008, %v1005
        %v1010 = vmul.f32 %v1008, %v1006
        %v1011 = vadd.f32 %v961, %v1009
        %v1012 = vadd.f32 %v962, %v1010
        %s1013 = sld [smem:[#allocation4 + $0x33]]
        %v1014 = vstv %s1013
        %v1015 = vmul.f32 %v1014, %v1005
        %v1016 = vmul.f32 %v1014, %v1006
        %v1017 = vadd.f32 %v975, %v1015
        %v1018 = vadd.f32 %v976, %v1016
        %s1019 = sld [smem:[#allocation4 + $0x57]]
        %v1020 = vstv %s1019
        %v1021 = vmul.f32 %v1020, %v1005
        %v1022 = vmul.f32 %v1020, %v1006
        %v1023 = vadd.f32 %v989, %v1021
        %v1024 = vadd.f32 %v990, %v1022
        %s1025 = sld [smem:[#allocation4 + $0x7b]]
        %v1026 = vstv %s1025
        %v1027 = vmul.f32 %v1026, %v1005
        %v1028 = vmul.f32 %v1026, %v1006
        %v1029 = vadd.f32 %v1003, %v1027
        %v1030 = vadd.f32 %v1004, %v1028
        %s1031 = sld [smem:[#allocation4 + $0x10]]
        %v1032 = vstv %s1031
        %v1033 = vmul.f32 %v1032, %v1005
        %v1034 = vmul.f32 %v1032, %v1006
        %1037 = vrot.lane.b32.xlu0 %v1033, 127
        %v1038 = vpop.permute.xlu0 %1037
        %1039 = vrot.lane.b32.xlu0 %v1034, 127
        %v1040 = vpop.permute.xlu0 %1039
        %v1043 = vadd.f32 %v1011, %v1038
        %v1044 = vadd.f32 %v1012, %v1040
        %s1045 = sld [smem:[#allocation4 + $0x34]]
        %v1046 = vstv %s1045
        %v1047 = vmul.f32 %v1046, %v1005
        %v1048 = vmul.f32 %v1046, %v1006
        %1051 = vrot.lane.b32.xlu0 %v1047, 127
        %v1052 = vpop.permute.xlu0 %1051
        %1053 = vrot.lane.b32.xlu0 %v1048, 127
        %v1054 = vpop.permute.xlu0 %1053
        %v1057 = vadd.f32 %v1017, %v1052
        %v1058 = vadd.f32 %v1018, %v1054
        %s1059 = sld [smem:[#allocation4 + $0x58]]
        %v1060 = vstv %s1059
        %v1061 = vmul.f32 %v1060, %v1005
        %v1062 = vmul.f32 %v1060, %v1006
        %1065 = vrot.lane.b32.xlu0 %v1061, 127
        %v1066 = vpop.permute.xlu0 %1065
        %1067 = vrot.lane.b32.xlu0 %v1062, 127
        %v1068 = vpop.permute.xlu0 %1067
        %v1071 = vadd.f32 %v1023, %v1066
        %v1072 = vadd.f32 %v1024, %v1068
        %s1073 = sld [smem:[#allocation4 + $0x7c]]
        %v1074 = vstv %s1073
        %v1075 = vmul.f32 %v1074, %v1005
        %v1076 = vmul.f32 %v1074, %v1006
        %1079 = vrot.lane.b32.xlu0 %v1075, 127
        %v1080 = vpop.permute.xlu0 %1079
        %1081 = vrot.lane.b32.xlu0 %v1076, 127
        %v1082 = vpop.permute.xlu0 %1081
        %v1085 = vadd.f32 %v1029, %v1080
        %v1086 = vadd.f32 %v1030, %v1082
        %s1087 = sld [smem:[#allocation4 + $0x11]]
        %v1088 = vstv %s1087
        %v1089 = vmul.f32 %v1088, %v1005
        %v1090 = vmul.f32 %v1088, %v1006
        %1093 = vrot.lane.b32.xlu0 %v1089, 126
        %v1094 = vpop.permute.xlu0 %1093
        %1095 = vrot.lane.b32.xlu0 %v1090, 126
        %v1096 = vpop.permute.xlu0 %1095
        %v1099 = vadd.f32 %v1043, %v1094
        %v1100 = vadd.f32 %v1044, %v1096
        %s1101 = sld [smem:[#allocation4 + $0x35]]
        %v1102 = vstv %s1101
        %v1103 = vmul.f32 %v1102, %v1005
        %v1104 = vmul.f32 %v1102, %v1006
        %1107 = vrot.lane.b32.xlu0 %v1103, 126
        %v1108 = vpop.permute.xlu0 %1107
        %1109 = vrot.lane.b32.xlu0 %v1104, 126
        %v1110 = vpop.permute.xlu0 %1109
        %v1113 = vadd.f32 %v1057, %v1108
        %v1114 = vadd.f32 %v1058, %v1110
        %s1115 = sld [smem:[#allocation4 + $0x59]]
        %v1116 = vstv %s1115
        %v1117 = vmul.f32 %v1116, %v1005
        %v1118 = vmul.f32 %v1116, %v1006
        %1121 = vrot.lane.b32.xlu0 %v1117, 126
        %v1122 = vpop.permute.xlu0 %1121
        %1123 = vrot.lane.b32.xlu0 %v1118, 126
        %v1124 = vpop.permute.xlu0 %1123
        %v1127 = vadd.f32 %v1071, %v1122
        %v1128 = vadd.f32 %v1072, %v1124
        %s1129 = sld [smem:[#allocation4 + $0x7d]]
        %v1130 = vstv %s1129
        %v1131 = vmul.f32 %v1130, %v1005
        %v1132 = vmul.f32 %v1130, %v1006
        %1135 = vrot.lane.b32.xlu0 %v1131, 126
        %v1136 = vpop.permute.xlu0 %1135
        %1137 = vrot.lane.b32.xlu0 %v1132, 126
        %v1138 = vpop.permute.xlu0 %1137
        %v1141 = vadd.f32 %v1085, %v1136
        %v1142 = vadd.f32 %v1086, %v1138
        %v1143 = vld [vmem:[%s218] sm:$0xff]
        %v1144 = vld [vmem:[%s218 + $0x8] sm:$0xff]
        %s1145 = sld [smem:[#allocation4 + $0x12]]
        %v1146 = vstv %s1145
        %v1147 = vmul.f32 %v1146, %v1143
        %v1148 = vmul.f32 %v1146, %v1144
        %v1149 = vadd.f32 %v1099, %v1147
        %v1150 = vadd.f32 %v1100, %v1148
        %s1151 = sld [smem:[#allocation4 + $0x36]]
        %v1152 = vstv %s1151
        %v1153 = vmul.f32 %v1152, %v1143
        %v1154 = vmul.f32 %v1152, %v1144
        %v1155 = vadd.f32 %v1113, %v1153
        %v1156 = vadd.f32 %v1114, %v1154
        %s1157 = sld [smem:[#allocation4 + $0x5a]]
        %v1158 = vstv %s1157
        %v1159 = vmul.f32 %v1158, %v1143
        %v1160 = vmul.f32 %v1158, %v1144
        %v1161 = vadd.f32 %v1127, %v1159
        %v1162 = vadd.f32 %v1128, %v1160
        %s1163 = sld [smem:[#allocation4 + $0x7e]]
        %v1164 = vstv %s1163
        %v1165 = vmul.f32 %v1164, %v1143
        %v1166 = vmul.f32 %v1164, %v1144
        %v1167 = vadd.f32 %v1141, %v1165
        %v1168 = vadd.f32 %v1142, %v1166
        %s1169 = sld [smem:[#allocation4 + $0x13]]
        %v1170 = vstv %s1169
        %v1171 = vmul.f32 %v1170, %v1143
        %v1172 = vmul.f32 %v1170, %v1144
        %1175 = vrot.lane.b32.xlu0 %v1171, 127
        %v1176 = vpop.permute.xlu0 %1175
        %1177 = vrot.lane.b32.xlu0 %v1172, 127
        %v1178 = vpop.permute.xlu0 %1177
        %v1181 = vadd.f32 %v1149, %v1176
        %v1182 = vadd.f32 %v1150, %v1178
        %s1183 = sld [smem:[#allocation4 + $0x37]]
        %v1184 = vstv %s1183
        %v1185 = vmul.f32 %v1184, %v1143
        %v1186 = vmul.f32 %v1184, %v1144
        %1189 = vrot.lane.b32.xlu0 %v1185, 127
        %v1190 = vpop.permute.xlu0 %1189
        %1191 = vrot.lane.b32.xlu0 %v1186, 127
        %v1192 = vpop.permute.xlu0 %1191
        %v1195 = vadd.f32 %v1155, %v1190
        %v1196 = vadd.f32 %v1156, %v1192
        %s1197 = sld [smem:[#allocation4 + $0x5b]]
        %v1198 = vstv %s1197
        %v1199 = vmul.f32 %v1198, %v1143
        %v1200 = vmul.f32 %v1198, %v1144
        %1203 = vrot.lane.b32.xlu0 %v1199, 127
        %v1204 = vpop.permute.xlu0 %1203
        %1205 = vrot.lane.b32.xlu0 %v1200, 127
        %v1206 = vpop.permute.xlu0 %1205
        %v1209 = vadd.f32 %v1161, %v1204
        %v1210 = vadd.f32 %v1162, %v1206
        %s1211 = sld [smem:[#allocation4 + $0x7f]]
        %v1212 = vstv %s1211
        %v1213 = vmul.f32 %v1212, %v1143
        %v1214 = vmul.f32 %v1212, %v1144
        %1217 = vrot.lane.b32.xlu0 %v1213, 127
        %v1218 = vpop.permute.xlu0 %1217
        %1219 = vrot.lane.b32.xlu0 %v1214, 127
        %v1220 = vpop.permute.xlu0 %1219
        %v1223 = vadd.f32 %v1167, %v1218
        %v1224 = vadd.f32 %v1168, %v1220
        %s1225 = sld [smem:[#allocation4 + $0x14]]
        %v1226 = vstv %s1225
        %v1227 = vmul.f32 %v1226, %v1143
        %v1228 = vmul.f32 %v1226, %v1144
        %1231 = vrot.lane.b32.xlu0 %v1227, 126
        %v1232 = vpop.permute.xlu0 %1231
        %1233 = vrot.lane.b32.xlu0 %v1228, 126
        %v1234 = vpop.permute.xlu0 %1233
        %v1237 = vadd.f32 %v1181, %v1232
        %v1238 = vadd.f32 %v1182, %v1234
        %s1239 = sld [smem:[#allocation4 + $0x38]]
        %v1240 = vstv %s1239
        %v1241 = vmul.f32 %v1240, %v1143
        %v1242 = vmul.f32 %v1240, %v1144
        %1245 = vrot.lane.b32.xlu0 %v1241, 126
        %v1246 = vpop.permute.xlu0 %1245
        %1247 = vrot.lane.b32.xlu0 %v1242, 126
        %v1248 = vpop.permute.xlu0 %1247
        %v1251 = vadd.f32 %v1195, %v1246
        %v1252 = vadd.f32 %v1196, %v1248
        %s1253 = sld [smem:[#allocation4 + $0x5c]]
        %v1254 = vstv %s1253
        %v1255 = vmul.f32 %v1254, %v1143
        %v1256 = vmul.f32 %v1254, %v1144
        %1259 = vrot.lane.b32.xlu0 %v1255, 126
        %v1260 = vpop.permute.xlu0 %1259
        %1261 = vrot.lane.b32.xlu0 %v1256, 126
        %v1262 = vpop.permute.xlu0 %1261
        %v1265 = vadd.f32 %v1209, %v1260
        %v1266 = vadd.f32 %v1210, %v1262
        %s1267 = sld [smem:[#allocation4 + $0x80]]
        %v1268 = vstv %s1267
        %v1269 = vmul.f32 %v1268, %v1143
        %v1270 = vmul.f32 %v1268, %v1144
        %1273 = vrot.lane.b32.xlu0 %v1269, 126
        %v1274 = vpop.permute.xlu0 %1273
        %1275 = vrot.lane.b32.xlu0 %v1270, 126
        %v1276 = vpop.permute.xlu0 %1275
        %v1279 = vadd.f32 %v1223, %v1274
        %v1280 = vadd.f32 %v1224, %v1276
        %v1281 = vld [vmem:[%s218 + $0x1] sm:$0xff]
        %v1282 = vld [vmem:[%s218 + $0x9] sm:$0xff]
        %s1283 = sld [smem:[#allocation4 + $0x15]]
        %v1284 = vstv %s1283
        %v1285 = vmul.f32 %v1284, %v1281
        %v1286 = vmul.f32 %v1284, %v1282
        %v1287 = vadd.f32 %v1237, %v1285
        %v1288 = vadd.f32 %v1238, %v1286
        %s1289 = sld [smem:[#allocation4 + $0x39]]
        %v1290 = vstv %s1289
        %v1291 = vmul.f32 %v1290, %v1281
        %v1292 = vmul.f32 %v1290, %v1282
        %v1293 = vadd.f32 %v1251, %v1291
        %v1294 = vadd.f32 %v1252, %v1292
        %s1295 = sld [smem:[#allocation4 + $0x5d]]
        %v1296 = vstv %s1295
        %v1297 = vmul.f32 %v1296, %v1281
        %v1298 = vmul.f32 %v1296, %v1282
        %v1299 = vadd.f32 %v1265, %v1297
        %v1300 = vadd.f32 %v1266, %v1298
        %s1301 = sld [smem:[#allocation4 + $0x81]]
        %v1302 = vstv %s1301
        %v1303 = vmul.f32 %v1302, %v1281
        %v1304 = vmul.f32 %v1302, %v1282
        %v1305 = vadd.f32 %v1279, %v1303
        %v1306 = vadd.f32 %v1280, %v1304
        %s1307 = sld [smem:[#allocation4 + $0x16]]
        %v1308 = vstv %s1307
        %v1309 = vmul.f32 %v1308, %v1281
        %v1310 = vmul.f32 %v1308, %v1282
        %1313 = vrot.lane.b32.xlu0 %v1309, 127
        %v1314 = vpop.permute.xlu0 %1313
        %1315 = vrot.lane.b32.xlu0 %v1310, 127
        %v1316 = vpop.permute.xlu0 %1315
        %v1319 = vadd.f32 %v1287, %v1314
        %v1320 = vadd.f32 %v1288, %v1316
        %s1321 = sld [smem:[#allocation4 + $0x3a]]
        %v1322 = vstv %s1321
        %v1323 = vmul.f32 %v1322, %v1281
        %v1324 = vmul.f32 %v1322, %v1282
        %1327 = vrot.lane.b32.xlu0 %v1323, 127
        %v1328 = vpop.permute.xlu0 %1327
        %1329 = vrot.lane.b32.xlu0 %v1324, 127
        %v1330 = vpop.permute.xlu0 %1329
        %v1333 = vadd.f32 %v1293, %v1328
        %v1334 = vadd.f32 %v1294, %v1330
        %s1335 = sld [smem:[#allocation4 + $0x5e]]
        %v1336 = vstv %s1335
        %v1337 = vmul.f32 %v1336, %v1281
        %v1338 = vmul.f32 %v1336, %v1282
        %1341 = vrot.lane.b32.xlu0 %v1337, 127
        %v1342 = vpop.permute.xlu0 %1341
        %1343 = vrot.lane.b32.xlu0 %v1338, 127
        %v1344 = vpop.permute.xlu0 %1343
        %v1347 = vadd.f32 %v1299, %v1342
        %v1348 = vadd.f32 %v1300, %v1344
        %s1349 = sld [smem:[#allocation4 + $0x82]]
        %v1350 = vstv %s1349
        %v1351 = vmul.f32 %v1350, %v1281
        %v1352 = vmul.f32 %v1350, %v1282
        %1355 = vrot.lane.b32.xlu0 %v1351, 127
        %v1356 = vpop.permute.xlu0 %1355
        %1357 = vrot.lane.b32.xlu0 %v1352, 127
        %v1358 = vpop.permute.xlu0 %1357
        %v1361 = vadd.f32 %v1305, %v1356
        %v1362 = vadd.f32 %v1306, %v1358
        %s1363 = sld [smem:[#allocation4 + $0x17]]
        %v1364 = vstv %s1363
        %v1365 = vmul.f32 %v1364, %v1281
        %v1366 = vmul.f32 %v1364, %v1282
        %1369 = vrot.lane.b32.xlu0 %v1365, 126
        %v1370 = vpop.permute.xlu0 %1369
        %1371 = vrot.lane.b32.xlu0 %v1366, 126
        %v1372 = vpop.permute.xlu0 %1371
        %v1375 = vadd.f32 %v1319, %v1370
        %v1376 = vadd.f32 %v1320, %v1372
        %s1377 = sld [smem:[#allocation4 + $0x3b]]
        %v1378 = vstv %s1377
        %v1379 = vmul.f32 %v1378, %v1281
        %v1380 = vmul.f32 %v1378, %v1282
        %1383 = vrot.lane.b32.xlu0 %v1379, 126
        %v1384 = vpop.permute.xlu0 %1383
        %1385 = vrot.lane.b32.xlu0 %v1380, 126
        %v1386 = vpop.permute.xlu0 %1385
        %v1389 = vadd.f32 %v1333, %v1384
        %v1390 = vadd.f32 %v1334, %v1386
        %s1391 = sld [smem:[#allocation4 + $0x5f]]
        %v1392 = vstv %s1391
        %v1393 = vmul.f32 %v1392, %v1281
        %v1394 = vmul.f32 %v1392, %v1282
        %1397 = vrot.lane.b32.xlu0 %v1393, 126
        %v1398 = vpop.permute.xlu0 %1397
        %1399 = vrot.lane.b32.xlu0 %v1394, 126
        %v1400 = vpop.permute.xlu0 %1399
        %v1403 = vadd.f32 %v1347, %v1398
        %v1404 = vadd.f32 %v1348, %v1400
        %s1405 = sld [smem:[#allocation4 + $0x83]]
        %v1406 = vstv %s1405
        %v1407 = vmul.f32 %v1406, %v1281
        %v1408 = vmul.f32 %v1406, %v1282
        %1411 = vrot.lane.b32.xlu0 %v1407, 126
        %v1412 = vpop.permute.xlu0 %1411
        %1413 = vrot.lane.b32.xlu0 %v1408, 126
        %v1414 = vpop.permute.xlu0 %1413
        %v1417 = vadd.f32 %v1361, %v1412
        %v1418 = vadd.f32 %v1362, %v1414
        %v1419 = vld [vmem:[%s218 + $0x2] sm:$0xff]
        %v1420 = vld [vmem:[%s218 + $0xa] sm:$0xff]
        %s1421 = sld [smem:[#allocation4 + $0x18]]
        %v1422 = vstv %s1421
        %v1423 = vmul.f32 %v1422, %v1419
        %v1424 = vmul.f32 %v1422, %v1420
        %v1425 = vadd.f32 %v1375, %v1423
        %v1426 = vadd.f32 %v1376, %v1424
        %s1427 = sld [smem:[#allocation4 + $0x3c]]
        %v1428 = vstv %s1427
        %v1429 = vmul.f32 %v1428, %v1419
        %v1430 = vmul.f32 %v1428, %v1420
        %v1431 = vadd.f32 %v1389, %v1429
        %v1432 = vadd.f32 %v1390, %v1430
        %s1433 = sld [smem:[#allocation4 + $0x60]]
        %v1434 = vstv %s1433
        %v1435 = vmul.f32 %v1434, %v1419
        %v1436 = vmul.f32 %v1434, %v1420
        %v1437 = vadd.f32 %v1403, %v1435
        %v1438 = vadd.f32 %v1404, %v1436
        %s1439 = sld [smem:[#allocation4 + $0x84]]
        %v1440 = vstv %s1439
        %v1441 = vmul.f32 %v1440, %v1419
        %v1442 = vmul.f32 %v1440, %v1420
        %v1443 = vadd.f32 %v1417, %v1441
        %v1444 = vadd.f32 %v1418, %v1442
        %s1445 = sld [smem:[#allocation4 + $0x19]]
        %v1446 = vstv %s1445
        %v1447 = vmul.f32 %v1446, %v1419
        %v1448 = vmul.f32 %v1446, %v1420
        %1451 = vrot.lane.b32.xlu0 %v1447, 127
        %v1452 = vpop.permute.xlu0 %1451
        %1453 = vrot.lane.b32.xlu0 %v1448, 127
        %v1454 = vpop.permute.xlu0 %1453
        %v1457 = vadd.f32 %v1425, %v1452
        %v1458 = vadd.f32 %v1426, %v1454
        %s1459 = sld [smem:[#allocation4 + $0x3d]]
        %v1460 = vstv %s1459
        %v1461 = vmul.f32 %v1460, %v1419
        %v1462 = vmul.f32 %v1460, %v1420
        %1465 = vrot.lane.b32.xlu0 %v1461, 127
        %v1466 = vpop.permute.xlu0 %1465
        %1467 = vrot.lane.b32.xlu0 %v1462, 127
        %v1468 = vpop.permute.xlu0 %1467
        %v1471 = vadd.f32 %v1431, %v1466
        %v1472 = vadd.f32 %v1432, %v1468
        %s1473 = sld [smem:[#allocation4 + $0x61]]
        %v1474 = vstv %s1473
        %v1475 = vmul.f32 %v1474, %v1419
        %v1476 = vmul.f32 %v1474, %v1420
        %1479 = vrot.lane.b32.xlu0 %v1475, 127
        %v1480 = vpop.permute.xlu0 %1479
        %1481 = vrot.lane.b32.xlu0 %v1476, 127
        %v1482 = vpop.permute.xlu0 %1481
        %v1485 = vadd.f32 %v1437, %v1480
        %v1486 = vadd.f32 %v1438, %v1482
        %s1487 = sld [smem:[#allocation4 + $0x85]]
        %v1488 = vstv %s1487
        %v1489 = vmul.f32 %v1488, %v1419
        %v1490 = vmul.f32 %v1488, %v1420
        %1493 = vrot.lane.b32.xlu0 %v1489, 127
        %v1494 = vpop.permute.xlu0 %1493
        %1495 = vrot.lane.b32.xlu0 %v1490, 127
        %v1496 = vpop.permute.xlu0 %1495
        %v1499 = vadd.f32 %v1443, %v1494
        %v1500 = vadd.f32 %v1444, %v1496
        %s1501 = sld [smem:[#allocation4 + $0x1a]]
        %v1502 = vstv %s1501
        %v1503 = vmul.f32 %v1502, %v1419
        %v1504 = vmul.f32 %v1502, %v1420
        %1507 = vrot.lane.b32.xlu0 %v1503, 126
        %v1508 = vpop.permute.xlu0 %1507
        %1509 = vrot.lane.b32.xlu0 %v1504, 126
        %v1510 = vpop.permute.xlu0 %1509
        %v1513 = vadd.f32 %v1457, %v1508
        %v1514 = vadd.f32 %v1458, %v1510
        %s1515 = sld [smem:[#allocation4 + $0x3e]]
        %v1516 = vstv %s1515
        %v1517 = vmul.f32 %v1516, %v1419
        %v1518 = vmul.f32 %v1516, %v1420
        %1521 = vrot.lane.b32.xlu0 %v1517, 126
        %v1522 = vpop.permute.xlu0 %1521
        %1523 = vrot.lane.b32.xlu0 %v1518, 126
        %v1524 = vpop.permute.xlu0 %1523
        %v1527 = vadd.f32 %v1471, %v1522
        %v1528 = vadd.f32 %v1472, %v1524
        %s1529 = sld [smem:[#allocation4 + $0x62]]
        %v1530 = vstv %s1529
        %v1531 = vmul.f32 %v1530, %v1419
        %v1532 = vmul.f32 %v1530, %v1420
        %1535 = vrot.lane.b32.xlu0 %v1531, 126
        %v1536 = vpop.permute.xlu0 %1535
        %1537 = vrot.lane.b32.xlu0 %v1532, 126
        %v1538 = vpop.permute.xlu0 %1537
        %v1541 = vadd.f32 %v1485, %v1536
        %v1542 = vadd.f32 %v1486, %v1538
        %s1543 = sld [smem:[#allocation4 + $0x86]]
        %v1544 = vstv %s1543
        %v1545 = vmul.f32 %v1544, %v1419
        %v1546 = vmul.f32 %v1544, %v1420
        %1549 = vrot.lane.b32.xlu0 %v1545, 126
        %v1550 = vpop.permute.xlu0 %1549
        %1551 = vrot.lane.b32.xlu0 %v1546, 126
        %v1552 = vpop.permute.xlu0 %1551
        %v1555 = vadd.f32 %v1499, %v1550
        %v1556 = vadd.f32 %v1500, %v1552
        %v1557 = vld [vmem:[%s227] sm:$0xff]
        %v1558 = vld [vmem:[%s227 + $0x8] sm:$0xff]
        %s1559 = sld [smem:[#allocation4 + $0x1b]]
        %v1560 = vstv %s1559
        %v1561 = vmul.f32 %v1560, %v1557
        %v1562 = vmul.f32 %v1560, %v1558
        %v1563 = vadd.f32 %v1513, %v1561
        %v1564 = vadd.f32 %v1514, %v1562
        %s1565 = sld [smem:[#allocation4 + $0x3f]]
        %v1566 = vstv %s1565
        %v1567 = vmul.f32 %v1566, %v1557
        %v1568 = vmul.f32 %v1566, %v1558
        %v1569 = vadd.f32 %v1527, %v1567
        %v1570 = vadd.f32 %v1528, %v1568
        %s1571 = sld [smem:[#allocation4 + $0x63]]
        %v1572 = vstv %s1571
        %v1573 = vmul.f32 %v1572, %v1557
        %v1574 = vmul.f32 %v1572, %v1558
        %v1575 = vadd.f32 %v1541, %v1573
        %v1576 = vadd.f32 %v1542, %v1574
        %s1577 = sld [smem:[#allocation4 + $0x87]]
        %v1578 = vstv %s1577
        %v1579 = vmul.f32 %v1578, %v1557
        %v1580 = vmul.f32 %v1578, %v1558
        %v1581 = vadd.f32 %v1555, %v1579
        %v1582 = vadd.f32 %v1556, %v1580
        %s1583 = sld [smem:[#allocation4 + $0x1c]]
        %v1584 = vstv %s1583
        %v1585 = vmul.f32 %v1584, %v1557
        %v1586 = vmul.f32 %v1584, %v1558
        %1589 = vrot.lane.b32.xlu0 %v1585, 127
        %v1590 = vpop.permute.xlu0 %1589
        %1591 = vrot.lane.b32.xlu0 %v1586, 127
        %v1592 = vpop.permute.xlu0 %1591
        %v1595 = vadd.f32 %v1563, %v1590
        %v1596 = vadd.f32 %v1564, %v1592
        %s1597 = sld [smem:[#allocation4 + $0x40]]
        %v1598 = vstv %s1597
        %v1599 = vmul.f32 %v1598, %v1557
        %v1600 = vmul.f32 %v1598, %v1558
        %1603 = vrot.lane.b32.xlu0 %v1599, 127
        %v1604 = vpop.permute.xlu0 %1603
        %1605 = vrot.lane.b32.xlu0 %v1600, 127
        %v1606 = vpop.permute.xlu0 %1605
        %v1609 = vadd.f32 %v1569, %v1604
        %v1610 = vadd.f32 %v1570, %v1606
        %s1611 = sld [smem:[#allocation4 + $0x64]]
        %v1612 = vstv %s1611
        %v1613 = vmul.f32 %v1612, %v1557
        %v1614 = vmul.f32 %v1612, %v1558
        %1617 = vrot.lane.b32.xlu0 %v1613, 127
        %v1618 = vpop.permute.xlu0 %1617
        %1619 = vrot.lane.b32.xlu0 %v1614, 127
        %v1620 = vpop.permute.xlu0 %1619
        %v1623 = vadd.f32 %v1575, %v1618
        %v1624 = vadd.f32 %v1576, %v1620
        %s1625 = sld [smem:[#allocation4 + $0x88]]
        %v1626 = vstv %s1625
        %v1627 = vmul.f32 %v1626, %v1557
        %v1628 = vmul.f32 %v1626, %v1558
        %1631 = vrot.lane.b32.xlu0 %v1627, 127
        %v1632 = vpop.permute.xlu0 %1631
        %1633 = vrot.lane.b32.xlu0 %v1628, 127
        %v1634 = vpop.permute.xlu0 %1633
        %v1637 = vadd.f32 %v1581, %v1632
        %v1638 = vadd.f32 %v1582, %v1634
        %s1639 = sld [smem:[#allocation4 + $0x1d]]
        %v1640 = vstv %s1639
        %v1641 = vmul.f32 %v1640, %v1557
        %v1642 = vmul.f32 %v1640, %v1558
        %1645 = vrot.lane.b32.xlu0 %v1641, 126
        %v1646 = vpop.permute.xlu0 %1645
        %1647 = vrot.lane.b32.xlu0 %v1642, 126
        %v1648 = vpop.permute.xlu0 %1647
        %v1651 = vadd.f32 %v1595, %v1646
        %v1652 = vadd.f32 %v1596, %v1648
        %s1653 = sld [smem:[#allocation4 + $0x41]]
        %v1654 = vstv %s1653
        %v1655 = vmul.f32 %v1654, %v1557
        %v1656 = vmul.f32 %v1654, %v1558
        %1659 = vrot.lane.b32.xlu0 %v1655, 126
        %v1660 = vpop.permute.xlu0 %1659
        %1661 = vrot.lane.b32.xlu0 %v1656, 126
        %v1662 = vpop.permute.xlu0 %1661
        %v1665 = vadd.f32 %v1609, %v1660
        %v1666 = vadd.f32 %v1610, %v1662
        %s1667 = sld [smem:[#allocation4 + $0x65]]
        %v1668 = vstv %s1667
        %v1669 = vmul.f32 %v1668, %v1557
        %v1670 = vmul.f32 %v1668, %v1558
        %1673 = vrot.lane.b32.xlu0 %v1669, 126
        %v1674 = vpop.permute.xlu0 %1673
        %1675 = vrot.lane.b32.xlu0 %v1670, 126
        %v1676 = vpop.permute.xlu0 %1675
        %v1679 = vadd.f32 %v1623, %v1674
        %v1680 = vadd.f32 %v1624, %v1676
        %s1681 = sld [smem:[#allocation4 + $0x89]]
        %v1682 = vstv %s1681
        %v1683 = vmul.f32 %v1682, %v1557
        %v1684 = vmul.f32 %v1682, %v1558
        %1687 = vrot.lane.b32.xlu0 %v1683, 126
        %v1688 = vpop.permute.xlu0 %1687
        %1689 = vrot.lane.b32.xlu0 %v1684, 126
        %v1690 = vpop.permute.xlu0 %1689
        %v1693 = vadd.f32 %v1637, %v1688
        %v1694 = vadd.f32 %v1638, %v1690
        %v1695 = vld [vmem:[%s227 + $0x1] sm:$0xff]
        %v1696 = vld [vmem:[%s227 + $0x9] sm:$0xff]
        %s1697 = sld [smem:[#allocation4 + $0x1e]]
        %v1698 = vstv %s1697
        %v1699 = vmul.f32 %v1698, %v1695
        %v1700 = vmul.f32 %v1698, %v1696
        %v1701 = vadd.f32 %v1651, %v1699
        %v1702 = vadd.f32 %v1652, %v1700
        %s1703 = sld [smem:[#allocation4 + $0x42]]
        %v1704 = vstv %s1703
        %v1705 = vmul.f32 %v1704, %v1695
        %v1706 = vmul.f32 %v1704, %v1696
        %v1707 = vadd.f32 %v1665, %v1705
        %v1708 = vadd.f32 %v1666, %v1706
        %s1709 = sld [smem:[#allocation4 + $0x66]]
        %v1710 = vstv %s1709
        %v1711 = vmul.f32 %v1710, %v1695
        %v1712 = vmul.f32 %v1710, %v1696
        %v1713 = vadd.f32 %v1679, %v1711
        %v1714 = vadd.f32 %v1680, %v1712
        %s1715 = sld [smem:[#allocation4 + $0x8a]]
        %v1716 = vstv %s1715
        %v1717 = vmul.f32 %v1716, %v1695
        %v1718 = vmul.f32 %v1716, %v1696
        %v1719 = vadd.f32 %v1693, %v1717
        %v1720 = vadd.f32 %v1694, %v1718
        %s1721 = sld [smem:[#allocation4 + $0x1f]]
        %v1722 = vstv %s1721
        %v1723 = vmul.f32 %v1722, %v1695
        %v1724 = vmul.f32 %v1722, %v1696
        %1727 = vrot.lane.b32.xlu0 %v1723, 127
        %v1728 = vpop.permute.xlu0 %1727
        %1729 = vrot.lane.b32.xlu0 %v1724, 127
        %v1730 = vpop.permute.xlu0 %1729
        %v1733 = vadd.f32 %v1701, %v1728
        %v1734 = vadd.f32 %v1702, %v1730
        %s1735 = sld [smem:[#allocation4 + $0x43]]
        %v1736 = vstv %s1735
        %v1737 = vmul.f32 %v1736, %v1695
        %v1738 = vmul.f32 %v1736, %v1696
        %1741 = vrot.lane.b32.xlu0 %v1737, 127
        %v1742 = vpop.permute.xlu0 %1741
        %1743 = vrot.lane.b32.xlu0 %v1738, 127
        %v1744 = vpop.permute.xlu0 %1743
        %v1747 = vadd.f32 %v1707, %v1742
        %v1748 = vadd.f32 %v1708, %v1744
        %s1749 = sld [smem:[#allocation4 + $0x67]]
        %v1750 = vstv %s1749
        %v1751 = vmul.f32 %v1750, %v1695
        %v1752 = vmul.f32 %v1750, %v1696
        %1755 = vrot.lane.b32.xlu0 %v1751, 127
        %v1756 = vpop.permute.xlu0 %1755
        %1757 = vrot.lane.b32.xlu0 %v1752, 127
        %v1758 = vpop.permute.xlu0 %1757
        %v1761 = vadd.f32 %v1713, %v1756
        %v1762 = vadd.f32 %v1714, %v1758
        %s1763 = sld [smem:[#allocation4 + $0x8b]]
        %v1764 = vstv %s1763
        %v1765 = vmul.f32 %v1764, %v1695
        %v1766 = vmul.f32 %v1764, %v1696
        %1769 = vrot.lane.b32.xlu0 %v1765, 127
        %v1770 = vpop.permute.xlu0 %1769
        %1771 = vrot.lane.b32.xlu0 %v1766, 127
        %v1772 = vpop.permute.xlu0 %1771
        %v1775 = vadd.f32 %v1719, %v1770
        %v1776 = vadd.f32 %v1720, %v1772
        %s1777 = sld [smem:[#allocation4 + $0x20]]
        %v1778 = vstv %s1777
        %v1779 = vmul.f32 %v1778, %v1695
        %v1780 = vmul.f32 %v1778, %v1696
        %1783 = vrot.lane.b32.xlu0 %v1779, 126
        %v1784 = vpop.permute.xlu0 %1783
        %1785 = vrot.lane.b32.xlu0 %v1780, 126
        %v1786 = vpop.permute.xlu0 %1785
        %v1789 = vadd.f32 %v1733, %v1784
        %v1790 = vadd.f32 %v1734, %v1786
        %s1791 = sld [smem:[#allocation4 + $0x44]]
        %v1792 = vstv %s1791
        %v1793 = vmul.f32 %v1792, %v1695
        %v1794 = vmul.f32 %v1792, %v1696
        %1797 = vrot.lane.b32.xlu0 %v1793, 126
        %v1798 = vpop.permute.xlu0 %1797
        %1799 = vrot.lane.b32.xlu0 %v1794, 126
        %v1800 = vpop.permute.xlu0 %1799
        %v1803 = vadd.f32 %v1747, %v1798
        %v1804 = vadd.f32 %v1748, %v1800
        %s1805 = sld [smem:[#allocation4 + $0x68]]
        %v1806 = vstv %s1805
        %v1807 = vmul.f32 %v1806, %v1695
        %v1808 = vmul.f32 %v1806, %v1696
        %1811 = vrot.lane.b32.xlu0 %v1807, 126
        %v1812 = vpop.permute.xlu0 %1811
        %1813 = vrot.lane.b32.xlu0 %v1808, 126
        %v1814 = vpop.permute.xlu0 %1813
        %v1817 = vadd.f32 %v1761, %v1812
        %v1818 = vadd.f32 %v1762, %v1814
        %s1819 = sld [smem:[#allocation4 + $0x8c]]
        %v1820 = vstv %s1819
        %v1821 = vmul.f32 %v1820, %v1695
        %v1822 = vmul.f32 %v1820, %v1696
        %1825 = vrot.lane.b32.xlu0 %v1821, 126
        %v1826 = vpop.permute.xlu0 %1825
        %1827 = vrot.lane.b32.xlu0 %v1822, 126
        %v1828 = vpop.permute.xlu0 %1827
        %v1831 = vadd.f32 %v1775, %v1826
        %v1832 = vadd.f32 %v1776, %v1828
        %v1833 = vld [vmem:[%s227 + $0x2] sm:$0xff]
        %v1834 = vld [vmem:[%s227 + $0xa] sm:$0xff]
        %s1835 = sld [smem:[#allocation4 + $0x21]]
        %v1836 = vstv %s1835
        %v1837 = vmul.f32 %v1836, %v1833
        %v1838 = vmul.f32 %v1836, %v1834
        %v1839 = vadd.f32 %v1789, %v1837
        %v1840 = vadd.f32 %v1790, %v1838
        %s1841 = sld [smem:[#allocation4 + $0x45]]
        %v1842 = vstv %s1841
        %v1843 = vmul.f32 %v1842, %v1833
        %v1844 = vmul.f32 %v1842, %v1834
        %v1845 = vadd.f32 %v1803, %v1843
        %v1846 = vadd.f32 %v1804, %v1844
        %s1847 = sld [smem:[#allocation4 + $0x69]]
        %v1848 = vstv %s1847
        %v1849 = vmul.f32 %v1848, %v1833
        %v1850 = vmul.f32 %v1848, %v1834
        %v1851 = vadd.f32 %v1817, %v1849
        %v1852 = vadd.f32 %v1818, %v1850
        %s1853 = sld [smem:[#allocation4 + $0x8d]]
        %v1854 = vstv %s1853
        %v1855 = vmul.f32 %v1854, %v1833
        %v1856 = vmul.f32 %v1854, %v1834
        %v1857 = vadd.f32 %v1831, %v1855
        %v1858 = vadd.f32 %v1832, %v1856
        %s1859 = sld [smem:[#allocation4 + $0x22]]
        %v1860 = vstv %s1859
        %v1861 = vmul.f32 %v1860, %v1833
        %v1862 = vmul.f32 %v1860, %v1834
        %1865 = vrot.lane.b32.xlu0 %v1861, 127
        %v1866 = vpop.permute.xlu0 %1865
        %1867 = vrot.lane.b32.xlu0 %v1862, 127
        %v1868 = vpop.permute.xlu0 %1867
        %v1871 = vadd.f32 %v1839, %v1866
        %v1872 = vadd.f32 %v1840, %v1868
        %s1873 = sld [smem:[#allocation4 + $0x46]]
        %v1874 = vstv %s1873
        %v1875 = vmul.f32 %v1874, %v1833
        %v1876 = vmul.f32 %v1874, %v1834
        %1879 = vrot.lane.b32.xlu0 %v1875, 127
        %v1880 = vpop.permute.xlu0 %1879
        %1881 = vrot.lane.b32.xlu0 %v1876, 127
        %v1882 = vpop.permute.xlu0 %1881
        %v1885 = vadd.f32 %v1845, %v1880
        %v1886 = vadd.f32 %v1846, %v1882
        %s1887 = sld [smem:[#allocation4 + $0x6a]]
        %v1888 = vstv %s1887
        %v1889 = vmul.f32 %v1888, %v1833
        %v1890 = vmul.f32 %v1888, %v1834
        %1893 = vrot.lane.b32.xlu0 %v1889, 127
        %v1894 = vpop.permute.xlu0 %1893
        %1895 = vrot.lane.b32.xlu0 %v1890, 127
        %v1896 = vpop.permute.xlu0 %1895
        %v1899 = vadd.f32 %v1851, %v1894
        %v1900 = vadd.f32 %v1852, %v1896
        %s1901 = sld [smem:[#allocation4 + $0x8e]]
        %v1902 = vstv %s1901
        %v1903 = vmul.f32 %v1902, %v1833
        %v1904 = vmul.f32 %v1902, %v1834
        %1907 = vrot.lane.b32.xlu0 %v1903, 127
        %v1908 = vpop.permute.xlu0 %1907
        %1909 = vrot.lane.b32.xlu0 %v1904, 127
        %v1910 = vpop.permute.xlu0 %1909
        %v1913 = vadd.f32 %v1857, %v1908
        %v1914 = vadd.f32 %v1858, %v1910
        %s1915 = sld [smem:[#allocation4 + $0x23]]
        %v1916 = vstv %s1915
        %v1917 = vmul.f32 %v1916, %v1833
        %v1918 = vmul.f32 %v1916, %v1834
        %1921 = vrot.lane.b32.xlu0 %v1917, 126
        %v1922 = vpop.permute.xlu0 %1921
        %1923 = vrot.lane.b32.xlu0 %v1918, 126
        %v1924 = vpop.permute.xlu0 %1923
        %v1927 = vadd.f32 %v1871, %v1922
        %v1928 = vadd.f32 %v1872, %v1924
        %s1929 = sld [smem:[#allocation4 + $0x47]]
        %v1930 = vstv %s1929
        %v1931 = vmul.f32 %v1930, %v1833
        %v1932 = vmul.f32 %v1930, %v1834
        %1935 = vrot.lane.b32.xlu0 %v1931, 126
        %v1936 = vpop.permute.xlu0 %1935
        %1937 = vrot.lane.b32.xlu0 %v1932, 126
        %v1938 = vpop.permute.xlu0 %1937
        %v1941 = vadd.f32 %v1885, %v1936
        %v1942 = vadd.f32 %v1886, %v1938
        %s1943 = sld [smem:[#allocation4 + $0x6b]]
        %v1944 = vstv %s1943
        %v1945 = vmul.f32 %v1944, %v1833
        %v1946 = vmul.f32 %v1944, %v1834
        %1949 = vrot.lane.b32.xlu0 %v1945, 126
        %v1950 = vpop.permute.xlu0 %1949
        %1951 = vrot.lane.b32.xlu0 %v1946, 126
        %v1952 = vpop.permute.xlu0 %1951
        %v1955 = vadd.f32 %v1899, %v1950
        %v1956 = vadd.f32 %v1900, %v1952
        %s1957 = sld [smem:[#allocation4 + $0x8f]]
        %v1958 = vstv %s1957
        %v1959 = vmul.f32 %v1958, %v1833
        %v1960 = vmul.f32 %v1958, %v1834
        %1963 = vrot.lane.b32.xlu0 %v1959, 126
        %v1964 = vpop.permute.xlu0 %1963
        %1965 = vrot.lane.b32.xlu0 %v1960, 126
        %v1966 = vpop.permute.xlu0 %1965
        %v1969 = vadd.f32 %v1913, %v1964
        %v1970 = vadd.f32 %v1914, %v1966
        %s1971 = sld [smem:[#allocation7]]
        %v1972 = vstv %s1971
        %v1973 = vadd.f32 %v1927, %v1972
        %v1974 = vadd.f32 %v1928, %v1972
        %s1975 = sld [smem:[#allocation7 + $0x1]]
        %v1976 = vstv %s1975
        %v1977 = vadd.f32 %v1941, %v1976
        %v1978 = vadd.f32 %v1942, %v1976
        %s1979 = sld [smem:[#allocation7 + $0x2]]
        %v1980 = vstv %s1979
        %v1981 = vadd.f32 %v1955, %v1980
        %v1982 = vadd.f32 %v1956, %v1980
        %s1983 = sld [smem:[#allocation7 + $0x3]]
        %v1984 = vstv %s1983
        %v1985 = vadd.f32 %v1969, %v1984
        %v1986 = vadd.f32 %v1970, %v1984
        %1989 = vrot.lane.b32.xlu0 %v1973, 1
        %v1990 = vpop.permute.xlu0 %1989
        %1991 = vrot.lane.b32.xlu0 %v1974, 1
        %v1992 = vpop.permute.xlu0 %1991
        %1995 = vst.msk [vmem:[#allocation3 + $0x1] sm:$0xff] %vm281, %v1990
        %1996 = vst.msk [vmem:[#allocation3 + $0x9] sm:$0xff] %vm281, %v1992
        %1999 = vrot.lane.b32.xlu0 %v1977, 1
        %v2000 = vpop.permute.xlu0 %1999
        %2001 = vrot.lane.b32.xlu0 %v1978, 1
        %v2002 = vpop.permute.xlu0 %2001
        %2005 = vst.msk [vmem:[%s244 + $0x1] sm:$0xff] %vm281, %v2000
        %2006 = vst.msk [vmem:[%s244 + $0x9] sm:$0xff] %vm281, %v2002
        %2009 = vrot.lane.b32.xlu0 %v1981, 1
        %v2010 = vpop.permute.xlu0 %2009
        %2011 = vrot.lane.b32.xlu0 %v1982, 1
        %v2012 = vpop.permute.xlu0 %2011
        %2015 = vst.msk [vmem:[%s253 + $0x1] sm:$0xff] %vm281, %v2010
        %2016 = vst.msk [vmem:[%s253 + $0x9] sm:$0xff] %vm281, %v2012
        %2019 = vrot.lane.b32.xlu0 %v1985, 1
        %v2020 = vpop.permute.xlu0 %2019
        %2021 = vrot.lane.b32.xlu0 %v1986, 1
        %v2022 = vpop.permute.xlu0 %2021
        %2025 = vst.msk [vmem:[%s262 + $0x1] sm:$0xff] %vm281, %v2020
        %2026 = vst.msk [vmem:[%s262 + $0x9] sm:$0xff] %vm281, %v2022
        %v2027 = vld [vmem:[#allocation3] sm:$0xff]
        %v2028 = vld [vmem:[#allocation3 + $0x8] sm:$0xff]
        %s2029 = sld [smem:[#allocation4 + $0x90]]
        %v2030 = vstv %s2029
        %v2031 = vmul.f32 %v2030, %v2027
        %v2032 = vmul.f32 %v2030, %v2028
        %s2033 = sld [smem:[#allocation4 + $0xb4]]
        %v2034 = vstv %s2033
        %v2035 = vmul.f32 %v2034, %v2027
        %v2036 = vmul.f32 %v2034, %v2028
        %s2037 = sld [smem:[#allocation4 + $0xd8]]
        %v2038 = vstv %s2037
        %v2039 = vmul.f32 %v2038, %v2027
        %v2040 = vmul.f32 %v2038, %v2028
        %s2041 = sld [smem:[#allocation4 + $0xfc]]
        %v2042 = vstv %s2041
        %v2043 = vmul.f32 %v2042, %v2027
        %v2044 = vmul.f32 %v2042, %v2028
        %s2045 = sld [smem:[#allocation4 + $0x91]]
        %v2046 = vstv %s2045
        %v2047 = vmul.f32 %v2046, %v2027
        %v2048 = vmul.f32 %v2046, %v2028
        %2051 = vrot.lane.b32.xlu0 %v2047, 127
        %v2052 = vpop.permute.xlu0 %2051
        %2053 = vrot.lane.b32.xlu0 %v2048, 127
        %v2054 = vpop.permute.xlu0 %2053
        %v2057 = vadd.f32 %v2031, %v2052
        %v2058 = vadd.f32 %v2032, %v2054
        %s2059 = sld [smem:[#allocation4 + $0xb5]]
        %v2060 = vstv %s2059
        %v2061 = vmul.f32 %v2060, %v2027
        %v2062 = vmul.f32 %v2060, %v2028
        %2065 = vrot.lane.b32.xlu0 %v2061, 127
        %v2066 = vpop.permute.xlu0 %2065
        %2067 = vrot.lane.b32.xlu0 %v2062, 127
        %v2068 = vpop.permute.xlu0 %2067
        %v2071 = vadd.f32 %v2035, %v2066
        %v2072 = vadd.f32 %v2036, %v2068
        %s2073 = sld [smem:[#allocation4 + $0xd9]]
        %v2074 = vstv %s2073
        %v2075 = vmul.f32 %v2074, %v2027
        %v2076 = vmul.f32 %v2074, %v2028
        %2079 = vrot.lane.b32.xlu0 %v2075, 127
        %v2080 = vpop.permute.xlu0 %2079
        %2081 = vrot.lane.b32.xlu0 %v2076, 127
        %v2082 = vpop.permute.xlu0 %2081
        %v2085 = vadd.f32 %v2039, %v2080
        %v2086 = vadd.f32 %v2040, %v2082
        %s2087 = sld [smem:[#allocation4 + $0xfd]]
        %v2088 = vstv %s2087
        %v2089 = vmul.f32 %v2088, %v2027
        %v2090 = vmul.f32 %v2088, %v2028
        %2093 = vrot.lane.b32.xlu0 %v2089, 127
        %v2094 = vpop.permute.xlu0 %2093
        %2095 = vrot.lane.b32.xlu0 %v2090, 127
        %v2096 = vpop.permute.xlu0 %2095
        %v2099 = vadd.f32 %v2043, %v2094
        %v2100 = vadd.f32 %v2044, %v2096
        %s2101 = sld [smem:[#allocation4 + $0x92]]
        %v2102 = vstv %s2101
        %v2103 = vmul.f32 %v2102, %v2027
        %v2104 = vmul.f32 %v2102, %v2028
        %2107 = vrot.lane.b32.xlu0 %v2103, 126
        %v2108 = vpop.permute.xlu0 %2107
        %2109 = vrot.lane.b32.xlu0 %v2104, 126
        %v2110 = vpop.permute.xlu0 %2109
        %v2113 = vadd.f32 %v2057, %v2108
        %v2114 = vadd.f32 %v2058, %v2110
        %s2115 = sld [smem:[#allocation4 + $0xb6]]
        %v2116 = vstv %s2115
        %v2117 = vmul.f32 %v2116, %v2027
        %v2118 = vmul.f32 %v2116, %v2028
        %2121 = vrot.lane.b32.xlu0 %v2117, 126
        %v2122 = vpop.permute.xlu0 %2121
        %2123 = vrot.lane.b32.xlu0 %v2118, 126
        %v2124 = vpop.permute.xlu0 %2123
        %v2127 = vadd.f32 %v2071, %v2122
        %v2128 = vadd.f32 %v2072, %v2124
        %s2129 = sld [smem:[#allocation4 + $0xda]]
        %v2130 = vstv %s2129
        %v2131 = vmul.f32 %v2130, %v2027
        %v2132 = vmul.f32 %v2130, %v2028
        %2135 = vrot.lane.b32.xlu0 %v2131, 126
        %v2136 = vpop.permute.xlu0 %2135
        %2137 = vrot.lane.b32.xlu0 %v2132, 126
        %v2138 = vpop.permute.xlu0 %2137
        %v2141 = vadd.f32 %v2085, %v2136
        %v2142 = vadd.f32 %v2086, %v2138
        %s2143 = sld [smem:[#allocation4 + $0xfe]]
        %v2144 = vstv %s2143
        %v2145 = vmul.f32 %v2144, %v2027
        %v2146 = vmul.f32 %v2144, %v2028
        %2149 = vrot.lane.b32.xlu0 %v2145, 126
        %v2150 = vpop.permute.xlu0 %2149
        %2151 = vrot.lane.b32.xlu0 %v2146, 126
        %v2152 = vpop.permute.xlu0 %2151
        %v2155 = vadd.f32 %v2099, %v2150
        %v2156 = vadd.f32 %v2100, %v2152
        %v2157 = vld [vmem:[#allocation3 + $0x1] sm:$0xff]
        %v2158 = vld [vmem:[#allocation3 + $0x9] sm:$0xff]
        %s2159 = sld [smem:[#allocation4 + $0x93]]
        %v2160 = vstv %s2159
        %v2161 = vmul.f32 %v2160, %v2157
        %v2162 = vmul.f32 %v2160, %v2158
        %v2163 = vadd.f32 %v2113, %v2161
        %v2164 = vadd.f32 %v2114, %v2162
        %s2165 = sld [smem:[#allocation4 + $0xb7]]
        %v2166 = vstv %s2165
        %v2167 = vmul.f32 %v2166, %v2157
        %v2168 = vmul.f32 %v2166, %v2158
        %v2169 = vadd.f32 %v2127, %v2167
        %v2170 = vadd.f32 %v2128, %v2168
        %s2171 = sld [smem:[#allocation4 + $0xdb]]
        %v2172 = vstv %s2171
        %v2173 = vmul.f32 %v2172, %v2157
        %v2174 = vmul.f32 %v2172, %v2158
        %v2175 = vadd.f32 %v2141, %v2173
        %v2176 = vadd.f32 %v2142, %v2174
        %s2177 = sld [smem:[#allocation4 + $0xff]]
        %v2178 = vstv %s2177
        %v2179 = vmul.f32 %v2178, %v2157
        %v2180 = vmul.f32 %v2178, %v2158
        %v2181 = vadd.f32 %v2155, %v2179
        %v2182 = vadd.f32 %v2156, %v2180
        %s2183 = sld [smem:[#allocation4 + $0x94]]
        %v2184 = vstv %s2183
        %v2185 = vmul.f32 %v2184, %v2157
        %v2186 = vmul.f32 %v2184, %v2158
        %2189 = vrot.lane.b32.xlu0 %v2185, 127
        %v2190 = vpop.permute.xlu0 %2189
        %2191 = vrot.lane.b32.xlu0 %v2186, 127
        %v2192 = vpop.permute.xlu0 %2191
        %v2195 = vadd.f32 %v2163, %v2190
        %v2196 = vadd.f32 %v2164, %v2192
        %s2197 = sld [smem:[#allocation4 + $0xb8]]
        %v2198 = vstv %s2197
        %v2199 = vmul.f32 %v2198, %v2157
        %v2200 = vmul.f32 %v2198, %v2158
        %2203 = vrot.lane.b32.xlu0 %v2199, 127
        %v2204 = vpop.permute.xlu0 %2203
        %2205 = vrot.lane.b32.xlu0 %v2200, 127
        %v2206 = vpop.permute.xlu0 %2205
        %v2209 = vadd.f32 %v2169, %v2204
        %v2210 = vadd.f32 %v2170, %v2206
        %s2211 = sld [smem:[#allocation4 + $0xdc]]
        %v2212 = vstv %s2211
        %v2213 = vmul.f32 %v2212, %v2157
        %v2214 = vmul.f32 %v2212, %v2158
        %2217 = vrot.lane.b32.xlu0 %v2213, 127
        %v2218 = vpop.permute.xlu0 %2217
        %2219 = vrot.lane.b32.xlu0 %v2214, 127
        %v2220 = vpop.permute.xlu0 %2219
        %v2223 = vadd.f32 %v2175, %v2218
        %v2224 = vadd.f32 %v2176, %v2220
        %s2225 = sld [smem:[#allocation4 + $0x100]]
        %v2226 = vstv %s2225
        %v2227 = vmul.f32 %v2226, %v2157
        %v2228 = vmul.f32 %v2226, %v2158
        %2231 = vrot.lane.b32.xlu0 %v2227, 127
        %v2232 = vpop.permute.xlu0 %2231
        %2233 = vrot.lane.b32.xlu0 %v2228, 127
        %v2234 = vpop.permute.xlu0 %2233
        %v2237 = vadd.f32 %v2181, %v2232
        %v2238 = vadd.f32 %v2182, %v2234
        %s2239 = sld [smem:[#allocation4 + $0x95]]
        %v2240 = vstv %s2239
        %v2241 = vmul.f32 %v2240, %v2157
        %v2242 = vmul.f32 %v2240, %v2158
        %2245 = vrot.lane.b32.xlu0 %v2241, 126
        %v2246 = vpop.permute.xlu0 %2245
        %2247 = vrot.lane.b32.xlu0 %v2242, 126
        %v2248 = vpop.permute.xlu0 %2247
        %v2251 = vadd.f32 %v2195, %v2246
        %v2252 = vadd.f32 %v2196, %v2248
        %s2253 = sld [smem:[#allocation4 + $0xb9]]
        %v2254 = vstv %s2253
        %v2255 = vmul.f32 %v2254, %v2157
        %v2256 = vmul.f32 %v2254, %v2158
        %2259 = vrot.lane.b32.xlu0 %v2255, 126
        %v2260 = vpop.permute.xlu0 %2259
        %2261 = vrot.lane.b32.xlu0 %v2256, 126
        %v2262 = vpop.permute.xlu0 %2261
        %v2265 = vadd.f32 %v2209, %v2260
        %v2266 = vadd.f32 %v2210, %v2262
        %s2267 = sld [smem:[#allocation4 + $0xdd]]
        %v2268 = vstv %s2267
        %v2269 = vmul.f32 %v2268, %v2157
        %v2270 = vmul.f32 %v2268, %v2158
        %2273 = vrot.lane.b32.xlu0 %v2269, 126
        %v2274 = vpop.permute.xlu0 %2273
        %2275 = vrot.lane.b32.xlu0 %v2270, 126
        %v2276 = vpop.permute.xlu0 %2275
        %v2279 = vadd.f32 %v2223, %v2274
        %v2280 = vadd.f32 %v2224, %v2276
        %s2281 = sld [smem:[#allocation4 + $0x101]]
        %v2282 = vstv %s2281
        %v2283 = vmul.f32 %v2282, %v2157
        %v2284 = vmul.f32 %v2282, %v2158
        %2287 = vrot.lane.b32.xlu0 %v2283, 126
        %v2288 = vpop.permute.xlu0 %2287
        %2289 = vrot.lane.b32.xlu0 %v2284, 126
        %v2290 = vpop.permute.xlu0 %2289
        %v2293 = vadd.f32 %v2237, %v2288
        %v2294 = vadd.f32 %v2238, %v2290
        %v2295 = vld [vmem:[#allocation3 + $0x2] sm:$0xff]
        %v2296 = vld [vmem:[#allocation3 + $0xa] sm:$0xff]
        %s2297 = sld [smem:[#allocation4 + $0x96]]
        %v2298 = vstv %s2297
        %v2299 = vmul.f32 %v2298, %v2295
        %v2300 = vmul.f32 %v2298, %v2296
        %v2301 = vadd.f32 %v2251, %v2299
        %v2302 = vadd.f32 %v2252, %v2300
        %s2303 = sld [smem:[#allocation4 + $0xba]]
        %v2304 = vstv %s2303
        %v2305 = vmul.f32 %v2304, %v2295
        %v2306 = vmul.f32 %v2304, %v2296
        %v2307 = vadd.f32 %v2265, %v2305
        %v2308 = vadd.f32 %v2266, %v2306
        %s2309 = sld [smem:[#allocation4 + $0xde]]
        %v2310 = vstv %s2309
        %v2311 = vmul.f32 %v2310, %v2295
        %v2312 = vmul.f32 %v2310, %v2296
        %v2313 = vadd.f32 %v2279, %v2311
        %v2314 = vadd.f32 %v2280, %v2312
        %s2315 = sld [smem:[#allocation4 + $0x102]]
        %v2316 = vstv %s2315
        %v2317 = vmul.f32 %v2316, %v2295
        %v2318 = vmul.f32 %v2316, %v2296
        %v2319 = vadd.f32 %v2293, %v2317
        %v2320 = vadd.f32 %v2294, %v2318
        %s2321 = sld [smem:[#allocation4 + $0x97]]
        %v2322 = vstv %s2321
        %v2323 = vmul.f32 %v2322, %v2295
        %v2324 = vmul.f32 %v2322, %v2296
        %2327 = vrot.lane.b32.xlu0 %v2323, 127
        %v2328 = vpop.permute.xlu0 %2327
        %2329 = vrot.lane.b32.xlu0 %v2324, 127
        %v2330 = vpop.permute.xlu0 %2329
        %v2333 = vadd.f32 %v2301, %v2328
        %v2334 = vadd.f32 %v2302, %v2330
        %s2335 = sld [smem:[#allocation4 + $0xbb]]
        %v2336 = vstv %s2335
        %v2337 = vmul.f32 %v2336, %v2295
        %v2338 = vmul.f32 %v2336, %v2296
        %2341 = vrot.lane.b32.xlu0 %v2337, 127
        %v2342 = vpop.permute.xlu0 %2341
        %2343 = vrot.lane.b32.xlu0 %v2338, 127
        %v2344 = vpop.permute.xlu0 %2343
        %v2347 = vadd.f32 %v2307, %v2342
        %v2348 = vadd.f32 %v2308, %v2344
        %s2349 = sld [smem:[#allocation4 + $0xdf]]
        %v2350 = vstv %s2349
        %v2351 = vmul.f32 %v2350, %v2295
        %v2352 = vmul.f32 %v2350, %v2296
        %2355 = vrot.lane.b32.xlu0 %v2351, 127
        %v2356 = vpop.permute.xlu0 %2355
        %2357 = vrot.lane.b32.xlu0 %v2352, 127
        %v2358 = vpop.permute.xlu0 %2357
        %v2361 = vadd.f32 %v2313, %v2356
        %v2362 = vadd.f32 %v2314, %v2358
        %s2363 = sld [smem:[#allocation4 + $0x103]]
        %v2364 = vstv %s2363
        %v2365 = vmul.f32 %v2364, %v2295
        %v2366 = vmul.f32 %v2364, %v2296
        %2369 = vrot.lane.b32.xlu0 %v2365, 127
        %v2370 = vpop.permute.xlu0 %2369
        %2371 = vrot.lane.b32.xlu0 %v2366, 127
        %v2372 = vpop.permute.xlu0 %2371
        %v2375 = vadd.f32 %v2319, %v2370
        %v2376 = vadd.f32 %v2320, %v2372
        %s2377 = sld [smem:[#allocation4 + $0x98]]
        %v2378 = vstv %s2377
        %v2379 = vmul.f32 %v2378, %v2295
        %v2380 = vmul.f32 %v2378, %v2296
        %2383 = vrot.lane.b32.xlu0 %v2379, 126
        %v2384 = vpop.permute.xlu0 %2383
        %2385 = vrot.lane.b32.xlu0 %v2380, 126
        %v2386 = vpop.permute.xlu0 %2385
        %v2389 = vadd.f32 %v2333, %v2384
        %v2390 = vadd.f32 %v2334, %v2386
        %s2391 = sld [smem:[#allocation4 + $0xbc]]
        %v2392 = vstv %s2391
        %v2393 = vmul.f32 %v2392, %v2295
        %v2394 = vmul.f32 %v2392, %v2296
        %2397 = vrot.lane.b32.xlu0 %v2393, 126
        %v2398 = vpop.permute.xlu0 %2397
        %2399 = vrot.lane.b32.xlu0 %v2394, 126
        %v2400 = vpop.permute.xlu0 %2399
        %v2403 = vadd.f32 %v2347, %v2398
        %v2404 = vadd.f32 %v2348, %v2400
        %s2405 = sld [smem:[#allocation4 + $0xe0]]
        %v2406 = vstv %s2405
        %v2407 = vmul.f32 %v2406, %v2295
        %v2408 = vmul.f32 %v2406, %v2296
        %2411 = vrot.lane.b32.xlu0 %v2407, 126
        %v2412 = vpop.permute.xlu0 %2411
        %2413 = vrot.lane.b32.xlu0 %v2408, 126
        %v2414 = vpop.permute.xlu0 %2413
        %v2417 = vadd.f32 %v2361, %v2412
        %v2418 = vadd.f32 %v2362, %v2414
        %s2419 = sld [smem:[#allocation4 + $0x104]]
        %v2420 = vstv %s2419
        %v2421 = vmul.f32 %v2420, %v2295
        %v2422 = vmul.f32 %v2420, %v2296
        %2425 = vrot.lane.b32.xlu0 %v2421, 126
        %v2426 = vpop.permute.xlu0 %2425
        %2427 = vrot.lane.b32.xlu0 %v2422, 126
        %v2428 = vpop.permute.xlu0 %2427
        %v2431 = vadd.f32 %v2375, %v2426
        %v2432 = vadd.f32 %v2376, %v2428
        %v2433 = vld [vmem:[%s244] sm:$0xff]
        %v2434 = vld [vmem:[%s244 + $0x8] sm:$0xff]
        %s2435 = sld [smem:[#allocation4 + $0x99]]
        %v2436 = vstv %s2435
        %v2437 = vmul.f32 %v2436, %v2433
        %v2438 = vmul.f32 %v2436, %v2434
        %v2439 = vadd.f32 %v2389, %v2437
        %v2440 = vadd.f32 %v2390, %v2438
        %s2441 = sld [smem:[#allocation4 + $0xbd]]
        %v2442 = vstv %s2441
        %v2443 = vmul.f32 %v2442, %v2433
        %v2444 = vmul.f32 %v2442, %v2434
        %v2445 = vadd.f32 %v2403, %v2443
        %v2446 = vadd.f32 %v2404, %v2444
        %s2447 = sld [smem:[#allocation4 + $0xe1]]
        %v2448 = vstv %s2447
        %v2449 = vmul.f32 %v2448, %v2433
        %v2450 = vmul.f32 %v2448, %v2434
        %v2451 = vadd.f32 %v2417, %v2449
        %v2452 = vadd.f32 %v2418, %v2450
        %s2453 = sld [smem:[#allocation4 + $0x105]]
        %v2454 = vstv %s2453
        %v2455 = vmul.f32 %v2454, %v2433
        %v2456 = vmul.f32 %v2454, %v2434
        %v2457 = vadd.f32 %v2431, %v2455
        %v2458 = vadd.f32 %v2432, %v2456
        %s2459 = sld [smem:[#allocation4 + $0x9a]]
        %v2460 = vstv %s2459
        %v2461 = vmul.f32 %v2460, %v2433
        %v2462 = vmul.f32 %v2460, %v2434
        %2465 = vrot.lane.b32.xlu0 %v2461, 127
        %v2466 = vpop.permute.xlu0 %2465
        %2467 = vrot.lane.b32.xlu0 %v2462, 127
        %v2468 = vpop.permute.xlu0 %2467
        %v2471 = vadd.f32 %v2439, %v2466
        %v2472 = vadd.f32 %v2440, %v2468
        %s2473 = sld [smem:[#allocation4 + $0xbe]]
        %v2474 = vstv %s2473
        %v2475 = vmul.f32 %v2474, %v2433
        %v2476 = vmul.f32 %v2474, %v2434
        %2479 = vrot.lane.b32.xlu0 %v2475, 127
        %v2480 = vpop.permute.xlu0 %2479
        %2481 = vrot.lane.b32.xlu0 %v2476, 127
        %v2482 = vpop.permute.xlu0 %2481
        %v2485 = vadd.f32 %v2445, %v2480
        %v2486 = vadd.f32 %v2446, %v2482
        %s2487 = sld [smem:[#allocation4 + $0xe2]]
        %v2488 = vstv %s2487
        %v2489 = vmul.f32 %v2488, %v2433
        %v2490 = vmul.f32 %v2488, %v2434
        %2493 = vrot.lane.b32.xlu0 %v2489, 127
        %v2494 = vpop.permute.xlu0 %2493
        %2495 = vrot.lane.b32.xlu0 %v2490, 127
        %v2496 = vpop.permute.xlu0 %2495
        %v2499 = vadd.f32 %v2451, %v2494
        %v2500 = vadd.f32 %v2452, %v2496
        %s2501 = sld [smem:[#allocation4 + $0x106]]
        %v2502 = vstv %s2501
        %v2503 = vmul.f32 %v2502, %v2433
        %v2504 = vmul.f32 %v2502, %v2434
        %2507 = vrot.lane.b32.xlu0 %v2503, 127
        %v2508 = vpop.permute.xlu0 %2507
        %2509 = vrot.lane.b32.xlu0 %v2504, 127
        %v2510 = vpop.permute.xlu0 %2509
        %v2513 = vadd.f32 %v2457, %v2508
        %v2514 = vadd.f32 %v2458, %v2510
        %s2515 = sld [smem:[#allocation4 + $0x9b]]
        %v2516 = vstv %s2515
        %v2517 = vmul.f32 %v2516, %v2433
        %v2518 = vmul.f32 %v2516, %v2434
        %2521 = vrot.lane.b32.xlu0 %v2517, 126
        %v2522 = vpop.permute.xlu0 %2521
        %2523 = vrot.lane.b32.xlu0 %v2518, 126
        %v2524 = vpop.permute.xlu0 %2523
        %v2527 = vadd.f32 %v2471, %v2522
        %v2528 = vadd.f32 %v2472, %v2524
        %s2529 = sld [smem:[#allocation4 + $0xbf]]
        %v2530 = vstv %s2529
        %v2531 = vmul.f32 %v2530, %v2433
        %v2532 = vmul.f32 %v2530, %v2434
        %2535 = vrot.lane.b32.xlu0 %v2531, 126
        %v2536 = vpop.permute.xlu0 %2535
        %2537 = vrot.lane.b32.xlu0 %v2532, 126
        %v2538 = vpop.permute.xlu0 %2537
        %v2541 = vadd.f32 %v2485, %v2536
        %v2542 = vadd.f32 %v2486, %v2538
        %s2543 = sld [smem:[#allocation4 + $0xe3]]
        %v2544 = vstv %s2543
        %v2545 = vmul.f32 %v2544, %v2433
        %v2546 = vmul.f32 %v2544, %v2434
        %2549 = vrot.lane.b32.xlu0 %v2545, 126
        %v2550 = vpop.permute.xlu0 %2549
        %2551 = vrot.lane.b32.xlu0 %v2546, 126
        %v2552 = vpop.permute.xlu0 %2551
        %v2555 = vadd.f32 %v2499, %v2550
        %v2556 = vadd.f32 %v2500, %v2552
        %s2557 = sld [smem:[#allocation4 + $0x107]]
        %v2558 = vstv %s2557
        %v2559 = vmul.f32 %v2558, %v2433
        %v2560 = vmul.f32 %v2558, %v2434
        %2563 = vrot.lane.b32.xlu0 %v2559, 126
        %v2564 = vpop.permute.xlu0 %2563
        %2565 = vrot.lane.b32.xlu0 %v2560, 126
        %v2566 = vpop.permute.xlu0 %2565
        %v2569 = vadd.f32 %v2513, %v2564
        %v2570 = vadd.f32 %v2514, %v2566
        %v2571 = vld [vmem:[%s244 + $0x1] sm:$0xff]
        %v2572 = vld [vmem:[%s244 + $0x9] sm:$0xff]
        %s2573 = sld [smem:[#allocation4 + $0x9c]]
        %v2574 = vstv %s2573
        %v2575 = vmul.f32 %v2574, %v2571
        %v2576 = vmul.f32 %v2574, %v2572
        %v2577 = vadd.f32 %v2527, %v2575
        %v2578 = vadd.f32 %v2528, %v2576
        %s2579 = sld [smem:[#allocation4 + $0xc0]]
        %v2580 = vstv %s2579
        %v2581 = vmul.f32 %v2580, %v2571
        %v2582 = vmul.f32 %v2580, %v2572
        %v2583 = vadd.f32 %v2541, %v2581
        %v2584 = vadd.f32 %v2542, %v2582
        %s2585 = sld [smem:[#allocation4 + $0xe4]]
        %v2586 = vstv %s2585
        %v2587 = vmul.f32 %v2586, %v2571
        %v2588 = vmul.f32 %v2586, %v2572
        %v2589 = vadd.f32 %v2555, %v2587
        %v2590 = vadd.f32 %v2556, %v2588
        %s2591 = sld [smem:[#allocation4 + $0x108]]
        %v2592 = vstv %s2591
        %v2593 = vmul.f32 %v2592, %v2571
        %v2594 = vmul.f32 %v2592, %v2572
        %v2595 = vadd.f32 %v2569, %v2593
        %v2596 = vadd.f32 %v2570, %v2594
        %s2597 = sld [smem:[#allocation4 + $0x9d]]
        %v2598 = vstv %s2597
        %v2599 = vmul.f32 %v2598, %v2571
        %v2600 = vmul.f32 %v2598, %v2572
        %2603 = vrot.lane.b32.xlu0 %v2599, 127
        %v2604 = vpop.permute.xlu0 %2603
        %2605 = vrot.lane.b32.xlu0 %v2600, 127
        %v2606 = vpop.permute.xlu0 %2605
        %v2609 = vadd.f32 %v2577, %v2604
        %v2610 = vadd.f32 %v2578, %v2606
        %s2611 = sld [smem:[#allocation4 + $0xc1]]
        %v2612 = vstv %s2611
        %v2613 = vmul.f32 %v2612, %v2571
        %v2614 = vmul.f32 %v2612, %v2572
        %2617 = vrot.lane.b32.xlu0 %v2613, 127
        %v2618 = vpop.permute.xlu0 %2617
        %2619 = vrot.lane.b32.xlu0 %v2614, 127
        %v2620 = vpop.permute.xlu0 %2619
        %v2623 = vadd.f32 %v2583, %v2618
        %v2624 = vadd.f32 %v2584, %v2620
        %s2625 = sld [smem:[#allocation4 + $0xe5]]
        %v2626 = vstv %s2625
        %v2627 = vmul.f32 %v2626, %v2571
        %v2628 = vmul.f32 %v2626, %v2572
        %2631 = vrot.lane.b32.xlu0 %v2627, 127
        %v2632 = vpop.permute.xlu0 %2631
        %2633 = vrot.lane.b32.xlu0 %v2628, 127
        %v2634 = vpop.permute.xlu0 %2633
        %v2637 = vadd.f32 %v2589, %v2632
        %v2638 = vadd.f32 %v2590, %v2634
        %s2639 = sld [smem:[#allocation4 + $0x109]]
        %v2640 = vstv %s2639
        %v2641 = vmul.f32 %v2640, %v2571
        %v2642 = vmul.f32 %v2640, %v2572
        %2645 = vrot.lane.b32.xlu0 %v2641, 127
        %v2646 = vpop.permute.xlu0 %2645
        %2647 = vrot.lane.b32.xlu0 %v2642, 127
        %v2648 = vpop.permute.xlu0 %2647
        %v2651 = vadd.f32 %v2595, %v2646
        %v2652 = vadd.f32 %v2596, %v2648
        %s2653 = sld [smem:[#allocation4 + $0x9e]]
        %v2654 = vstv %s2653
        %v2655 = vmul.f32 %v2654, %v2571
        %v2656 = vmul.f32 %v2654, %v2572
        %2659 = vrot.lane.b32.xlu0 %v2655, 126
        %v2660 = vpop.permute.xlu0 %2659
        %2661 = vrot.lane.b32.xlu0 %v2656, 126
        %v2662 = vpop.permute.xlu0 %2661
        %v2665 = vadd.f32 %v2609, %v2660
        %v2666 = vadd.f32 %v2610, %v2662
        %s2667 = sld [smem:[#allocation4 + $0xc2]]
        %v2668 = vstv %s2667
        %v2669 = vmul.f32 %v2668, %v2571
        %v2670 = vmul.f32 %v2668, %v2572
        %2673 = vrot.lane.b32.xlu0 %v2669, 126
        %v2674 = vpop.permute.xlu0 %2673
        %2675 = vrot.lane.b32.xlu0 %v2670, 126
        %v2676 = vpop.permute.xlu0 %2675
        %v2679 = vadd.f32 %v2623, %v2674
        %v2680 = vadd.f32 %v2624, %v2676
        %s2681 = sld [smem:[#allocation4 + $0xe6]]
        %v2682 = vstv %s2681
        %v2683 = vmul.f32 %v2682, %v2571
        %v2684 = vmul.f32 %v2682, %v2572
        %2687 = vrot.lane.b32.xlu0 %v2683, 126
        %v2688 = vpop.permute.xlu0 %2687
        %2689 = vrot.lane.b32.xlu0 %v2684, 126
        %v2690 = vpop.permute.xlu0 %2689
        %v2693 = vadd.f32 %v2637, %v2688
        %v2694 = vadd.f32 %v2638, %v2690
        %s2695 = sld [smem:[#allocation4 + $0x10a]]
        %v2696 = vstv %s2695
        %v2697 = vmul.f32 %v2696, %v2571
        %v2698 = vmul.f32 %v2696, %v2572
        %2701 = vrot.lane.b32.xlu0 %v2697, 126
        %v2702 = vpop.permute.xlu0 %2701
        %2703 = vrot.lane.b32.xlu0 %v2698, 126
        %v2704 = vpop.permute.xlu0 %2703
        %v2707 = vadd.f32 %v2651, %v2702
        %v2708 = vadd.f32 %v2652, %v2704
        %v2709 = vld [vmem:[%s244 + $0x2] sm:$0xff]
        %v2710 = vld [vmem:[%s244 + $0xa] sm:$0xff]
        %s2711 = sld [smem:[#allocation4 + $0x9f]]
        %v2712 = vstv %s2711
        %v2713 = vmul.f32 %v2712, %v2709
        %v2714 = vmul.f32 %v2712, %v2710
        %v2715 = vadd.f32 %v2665, %v2713
        %v2716 = vadd.f32 %v2666, %v2714
        %s2717 = sld [smem:[#allocation4 + $0xc3]]
        %v2718 = vstv %s2717
        %v2719 = vmul.f32 %v2718, %v2709
        %v2720 = vmul.f32 %v2718, %v2710
        %v2721 = vadd.f32 %v2679, %v2719
        %v2722 = vadd.f32 %v2680, %v2720
        %s2723 = sld [smem:[#allocation4 + $0xe7]]
        %v2724 = vstv %s2723
        %v2725 = vmul.f32 %v2724, %v2709
        %v2726 = vmul.f32 %v2724, %v2710
        %v2727 = vadd.f32 %v2693, %v2725
        %v2728 = vadd.f32 %v2694, %v2726
        %s2729 = sld [smem:[#allocation4 + $0x10b]]
        %v2730 = vstv %s2729
        %v2731 = vmul.f32 %v2730, %v2709
        %v2732 = vmul.f32 %v2730, %v2710
        %v2733 = vadd.f32 %v2707, %v2731
        %v2734 = vadd.f32 %v2708, %v2732
        %s2735 = sld [smem:[#allocation4 + $0xa0]]
        %v2736 = vstv %s2735
        %v2737 = vmul.f32 %v2736, %v2709
        %v2738 = vmul.f32 %v2736, %v2710
        %2741 = vrot.lane.b32.xlu0 %v2737, 127
        %v2742 = vpop.permute.xlu0 %2741
        %2743 = vrot.lane.b32.xlu0 %v2738, 127
        %v2744 = vpop.permute.xlu0 %2743
        %v2747 = vadd.f32 %v2715, %v2742
        %v2748 = vadd.f32 %v2716, %v2744
        %s2749 = sld [smem:[#allocation4 + $0xc4]]
        %v2750 = vstv %s2749
        %v2751 = vmul.f32 %v2750, %v2709
        %v2752 = vmul.f32 %v2750, %v2710
        %2755 = vrot.lane.b32.xlu0 %v2751, 127
        %v2756 = vpop.permute.xlu0 %2755
        %2757 = vrot.lane.b32.xlu0 %v2752, 127
        %v2758 = vpop.permute.xlu0 %2757
        %v2761 = vadd.f32 %v2721, %v2756
        %v2762 = vadd.f32 %v2722, %v2758
        %s2763 = sld [smem:[#allocation4 + $0xe8]]
        %v2764 = vstv %s2763
        %v2765 = vmul.f32 %v2764, %v2709
        %v2766 = vmul.f32 %v2764, %v2710
        %2769 = vrot.lane.b32.xlu0 %v2765, 127
        %v2770 = vpop.permute.xlu0 %2769
        %2771 = vrot.lane.b32.xlu0 %v2766, 127
        %v2772 = vpop.permute.xlu0 %2771
        %v2775 = vadd.f32 %v2727, %v2770
        %v2776 = vadd.f32 %v2728, %v2772
        %s2777 = sld [smem:[#allocation4 + $0x10c]]
        %v2778 = vstv %s2777
        %v2779 = vmul.f32 %v2778, %v2709
        %v2780 = vmul.f32 %v2778, %v2710
        %2783 = vrot.lane.b32.xlu0 %v2779, 127
        %v2784 = vpop.permute.xlu0 %2783
        %2785 = vrot.lane.b32.xlu0 %v2780, 127
        %v2786 = vpop.permute.xlu0 %2785
        %v2789 = vadd.f32 %v2733, %v2784
        %v2790 = vadd.f32 %v2734, %v2786
        %s2791 = sld [smem:[#allocation4 + $0xa1]]
        %v2792 = vstv %s2791
        %v2793 = vmul.f32 %v2792, %v2709
        %v2794 = vmul.f32 %v2792, %v2710
        %2797 = vrot.lane.b32.xlu0 %v2793, 126
        %v2798 = vpop.permute.xlu0 %2797
        %2799 = vrot.lane.b32.xlu0 %v2794, 126
        %v2800 = vpop.permute.xlu0 %2799
        %v2803 = vadd.f32 %v2747, %v2798
        %v2804 = vadd.f32 %v2748, %v2800
        %s2805 = sld [smem:[#allocation4 + $0xc5]]
        %v2806 = vstv %s2805
        %v2807 = vmul.f32 %v2806, %v2709
        %v2808 = vmul.f32 %v2806, %v2710
        %2811 = vrot.lane.b32.xlu0 %v2807, 126
        %v2812 = vpop.permute.xlu0 %2811
        %2813 = vrot.lane.b32.xlu0 %v2808, 126
        %v2814 = vpop.permute.xlu0 %2813
        %v2817 = vadd.f32 %v2761, %v2812
        %v2818 = vadd.f32 %v2762, %v2814
        %s2819 = sld [smem:[#allocation4 + $0xe9]]
        %v2820 = vstv %s2819
        %v2821 = vmul.f32 %v2820, %v2709
        %v2822 = vmul.f32 %v2820, %v2710
        %2825 = vrot.lane.b32.xlu0 %v2821, 126
        %v2826 = vpop.permute.xlu0 %2825
        %2827 = vrot.lane.b32.xlu0 %v2822, 126
        %v2828 = vpop.permute.xlu0 %2827
        %v2831 = vadd.f32 %v2775, %v2826
        %v2832 = vadd.f32 %v2776, %v2828
        %s2833 = sld [smem:[#allocation4 + $0x10d]]
        %v2834 = vstv %s2833
        %v2835 = vmul.f32 %v2834, %v2709
        %v2836 = vmul.f32 %v2834, %v2710
        %2839 = vrot.lane.b32.xlu0 %v2835, 126
        %v2840 = vpop.permute.xlu0 %2839
        %2841 = vrot.lane.b32.xlu0 %v2836, 126
        %v2842 = vpop.permute.xlu0 %2841
        %v2845 = vadd.f32 %v2789, %v2840
        %v2846 = vadd.f32 %v2790, %v2842
        %v2847 = vld [vmem:[%s253] sm:$0xff]
        %v2848 = vld [vmem:[%s253 + $0x8] sm:$0xff]
        %s2849 = sld [smem:[#allocation4 + $0xa2]]
        %v2850 = vstv %s2849
        %v2851 = vmul.f32 %v2850, %v2847
        %v2852 = vmul.f32 %v2850, %v2848
        %v2853 = vadd.f32 %v2803, %v2851
        %v2854 = vadd.f32 %v2804, %v2852
        %s2855 = sld [smem:[#allocation4 + $0xc6]]
        %v2856 = vstv %s2855
        %v2857 = vmul.f32 %v2856, %v2847
        %v2858 = vmul.f32 %v2856, %v2848
        %v2859 = vadd.f32 %v2817, %v2857
        %v2860 = vadd.f32 %v2818, %v2858
        %s2861 = sld [smem:[#allocation4 + $0xea]]
        %v2862 = vstv %s2861
        %v2863 = vmul.f32 %v2862, %v2847
        %v2864 = vmul.f32 %v2862, %v2848
        %v2865 = vadd.f32 %v2831, %v2863
        %v2866 = vadd.f32 %v2832, %v2864
        %s2867 = sld [smem:[#allocation4 + $0x10e]]
        %v2868 = vstv %s2867
        %v2869 = vmul.f32 %v2868, %v2847
        %v2870 = vmul.f32 %v2868, %v2848
        %v2871 = vadd.f32 %v2845, %v2869
        %v2872 = vadd.f32 %v2846, %v2870
        %s2873 = sld [smem:[#allocation4 + $0xa3]]
        %v2874 = vstv %s2873
        %v2875 = vmul.f32 %v2874, %v2847
        %v2876 = vmul.f32 %v2874, %v2848
        %2879 = vrot.lane.b32.xlu0 %v2875, 127
        %v2880 = vpop.permute.xlu0 %2879
        %2881 = vrot.lane.b32.xlu0 %v2876, 127
        %v2882 = vpop.permute.xlu0 %2881
        %v2885 = vadd.f32 %v2853, %v2880
        %v2886 = vadd.f32 %v2854, %v2882
        %s2887 = sld [smem:[#allocation4 + $0xc7]]
        %v2888 = vstv %s2887
        %v2889 = vmul.f32 %v2888, %v2847
        %v2890 = vmul.f32 %v2888, %v2848
        %2893 = vrot.lane.b32.xlu0 %v2889, 127
        %v2894 = vpop.permute.xlu0 %2893
        %2895 = vrot.lane.b32.xlu0 %v2890, 127
        %v2896 = vpop.permute.xlu0 %2895
        %v2899 = vadd.f32 %v2859, %v2894
        %v2900 = vadd.f32 %v2860, %v2896
        %s2901 = sld [smem:[#allocation4 + $0xeb]]
        %v2902 = vstv %s2901
        %v2903 = vmul.f32 %v2902, %v2847
        %v2904 = vmul.f32 %v2902, %v2848
        %2907 = vrot.lane.b32.xlu0 %v2903, 127
        %v2908 = vpop.permute.xlu0 %2907
        %2909 = vrot.lane.b32.xlu0 %v2904, 127
        %v2910 = vpop.permute.xlu0 %2909
        %v2913 = vadd.f32 %v2865, %v2908
        %v2914 = vadd.f32 %v2866, %v2910
        %s2915 = sld [smem:[#allocation4 + $0x10f]]
        %v2916 = vstv %s2915
        %v2917 = vmul.f32 %v2916, %v2847
        %v2918 = vmul.f32 %v2916, %v2848
        %2921 = vrot.lane.b32.xlu0 %v2917, 127
        %v2922 = vpop.permute.xlu0 %2921
        %2923 = vrot.lane.b32.xlu0 %v2918, 127
        %v2924 = vpop.permute.xlu0 %2923
        %v2927 = vadd.f32 %v2871, %v2922
        %v2928 = vadd.f32 %v2872, %v2924
        %s2929 = sld [smem:[#allocation4 + $0xa4]]
        %v2930 = vstv %s2929
        %v2931 = vmul.f32 %v2930, %v2847
        %v2932 = vmul.f32 %v2930, %v2848
        %2935 = vrot.lane.b32.xlu0 %v2931, 126
        %v2936 = vpop.permute.xlu0 %2935
        %2937 = vrot.lane.b32.xlu0 %v2932, 126
        %v2938 = vpop.permute.xlu0 %2937
        %v2941 = vadd.f32 %v2885, %v2936
        %v2942 = vadd.f32 %v2886, %v2938
        %s2943 = sld [smem:[#allocation4 + $0xc8]]
        %v2944 = vstv %s2943
        %v2945 = vmul.f32 %v2944, %v2847
        %v2946 = vmul.f32 %v2944, %v2848
        %2949 = vrot.lane.b32.xlu0 %v2945, 126
        %v2950 = vpop.permute.xlu0 %2949
        %2951 = vrot.lane.b32.xlu0 %v2946, 126
        %v2952 = vpop.permute.xlu0 %2951
        %v2955 = vadd.f32 %v2899, %v2950
        %v2956 = vadd.f32 %v2900, %v2952
        %s2957 = sld [smem:[#allocation4 + $0xec]]
        %v2958 = vstv %s2957
        %v2959 = vmul.f32 %v2958, %v2847
        %v2960 = vmul.f32 %v2958, %v2848
        %2963 = vrot.lane.b32.xlu0 %v2959, 126
        %v2964 = vpop.permute.xlu0 %2963
        %2965 = vrot.lane.b32.xlu0 %v2960, 126
        %v2966 = vpop.permute.xlu0 %2965
        %v2969 = vadd.f32 %v2913, %v2964
        %v2970 = vadd.f32 %v2914, %v2966
        %s2971 = sld [smem:[#allocation4 + $0x110]]
        %v2972 = vstv %s2971
        %v2973 = vmul.f32 %v2972, %v2847
        %v2974 = vmul.f32 %v2972, %v2848
        %2977 = vrot.lane.b32.xlu0 %v2973, 126
        %v2978 = vpop.permute.xlu0 %2977
        %2979 = vrot.lane.b32.xlu0 %v2974, 126
        %v2980 = vpop.permute.xlu0 %2979
        %v2983 = vadd.f32 %v2927, %v2978
        %v2984 = vadd.f32 %v2928, %v2980
        %v2985 = vld [vmem:[%s253 + $0x1] sm:$0xff]
        %v2986 = vld [vmem:[%s253 + $0x9] sm:$0xff]
        %s2987 = sld [smem:[#allocation4 + $0xa5]]
        %v2988 = vstv %s2987
        %v2989 = vmul.f32 %v2988, %v2985
        %v2990 = vmul.f32 %v2988, %v2986
        %v2991 = vadd.f32 %v2941, %v2989
        %v2992 = vadd.f32 %v2942, %v2990
        %s2993 = sld [smem:[#allocation4 + $0xc9]]
        %v2994 = vstv %s2993
        %v2995 = vmul.f32 %v2994, %v2985
        %v2996 = vmul.f32 %v2994, %v2986
        %v2997 = vadd.f32 %v2955, %v2995
        %v2998 = vadd.f32 %v2956, %v2996
        %s2999 = sld [smem:[#allocation4 + $0xed]]
        %v3000 = vstv %s2999
        %v3001 = vmul.f32 %v3000, %v2985
        %v3002 = vmul.f32 %v3000, %v2986
        %v3003 = vadd.f32 %v2969, %v3001
        %v3004 = vadd.f32 %v2970, %v3002
        %s3005 = sld [smem:[#allocation4 + $0x111]]
        %v3006 = vstv %s3005
        %v3007 = vmul.f32 %v3006, %v2985
        %v3008 = vmul.f32 %v3006, %v2986
        %v3009 = vadd.f32 %v2983, %v3007
        %v3010 = vadd.f32 %v2984, %v3008
        %s3011 = sld [smem:[#allocation4 + $0xa6]]
        %v3012 = vstv %s3011
        %v3013 = vmul.f32 %v3012, %v2985
        %v3014 = vmul.f32 %v3012, %v2986
        %3017 = vrot.lane.b32.xlu0 %v3013, 127
        %v3018 = vpop.permute.xlu0 %3017
        %3019 = vrot.lane.b32.xlu0 %v3014, 127
        %v3020 = vpop.permute.xlu0 %3019
        %v3023 = vadd.f32 %v2991, %v3018
        %v3024 = vadd.f32 %v2992, %v3020
        %s3025 = sld [smem:[#allocation4 + $0xca]]
        %v3026 = vstv %s3025
        %v3027 = vmul.f32 %v3026, %v2985
        %v3028 = vmul.f32 %v3026, %v2986
        %3031 = vrot.lane.b32.xlu0 %v3027, 127
        %v3032 = vpop.permute.xlu0 %3031
        %3033 = vrot.lane.b32.xlu0 %v3028, 127
        %v3034 = vpop.permute.xlu0 %3033
        %v3037 = vadd.f32 %v2997, %v3032
        %v3038 = vadd.f32 %v2998, %v3034
        %s3039 = sld [smem:[#allocation4 + $0xee]]
        %v3040 = vstv %s3039
        %v3041 = vmul.f32 %v3040, %v2985
        %v3042 = vmul.f32 %v3040, %v2986
        %3045 = vrot.lane.b32.xlu0 %v3041, 127
        %v3046 = vpop.permute.xlu0 %3045
        %3047 = vrot.lane.b32.xlu0 %v3042, 127
        %v3048 = vpop.permute.xlu0 %3047
        %v3051 = vadd.f32 %v3003, %v3046
        %v3052 = vadd.f32 %v3004, %v3048
        %s3053 = sld [smem:[#allocation4 + $0x112]]
        %v3054 = vstv %s3053
        %v3055 = vmul.f32 %v3054, %v2985
        %v3056 = vmul.f32 %v3054, %v2986
        %3059 = vrot.lane.b32.xlu0 %v3055, 127
        %v3060 = vpop.permute.xlu0 %3059
        %3061 = vrot.lane.b32.xlu0 %v3056, 127
        %v3062 = vpop.permute.xlu0 %3061
        %v3065 = vadd.f32 %v3009, %v3060
        %v3066 = vadd.f32 %v3010, %v3062
        %s3067 = sld [smem:[#allocation4 + $0xa7]]
        %v3068 = vstv %s3067
        %v3069 = vmul.f32 %v3068, %v2985
        %v3070 = vmul.f32 %v3068, %v2986
        %3073 = vrot.lane.b32.xlu0 %v3069, 126
        %v3074 = vpop.permute.xlu0 %3073
        %3075 = vrot.lane.b32.xlu0 %v3070, 126
        %v3076 = vpop.permute.xlu0 %3075
        %v3079 = vadd.f32 %v3023, %v3074
        %v3080 = vadd.f32 %v3024, %v3076
        %s3081 = sld [smem:[#allocation4 + $0xcb]]
        %v3082 = vstv %s3081
        %v3083 = vmul.f32 %v3082, %v2985
        %v3084 = vmul.f32 %v3082, %v2986
        %3087 = vrot.lane.b32.xlu0 %v3083, 126
        %v3088 = vpop.permute.xlu0 %3087
        %3089 = vrot.lane.b32.xlu0 %v3084, 126
        %v3090 = vpop.permute.xlu0 %3089
        %v3093 = vadd.f32 %v3037, %v3088
        %v3094 = vadd.f32 %v3038, %v3090
        %s3095 = sld [smem:[#allocation4 + $0xef]]
        %v3096 = vstv %s3095
        %v3097 = vmul.f32 %v3096, %v2985
        %v3098 = vmul.f32 %v3096, %v2986
        %3101 = vrot.lane.b32.xlu0 %v3097, 126
        %v3102 = vpop.permute.xlu0 %3101
        %3103 = vrot.lane.b32.xlu0 %v3098, 126
        %v3104 = vpop.permute.xlu0 %3103
        %v3107 = vadd.f32 %v3051, %v3102
        %v3108 = vadd.f32 %v3052, %v3104
        %s3109 = sld [smem:[#allocation4 + $0x113]]
        %v3110 = vstv %s3109
        %v3111 = vmul.f32 %v3110, %v2985
        %v3112 = vmul.f32 %v3110, %v2986
        %3115 = vrot.lane.b32.xlu0 %v3111, 126
        %v3116 = vpop.permute.xlu0 %3115
        %3117 = vrot.lane.b32.xlu0 %v3112, 126
        %v3118 = vpop.permute.xlu0 %3117
        %v3121 = vadd.f32 %v3065, %v3116
        %v3122 = vadd.f32 %v3066, %v3118
        %v3123 = vld [vmem:[%s253 + $0x2] sm:$0xff]
        %v3124 = vld [vmem:[%s253 + $0xa] sm:$0xff]
        %s3125 = sld [smem:[#allocation4 + $0xa8]]
        %v3126 = vstv %s3125
        %v3127 = vmul.f32 %v3126, %v3123
        %v3128 = vmul.f32 %v3126, %v3124
        %v3129 = vadd.f32 %v3079, %v3127
        %v3130 = vadd.f32 %v3080, %v3128
        %s3131 = sld [smem:[#allocation4 + $0xcc]]
        %v3132 = vstv %s3131
        %v3133 = vmul.f32 %v3132, %v3123
        %v3134 = vmul.f32 %v3132, %v3124
        %v3135 = vadd.f32 %v3093, %v3133
        %v3136 = vadd.f32 %v3094, %v3134
        %s3137 = sld [smem:[#allocation4 + $0xf0]]
        %v3138 = vstv %s3137
        %v3139 = vmul.f32 %v3138, %v3123
        %v3140 = vmul.f32 %v3138, %v3124
        %v3141 = vadd.f32 %v3107, %v3139
        %v3142 = vadd.f32 %v3108, %v3140
        %s3143 = sld [smem:[#allocation4 + $0x114]]
        %v3144 = vstv %s3143
        %v3145 = vmul.f32 %v3144, %v3123
        %v3146 = vmul.f32 %v3144, %v3124
        %v3147 = vadd.f32 %v3121, %v3145
        %v3148 = vadd.f32 %v3122, %v3146
        %s3149 = sld [smem:[#allocation4 + $0xa9]]
        %v3150 = vstv %s3149
        %v3151 = vmul.f32 %v3150, %v3123
        %v3152 = vmul.f32 %v3150, %v3124
        %3155 = vrot.lane.b32.xlu0 %v3151, 127
        %v3156 = vpop.permute.xlu0 %3155
        %3157 = vrot.lane.b32.xlu0 %v3152, 127
        %v3158 = vpop.permute.xlu0 %3157
        %v3161 = vadd.f32 %v3129, %v3156
        %v3162 = vadd.f32 %v3130, %v3158
        %s3163 = sld [smem:[#allocation4 + $0xcd]]
        %v3164 = vstv %s3163
        %v3165 = vmul.f32 %v3164, %v3123
        %v3166 = vmul.f32 %v3164, %v3124
        %3169 = vrot.lane.b32.xlu0 %v3165, 127
        %v3170 = vpop.permute.xlu0 %3169
        %3171 = vrot.lane.b32.xlu0 %v3166, 127
        %v3172 = vpop.permute.xlu0 %3171
        %v3175 = vadd.f32 %v3135, %v3170
        %v3176 = vadd.f32 %v3136, %v3172
        %s3177 = sld [smem:[#allocation4 + $0xf1]]
        %v3178 = vstv %s3177
        %v3179 = vmul.f32 %v3178, %v3123
        %v3180 = vmul.f32 %v3178, %v3124
        %3183 = vrot.lane.b32.xlu0 %v3179, 127
        %v3184 = vpop.permute.xlu0 %3183
        %3185 = vrot.lane.b32.xlu0 %v3180, 127
        %v3186 = vpop.permute.xlu0 %3185
        %v3189 = vadd.f32 %v3141, %v3184
        %v3190 = vadd.f32 %v3142, %v3186
        %s3191 = sld [smem:[#allocation4 + $0x115]]
        %v3192 = vstv %s3191
        %v3193 = vmul.f32 %v3192, %v3123
        %v3194 = vmul.f32 %v3192, %v3124
        %3197 = vrot.lane.b32.xlu0 %v3193, 127
        %v3198 = vpop.permute.xlu0 %3197
        %3199 = vrot.lane.b32.xlu0 %v3194, 127
        %v3200 = vpop.permute.xlu0 %3199
        %v3203 = vadd.f32 %v3147, %v3198
        %v3204 = vadd.f32 %v3148, %v3200
        %s3205 = sld [smem:[#allocation4 + $0xaa]]
        %v3206 = vstv %s3205
        %v3207 = vmul.f32 %v3206, %v3123
        %v3208 = vmul.f32 %v3206, %v3124
        %3211 = vrot.lane.b32.xlu0 %v3207, 126
        %v3212 = vpop.permute.xlu0 %3211
        %3213 = vrot.lane.b32.xlu0 %v3208, 126
        %v3214 = vpop.permute.xlu0 %3213
        %v3217 = vadd.f32 %v3161, %v3212
        %v3218 = vadd.f32 %v3162, %v3214
        %s3219 = sld [smem:[#allocation4 + $0xce]]
        %v3220 = vstv %s3219
        %v3221 = vmul.f32 %v3220, %v3123
        %v3222 = vmul.f32 %v3220, %v3124
        %3225 = vrot.lane.b32.xlu0 %v3221, 126
        %v3226 = vpop.permute.xlu0 %3225
        %3227 = vrot.lane.b32.xlu0 %v3222, 126
        %v3228 = vpop.permute.xlu0 %3227
        %v3231 = vadd.f32 %v3175, %v3226
        %v3232 = vadd.f32 %v3176, %v3228
        %s3233 = sld [smem:[#allocation4 + $0xf2]]
        %v3234 = vstv %s3233
        %v3235 = vmul.f32 %v3234, %v3123
        %v3236 = vmul.f32 %v3234, %v3124
        %3239 = vrot.lane.b32.xlu0 %v3235, 126
        %v3240 = vpop.permute.xlu0 %3239
        %3241 = vrot.lane.b32.xlu0 %v3236, 126
        %v3242 = vpop.permute.xlu0 %3241
        %v3245 = vadd.f32 %v3189, %v3240
        %v3246 = vadd.f32 %v3190, %v3242
        %s3247 = sld [smem:[#allocation4 + $0x116]]
        %v3248 = vstv %s3247
        %v3249 = vmul.f32 %v3248, %v3123
        %v3250 = vmul.f32 %v3248, %v3124
        %3253 = vrot.lane.b32.xlu0 %v3249, 126
        %v3254 = vpop.permute.xlu0 %3253
        %3255 = vrot.lane.b32.xlu0 %v3250, 126
        %v3256 = vpop.permute.xlu0 %3255
        %v3259 = vadd.f32 %v3203, %v3254
        %v3260 = vadd.f32 %v3204, %v3256
        %v3261 = vld [vmem:[%s262] sm:$0xff]
        %v3262 = vld [vmem:[%s262 + $0x8] sm:$0xff]
        %s3263 = sld [smem:[#allocation4 + $0xab]]
        %v3264 = vstv %s3263
        %v3265 = vmul.f32 %v3264, %v3261
        %v3266 = vmul.f32 %v3264, %v3262
        %v3267 = vadd.f32 %v3217, %v3265
        %v3268 = vadd.f32 %v3218, %v3266
        %s3269 = sld [smem:[#allocation4 + $0xcf]]
        %v3270 = vstv %s3269
        %v3271 = vmul.f32 %v3270, %v3261
        %v3272 = vmul.f32 %v3270, %v3262
        %v3273 = vadd.f32 %v3231, %v3271
        %v3274 = vadd.f32 %v3232, %v3272
        %s3275 = sld [smem:[#allocation4 + $0xf3]]
        %v3276 = vstv %s3275
        %v3277 = vmul.f32 %v3276, %v3261
        %v3278 = vmul.f32 %v3276, %v3262
        %v3279 = vadd.f32 %v3245, %v3277
        %v3280 = vadd.f32 %v3246, %v3278
        %s3281 = sld [smem:[#allocation4 + $0x117]]
        %v3282 = vstv %s3281
        %v3283 = vmul.f32 %v3282, %v3261
        %v3284 = vmul.f32 %v3282, %v3262
        %v3285 = vadd.f32 %v3259, %v3283
        %v3286 = vadd.f32 %v3260, %v3284
        %s3287 = sld [smem:[#allocation4 + $0xac]]
        %v3288 = vstv %s3287
        %v3289 = vmul.f32 %v3288, %v3261
        %v3290 = vmul.f32 %v3288, %v3262
        %3293 = vrot.lane.b32.xlu0 %v3289, 127
        %v3294 = vpop.permute.xlu0 %3293
        %3295 = vrot.lane.b32.xlu0 %v3290, 127
        %v3296 = vpop.permute.xlu0 %3295
        %v3299 = vadd.f32 %v3267, %v3294
        %v3300 = vadd.f32 %v3268, %v3296
        %s3301 = sld [smem:[#allocation4 + $0xd0]]
        %v3302 = vstv %s3301
        %v3303 = vmul.f32 %v3302, %v3261
        %v3304 = vmul.f32 %v3302, %v3262
        %3307 = vrot.lane.b32.xlu0 %v3303, 127
        %v3308 = vpop.permute.xlu0 %3307
        %3309 = vrot.lane.b32.xlu0 %v3304, 127
        %v3310 = vpop.permute.xlu0 %3309
        %v3313 = vadd.f32 %v3273, %v3308
        %v3314 = vadd.f32 %v3274, %v3310
        %s3315 = sld [smem:[#allocation4 + $0xf4]]
        %v3316 = vstv %s3315
        %v3317 = vmul.f32 %v3316, %v3261
        %v3318 = vmul.f32 %v3316, %v3262
        %3321 = vrot.lane.b32.xlu0 %v3317, 127
        %v3322 = vpop.permute.xlu0 %3321
        %3323 = vrot.lane.b32.xlu0 %v3318, 127
        %v3324 = vpop.permute.xlu0 %3323
        %v3327 = vadd.f32 %v3279, %v3322
        %v3328 = vadd.f32 %v3280, %v3324
        %s3329 = sld [smem:[#allocation4 + $0x118]]
        %v3330 = vstv %s3329
        %v3331 = vmul.f32 %v3330, %v3261
        %v3332 = vmul.f32 %v3330, %v3262
        %3335 = vrot.lane.b32.xlu0 %v3331, 127
        %v3336 = vpop.permute.xlu0 %3335
        %3337 = vrot.lane.b32.xlu0 %v3332, 127
        %v3338 = vpop.permute.xlu0 %3337
        %v3341 = vadd.f32 %v3285, %v3336
        %v3342 = vadd.f32 %v3286, %v3338
        %s3343 = sld [smem:[#allocation4 + $0xad]]
        %v3344 = vstv %s3343
        %v3345 = vmul.f32 %v3344, %v3261
        %v3346 = vmul.f32 %v3344, %v3262
        %3349 = vrot.lane.b32.xlu0 %v3345, 126
        %v3350 = vpop.permute.xlu0 %3349
        %3351 = vrot.lane.b32.xlu0 %v3346, 126
        %v3352 = vpop.permute.xlu0 %3351
        %v3355 = vadd.f32 %v3299, %v3350
        %v3356 = vadd.f32 %v3300, %v3352
        %s3357 = sld [smem:[#allocation4 + $0xd1]]
        %v3358 = vstv %s3357
        %v3359 = vmul.f32 %v3358, %v3261
        %v3360 = vmul.f32 %v3358, %v3262
        %3363 = vrot.lane.b32.xlu0 %v3359, 126
        %v3364 = vpop.permute.xlu0 %3363
        %3365 = vrot.lane.b32.xlu0 %v3360, 126
        %v3366 = vpop.permute.xlu0 %3365
        %v3369 = vadd.f32 %v3313, %v3364
        %v3370 = vadd.f32 %v3314, %v3366
        %s3371 = sld [smem:[#allocation4 + $0xf5]]
        %v3372 = vstv %s3371
        %v3373 = vmul.f32 %v3372, %v3261
        %v3374 = vmul.f32 %v3372, %v3262
        %3377 = vrot.lane.b32.xlu0 %v3373, 126
        %v3378 = vpop.permute.xlu0 %3377
        %3379 = vrot.lane.b32.xlu0 %v3374, 126
        %v3380 = vpop.permute.xlu0 %3379
        %v3383 = vadd.f32 %v3327, %v3378
        %v3384 = vadd.f32 %v3328, %v3380
        %s3385 = sld [smem:[#allocation4 + $0x119]]
        %v3386 = vstv %s3385
        %v3387 = vmul.f32 %v3386, %v3261
        %v3388 = vmul.f32 %v3386, %v3262
        %3391 = vrot.lane.b32.xlu0 %v3387, 126
        %v3392 = vpop.permute.xlu0 %3391
        %3393 = vrot.lane.b32.xlu0 %v3388, 126
        %v3394 = vpop.permute.xlu0 %3393
        %v3397 = vadd.f32 %v3341, %v3392
        %v3398 = vadd.f32 %v3342, %v3394
        %v3399 = vld [vmem:[%s262 + $0x1] sm:$0xff]
        %v3400 = vld [vmem:[%s262 + $0x9] sm:$0xff]
        %s3401 = sld [smem:[#allocation4 + $0xae]]
        %v3402 = vstv %s3401
        %v3403 = vmul.f32 %v3402, %v3399
        %v3404 = vmul.f32 %v3402, %v3400
        %v3405 = vadd.f32 %v3355, %v3403
        %v3406 = vadd.f32 %v3356, %v3404
        %s3407 = sld [smem:[#allocation4 + $0xd2]]
        %v3408 = vstv %s3407
        %v3409 = vmul.f32 %v3408, %v3399
        %v3410 = vmul.f32 %v3408, %v3400
        %v3411 = vadd.f32 %v3369, %v3409
        %v3412 = vadd.f32 %v3370, %v3410
        %s3413 = sld [smem:[#allocation4 + $0xf6]]
        %v3414 = vstv %s3413
        %v3415 = vmul.f32 %v3414, %v3399
        %v3416 = vmul.f32 %v3414, %v3400
        %v3417 = vadd.f32 %v3383, %v3415
        %v3418 = vadd.f32 %v3384, %v3416
        %s3419 = sld [smem:[#allocation4 + $0x11a]]
        %v3420 = vstv %s3419
        %v3421 = vmul.f32 %v3420, %v3399
        %v3422 = vmul.f32 %v3420, %v3400
        %v3423 = vadd.f32 %v3397, %v3421
        %v3424 = vadd.f32 %v3398, %v3422
        %s3425 = sld [smem:[#allocation4 + $0xaf]]
        %v3426 = vstv %s3425
        %v3427 = vmul.f32 %v3426, %v3399
        %v3428 = vmul.f32 %v3426, %v3400
        %3431 = vrot.lane.b32.xlu0 %v3427, 127
        %v3432 = vpop.permute.xlu0 %3431
        %3433 = vrot.lane.b32.xlu0 %v3428, 127
        %v3434 = vpop.permute.xlu0 %3433
        %v3437 = vadd.f32 %v3405, %v3432
        %v3438 = vadd.f32 %v3406, %v3434
        %s3439 = sld [smem:[#allocation4 + $0xd3]]
        %v3440 = vstv %s3439
        %v3441 = vmul.f32 %v3440, %v3399
        %v3442 = vmul.f32 %v3440, %v3400
        %3445 = vrot.lane.b32.xlu0 %v3441, 127
        %v3446 = vpop.permute.xlu0 %3445
        %3447 = vrot.lane.b32.xlu0 %v3442, 127
        %v3448 = vpop.permute.xlu0 %3447
        %v3451 = vadd.f32 %v3411, %v3446
        %v3452 = vadd.f32 %v3412, %v3448
        %s3453 = sld [smem:[#allocation4 + $0xf7]]
        %v3454 = vstv %s3453
        %v3455 = vmul.f32 %v3454, %v3399
        %v3456 = vmul.f32 %v3454, %v3400
        %3459 = vrot.lane.b32.xlu0 %v3455, 127
        %v3460 = vpop.permute.xlu0 %3459
        %3461 = vrot.lane.b32.xlu0 %v3456, 127
        %v3462 = vpop.permute.xlu0 %3461
        %v3465 = vadd.f32 %v3417, %v3460
        %v3466 = vadd.f32 %v3418, %v3462
        %s3467 = sld [smem:[#allocation4 + $0x11b]]
        %v3468 = vstv %s3467
        %v3469 = vmul.f32 %v3468, %v3399
        %v3470 = vmul.f32 %v3468, %v3400
        %3473 = vrot.lane.b32.xlu0 %v3469, 127
        %v3474 = vpop.permute.xlu0 %3473
        %3475 = vrot.lane.b32.xlu0 %v3470, 127
        %v3476 = vpop.permute.xlu0 %3475
        %v3479 = vadd.f32 %v3423, %v3474
        %v3480 = vadd.f32 %v3424, %v3476
        %s3481 = sld [smem:[#allocation4 + $0xb0]]
        %v3482 = vstv %s3481
        %v3483 = vmul.f32 %v3482, %v3399
        %v3484 = vmul.f32 %v3482, %v3400
        %3487 = vrot.lane.b32.xlu0 %v3483, 126
        %v3488 = vpop.permute.xlu0 %3487
        %3489 = vrot.lane.b32.xlu0 %v3484, 126
        %v3490 = vpop.permute.xlu0 %3489
        %v3493 = vadd.f32 %v3437, %v3488
        %v3494 = vadd.f32 %v3438, %v3490
        %s3495 = sld [smem:[#allocation4 + $0xd4]]
        %v3496 = vstv %s3495
        %v3497 = vmul.f32 %v3496, %v3399
        %v3498 = vmul.f32 %v3496, %v3400
        %3501 = vrot.lane.b32.xlu0 %v3497, 126
        %v3502 = vpop.permute.xlu0 %3501
        %3503 = vrot.lane.b32.xlu0 %v3498, 126
        %v3504 = vpop.permute.xlu0 %3503
        %v3507 = vadd.f32 %v3451, %v3502
        %v3508 = vadd.f32 %v3452, %v3504
        %s3509 = sld [smem:[#allocation4 + $0xf8]]
        %v3510 = vstv %s3509
        %v3511 = vmul.f32 %v3510, %v3399
        %v3512 = vmul.f32 %v3510, %v3400
        %3515 = vrot.lane.b32.xlu0 %v3511, 126
        %v3516 = vpop.permute.xlu0 %3515
        %3517 = vrot.lane.b32.xlu0 %v3512, 126
        %v3518 = vpop.permute.xlu0 %3517
        %v3521 = vadd.f32 %v3465, %v3516
        %v3522 = vadd.f32 %v3466, %v3518
        %s3523 = sld [smem:[#allocation4 + $0x11c]]
        %v3524 = vstv %s3523
        %v3525 = vmul.f32 %v3524, %v3399
        %v3526 = vmul.f32 %v3524, %v3400
        %3529 = vrot.lane.b32.xlu0 %v3525, 126
        %v3530 = vpop.permute.xlu0 %3529
        %3531 = vrot.lane.b32.xlu0 %v3526, 126
        %v3532 = vpop.permute.xlu0 %3531
        %v3535 = vadd.f32 %v3479, %v3530
        %v3536 = vadd.f32 %v3480, %v3532
        %v3537 = vld [vmem:[%s262 + $0x2] sm:$0xff]
        %v3538 = vld [vmem:[%s262 + $0xa] sm:$0xff]
        %s3539 = sld [smem:[#allocation4 + $0xb1]]
        %v3540 = vstv %s3539
        %v3541 = vmul.f32 %v3540, %v3537
        %v3542 = vmul.f32 %v3540, %v3538
        %v3543 = vadd.f32 %v3493, %v3541
        %v3544 = vadd.f32 %v3494, %v3542
        %s3545 = sld [smem:[#allocation4 + $0xd5]]
        %v3546 = vstv %s3545
        %v3547 = vmul.f32 %v3546, %v3537
        %v3548 = vmul.f32 %v3546, %v3538
        %v3549 = vadd.f32 %v3507, %v3547
        %v3550 = vadd.f32 %v3508, %v3548
        %s3551 = sld [smem:[#allocation4 + $0xf9]]
        %v3552 = vstv %s3551
        %v3553 = vmul.f32 %v3552, %v3537
        %v3554 = vmul.f32 %v3552, %v3538
        %v3555 = vadd.f32 %v3521, %v3553
        %v3556 = vadd.f32 %v3522, %v3554
        %s3557 = sld [smem:[#allocation4 + $0x11d]]
        %v3558 = vstv %s3557
        %v3559 = vmul.f32 %v3558, %v3537
        %v3560 = vmul.f32 %v3558, %v3538
        %v3561 = vadd.f32 %v3535, %v3559
        %v3562 = vadd.f32 %v3536, %v3560
        %s3563 = sld [smem:[#allocation4 + $0xb2]]
        %v3564 = vstv %s3563
        %v3565 = vmul.f32 %v3564, %v3537
        %v3566 = vmul.f32 %v3564, %v3538
        %3569 = vrot.lane.b32.xlu0 %v3565, 127
        %v3570 = vpop.permute.xlu0 %3569
        %3571 = vrot.lane.b32.xlu0 %v3566, 127
        %v3572 = vpop.permute.xlu0 %3571
        %v3575 = vadd.f32 %v3543, %v3570
        %v3576 = vadd.f32 %v3544, %v3572
        %s3577 = sld [smem:[#allocation4 + $0xd6]]
        %v3578 = vstv %s3577
        %v3579 = vmul.f32 %v3578, %v3537
        %v3580 = vmul.f32 %v3578, %v3538
        %3583 = vrot.lane.b32.xlu0 %v3579, 127
        %v3584 = vpop.permute.xlu0 %3583
        %3585 = vrot.lane.b32.xlu0 %v3580, 127
        %v3586 = vpop.permute.xlu0 %3585
        %v3589 = vadd.f32 %v3549, %v3584
        %v3590 = vadd.f32 %v3550, %v3586
        %s3591 = sld [smem:[#allocation4 + $0xfa]]
        %v3592 = vstv %s3591
        %v3593 = vmul.f32 %v3592, %v3537
        %v3594 = vmul.f32 %v3592, %v3538
        %3597 = vrot.lane.b32.xlu0 %v3593, 127
        %v3598 = vpop.permute.xlu0 %3597
        %3599 = vrot.lane.b32.xlu0 %v3594, 127
        %v3600 = vpop.permute.xlu0 %3599
        %v3603 = vadd.f32 %v3555, %v3598
        %v3604 = vadd.f32 %v3556, %v3600
        %s3605 = sld [smem:[#allocation4 + $0x11e]]
        %v3606 = vstv %s3605
        %v3607 = vmul.f32 %v3606, %v3537
        %v3608 = vmul.f32 %v3606, %v3538
        %3611 = vrot.lane.b32.xlu0 %v3607, 127
        %v3612 = vpop.permute.xlu0 %3611
        %3613 = vrot.lane.b32.xlu0 %v3608, 127
        %v3614 = vpop.permute.xlu0 %3613
        %v3617 = vadd.f32 %v3561, %v3612
        %v3618 = vadd.f32 %v3562, %v3614
        %s3619 = sld [smem:[#allocation4 + $0xb3]]
        %v3620 = vstv %s3619
        %v3621 = vmul.f32 %v3620, %v3537
        %v3622 = vmul.f32 %v3620, %v3538
        %3625 = vrot.lane.b32.xlu0 %v3621, 126
        %v3626 = vpop.permute.xlu0 %3625
        %3627 = vrot.lane.b32.xlu0 %v3622, 126
        %v3628 = vpop.permute.xlu0 %3627
        %v3631 = vadd.f32 %v3575, %v3626
        %v3632 = vadd.f32 %v3576, %v3628
        %s3633 = sld [smem:[#allocation4 + $0xd7]]
        %v3634 = vstv %s3633
        %v3635 = vmul.f32 %v3634, %v3537
        %v3636 = vmul.f32 %v3634, %v3538
        %3639 = vrot.lane.b32.xlu0 %v3635, 126
        %v3640 = vpop.permute.xlu0 %3639
        %3641 = vrot.lane.b32.xlu0 %v3636, 126
        %v3642 = vpop.permute.xlu0 %3641
        %v3645 = vadd.f32 %v3589, %v3640
        %v3646 = vadd.f32 %v3590, %v3642
        %s3647 = sld [smem:[#allocation4 + $0xfb]]
        %v3648 = vstv %s3647
        %v3649 = vmul.f32 %v3648, %v3537
        %v3650 = vmul.f32 %v3648, %v3538
        %3653 = vrot.lane.b32.xlu0 %v3649, 126
        %v3654 = vpop.permute.xlu0 %3653
        %3655 = vrot.lane.b32.xlu0 %v3650, 126
        %v3656 = vpop.permute.xlu0 %3655
        %v3659 = vadd.f32 %v3603, %v3654
        %v3660 = vadd.f32 %v3604, %v3656
        %s3661 = sld [smem:[#allocation4 + $0x11f]]
        %v3662 = vstv %s3661
        %v3663 = vmul.f32 %v3662, %v3537
        %v3664 = vmul.f32 %v3662, %v3538
        %3667 = vrot.lane.b32.xlu0 %v3663, 126
        %v3668 = vpop.permute.xlu0 %3667
        %3669 = vrot.lane.b32.xlu0 %v3664, 126
        %v3670 = vpop.permute.xlu0 %3669
        %v3673 = vadd.f32 %v3617, %v3668
        %v3674 = vadd.f32 %v3618, %v3670
        %s3675 = sld [smem:[#allocation7 + $0x4]]
        %v3676 = vstv %s3675
        %v3677 = vadd.f32 %v3631, %v3676
        %v3678 = vadd.f32 %v3632, %v3676
        %s3679 = sld [smem:[#allocation7 + $0x5]]
        %v3680 = vstv %s3679
        %v3681 = vadd.f32 %v3645, %v3680
        %v3682 = vadd.f32 %v3646, %v3680
        %s3683 = sld [smem:[#allocation7 + $0x6]]
        %v3684 = vstv %s3683
        %v3685 = vadd.f32 %v3659, %v3684
        %v3686 = vadd.f32 %v3660, %v3684
        %s3687 = sld [smem:[#allocation7 + $0x7]]
        %v3688 = vstv %s3687
        %v3689 = vadd.f32 %v3673, %v3688
        %v3690 = vadd.f32 %v3674, %v3688
        %v3691 = vmax.f32 %v3677, 0.0
        %v3692 = vmax.f32 %v3678, 0.0
        %3695 = vrot.lane.b32.xlu0 %v3691, 1
        %v3696 = vpop.permute.xlu0 %3695
        %3697 = vrot.lane.b32.xlu0 %v3692, 1
        %v3698 = vpop.permute.xlu0 %3697
        %3701 = vst.msk [vmem:[#allocation2 + $0x1] sm:$0xff] %vm281, %v3696
        %3702 = vst.msk [vmem:[#allocation2 + $0x9] sm:$0xff] %vm281, %v3698
        %v3703 = vmax.f32 %v3681, 0.0
        %v3704 = vmax.f32 %v3682, 0.0
        %3707 = vrot.lane.b32.xlu0 %v3703, 1
        %v3708 = vpop.permute.xlu0 %3707
        %3709 = vrot.lane.b32.xlu0 %v3704, 1
        %v3710 = vpop.permute.xlu0 %3709
        %3713 = vst.msk [vmem:[%s209 + $0x1] sm:$0xff] %vm281, %v3708
        %3714 = vst.msk [vmem:[%s209 + $0x9] sm:$0xff] %vm281, %v3710
        %v3715 = vmax.f32 %v3685, 0.0
        %v3716 = vmax.f32 %v3686, 0.0
        %3719 = vrot.lane.b32.xlu0 %v3715, 1
        %v3720 = vpop.permute.xlu0 %3719
        %3721 = vrot.lane.b32.xlu0 %v3716, 1
        %v3722 = vpop.permute.xlu0 %3721
        %3725 = vst.msk [vmem:[%s218 + $0x1] sm:$0xff] %vm281, %v3720
        %3726 = vst.msk [vmem:[%s218 + $0x9] sm:$0xff] %vm281, %v3722
        %v3727 = vmax.f32 %v3689, 0.0
        %v3728 = vmax.f32 %v3690, 0.0
        %3731 = vrot.lane.b32.xlu0 %v3727, 1
        %v3732 = vpop.permute.xlu0 %3731
        %3733 = vrot.lane.b32.xlu0 %v3728, 1
        %v3734 = vpop.permute.xlu0 %3733
        %3737 = vst.msk [vmem:[%s227 + $0x1] sm:$0xff] %vm281, %v3732
        %3738 = vst.msk [vmem:[%s227 + $0x9] sm:$0xff] %vm281, %v3734
        %v3739 = vld [vmem:[#allocation2] sm:$0xff]
        %v3740 = vld [vmem:[#allocation2 + $0x8] sm:$0xff]
        %s3741 = sld [smem:[#allocation4 + $0x120]]
        %v3742 = vstv %s3741
        %v3743 = vmul.f32 %v3742, %v3739
        %v3744 = vmul.f32 %v3742, %v3740
        %s3745 = sld [smem:[#allocation4 + $0x144]]
        %v3746 = vstv %s3745
        %v3747 = vmul.f32 %v3746, %v3739
        %v3748 = vmul.f32 %v3746, %v3740
        %s3749 = sld [smem:[#allocation4 + $0x168]]
        %v3750 = vstv %s3749
        %v3751 = vmul.f32 %v3750, %v3739
        %v3752 = vmul.f32 %v3750, %v3740
        %s3753 = sld [smem:[#allocation4 + $0x18c]]
        %v3754 = vstv %s3753
        %v3755 = vmul.f32 %v3754, %v3739
        %v3756 = vmul.f32 %v3754, %v3740
        %s3757 = sld [smem:[#allocation4 + $0x121]]
        %v3758 = vstv %s3757
        %v3759 = vmul.f32 %v3758, %v3739
        %v3760 = vmul.f32 %v3758, %v3740
        %3763 = vrot.lane.b32.xlu0 %v3759, 127
        %v3764 = vpop.permute.xlu0 %3763
        %3765 = vrot.lane.b32.xlu0 %v3760, 127
        %v3766 = vpop.permute.xlu0 %3765
        %v3769 = vadd.f32 %v3743, %v3764
        %v3770 = vadd.f32 %v3744, %v3766
        %s3771 = sld [smem:[#allocation4 + $0x145]]
        %v3772 = vstv %s3771
        %v3773 = vmul.f32 %v3772, %v3739
        %v3774 = vmul.f32 %v3772, %v3740
        %3777 = vrot.lane.b32.xlu0 %v3773, 127
        %v3778 = vpop.permute.xlu0 %3777
        %3779 = vrot.lane.b32.xlu0 %v3774, 127
        %v3780 = vpop.permute.xlu0 %3779
        %v3783 = vadd.f32 %v3747, %v3778
        %v3784 = vadd.f32 %v3748, %v3780
        %s3785 = sld [smem:[#allocation4 + $0x169]]
        %v3786 = vstv %s3785
        %v3787 = vmul.f32 %v3786, %v3739
        %v3788 = vmul.f32 %v3786, %v3740
        %3791 = vrot.lane.b32.xlu0 %v3787, 127
        %v3792 = vpop.permute.xlu0 %3791
        %3793 = vrot.lane.b32.xlu0 %v3788, 127
        %v3794 = vpop.permute.xlu0 %3793
        %v3797 = vadd.f32 %v3751, %v3792
        %v3798 = vadd.f32 %v3752, %v3794
        %s3799 = sld [smem:[#allocation4 + $0x18d]]
        %v3800 = vstv %s3799
        %v3801 = vmul.f32 %v3800, %v3739
        %v3802 = vmul.f32 %v3800, %v3740
        %3805 = vrot.lane.b32.xlu0 %v3801, 127
        %v3806 = vpop.permute.xlu0 %3805
        %3807 = vrot.lane.b32.xlu0 %v3802, 127
        %v3808 = vpop.permute.xlu0 %3807
        %v3811 = vadd.f32 %v3755, %v3806
        %v3812 = vadd.f32 %v3756, %v3808
        %s3813 = sld [smem:[#allocation4 + $0x122]]
        %v3814 = vstv %s3813
        %v3815 = vmul.f32 %v3814, %v3739
        %v3816 = vmul.f32 %v3814, %v3740
        %3819 = vrot.lane.b32.xlu0 %v3815, 126
        %v3820 = vpop.permute.xlu0 %3819
        %3821 = vrot.lane.b32.xlu0 %v3816, 126
        %v3822 = vpop.permute.xlu0 %3821
        %v3825 = vadd.f32 %v3769, %v3820
        %v3826 = vadd.f32 %v3770, %v3822
        %s3827 = sld [smem:[#allocation4 + $0x146]]
        %v3828 = vstv %s3827
        %v3829 = vmul.f32 %v3828, %v3739
        %v3830 = vmul.f32 %v3828, %v3740
        %3833 = vrot.lane.b32.xlu0 %v3829, 126
        %v3834 = vpop.permute.xlu0 %3833
        %3835 = vrot.lane.b32.xlu0 %v3830, 126
        %v3836 = vpop.permute.xlu0 %3835
        %v3839 = vadd.f32 %v3783, %v3834
        %v3840 = vadd.f32 %v3784, %v3836
        %s3841 = sld [smem:[#allocation4 + $0x16a]]
        %v3842 = vstv %s3841
        %v3843 = vmul.f32 %v3842, %v3739
        %v3844 = vmul.f32 %v3842, %v3740
        %3847 = vrot.lane.b32.xlu0 %v3843, 126
        %v3848 = vpop.permute.xlu0 %3847
        %3849 = vrot.lane.b32.xlu0 %v3844, 126
        %v3850 = vpop.permute.xlu0 %3849
        %v3853 = vadd.f32 %v3797, %v3848
        %v3854 = vadd.f32 %v3798, %v3850
        %s3855 = sld [smem:[#allocation4 + $0x18e]]
        %v3856 = vstv %s3855
        %v3857 = vmul.f32 %v3856, %v3739
        %v3858 = vmul.f32 %v3856, %v3740
        %3861 = vrot.lane.b32.xlu0 %v3857, 126
        %v3862 = vpop.permute.xlu0 %3861
        %3863 = vrot.lane.b32.xlu0 %v3858, 126
        %v3864 = vpop.permute.xlu0 %3863
        %v3867 = vadd.f32 %v3811, %v3862
        %v3868 = vadd.f32 %v3812, %v3864
        %v3869 = vld [vmem:[#allocation2 + $0x1] sm:$0xff]
        %v3870 = vld [vmem:[#allocation2 + $0x9] sm:$0xff]
        %s3871 = sld [smem:[#allocation4 + $0x123]]
        %v3872 = vstv %s3871
        %v3873 = vmul.f32 %v3872, %v3869
        %v3874 = vmul.f32 %v3872, %v3870
        %v3875 = vadd.f32 %v3825, %v3873
        %v3876 = vadd.f32 %v3826, %v3874
        %s3877 = sld [smem:[#allocation4 + $0x147]]
        %v3878 = vstv %s3877
        %v3879 = vmul.f32 %v3878, %v3869
        %v3880 = vmul.f32 %v3878, %v3870
        %v3881 = vadd.f32 %v3839, %v3879
        %v3882 = vadd.f32 %v3840, %v3880
        %s3883 = sld [smem:[#allocation4 + $0x16b]]
        %v3884 = vstv %s3883
        %v3885 = vmul.f32 %v3884, %v3869
        %v3886 = vmul.f32 %v3884, %v3870
        %v3887 = vadd.f32 %v3853, %v3885
        %v3888 = vadd.f32 %v3854, %v3886
        %s3889 = sld [smem:[#allocation4 + $0x18f]]
        %v3890 = vstv %s3889
        %v3891 = vmul.f32 %v3890, %v3869
        %v3892 = vmul.f32 %v3890, %v3870
        %v3893 = vadd.f32 %v3867, %v3891
        %v3894 = vadd.f32 %v3868, %v3892
        %s3895 = sld [smem:[#allocation4 + $0x124]]
        %v3896 = vstv %s3895
        %v3897 = vmul.f32 %v3896, %v3869
        %v3898 = vmul.f32 %v3896, %v3870
        %3901 = vrot.lane.b32.xlu0 %v3897, 127
        %v3902 = vpop.permute.xlu0 %3901
        %3903 = vrot.lane.b32.xlu0 %v3898, 127
        %v3904 = vpop.permute.xlu0 %3903
        %v3907 = vadd.f32 %v3875, %v3902
        %v3908 = vadd.f32 %v3876, %v3904
        %s3909 = sld [smem:[#allocation4 + $0x148]]
        %v3910 = vstv %s3909
        %v3911 = vmul.f32 %v3910, %v3869
        %v3912 = vmul.f32 %v3910, %v3870
        %3915 = vrot.lane.b32.xlu0 %v3911, 127
        %v3916 = vpop.permute.xlu0 %3915
        %3917 = vrot.lane.b32.xlu0 %v3912, 127
        %v3918 = vpop.permute.xlu0 %3917
        %v3921 = vadd.f32 %v3881, %v3916
        %v3922 = vadd.f32 %v3882, %v3918
        %s3923 = sld [smem:[#allocation4 + $0x16c]]
        %v3924 = vstv %s3923
        %v3925 = vmul.f32 %v3924, %v3869
        %v3926 = vmul.f32 %v3924, %v3870
        %3929 = vrot.lane.b32.xlu0 %v3925, 127
        %v3930 = vpop.permute.xlu0 %3929
        %3931 = vrot.lane.b32.xlu0 %v3926, 127
        %v3932 = vpop.permute.xlu0 %3931
        %v3935 = vadd.f32 %v3887, %v3930
        %v3936 = vadd.f32 %v3888, %v3932
        %s3937 = sld [smem:[#allocation4 + $0x190]]
        %v3938 = vstv %s3937
        %v3939 = vmul.f32 %v3938, %v3869
        %v3940 = vmul.f32 %v3938, %v3870
        %3943 = vrot.lane.b32.xlu0 %v3939, 127
        %v3944 = vpop.permute.xlu0 %3943
        %3945 = vrot.lane.b32.xlu0 %v3940, 127
        %v3946 = vpop.permute.xlu0 %3945
        %v3949 = vadd.f32 %v3893, %v3944
        %v3950 = vadd.f32 %v3894, %v3946
        %s3951 = sld [smem:[#allocation4 + $0x125]]
        %v3952 = vstv %s3951
        %v3953 = vmul.f32 %v3952, %v3869
        %v3954 = vmul.f32 %v3952, %v3870
        %3957 = vrot.lane.b32.xlu0 %v3953, 126
        %v3958 = vpop.permute.xlu0 %3957
        %3959 = vrot.lane.b32.xlu0 %v3954, 126
        %v3960 = vpop.permute.xlu0 %3959
        %v3963 = vadd.f32 %v3907, %v3958
        %v3964 = vadd.f32 %v3908, %v3960
        %s3965 = sld [smem:[#allocation4 + $0x149]]
        %v3966 = vstv %s3965
        %v3967 = vmul.f32 %v3966, %v3869
        %v3968 = vmul.f32 %v3966, %v3870
        %3971 = vrot.lane.b32.xlu0 %v3967, 126
        %v3972 = vpop.permute.xlu0 %3971
        %3973 = vrot.lane.b32.xlu0 %v3968, 126
        %v3974 = vpop.permute.xlu0 %3973
        %v3977 = vadd.f32 %v3921, %v3972
        %v3978 = vadd.f32 %v3922, %v3974
        %s3979 = sld [smem:[#allocation4 + $0x16d]]
        %v3980 = vstv %s3979
        %v3981 = vmul.f32 %v3980, %v3869
        %v3982 = vmul.f32 %v3980, %v3870
        %3985 = vrot.lane.b32.xlu0 %v3981, 126
        %v3986 = vpop.permute.xlu0 %3985
        %3987 = vrot.lane.b32.xlu0 %v3982, 126
        %v3988 = vpop.permute.xlu0 %3987
        %v3991 = vadd.f32 %v3935, %v3986
        %v3992 = vadd.f32 %v3936, %v3988
        %s3993 = sld [smem:[#allocation4 + $0x191]]
        %v3994 = vstv %s3993
        %v3995 = vmul.f32 %v3994, %v3869
        %v3996 = vmul.f32 %v3994, %v3870
        %3999 = vrot.lane.b32.xlu0 %v3995, 126
        %v4000 = vpop.permute.xlu0 %3999
        %4001 = vrot.lane.b32.xlu0 %v3996, 126
        %v4002 = vpop.permute.xlu0 %4001
        %v4005 = vadd.f32 %v3949, %v4000
        %v4006 = vadd.f32 %v3950, %v4002
        %v4007 = vld [vmem:[#allocation2 + $0x2] sm:$0xff]
        %v4008 = vld [vmem:[#allocation2 + $0xa] sm:$0xff]
        %s4009 = sld [smem:[#allocation4 + $0x126]]
        %v4010 = vstv %s4009
        %v4011 = vmul.f32 %v4010, %v4007
        %v4012 = vmul.f32 %v4010, %v4008
        %v4013 = vadd.f32 %v3963, %v4011
        %v4014 = vadd.f32 %v3964, %v4012
        %s4015 = sld [smem:[#allocation4 + $0x14a]]
        %v4016 = vstv %s4015
        %v4017 = vmul.f32 %v4016, %v4007
        %v4018 = vmul.f32 %v4016, %v4008
        %v4019 = vadd.f32 %v3977, %v4017
        %v4020 = vadd.f32 %v3978, %v4018
        %s4021 = sld [smem:[#allocation4 + $0x16e]]
        %v4022 = vstv %s4021
        %v4023 = vmul.f32 %v4022, %v4007
        %v4024 = vmul.f32 %v4022, %v4008
        %v4025 = vadd.f32 %v3991, %v4023
        %v4026 = vadd.f32 %v3992, %v4024
        %s4027 = sld [smem:[#allocation4 + $0x192]]
        %v4028 = vstv %s4027
        %v4029 = vmul.f32 %v4028, %v4007
        %v4030 = vmul.f32 %v4028, %v4008
        %v4031 = vadd.f32 %v4005, %v4029
        %v4032 = vadd.f32 %v4006, %v4030
        %s4033 = sld [smem:[#allocation4 + $0x127]]
        %v4034 = vstv %s4033
        %v4035 = vmul.f32 %v4034, %v4007
        %v4036 = vmul.f32 %v4034, %v4008
        %4039 = vrot.lane.b32.xlu0 %v4035, 127
        %v4040 = vpop.permute.xlu0 %4039
        %4041 = vrot.lane.b32.xlu0 %v4036, 127
        %v4042 = vpop.permute.xlu0 %4041
        %v4045 = vadd.f32 %v4013, %v4040
        %v4046 = vadd.f32 %v4014, %v4042
        %s4047 = sld [smem:[#allocation4 + $0x14b]]
        %v4048 = vstv %s4047
        %v4049 = vmul.f32 %v4048, %v4007
        %v4050 = vmul.f32 %v4048, %v4008
        %4053 = vrot.lane.b32.xlu0 %v4049, 127
        %v4054 = vpop.permute.xlu0 %4053
        %4055 = vrot.lane.b32.xlu0 %v4050, 127
        %v4056 = vpop.permute.xlu0 %4055
        %v4059 = vadd.f32 %v4019, %v4054
        %v4060 = vadd.f32 %v4020, %v4056
        %s4061 = sld [smem:[#allocation4 + $0x16f]]
        %v4062 = vstv %s4061
        %v4063 = vmul.f32 %v4062, %v4007
        %v4064 = vmul.f32 %v4062, %v4008
        %4067 = vrot.lane.b32.xlu0 %v4063, 127
        %v4068 = vpop.permute.xlu0 %4067
        %4069 = vrot.lane.b32.xlu0 %v4064, 127
        %v4070 = vpop.permute.xlu0 %4069
        %v4073 = vadd.f32 %v4025, %v4068
        %v4074 = vadd.f32 %v4026, %v4070
        %s4075 = sld [smem:[#allocation4 + $0x193]]
        %v4076 = vstv %s4075
        %v4077 = vmul.f32 %v4076, %v4007
        %v4078 = vmul.f32 %v4076, %v4008
        %4081 = vrot.lane.b32.xlu0 %v4077, 127
        %v4082 = vpop.permute.xlu0 %4081
        %4083 = vrot.lane.b32.xlu0 %v4078, 127
        %v4084 = vpop.permute.xlu0 %4083
        %v4087 = vadd.f32 %v4031, %v4082
        %v4088 = vadd.f32 %v4032, %v4084
        %s4089 = sld [smem:[#allocation4 + $0x128]]
        %v4090 = vstv %s4089
        %v4091 = vmul.f32 %v4090, %v4007
        %v4092 = vmul.f32 %v4090, %v4008
        %4095 = vrot.lane.b32.xlu0 %v4091, 126
        %v4096 = vpop.permute.xlu0 %4095
        %4097 = vrot.lane.b32.xlu0 %v4092, 126
        %v4098 = vpop.permute.xlu0 %4097
        %v4101 = vadd.f32 %v4045, %v4096
        %v4102 = vadd.f32 %v4046, %v4098
        %s4103 = sld [smem:[#allocation4 + $0x14c]]
        %v4104 = vstv %s4103
        %v4105 = vmul.f32 %v4104, %v4007
        %v4106 = vmul.f32 %v4104, %v4008
        %4109 = vrot.lane.b32.xlu0 %v4105, 126
        %v4110 = vpop.permute.xlu0 %4109
        %4111 = vrot.lane.b32.xlu0 %v4106, 126
        %v4112 = vpop.permute.xlu0 %4111
        %v4115 = vadd.f32 %v4059, %v4110
        %v4116 = vadd.f32 %v4060, %v4112
        %s4117 = sld [smem:[#allocation4 + $0x170]]
        %v4118 = vstv %s4117
        %v4119 = vmul.f32 %v4118, %v4007
        %v4120 = vmul.f32 %v4118, %v4008
        %4123 = vrot.lane.b32.xlu0 %v4119, 126
        %v4124 = vpop.permute.xlu0 %4123
        %4125 = vrot.lane.b32.xlu0 %v4120, 126
        %v4126 = vpop.permute.xlu0 %4125
        %v4129 = vadd.f32 %v4073, %v4124
        %v4130 = vadd.f32 %v4074, %v4126
        %s4131 = sld [smem:[#allocation4 + $0x194]]
        %v4132 = vstv %s4131
        %v4133 = vmul.f32 %v4132, %v4007
        %v4134 = vmul.f32 %v4132, %v4008
        %4137 = vrot.lane.b32.xlu0 %v4133, 126
        %v4138 = vpop.permute.xlu0 %4137
        %4139 = vrot.lane.b32.xlu0 %v4134, 126
        %v4140 = vpop.permute.xlu0 %4139
        %v4143 = vadd.f32 %v4087, %v4138
        %v4144 = vadd.f32 %v4088, %v4140
        %v4145 = vld [vmem:[%s209] sm:$0xff]
        %v4146 = vld [vmem:[%s209 + $0x8] sm:$0xff]
        %s4147 = sld [smem:[#allocation4 + $0x129]]
        %v4148 = vstv %s4147
        %v4149 = vmul.f32 %v4148, %v4145
        %v4150 = vmul.f32 %v4148, %v4146
        %v4151 = vadd.f32 %v4101, %v4149
        %v4152 = vadd.f32 %v4102, %v4150
        %s4153 = sld [smem:[#allocation4 + $0x14d]]
        %v4154 = vstv %s4153
        %v4155 = vmul.f32 %v4154, %v4145
        %v4156 = vmul.f32 %v4154, %v4146
        %v4157 = vadd.f32 %v4115, %v4155
        %v4158 = vadd.f32 %v4116, %v4156
        %s4159 = sld [smem:[#allocation4 + $0x171]]
        %v4160 = vstv %s4159
        %v4161 = vmul.f32 %v4160, %v4145
        %v4162 = vmul.f32 %v4160, %v4146
        %v4163 = vadd.f32 %v4129, %v4161
        %v4164 = vadd.f32 %v4130, %v4162
        %s4165 = sld [smem:[#allocation4 + $0x195]]
        %v4166 = vstv %s4165
        %v4167 = vmul.f32 %v4166, %v4145
        %v4168 = vmul.f32 %v4166, %v4146
        %v4169 = vadd.f32 %v4143, %v4167
        %v4170 = vadd.f32 %v4144, %v4168
        %s4171 = sld [smem:[#allocation4 + $0x12a]]
        %v4172 = vstv %s4171
        %v4173 = vmul.f32 %v4172, %v4145
        %v4174 = vmul.f32 %v4172, %v4146
        %4177 = vrot.lane.b32.xlu0 %v4173, 127
        %v4178 = vpop.permute.xlu0 %4177
        %4179 = vrot.lane.b32.xlu0 %v4174, 127
        %v4180 = vpop.permute.xlu0 %4179
        %v4183 = vadd.f32 %v4151, %v4178
        %v4184 = vadd.f32 %v4152, %v4180
        %s4185 = sld [smem:[#allocation4 + $0x14e]]
        %v4186 = vstv %s4185
        %v4187 = vmul.f32 %v4186, %v4145
        %v4188 = vmul.f32 %v4186, %v4146
        %4191 = vrot.lane.b32.xlu0 %v4187, 127
        %v4192 = vpop.permute.xlu0 %4191
        %4193 = vrot.lane.b32.xlu0 %v4188, 127
        %v4194 = vpop.permute.xlu0 %4193
        %v4197 = vadd.f32 %v4157, %v4192
        %v4198 = vadd.f32 %v4158, %v4194
        %s4199 = sld [smem:[#allocation4 + $0x172]]
        %v4200 = vstv %s4199
        %v4201 = vmul.f32 %v4200, %v4145
        %v4202 = vmul.f32 %v4200, %v4146
        %4205 = vrot.lane.b32.xlu0 %v4201, 127
        %v4206 = vpop.permute.xlu0 %4205
        %4207 = vrot.lane.b32.xlu0 %v4202, 127
        %v4208 = vpop.permute.xlu0 %4207
        %v4211 = vadd.f32 %v4163, %v4206
        %v4212 = vadd.f32 %v4164, %v4208
        %s4213 = sld [smem:[#allocation4 + $0x196]]
        %v4214 = vstv %s4213
        %v4215 = vmul.f32 %v4214, %v4145
        %v4216 = vmul.f32 %v4214, %v4146
        %4219 = vrot.lane.b32.xlu0 %v4215, 127
        %v4220 = vpop.permute.xlu0 %4219
        %4221 = vrot.lane.b32.xlu0 %v4216, 127
        %v4222 = vpop.permute.xlu0 %4221
        %v4225 = vadd.f32 %v4169, %v4220
        %v4226 = vadd.f32 %v4170, %v4222
        %s4227 = sld [smem:[#allocation4 + $0x12b]]
        %v4228 = vstv %s4227
        %v4229 = vmul.f32 %v4228, %v4145
        %v4230 = vmul.f32 %v4228, %v4146
        %4233 = vrot.lane.b32.xlu0 %v4229, 126
        %v4234 = vpop.permute.xlu0 %4233
        %4235 = vrot.lane.b32.xlu0 %v4230, 126
        %v4236 = vpop.permute.xlu0 %4235
        %v4239 = vadd.f32 %v4183, %v4234
        %v4240 = vadd.f32 %v4184, %v4236
        %s4241 = sld [smem:[#allocation4 + $0x14f]]
        %v4242 = vstv %s4241
        %v4243 = vmul.f32 %v4242, %v4145
        %v4244 = vmul.f32 %v4242, %v4146
        %4247 = vrot.lane.b32.xlu0 %v4243, 126
        %v4248 = vpop.permute.xlu0 %4247
        %4249 = vrot.lane.b32.xlu0 %v4244, 126
        %v4250 = vpop.permute.xlu0 %4249
        %v4253 = vadd.f32 %v4197, %v4248
        %v4254 = vadd.f32 %v4198, %v4250
        %s4255 = sld [smem:[#allocation4 + $0x173]]
        %v4256 = vstv %s4255
        %v4257 = vmul.f32 %v4256, %v4145
        %v4258 = vmul.f32 %v4256, %v4146
        %4261 = vrot.lane.b32.xlu0 %v4257, 126
        %v4262 = vpop.permute.xlu0 %4261
        %4263 = vrot.lane.b32.xlu0 %v4258, 126
        %v4264 = vpop.permute.xlu0 %4263
        %v4267 = vadd.f32 %v4211, %v4262
        %v4268 = vadd.f32 %v4212, %v4264
        %s4269 = sld [smem:[#allocation4 + $0x197]]
        %v4270 = vstv %s4269
        %v4271 = vmul.f32 %v4270, %v4145
        %v4272 = vmul.f32 %v4270, %v4146
        %4275 = vrot.lane.b32.xlu0 %v4271, 126
        %v4276 = vpop.permute.xlu0 %4275
        %4277 = vrot.lane.b32.xlu0 %v4272, 126
        %v4278 = vpop.permute.xlu0 %4277
        %v4281 = vadd.f32 %v4225, %v4276
        %v4282 = vadd.f32 %v4226, %v4278
        %v4283 = vld [vmem:[%s209 + $0x1] sm:$0xff]
        %v4284 = vld [vmem:[%s209 + $0x9] sm:$0xff]
        %s4285 = sld [smem:[#allocation4 + $0x12c]]
        %v4286 = vstv %s4285
        %v4287 = vmul.f32 %v4286, %v4283
        %v4288 = vmul.f32 %v4286, %v4284
        %v4289 = vadd.f32 %v4239, %v4287
        %v4290 = vadd.f32 %v4240, %v4288
        %s4291 = sld [smem:[#allocation4 + $0x150]]
        %v4292 = vstv %s4291
        %v4293 = vmul.f32 %v4292, %v4283
        %v4294 = vmul.f32 %v4292, %v4284
        %v4295 = vadd.f32 %v4253, %v4293
        %v4296 = vadd.f32 %v4254, %v4294
        %s4297 = sld [smem:[#allocation4 + $0x174]]
        %v4298 = vstv %s4297
        %v4299 = vmul.f32 %v4298, %v4283
        %v4300 = vmul.f32 %v4298, %v4284
        %v4301 = vadd.f32 %v4267, %v4299
        %v4302 = vadd.f32 %v4268, %v4300
        %s4303 = sld [smem:[#allocation4 + $0x198]]
        %v4304 = vstv %s4303
        %v4305 = vmul.f32 %v4304, %v4283
        %v4306 = vmul.f32 %v4304, %v4284
        %v4307 = vadd.f32 %v4281, %v4305
        %v4308 = vadd.f32 %v4282, %v4306
        %s4309 = sld [smem:[#allocation4 + $0x12d]]
        %v4310 = vstv %s4309
        %v4311 = vmul.f32 %v4310, %v4283
        %v4312 = vmul.f32 %v4310, %v4284
        %4315 = vrot.lane.b32.xlu0 %v4311, 127
        %v4316 = vpop.permute.xlu0 %4315
        %4317 = vrot.lane.b32.xlu0 %v4312, 127
        %v4318 = vpop.permute.xlu0 %4317
        %v4321 = vadd.f32 %v4289, %v4316
        %v4322 = vadd.f32 %v4290, %v4318
        %s4323 = sld [smem:[#allocation4 + $0x151]]
        %v4324 = vstv %s4323
        %v4325 = vmul.f32 %v4324, %v4283
        %v4326 = vmul.f32 %v4324, %v4284
        %4329 = vrot.lane.b32.xlu0 %v4325, 127
        %v4330 = vpop.permute.xlu0 %4329
        %4331 = vrot.lane.b32.xlu0 %v4326, 127
        %v4332 = vpop.permute.xlu0 %4331
        %v4335 = vadd.f32 %v4295, %v4330
        %v4336 = vadd.f32 %v4296, %v4332
        %s4337 = sld [smem:[#allocation4 + $0x175]]
        %v4338 = vstv %s4337
        %v4339 = vmul.f32 %v4338, %v4283
        %v4340 = vmul.f32 %v4338, %v4284
        %4343 = vrot.lane.b32.xlu0 %v4339, 127
        %v4344 = vpop.permute.xlu0 %4343
        %4345 = vrot.lane.b32.xlu0 %v4340, 127
        %v4346 = vpop.permute.xlu0 %4345
        %v4349 = vadd.f32 %v4301, %v4344
        %v4350 = vadd.f32 %v4302, %v4346
        %s4351 = sld [smem:[#allocation4 + $0x199]]
        %v4352 = vstv %s4351
        %v4353 = vmul.f32 %v4352, %v4283
        %v4354 = vmul.f32 %v4352, %v4284
        %4357 = vrot.lane.b32.xlu0 %v4353, 127
        %v4358 = vpop.permute.xlu0 %4357
        %4359 = vrot.lane.b32.xlu0 %v4354, 127
        %v4360 = vpop.permute.xlu0 %4359
        %v4363 = vadd.f32 %v4307, %v4358
        %v4364 = vadd.f32 %v4308, %v4360
        %s4365 = sld [smem:[#allocation4 + $0x12e]]
        %v4366 = vstv %s4365
        %v4367 = vmul.f32 %v4366, %v4283
        %v4368 = vmul.f32 %v4366, %v4284
        %4371 = vrot.lane.b32.xlu0 %v4367, 126
        %v4372 = vpop.permute.xlu0 %4371
        %4373 = vrot.lane.b32.xlu0 %v4368, 126
        %v4374 = vpop.permute.xlu0 %4373
        %v4377 = vadd.f32 %v4321, %v4372
        %v4378 = vadd.f32 %v4322, %v4374
        %s4379 = sld [smem:[#allocation4 + $0x152]]
        %v4380 = vstv %s4379
        %v4381 = vmul.f32 %v4380, %v4283
        %v4382 = vmul.f32 %v4380, %v4284
        %4385 = vrot.lane.b32.xlu0 %v4381, 126
        %v4386 = vpop.permute.xlu0 %4385
        %4387 = vrot.lane.b32.xlu0 %v4382, 126
        %v4388 = vpop.permute.xlu0 %4387
        %v4391 = vadd.f32 %v4335, %v4386
        %v4392 = vadd.f32 %v4336, %v4388
        %s4393 = sld [smem:[#allocation4 + $0x176]]
        %v4394 = vstv %s4393
        %v4395 = vmul.f32 %v4394, %v4283
        %v4396 = vmul.f32 %v4394, %v4284
        %4399 = vrot.lane.b32.xlu0 %v4395, 126
        %v4400 = vpop.permute.xlu0 %4399
        %4401 = vrot.lane.b32.xlu0 %v4396, 126
        %v4402 = vpop.permute.xlu0 %4401
        %v4405 = vadd.f32 %v4349, %v4400
        %v4406 = vadd.f32 %v4350, %v4402
        %s4407 = sld [smem:[#allocation4 + $0x19a]]
        %v4408 = vstv %s4407
        %v4409 = vmul.f32 %v4408, %v4283
        %v4410 = vmul.f32 %v4408, %v4284
        %4413 = vrot.lane.b32.xlu0 %v4409, 126
        %v4414 = vpop.permute.xlu0 %4413
        %4415 = vrot.lane.b32.xlu0 %v4410, 126
        %v4416 = vpop.permute.xlu0 %4415
        %v4419 = vadd.f32 %v4363, %v4414
        %v4420 = vadd.f32 %v4364, %v4416
        %v4421 = vld [vmem:[%s209 + $0x2] sm:$0xff]
        %v4422 = vld [vmem:[%s209 + $0xa] sm:$0xff]
        %s4423 = sld [smem:[#allocation4 + $0x12f]]
        %v4424 = vstv %s4423
        %v4425 = vmul.f32 %v4424, %v4421
        %v4426 = vmul.f32 %v4424, %v4422
        %v4427 = vadd.f32 %v4377, %v4425
        %v4428 = vadd.f32 %v4378, %v4426
        %s4429 = sld [smem:[#allocation4 + $0x153]]
        %v4430 = vstv %s4429
        %v4431 = vmul.f32 %v4430, %v4421
        %v4432 = vmul.f32 %v4430, %v4422
        %v4433 = vadd.f32 %v4391, %v4431
        %v4434 = vadd.f32 %v4392, %v4432
        %s4435 = sld [smem:[#allocation4 + $0x177]]
        %v4436 = vstv %s4435
        %v4437 = vmul.f32 %v4436, %v4421
        %v4438 = vmul.f32 %v4436, %v4422
        %v4439 = vadd.f32 %v4405, %v4437
        %v4440 = vadd.f32 %v4406, %v4438
        %s4441 = sld [smem:[#allocation4 + $0x19b]]
        %v4442 = vstv %s4441
        %v4443 = vmul.f32 %v4442, %v4421
        %v4444 = vmul.f32 %v4442, %v4422
        %v4445 = vadd.f32 %v4419, %v4443
        %v4446 = vadd.f32 %v4420, %v4444
        %s4447 = sld [smem:[#allocation4 + $0x130]]
        %v4448 = vstv %s4447
        %v4449 = vmul.f32 %v4448, %v4421
        %v4450 = vmul.f32 %v4448, %v4422
        %4453 = vrot.lane.b32.xlu0 %v4449, 127
        %v4454 = vpop.permute.xlu0 %4453
        %4455 = vrot.lane.b32.xlu0 %v4450, 127
        %v4456 = vpop.permute.xlu0 %4455
        %v4459 = vadd.f32 %v4427, %v4454
        %v4460 = vadd.f32 %v4428, %v4456
        %s4461 = sld [smem:[#allocation4 + $0x154]]
        %v4462 = vstv %s4461
        %v4463 = vmul.f32 %v4462, %v4421
        %v4464 = vmul.f32 %v4462, %v4422
        %4467 = vrot.lane.b32.xlu0 %v4463, 127
        %v4468 = vpop.permute.xlu0 %4467
        %4469 = vrot.lane.b32.xlu0 %v4464, 127
        %v4470 = vpop.permute.xlu0 %4469
        %v4473 = vadd.f32 %v4433, %v4468
        %v4474 = vadd.f32 %v4434, %v4470
        %s4475 = sld [smem:[#allocation4 + $0x178]]
        %v4476 = vstv %s4475
        %v4477 = vmul.f32 %v4476, %v4421
        %v4478 = vmul.f32 %v4476, %v4422
        %4481 = vrot.lane.b32.xlu0 %v4477, 127
        %v4482 = vpop.permute.xlu0 %4481
        %4483 = vrot.lane.b32.xlu0 %v4478, 127
        %v4484 = vpop.permute.xlu0 %4483
        %v4487 = vadd.f32 %v4439, %v4482
        %v4488 = vadd.f32 %v4440, %v4484
        %s4489 = sld [smem:[#allocation4 + $0x19c]]
        %v4490 = vstv %s4489
        %v4491 = vmul.f32 %v4490, %v4421
        %v4492 = vmul.f32 %v4490, %v4422
        %4495 = vrot.lane.b32.xlu0 %v4491, 127
        %v4496 = vpop.permute.xlu0 %4495
        %4497 = vrot.lane.b32.xlu0 %v4492, 127
        %v4498 = vpop.permute.xlu0 %4497
        %v4501 = vadd.f32 %v4445, %v4496
        %v4502 = vadd.f32 %v4446, %v4498
        %s4503 = sld [smem:[#allocation4 + $0x131]]
        %v4504 = vstv %s4503
        %v4505 = vmul.f32 %v4504, %v4421
        %v4506 = vmul.f32 %v4504, %v4422
        %4509 = vrot.lane.b32.xlu0 %v4505, 126
        %v4510 = vpop.permute.xlu0 %4509
        %4511 = vrot.lane.b32.xlu0 %v4506, 126
        %v4512 = vpop.permute.xlu0 %4511
        %v4515 = vadd.f32 %v4459, %v4510
        %v4516 = vadd.f32 %v4460, %v4512
        %s4517 = sld [smem:[#allocation4 + $0x155]]
        %v4518 = vstv %s4517
        %v4519 = vmul.f32 %v4518, %v4421
        %v4520 = vmul.f32 %v4518, %v4422
        %4523 = vrot.lane.b32.xlu0 %v4519, 126
        %v4524 = vpop.permute.xlu0 %4523
        %4525 = vrot.lane.b32.xlu0 %v4520, 126
        %v4526 = vpop.permute.xlu0 %4525
        %v4529 = vadd.f32 %v4473, %v4524
        %v4530 = vadd.f32 %v4474, %v4526
        %s4531 = sld [smem:[#allocation4 + $0x179]]
        %v4532 = vstv %s4531
        %v4533 = vmul.f32 %v4532, %v4421
        %v4534 = vmul.f32 %v4532, %v4422
        %4537 = vrot.lane.b32.xlu0 %v4533, 126
        %v4538 = vpop.permute.xlu0 %4537
        %4539 = vrot.lane.b32.xlu0 %v4534, 126
        %v4540 = vpop.permute.xlu0 %4539
        %v4543 = vadd.f32 %v4487, %v4538
        %v4544 = vadd.f32 %v4488, %v4540
        %s4545 = sld [smem:[#allocation4 + $0x19d]]
        %v4546 = vstv %s4545
        %v4547 = vmul.f32 %v4546, %v4421
        %v4548 = vmul.f32 %v4546, %v4422
        %4551 = vrot.lane.b32.xlu0 %v4547, 126
        %v4552 = vpop.permute.xlu0 %4551
        %4553 = vrot.lane.b32.xlu0 %v4548, 126
        %v4554 = vpop.permute.xlu0 %4553
        %v4557 = vadd.f32 %v4501, %v4552
        %v4558 = vadd.f32 %v4502, %v4554
        %v4559 = vld [vmem:[%s218] sm:$0xff]
        %v4560 = vld [vmem:[%s218 + $0x8] sm:$0xff]
        %s4561 = sld [smem:[#allocation4 + $0x132]]
        %v4562 = vstv %s4561
        %v4563 = vmul.f32 %v4562, %v4559
        %v4564 = vmul.f32 %v4562, %v4560
        %v4565 = vadd.f32 %v4515, %v4563
        %v4566 = vadd.f32 %v4516, %v4564
        %s4567 = sld [smem:[#allocation4 + $0x156]]
        %v4568 = vstv %s4567
        %v4569 = vmul.f32 %v4568, %v4559
        %v4570 = vmul.f32 %v4568, %v4560
        %v4571 = vadd.f32 %v4529, %v4569
        %v4572 = vadd.f32 %v4530, %v4570
        %s4573 = sld [smem:[#allocation4 + $0x17a]]
        %v4574 = vstv %s4573
        %v4575 = vmul.f32 %v4574, %v4559
        %v4576 = vmul.f32 %v4574, %v4560
        %v4577 = vadd.f32 %v4543, %v4575
        %v4578 = vadd.f32 %v4544, %v4576
        %s4579 = sld [smem:[#allocation4 + $0x19e]]
        %v4580 = vstv %s4579
        %v4581 = vmul.f32 %v4580, %v4559
        %v4582 = vmul.f32 %v4580, %v4560
        %v4583 = vadd.f32 %v4557, %v4581
        %v4584 = vadd.f32 %v4558, %v4582
        %s4585 = sld [smem:[#allocation4 + $0x133]]
        %v4586 = vstv %s4585
        %v4587 = vmul.f32 %v4586, %v4559
        %v4588 = vmul.f32 %v4586, %v4560
        %4591 = vrot.lane.b32.xlu0 %v4587, 127
        %v4592 = vpop.permute.xlu0 %4591
        %4593 = vrot.lane.b32.xlu0 %v4588, 127
        %v4594 = vpop.permute.xlu0 %4593
        %v4597 = vadd.f32 %v4565, %v4592
        %v4598 = vadd.f32 %v4566, %v4594
        %s4599 = sld [smem:[#allocation4 + $0x157]]
        %v4600 = vstv %s4599
        %v4601 = vmul.f32 %v4600, %v4559
        %v4602 = vmul.f32 %v4600, %v4560
        %4605 = vrot.lane.b32.xlu0 %v4601, 127
        %v4606 = vpop.permute.xlu0 %4605
        %4607 = vrot.lane.b32.xlu0 %v4602, 127
        %v4608 = vpop.permute.xlu0 %4607
        %v4611 = vadd.f32 %v4571, %v4606
        %v4612 = vadd.f32 %v4572, %v4608
        %s4613 = sld [smem:[#allocation4 + $0x17b]]
        %v4614 = vstv %s4613
        %v4615 = vmul.f32 %v4614, %v4559
        %v4616 = vmul.f32 %v4614, %v4560
        %4619 = vrot.lane.b32.xlu0 %v4615, 127
        %v4620 = vpop.permute.xlu0 %4619
        %4621 = vrot.lane.b32.xlu0 %v4616, 127
        %v4622 = vpop.permute.xlu0 %4621
        %v4625 = vadd.f32 %v4577, %v4620
        %v4626 = vadd.f32 %v4578, %v4622
        %s4627 = sld [smem:[#allocation4 + $0x19f]]
        %v4628 = vstv %s4627
        %v4629 = vmul.f32 %v4628, %v4559
        %v4630 = vmul.f32 %v4628, %v4560
        %4633 = vrot.lane.b32.xlu0 %v4629, 127
        %v4634 = vpop.permute.xlu0 %4633
        %4635 = vrot.lane.b32.xlu0 %v4630, 127
        %v4636 = vpop.permute.xlu0 %4635
        %v4639 = vadd.f32 %v4583, %v4634
        %v4640 = vadd.f32 %v4584, %v4636
        %s4641 = sld [smem:[#allocation4 + $0x134]]
        %v4642 = vstv %s4641
        %v4643 = vmul.f32 %v4642, %v4559
        %v4644 = vmul.f32 %v4642, %v4560
        %4647 = vrot.lane.b32.xlu0 %v4643, 126
        %v4648 = vpop.permute.xlu0 %4647
        %4649 = vrot.lane.b32.xlu0 %v4644, 126
        %v4650 = vpop.permute.xlu0 %4649
        %v4653 = vadd.f32 %v4597, %v4648
        %v4654 = vadd.f32 %v4598, %v4650
        %s4655 = sld [smem:[#allocation4 + $0x158]]
        %v4656 = vstv %s4655
        %v4657 = vmul.f32 %v4656, %v4559
        %v4658 = vmul.f32 %v4656, %v4560
        %4661 = vrot.lane.b32.xlu0 %v4657, 126
        %v4662 = vpop.permute.xlu0 %4661
        %4663 = vrot.lane.b32.xlu0 %v4658, 126
        %v4664 = vpop.permute.xlu0 %4663
        %v4667 = vadd.f32 %v4611, %v4662
        %v4668 = vadd.f32 %v4612, %v4664
        %s4669 = sld [smem:[#allocation4 + $0x17c]]
        %v4670 = vstv %s4669
        %v4671 = vmul.f32 %v4670, %v4559
        %v4672 = vmul.f32 %v4670, %v4560
        %4675 = vrot.lane.b32.xlu0 %v4671, 126
        %v4676 = vpop.permute.xlu0 %4675
        %4677 = vrot.lane.b32.xlu0 %v4672, 126
        %v4678 = vpop.permute.xlu0 %4677
        %v4681 = vadd.f32 %v4625, %v4676
        %v4682 = vadd.f32 %v4626, %v4678
        %s4683 = sld [smem:[#allocation4 + $0x1a0]]
        %v4684 = vstv %s4683
        %v4685 = vmul.f32 %v4684, %v4559
        %v4686 = vmul.f32 %v4684, %v4560
        %4689 = vrot.lane.b32.xlu0 %v4685, 126
        %v4690 = vpop.permute.xlu0 %4689
        %4691 = vrot.lane.b32.xlu0 %v4686, 126
        %v4692 = vpop.permute.xlu0 %4691
        %v4695 = vadd.f32 %v4639, %v4690
        %v4696 = vadd.f32 %v4640, %v4692
        %v4697 = vld [vmem:[%s218 + $0x1] sm:$0xff]
        %v4698 = vld [vmem:[%s218 + $0x9] sm:$0xff]
        %s4699 = sld [smem:[#allocation4 + $0x135]]
        %v4700 = vstv %s4699
        %v4701 = vmul.f32 %v4700, %v4697
        %v4702 = vmul.f32 %v4700, %v4698
        %v4703 = vadd.f32 %v4653, %v4701
        %v4704 = vadd.f32 %v4654, %v4702
        %s4705 = sld [smem:[#allocation4 + $0x159]]
        %v4706 = vstv %s4705
        %v4707 = vmul.f32 %v4706, %v4697
        %v4708 = vmul.f32 %v4706, %v4698
        %v4709 = vadd.f32 %v4667, %v4707
        %v4710 = vadd.f32 %v4668, %v4708
        %s4711 = sld [smem:[#allocation4 + $0x17d]]
        %v4712 = vstv %s4711
        %v4713 = vmul.f32 %v4712, %v4697
        %v4714 = vmul.f32 %v4712, %v4698
        %v4715 = vadd.f32 %v4681, %v4713
        %v4716 = vadd.f32 %v4682, %v4714
        %s4717 = sld [smem:[#allocation4 + $0x1a1]]
        %v4718 = vstv %s4717
        %v4719 = vmul.f32 %v4718, %v4697
        %v4720 = vmul.f32 %v4718, %v4698
        %v4721 = vadd.f32 %v4695, %v4719
        %v4722 = vadd.f32 %v4696, %v4720
        %s4723 = sld [smem:[#allocation4 + $0x136]]
        %v4724 = vstv %s4723
        %v4725 = vmul.f32 %v4724, %v4697
        %v4726 = vmul.f32 %v4724, %v4698
        %4729 = vrot.lane.b32.xlu0 %v4725, 127
        %v4730 = vpop.permute.xlu0 %4729
        %4731 = vrot.lane.b32.xlu0 %v4726, 127
        %v4732 = vpop.permute.xlu0 %4731
        %v4735 = vadd.f32 %v4703, %v4730
        %v4736 = vadd.f32 %v4704, %v4732
        %s4737 = sld [smem:[#allocation4 + $0x15a]]
        %v4738 = vstv %s4737
        %v4739 = vmul.f32 %v4738, %v4697
        %v4740 = vmul.f32 %v4738, %v4698
        %4743 = vrot.lane.b32.xlu0 %v4739, 127
        %v4744 = vpop.permute.xlu0 %4743
        %4745 = vrot.lane.b32.xlu0 %v4740, 127
        %v4746 = vpop.permute.xlu0 %4745
        %v4749 = vadd.f32 %v4709, %v4744
        %v4750 = vadd.f32 %v4710, %v4746
        %s4751 = sld [smem:[#allocation4 + $0x17e]]
        %v4752 = vstv %s4751
        %v4753 = vmul.f32 %v4752, %v4697
        %v4754 = vmul.f32 %v4752, %v4698
        %4757 = vrot.lane.b32.xlu0 %v4753, 127
        %v4758 = vpop.permute.xlu0 %4757
        %4759 = vrot.lane.b32.xlu0 %v4754, 127
        %v4760 = vpop.permute.xlu0 %4759
        %v4763 = vadd.f32 %v4715, %v4758
        %v4764 = vadd.f32 %v4716, %v4760
        %s4765 = sld [smem:[#allocation4 + $0x1a2]]
        %v4766 = vstv %s4765
        %v4767 = vmul.f32 %v4766, %v4697
        %v4768 = vmul.f32 %v4766, %v4698
        %4771 = vrot.lane.b32.xlu0 %v4767, 127
        %v4772 = vpop.permute.xlu0 %4771
        %4773 = vrot.lane.b32.xlu0 %v4768, 127
        %v4774 = vpop.permute.xlu0 %4773
        %v4777 = vadd.f32 %v4721, %v4772
        %v4778 = vadd.f32 %v4722, %v4774
        %s4779 = sld [smem:[#allocation4 + $0x137]]
        %v4780 = vstv %s4779
        %v4781 = vmul.f32 %v4780, %v4697
        %v4782 = vmul.f32 %v4780, %v4698
        %4785 = vrot.lane.b32.xlu0 %v4781, 126
        %v4786 = vpop.permute.xlu0 %4785
        %4787 = vrot.lane.b32.xlu0 %v4782, 126
        %v4788 = vpop.permute.xlu0 %4787
        %v4791 = vadd.f32 %v4735, %v4786
        %v4792 = vadd.f32 %v4736, %v4788
        %s4793 = sld [smem:[#allocation4 + $0x15b]]
        %v4794 = vstv %s4793
        %v4795 = vmul.f32 %v4794, %v4697
        %v4796 = vmul.f32 %v4794, %v4698
        %4799 = vrot.lane.b32.xlu0 %v4795, 126
        %v4800 = vpop.permute.xlu0 %4799
        %4801 = vrot.lane.b32.xlu0 %v4796, 126
        %v4802 = vpop.permute.xlu0 %4801
        %v4805 = vadd.f32 %v4749, %v4800
        %v4806 = vadd.f32 %v4750, %v4802
        %s4807 = sld [smem:[#allocation4 + $0x17f]]
        %v4808 = vstv %s4807
        %v4809 = vmul.f32 %v4808, %v4697
        %v4810 = vmul.f32 %v4808, %v4698
        %4813 = vrot.lane.b32.xlu0 %v4809, 126
        %v4814 = vpop.permute.xlu0 %4813
        %4815 = vrot.lane.b32.xlu0 %v4810, 126
        %v4816 = vpop.permute.xlu0 %4815
        %v4819 = vadd.f32 %v4763, %v4814
        %v4820 = vadd.f32 %v4764, %v4816
        %s4821 = sld [smem:[#allocation4 + $0x1a3]]
        %v4822 = vstv %s4821
        %v4823 = vmul.f32 %v4822, %v4697
        %v4824 = vmul.f32 %v4822, %v4698
        %4827 = vrot.lane.b32.xlu0 %v4823, 126
        %v4828 = vpop.permute.xlu0 %4827
        %4829 = vrot.lane.b32.xlu0 %v4824, 126
        %v4830 = vpop.permute.xlu0 %4829
        %v4833 = vadd.f32 %v4777, %v4828
        %v4834 = vadd.f32 %v4778, %v4830
        %v4835 = vld [vmem:[%s218 + $0x2] sm:$0xff]
        %v4836 = vld [vmem:[%s218 + $0xa] sm:$0xff]
        %s4837 = sld [smem:[#allocation4 + $0x138]]
        %v4838 = vstv %s4837
        %v4839 = vmul.f32 %v4838, %v4835
        %v4840 = vmul.f32 %v4838, %v4836
        %v4841 = vadd.f32 %v4791, %v4839
        %v4842 = vadd.f32 %v4792, %v4840
        %s4843 = sld [smem:[#allocation4 + $0x15c]]
        %v4844 = vstv %s4843
        %v4845 = vmul.f32 %v4844, %v4835
        %v4846 = vmul.f32 %v4844, %v4836
        %v4847 = vadd.f32 %v4805, %v4845
        %v4848 = vadd.f32 %v4806, %v4846
        %s4849 = sld [smem:[#allocation4 + $0x180]]
        %v4850 = vstv %s4849
        %v4851 = vmul.f32 %v4850, %v4835
        %v4852 = vmul.f32 %v4850, %v4836
        %v4853 = vadd.f32 %v4819, %v4851
        %v4854 = vadd.f32 %v4820, %v4852
        %s4855 = sld [smem:[#allocation4 + $0x1a4]]
        %v4856 = vstv %s4855
        %v4857 = vmul.f32 %v4856, %v4835
        %v4858 = vmul.f32 %v4856, %v4836
        %v4859 = vadd.f32 %v4833, %v4857
        %v4860 = vadd.f32 %v4834, %v4858
        %s4861 = sld [smem:[#allocation4 + $0x139]]
        %v4862 = vstv %s4861
        %v4863 = vmul.f32 %v4862, %v4835
        %v4864 = vmul.f32 %v4862, %v4836
        %4867 = vrot.lane.b32.xlu0 %v4863, 127
        %v4868 = vpop.permute.xlu0 %4867
        %4869 = vrot.lane.b32.xlu0 %v4864, 127
        %v4870 = vpop.permute.xlu0 %4869
        %v4873 = vadd.f32 %v4841, %v4868
        %v4874 = vadd.f32 %v4842, %v4870
        %s4875 = sld [smem:[#allocation4 + $0x15d]]
        %v4876 = vstv %s4875
        %v4877 = vmul.f32 %v4876, %v4835
        %v4878 = vmul.f32 %v4876, %v4836
        %4881 = vrot.lane.b32.xlu0 %v4877, 127
        %v4882 = vpop.permute.xlu0 %4881
        %4883 = vrot.lane.b32.xlu0 %v4878, 127
        %v4884 = vpop.permute.xlu0 %4883
        %v4887 = vadd.f32 %v4847, %v4882
        %v4888 = vadd.f32 %v4848, %v4884
        %s4889 = sld [smem:[#allocation4 + $0x181]]
        %v4890 = vstv %s4889
        %v4891 = vmul.f32 %v4890, %v4835
        %v4892 = vmul.f32 %v4890, %v4836
        %4895 = vrot.lane.b32.xlu0 %v4891, 127
        %v4896 = vpop.permute.xlu0 %4895
        %4897 = vrot.lane.b32.xlu0 %v4892, 127
        %v4898 = vpop.permute.xlu0 %4897
        %v4901 = vadd.f32 %v4853, %v4896
        %v4902 = vadd.f32 %v4854, %v4898
        %s4903 = sld [smem:[#allocation4 + $0x1a5]]
        %v4904 = vstv %s4903
        %v4905 = vmul.f32 %v4904, %v4835
        %v4906 = vmul.f32 %v4904, %v4836
        %4909 = vrot.lane.b32.xlu0 %v4905, 127
        %v4910 = vpop.permute.xlu0 %4909
        %4911 = vrot.lane.b32.xlu0 %v4906, 127
        %v4912 = vpop.permute.xlu0 %4911
        %v4915 = vadd.f32 %v4859, %v4910
        %v4916 = vadd.f32 %v4860, %v4912
        %s4917 = sld [smem:[#allocation4 + $0x13a]]
        %v4918 = vstv %s4917
        %v4919 = vmul.f32 %v4918, %v4835
        %v4920 = vmul.f32 %v4918, %v4836
        %4923 = vrot.lane.b32.xlu0 %v4919, 126
        %v4924 = vpop.permute.xlu0 %4923
        %4925 = vrot.lane.b32.xlu0 %v4920, 126
        %v4926 = vpop.permute.xlu0 %4925
        %v4929 = vadd.f32 %v4873, %v4924
        %v4930 = vadd.f32 %v4874, %v4926
        %s4931 = sld [smem:[#allocation4 + $0x15e]]
        %v4932 = vstv %s4931
        %v4933 = vmul.f32 %v4932, %v4835
        %v4934 = vmul.f32 %v4932, %v4836
        %4937 = vrot.lane.b32.xlu0 %v4933, 126
        %v4938 = vpop.permute.xlu0 %4937
        %4939 = vrot.lane.b32.xlu0 %v4934, 126
        %v4940 = vpop.permute.xlu0 %4939
        %v4943 = vadd.f32 %v4887, %v4938
        %v4944 = vadd.f32 %v4888, %v4940
        %s4945 = sld [smem:[#allocation4 + $0x182]]
        %v4946 = vstv %s4945
        %v4947 = vmul.f32 %v4946, %v4835
        %v4948 = vmul.f32 %v4946, %v4836
        %4951 = vrot.lane.b32.xlu0 %v4947, 126
        %v4952 = vpop.permute.xlu0 %4951
        %4953 = vrot.lane.b32.xlu0 %v4948, 126
        %v4954 = vpop.permute.xlu0 %4953
        %v4957 = vadd.f32 %v4901, %v4952
        %v4958 = vadd.f32 %v4902, %v4954
        %s4959 = sld [smem:[#allocation4 + $0x1a6]]
        %v4960 = vstv %s4959
        %v4961 = vmul.f32 %v4960, %v4835
        %v4962 = vmul.f32 %v4960, %v4836
        %4965 = vrot.lane.b32.xlu0 %v4961, 126
        %v4966 = vpop.permute.xlu0 %4965
        %4967 = vrot.lane.b32.xlu0 %v4962, 126
        %v4968 = vpop.permute.xlu0 %4967
        %v4971 = vadd.f32 %v4915, %v4966
        %v4972 = vadd.f32 %v4916, %v4968
        %v4973 = vld [vmem:[%s227] sm:$0xff]
        %v4974 = vld [vmem:[%s227 + $0x8] sm:$0xff]
        %s4975 = sld [smem:[#allocation4 + $0x13b]]
        %v4976 = vstv %s4975
        %v4977 = vmul.f32 %v4976, %v4973
        %v4978 = vmul.f32 %v4976, %v4974
        %v4979 = vadd.f32 %v4929, %v4977
        %v4980 = vadd.f32 %v4930, %v4978
        %s4981 = sld [smem:[#allocation4 + $0x15f]]
        %v4982 = vstv %s4981
        %v4983 = vmul.f32 %v4982, %v4973
        %v4984 = vmul.f32 %v4982, %v4974
        %v4985 = vadd.f32 %v4943, %v4983
        %v4986 = vadd.f32 %v4944, %v4984
        %s4987 = sld [smem:[#allocation4 + $0x183]]
        %v4988 = vstv %s4987
        %v4989 = vmul.f32 %v4988, %v4973
        %v4990 = vmul.f32 %v4988, %v4974
        %v4991 = vadd.f32 %v4957, %v4989
        %v4992 = vadd.f32 %v4958, %v4990
        %s4993 = sld [smem:[#allocation4 + $0x1a7]]
        %v4994 = vstv %s4993
        %v4995 = vmul.f32 %v4994, %v4973
        %v4996 = vmul.f32 %v4994, %v4974
        %v4997 = vadd.f32 %v4971, %v4995
        %v4998 = vadd.f32 %v4972, %v4996
        %s4999 = sld [smem:[#allocation4 + $0x13c]]
        %v5000 = vstv %s4999
        %v5001 = vmul.f32 %v5000, %v4973
        %v5002 = vmul.f32 %v5000, %v4974
        %5005 = vrot.lane.b32.xlu0 %v5001, 127
        %v5006 = vpop.permute.xlu0 %5005
        %5007 = vrot.lane.b32.xlu0 %v5002, 127
        %v5008 = vpop.permute.xlu0 %5007
        %v5011 = vadd.f32 %v4979, %v5006
        %v5012 = vadd.f32 %v4980, %v5008
        %s5013 = sld [smem:[#allocation4 + $0x160]]
        %v5014 = vstv %s5013
        %v5015 = vmul.f32 %v5014, %v4973
        %v5016 = vmul.f32 %v5014, %v4974
        %5019 = vrot.lane.b32.xlu0 %v5015, 127
        %v5020 = vpop.permute.xlu0 %5019
        %5021 = vrot.lane.b32.xlu0 %v5016, 127
        %v5022 = vpop.permute.xlu0 %5021
        %v5025 = vadd.f32 %v4985, %v5020
        %v5026 = vadd.f32 %v4986, %v5022
        %s5027 = sld [smem:[#allocation4 + $0x184]]
        %v5028 = vstv %s5027
        %v5029 = vmul.f32 %v5028, %v4973
        %v5030 = vmul.f32 %v5028, %v4974
        %5033 = vrot.lane.b32.xlu0 %v5029, 127
        %v5034 = vpop.permute.xlu0 %5033
        %5035 = vrot.lane.b32.xlu0 %v5030, 127
        %v5036 = vpop.permute.xlu0 %5035
        %v5039 = vadd.f32 %v4991, %v5034
        %v5040 = vadd.f32 %v4992, %v5036
        %s5041 = sld [smem:[#allocation4 + $0x1a8]]
        %v5042 = vstv %s5041
        %v5043 = vmul.f32 %v5042, %v4973
        %v5044 = vmul.f32 %v5042, %v4974
        %5047 = vrot.lane.b32.xlu0 %v5043, 127
        %v5048 = vpop.permute.xlu0 %5047
        %5049 = vrot.lane.b32.xlu0 %v5044, 127
        %v5050 = vpop.permute.xlu0 %5049
        %v5053 = vadd.f32 %v4997, %v5048
        %v5054 = vadd.f32 %v4998, %v5050
        %s5055 = sld [smem:[#allocation4 + $0x13d]]
        %v5056 = vstv %s5055
        %v5057 = vmul.f32 %v5056, %v4973
        %v5058 = vmul.f32 %v5056, %v4974
        %5061 = vrot.lane.b32.xlu0 %v5057, 126
        %v5062 = vpop.permute.xlu0 %5061
        %5063 = vrot.lane.b32.xlu0 %v5058, 126
        %v5064 = vpop.permute.xlu0 %5063
        %v5067 = vadd.f32 %v5011, %v5062
        %v5068 = vadd.f32 %v5012, %v5064
        %s5069 = sld [smem:[#allocation4 + $0x161]]
        %v5070 = vstv %s5069
        %v5071 = vmul.f32 %v5070, %v4973
        %v5072 = vmul.f32 %v5070, %v4974
        %5075 = vrot.lane.b32.xlu0 %v5071, 126
        %v5076 = vpop.permute.xlu0 %5075
        %5077 = vrot.lane.b32.xlu0 %v5072, 126
        %v5078 = vpop.permute.xlu0 %5077
        %v5081 = vadd.f32 %v5025, %v5076
        %v5082 = vadd.f32 %v5026, %v5078
        %s5083 = sld [smem:[#allocation4 + $0x185]]
        %v5084 = vstv %s5083
        %v5085 = vmul.f32 %v5084, %v4973
        %v5086 = vmul.f32 %v5084, %v4974
        %5089 = vrot.lane.b32.xlu0 %v5085, 126
        %v5090 = vpop.permute.xlu0 %5089
        %5091 = vrot.lane.b32.xlu0 %v5086, 126
        %v5092 = vpop.permute.xlu0 %5091
        %v5095 = vadd.f32 %v5039, %v5090
        %v5096 = vadd.f32 %v5040, %v5092
        %s5097 = sld [smem:[#allocation4 + $0x1a9]]
        %v5098 = vstv %s5097
        %v5099 = vmul.f32 %v5098, %v4973
        %v5100 = vmul.f32 %v5098, %v4974
        %5103 = vrot.lane.b32.xlu0 %v5099, 126
        %v5104 = vpop.permute.xlu0 %5103
        %5105 = vrot.lane.b32.xlu0 %v5100, 126
        %v5106 = vpop.permute.xlu0 %5105
        %v5109 = vadd.f32 %v5053, %v5104
        %v5110 = vadd.f32 %v5054, %v5106
        %v5111 = vld [vmem:[%s227 + $0x1] sm:$0xff]
        %v5112 = vld [vmem:[%s227 + $0x9] sm:$0xff]
        %s5113 = sld [smem:[#allocation4 + $0x13e]]
        %v5114 = vstv %s5113
        %v5115 = vmul.f32 %v5114, %v5111
        %v5116 = vmul.f32 %v5114, %v5112
        %v5117 = vadd.f32 %v5067, %v5115
        %v5118 = vadd.f32 %v5068, %v5116
        %s5119 = sld [smem:[#allocation4 + $0x162]]
        %v5120 = vstv %s5119
        %v5121 = vmul.f32 %v5120, %v5111
        %v5122 = vmul.f32 %v5120, %v5112
        %v5123 = vadd.f32 %v5081, %v5121
        %v5124 = vadd.f32 %v5082, %v5122
        %s5125 = sld [smem:[#allocation4 + $0x186]]
        %v5126 = vstv %s5125
        %v5127 = vmul.f32 %v5126, %v5111
        %v5128 = vmul.f32 %v5126, %v5112
        %v5129 = vadd.f32 %v5095, %v5127
        %v5130 = vadd.f32 %v5096, %v5128
        %s5131 = sld [smem:[#allocation4 + $0x1aa]]
        %v5132 = vstv %s5131
        %v5133 = vmul.f32 %v5132, %v5111
        %v5134 = vmul.f32 %v5132, %v5112
        %v5135 = vadd.f32 %v5109, %v5133
        %v5136 = vadd.f32 %v5110, %v5134
        %s5137 = sld [smem:[#allocation4 + $0x13f]]
        %v5138 = vstv %s5137
        %v5139 = vmul.f32 %v5138, %v5111
        %v5140 = vmul.f32 %v5138, %v5112
        %5143 = vrot.lane.b32.xlu0 %v5139, 127
        %v5144 = vpop.permute.xlu0 %5143
        %5145 = vrot.lane.b32.xlu0 %v5140, 127
        %v5146 = vpop.permute.xlu0 %5145
        %v5149 = vadd.f32 %v5117, %v5144
        %v5150 = vadd.f32 %v5118, %v5146
        %s5151 = sld [smem:[#allocation4 + $0x163]]
        %v5152 = vstv %s5151
        %v5153 = vmul.f32 %v5152, %v5111
        %v5154 = vmul.f32 %v5152, %v5112
        %5157 = vrot.lane.b32.xlu0 %v5153, 127
        %v5158 = vpop.permute.xlu0 %5157
        %5159 = vrot.lane.b32.xlu0 %v5154, 127
        %v5160 = vpop.permute.xlu0 %5159
        %v5163 = vadd.f32 %v5123, %v5158
        %v5164 = vadd.f32 %v5124, %v5160
        %s5165 = sld [smem:[#allocation4 + $0x187]]
        %v5166 = vstv %s5165
        %v5167 = vmul.f32 %v5166, %v5111
        %v5168 = vmul.f32 %v5166, %v5112
        %5171 = vrot.lane.b32.xlu0 %v5167, 127
        %v5172 = vpop.permute.xlu0 %5171
        %5173 = vrot.lane.b32.xlu0 %v5168, 127
        %v5174 = vpop.permute.xlu0 %5173
        %v5177 = vadd.f32 %v5129, %v5172
        %v5178 = vadd.f32 %v5130, %v5174
        %s5179 = sld [smem:[#allocation4 + $0x1ab]]
        %v5180 = vstv %s5179
        %v5181 = vmul.f32 %v5180, %v5111
        %v5182 = vmul.f32 %v5180, %v5112
        %5185 = vrot.lane.b32.xlu0 %v5181, 127
        %v5186 = vpop.permute.xlu0 %5185
        %5187 = vrot.lane.b32.xlu0 %v5182, 127
        %v5188 = vpop.permute.xlu0 %5187
        %v5191 = vadd.f32 %v5135, %v5186
        %v5192 = vadd.f32 %v5136, %v5188
        %s5193 = sld [smem:[#allocation4 + $0x140]]
        %v5194 = vstv %s5193
        %v5195 = vmul.f32 %v5194, %v5111
        %v5196 = vmul.f32 %v5194, %v5112
        %5199 = vrot.lane.b32.xlu0 %v5195, 126
        %v5200 = vpop.permute.xlu0 %5199
        %5201 = vrot.lane.b32.xlu0 %v5196, 126
        %v5202 = vpop.permute.xlu0 %5201
        %v5205 = vadd.f32 %v5149, %v5200
        %v5206 = vadd.f32 %v5150, %v5202
        %s5207 = sld [smem:[#allocation4 + $0x164]]
        %v5208 = vstv %s5207
        %v5209 = vmul.f32 %v5208, %v5111
        %v5210 = vmul.f32 %v5208, %v5112
        %5213 = vrot.lane.b32.xlu0 %v5209, 126
        %v5214 = vpop.permute.xlu0 %5213
        %5215 = vrot.lane.b32.xlu0 %v5210, 126
        %v5216 = vpop.permute.xlu0 %5215
        %v5219 = vadd.f32 %v5163, %v5214
        %v5220 = vadd.f32 %v5164, %v5216
        %s5221 = sld [smem:[#allocation4 + $0x188]]
        %v5222 = vstv %s5221
        %v5223 = vmul.f32 %v5222, %v5111
        %v5224 = vmul.f32 %v5222, %v5112
        %5227 = vrot.lane.b32.xlu0 %v5223, 126
        %v5228 = vpop.permute.xlu0 %5227
        %5229 = vrot.lane.b32.xlu0 %v5224, 126
        %v5230 = vpop.permute.xlu0 %5229
        %v5233 = vadd.f32 %v5177, %v5228
        %v5234 = vadd.f32 %v5178, %v5230
        %s5235 = sld [smem:[#allocation4 + $0x1ac]]
        %v5236 = vstv %s5235
        %v5237 = vmul.f32 %v5236, %v5111
        %v5238 = vmul.f32 %v5236, %v5112
        %5241 = vrot.lane.b32.xlu0 %v5237, 126
        %v5242 = vpop.permute.xlu0 %5241
        %5243 = vrot.lane.b32.xlu0 %v5238, 126
        %v5244 = vpop.permute.xlu0 %5243
        %v5247 = vadd.f32 %v5191, %v5242
        %v5248 = vadd.f32 %v5192, %v5244
        %v5249 = vld [vmem:[%s227 + $0x2] sm:$0xff]
        %v5250 = vld [vmem:[%s227 + $0xa] sm:$0xff]
        %s5251 = sld [smem:[#allocation4 + $0x141]]
        %v5252 = vstv %s5251
        %v5253 = vmul.f32 %v5252, %v5249
        %v5254 = vmul.f32 %v5252, %v5250
        %v5255 = vadd.f32 %v5205, %v5253
        %v5256 = vadd.f32 %v5206, %v5254
        %s5257 = sld [smem:[#allocation4 + $0x165]]
        %v5258 = vstv %s5257
        %v5259 = vmul.f32 %v5258, %v5249
        %v5260 = vmul.f32 %v5258, %v5250
        %v5261 = vadd.f32 %v5219, %v5259
        %v5262 = vadd.f32 %v5220, %v5260
        %s5263 = sld [smem:[#allocation4 + $0x189]]
        %v5264 = vstv %s5263
        %v5265 = vmul.f32 %v5264, %v5249
        %v5266 = vmul.f32 %v5264, %v5250
        %v5267 = vadd.f32 %v5233, %v5265
        %v5268 = vadd.f32 %v5234, %v5266
        %s5269 = sld [smem:[#allocation4 + $0x1ad]]
        %v5270 = vstv %s5269
        %v5271 = vmul.f32 %v5270, %v5249
        %v5272 = vmul.f32 %v5270, %v5250
        %v5273 = vadd.f32 %v5247, %v5271
        %v5274 = vadd.f32 %v5248, %v5272
        %s5275 = sld [smem:[#allocation4 + $0x142]]
        %v5276 = vstv %s5275
        %v5277 = vmul.f32 %v5276, %v5249
        %v5278 = vmul.f32 %v5276, %v5250
        %5281 = vrot.lane.b32.xlu0 %v5277, 127
        %v5282 = vpop.permute.xlu0 %5281
        %5283 = vrot.lane.b32.xlu0 %v5278, 127
        %v5284 = vpop.permute.xlu0 %5283
        %v5287 = vadd.f32 %v5255, %v5282
        %v5288 = vadd.f32 %v5256, %v5284
        %s5289 = sld [smem:[#allocation4 + $0x166]]
        %v5290 = vstv %s5289
        %v5291 = vmul.f32 %v5290, %v5249
        %v5292 = vmul.f32 %v5290, %v5250
        %5295 = vrot.lane.b32.xlu0 %v5291, 127
        %v5296 = vpop.permute.xlu0 %5295
        %5297 = vrot.lane.b32.xlu0 %v5292, 127
        %v5298 = vpop.permute.xlu0 %5297
        %v5301 = vadd.f32 %v5261, %v5296
        %v5302 = vadd.f32 %v5262, %v5298
        %s5303 = sld [smem:[#allocation4 + $0x18a]]
        %v5304 = vstv %s5303
        %v5305 = vmul.f32 %v5304, %v5249
        %v5306 = vmul.f32 %v5304, %v5250
        %5309 = vrot.lane.b32.xlu0 %v5305, 127
        %v5310 = vpop.permute.xlu0 %5309
        %5311 = vrot.lane.b32.xlu0 %v5306, 127
        %v5312 = vpop.permute.xlu0 %5311
        %v5315 = vadd.f32 %v5267, %v5310
        %v5316 = vadd.f32 %v5268, %v5312
        %s5317 = sld [smem:[#allocation4 + $0x1ae]]
        %v5318 = vstv %s5317
        %v5319 = vmul.f32 %v5318, %v5249
        %v5320 = vmul.f32 %v5318, %v5250
        %5323 = vrot.lane.b32.xlu0 %v5319, 127
        %v5324 = vpop.permute.xlu0 %5323
        %5325 = vrot.lane.b32.xlu0 %v5320, 127
        %v5326 = vpop.permute.xlu0 %5325
        %v5329 = vadd.f32 %v5273, %v5324
        %v5330 = vadd.f32 %v5274, %v5326
        %s5331 = sld [smem:[#allocation4 + $0x143]]
        %v5332 = vstv %s5331
        %v5333 = vmul.f32 %v5332, %v5249
        %v5334 = vmul.f32 %v5332, %v5250
        %5337 = vrot.lane.b32.xlu0 %v5333, 126
        %v5338 = vpop.permute.xlu0 %5337
        %5339 = vrot.lane.b32.xlu0 %v5334, 126
        %v5340 = vpop.permute.xlu0 %5339
        %v5343 = vadd.f32 %v5287, %v5338
        %v5344 = vadd.f32 %v5288, %v5340
        %s5345 = sld [smem:[#allocation4 + $0x167]]
        %v5346 = vstv %s5345
        %v5347 = vmul.f32 %v5346, %v5249
        %v5348 = vmul.f32 %v5346, %v5250
        %5351 = vrot.lane.b32.xlu0 %v5347, 126
        %v5352 = vpop.permute.xlu0 %5351
        %5353 = vrot.lane.b32.xlu0 %v5348, 126
        %v5354 = vpop.permute.xlu0 %5353
        %v5357 = vadd.f32 %v5301, %v5352
        %v5358 = vadd.f32 %v5302, %v5354
        %s5359 = sld [smem:[#allocation4 + $0x18b]]
        %v5360 = vstv %s5359
        %v5361 = vmul.f32 %v5360, %v5249
        %v5362 = vmul.f32 %v5360, %v5250
        %5365 = vrot.lane.b32.xlu0 %v5361, 126
        %v5366 = vpop.permute.xlu0 %5365
        %5367 = vrot.lane.b32.xlu0 %v5362, 126
        %v5368 = vpop.permute.xlu0 %5367
        %v5371 = vadd.f32 %v5315, %v5366
        %v5372 = vadd.f32 %v5316, %v5368
        %s5373 = sld [smem:[#allocation4 + $0x1af]]
        %v5374 = vstv %s5373
        %v5375 = vmul.f32 %v5374, %v5249
        %v5376 = vmul.f32 %v5374, %v5250
        %5379 = vrot.lane.b32.xlu0 %v5375, 126
        %v5380 = vpop.permute.xlu0 %5379
        %5381 = vrot.lane.b32.xlu0 %v5376, 126
        %v5382 = vpop.permute.xlu0 %5381
        %v5385 = vadd.f32 %v5329, %v5380
        %v5386 = vadd.f32 %v5330, %v5382
        %s5387 = sld [smem:[#allocation7 + $0x8]]
        %v5388 = vstv %s5387
        %v5389 = vadd.f32 %v5343, %v5388
        %v5390 = vadd.f32 %v5344, %v5388
        %s5391 = sld [smem:[#allocation7 + $0x9]]
        %v5392 = vstv %s5391
        %v5393 = vadd.f32 %v5357, %v5392
        %v5394 = vadd.f32 %v5358, %v5392
        %s5395 = sld [smem:[#allocation7 + $0xa]]
        %v5396 = vstv %s5395
        %v5397 = vadd.f32 %v5371, %v5396
        %v5398 = vadd.f32 %v5372, %v5396
        %s5399 = sld [smem:[#allocation7 + $0xb]]
        %v5400 = vstv %s5399
        %v5401 = vadd.f32 %v5385, %v5400
        %v5402 = vadd.f32 %v5386, %v5400
        %v5403 = vld [vmem:[#allocation3 + $0x1] sm:$0xff]
        %v5404 = vld [vmem:[#allocation3 + $0x9] sm:$0xff]
        %5407 = vrot.lane.b32.xlu0 %v5403, 127
        %v5408 = vpop.permute.xlu0 %5407
        %5409 = vrot.lane.b32.xlu0 %v5404, 127
        %v5410 = vpop.permute.xlu0 %5409
        %v5413 = vadd.f32 %v5389, %v5408
        %v5414 = vadd.f32 %v5390, %v5410
        %vm5415 = vcmask 130048
        %5416 = vst.msk [vmem:[%s190] sm:$0xff] %vm5415, %v5413
        %5417 = vst.msk [vmem:[%s190 + $0x8] sm:$0xff] %vm5415, %v5414
        %v5418 = vld [vmem:[%s244 + $0x1] sm:$0xff]
        %v5419 = vld [vmem:[%s244 + $0x9] sm:$0xff]
        %5422 = vrot.lane.b32.xlu0 %v5418, 127
        %v5423 = vpop.permute.xlu0 %5422
        %5424 = vrot.lane.b32.xlu0 %v5419, 127
        %v5425 = vpop.permute.xlu0 %5424
        %v5428 = vadd.f32 %v5393, %v5423
        %v5429 = vadd.f32 %v5394, %v5425
        %s5430 = scalar_lea.vmem %s190, 16 [#allocation9]
        %5431 = vst.msk [vmem:[%s5430] sm:$0xff] %vm5415, %v5428
        %5432 = vst.msk [vmem:[%s5430 + $0x8] sm:$0xff] %vm5415, %v5429
        %v5433 = vld [vmem:[%s253 + $0x1] sm:$0xff]
        %v5434 = vld [vmem:[%s253 + $0x9] sm:$0xff]
        %5437 = vrot.lane.b32.xlu0 %v5433, 127
        %v5438 = vpop.permute.xlu0 %5437
        %5439 = vrot.lane.b32.xlu0 %v5434, 127
        %v5440 = vpop.permute.xlu0 %5439
        %v5443 = vadd.f32 %v5397, %v5438
        %v5444 = vadd.f32 %v5398, %v5440
        %s5445 = scalar_lea.vmem %s190, 32 [#allocation9]
        %5446 = vst.msk [vmem:[%s5445] sm:$0xff] %vm5415, %v5443
        %5447 = vst.msk [vmem:[%s5445 + $0x8] sm:$0xff] %vm5415, %v5444
        %v5448 = vld [vmem:[%s262 + $0x1] sm:$0xff]
        %v5449 = vld [vmem:[%s262 + $0x9] sm:$0xff]
        %5452 = vrot.lane.b32.xlu0 %v5448, 127
        %v5453 = vpop.permute.xlu0 %5452
        %5454 = vrot.lane.b32.xlu0 %v5449, 127
        %v5455 = vpop.permute.xlu0 %5454
        %v5458 = vadd.f32 %v5401, %v5453
        %v5459 = vadd.f32 %v5402, %v5455
        %s5460 = scalar_lea.vmem %s190, 48 [#allocation9]
        %5461 = vst.msk [vmem:[%s5460] sm:$0xff] %vm5415, %v5458
        %5462 = vst.msk [vmem:[%s5460 + $0x8] sm:$0xff] %vm5415, %v5459
        %s5463 = sand.u32 %s95, 1
        %s5464 = scalar_lea.sflag [#allocation5], %s5463
        %s5465 = sand.u32 %s95, 1
        %s5466 = smul.addr %s5465, 64
        %s5467 = scalar_lea.vmem [#allocation9], %s5466
        // Predicated region
        $region41: #{prepyramid_l1.1} parent=31 // pred_check
          %p5468 = pneg %p105
        $region42: #{prepyramid_l1.1} parent=31 // pred_check_branch
          %5470 = sbr.rel (%p5468) target = $region44
        $region43: #{prepyramid_l1.1} parent=31 // pred_region
          %s5472 = ssub.s32 1024, 1024
          %5473 = vsyncadd %s5464, %s5472
          %s5474 = smul.addr %s19, 8
          %s5475 = smul.addr %s5474, 128
          %s5476 = scalar_lea.hbm %s3, %s5475
          %s5477 = sshll.u32 %s5467, 4
          %s5478 = int_to_ptr.vmem [resolvable:$true] %s5477
          %5483 = dma.vmem_to_hbm [thread:$0]  %s5478, 1024, %s5476, %s5464, 128, 128, 8
        $region44: #{prepyramid_l1.1} parent=31 // pred_fallthru
          _
      $region32: #{prepyramid_l1.1} parent=5 // pred_fallthru
        _
      %p5484 = scmp.le.s32.totalorder 2, %s14
      // Predicated region
      $region45: #{prepyramid_l1.1} parent=5 // pred_check
        %p5485 = pneg %p5484
      $region46: #{prepyramid_l1.1} parent=5 // pred_check_branch
        %5487 = sbr.rel (%p5485) target = $region48
      $region47: #{prepyramid_l1.1} parent=5 // pred_region
        %s5488 = ssub.s32 %s14, 2
        // Predicated region
        $region49: #{prepyramid_l1.1} parent=47 // pred_check
          %p5489 = pneg %p111
        $region50: #{prepyramid_l1.1} parent=47 // pred_check_branch
          %5491 = sbr.rel (%p5489) target = $region52
        $region51: #{prepyramid_l1.1} parent=47 // pred_region
          %s5492 = sand.u32 %s96, 1
          %s5493 = scalar_lea.sflag [#allocation5], %s5492
          %s5494 = sand.u32 %s96, 1
          %s5495 = smul.addr %s5494, 64
          %s5496 = scalar_lea.vmem [#allocation9], %s5495
          %5497 = dma.done %s5493, 1024
        $region52: #{prepyramid_l1.1} parent=47 // pred_fallthru
          _
      $region48: #{prepyramid_l1.1} parent=5 // pred_fallthru
        _
    $region6: #{prepyramid_l1.1} parent=1 // loop_footer
      %s18 = sadd.s32 1, %s14
    $region7: #{prepyramid_l1.1} parent=1 // loop_footer_branch
      %13 = sbr.rel target = $region3
    $region8: #{prepyramid_l1.1} parent=1 // loop_exit
      _
    %5498 = vsyncpa [#allocation5], 1
    %s5499 = scalar_lea.sflag [#allocation5], 1
    %5500 = vsyncpa %s5499, 1
    %5501 = vsyncpa [#allocation6], 1
    %s5502 = scalar_lea.sflag [#allocation6], 1
    %5503 = vsyncpa %s5502, 1
    %5504 = vsyncpa [#allocation8], 1

</llo_original>
